<compile_context>
chip_gen: v7x
topology: tpu7x:2x2x1
jax: 0.10.0
libtpu: 0.0.40
codegen_flags: <defaults>
</compile_context>

<pallas_src>
import numpy as np
import jax
import jax.numpy as jnp
from jax.experimental import pallas as pl
from jax.experimental.pallas import tpu as pltpu


def ortho_idct_matrix(n):
    # Equals scipy.fft.idct(np.eye(n), norm='ortho'):
    # m[u, i] = s_u * cos(pi * u * (2i + 1) / (2n)), s_0 = sqrt(1/n), s_{u>0} = sqrt(2/n)
    u = np.arange(n, dtype=np.float64)[:, None]
    i = np.arange(n, dtype=np.float64)[None, :]
    m = np.cos(np.pi * u * (2.0 * i + 1.0) / (2.0 * n))
    scale = np.full((n, 1), np.sqrt(2.0 / n))
    scale[0, 0] = np.sqrt(1.0 / n)
    return jnp.asarray(m * scale, dtype=jnp.float32)


def build_channel_idct_constants(weight, bias, out_channels, window_size, in_channels,
                                 width_tile):
    """Fold 1x1-conv + 2D IDCT + column dilation (pixel shuffle along W) into constants.

    Depends only on the module parameters and the width tile -> cache outside the
    per-image call path.

    Returns:
      gmat : (OC*ws, Cin, Wt, Wt*ws) with gmat[oc*ws+i, c, w, w'*ws+j] = delta(w,w') * Wfold[oc,i,j,c]
      brow : (OC*ws, 1, Wt*ws)       with brow[oc*ws+i, 0, w*ws+j]    = bfold[oc,i,j]
    """
    OC, ws, Cin, Wt = out_channels, window_size, in_channels, width_tile
    m = ortho_idct_matrix(ws)                                   # m[u, i]; [[1.]] when ws == 1
    w4 = weight.astype(jnp.float32).reshape(OC, ws, ws, Cin)    # conv channel c = oc*ws*ws+u*ws+v
    b3 = bias.astype(jnp.float32).reshape(OC, ws, ws)
    wk = jnp.einsum('ouvc,ui,vj->oijc', w4, m, m)               # (OC, i, j, Cin)
    bk = jnp.einsum('ouv,ui,vj->oij', b3, m, m)                 # (OC, i, j)
    eye = jnp.eye(Wt, dtype=jnp.float32)
    gmat = jnp.einsum('oijc,wx->oicwxj', wk, eye).reshape(OC * ws, Cin, Wt, Wt * ws)
    brow = jnp.broadcast_to(bk[:, :, None, :], (OC, ws, Wt, ws)).reshape(OC * ws, 1, Wt * ws)
    return gmat, brow


def _make_kernel(out_channels, window_size, in_channels):
    OC, ws, Cin = out_channels, window_size, in_channels

    def kernel(x_ref, g_ref, b_ref, o_ref):
        # x_ref: (Cin, th, Wt)               input rows on sublanes, input cols on lanes
        # g_ref: (OC*ws, Cin, Wt, Wt*ws)     fused conv+IDCT+dilation weights (resident)
        # b_ref: (OC*ws, 1, Wt*ws)           fused per-lane bias (resident)
        # o_ref: (OC, th, ws, Wt*ws)         5-D pixel-shuffled output view (batch squeezed)
        for oc in range(OC):
            for i in range(ws):
                r = oc * ws + i
                acc = jnp.dot(x_ref[0], g_ref[r, 0], preferred_element_type=jnp.float32)
                for c in range(1, Cin):
                    acc = acc + jnp.dot(x_ref[c], g_ref[r, c],
                                        preferred_element_type=jnp.float32)
                acc = acc + b_ref[r]
                # (h, i) interleave handled by the BlockSpec view: row h*ws+i <- [:, h, i, :]
                o_ref[oc, :, i, :] = acc.astype(o_ref.dtype)

    return kernel


def _pick_tiles(B, H, W, Cin, OC, ws, out_itemsize,
                pixel_tile=4096, g_budget=4 << 20, vmem_budget=12 << 20):
    """Pick (row tile th | H, width tile Wt | W): big tiles, bounded VMEM, grid >= 4."""
    Cmid = OC * ws * ws

    def g_bytes(wt):
        return Cmid * Cin * wt * wt * 4

    # Width tile: prefer the full row (lane-dense output, contiguous DMA).  Only shrink if
    # the dilation constant would blow the budget, and then only to 128-aligned divisors.
    Wt = W
    if g_bytes(Wt) > g_budget:
        aligned = [d for d in range(W, 0, -1)
                   if W % d == 0 and d % 128 == 0 and g_bytes(d) <= g_budget]
        if aligned:
            Wt = aligned[0]
        # TODO(synk): very wide images with no 128-aligned divisor keep Wt = W (large constant).

    # Row tile: divisor of H, sublane-friendly (th % 8 == 0 or th == H), ~pixel_tile px/step,
    # within the VMEM budget.
    cands = [d for d in range(H, 0, -1) if H % d == 0 and (d % 8 == 0 or d == H)]

    def step_bytes(th):
        xb = Cin * th * Wt * 4
        ob = OC * th * max(ws, 8) * Wt * ws * out_itemsize
        return 2 * (xb + ob + g_bytes(Wt))

    th = cands[-1]
    for d in cands:
        if d * Wt <= pixel_tile and step_bytes(d) <= vmem_budget:
            th = d
            break

    # v7x megacore: >= 2 pipelined steps per TensorCore -> >= 4 total grid steps if possible.
    idx = cands.index(th)
    while B * (H // th) * (W // Wt) < 4 and idx + 1 < len(cands):
        idx += 1
        th = cands[idx]
    return th, Wt


def channel_idct_forward(x, weight, bias, out_channels, window_size, *,
                         out_dtype=None, pixel_tile=4096):
    """ChannelIDCT.forward (project=True, bias=True).

    x      : (B, Cin, H, W) float32 (NCHW, consumed as-is: no XLA transpose / pad)
    weight : (OC*ws*ws, Cin) float32   (Conv2d 1x1 weight, squeezed)
    bias   : (OC*ws*ws,) float32
    returns: (B, OC, H*ws, W*ws) in out_dtype (default float32; bf16 optional)
    """
    B, Cin, H, W = x.shape
    ws = int(window_size)
    OC = int(out_channels)
    Cmid = OC * ws * ws
    assert weight.shape == (Cmid, Cin)
    assert bias.shape == (Cmid,)
    out_dtype = jnp.float32 if out_dtype is None else out_dtype
    out_itemsize = jnp.dtype(out_dtype).itemsize

    th, Wt = _pick_tiles(B, H, W, Cin, OC, ws, out_itemsize, pixel_tile=pixel_tile)
    gmat, brow = build_channel_idct_constants(weight, bias, OC, ws, Cin, Wt)
    kernel = _make_kernel(OC, ws, Cin)

    grid = (B, H // th, W // Wt)

    # VMEM budget: double-buffered input/output blocks + resident constants (+ margin).
    xb = Cin * th * Wt * 4
    ob = OC * th * max(ws, 8) * Wt * ws * out_itemsize
    gb = Cmid * Cin * Wt * Wt * 4
    need = 2 * (xb + ob + gb) + (1 << 20)
    vmem_limit = int(min(max(2 * need, 16 << 20), 64 << 20))

    cost = pl.CostEstimate(
        flops=2 * B * H * W * Cin * Cmid * Wt,   # Wt-dilated matmuls; MXU has the slack
        transcendentals=0,
        bytes_accessed=(4 * B * Cin * H * W
                        + out_itemsize * B * Cmid * H * W
                        + 4 * Cmid * Cin * Wt * Wt),
    )

    out5 = pl.pallas_call(
        kernel,
        out_shape=jax.ShapeDtypeStruct((B, OC, H, ws, W * ws), out_dtype),
        grid_spec=pltpu.PrefetchScalarGridSpec(
            num_scalar_prefetch=0,
            grid=grid,
            in_specs=[
                # raw NCHW input block: (Cin, th, Wt); batch dim squeezed
                pl.BlockSpec((None, Cin, th, Wt), lambda b, h, w: (b, 0, h, w)),
                # fused weights / bias: constant block index -> fetched once, stays resident
                pl.BlockSpec((Cmid // ws, Cin, Wt, Wt * ws), lambda b, h, w: (0, 0, 0, 0)),
                pl.BlockSpec((Cmid // ws, 1, Wt * ws), lambda b, h, w: (0, 0, 0)),
            ],
            # pixel-shuffled 5-D output view; lane axis already carries the final w*ws+j order
            out_specs=pl.BlockSpec((None, OC, th, ws, Wt * ws),
                                   lambda b, h, w: (b, 0, h, 0, w)),
        ),
        compiler_params=pltpu.CompilerParams(
            dimension_semantics=("parallel", "parallel", "parallel"),
            vmem_limit_bytes=vmem_limit,
        ),
        cost_estimate=cost,
    )(x.astype(jnp.float32), gmat, brow)

    # Free, contiguous metadata reshape: (B, OC, H, ws, W*ws) -> (B, OC, H*ws, W*ws)
    return out5.reshape(B, OC, H * ws, W * ws)


def channel_idct_reference(x, weight, bias, out_channels, window_size):
    # Pure-JAX reference mirroring the PyTorch module exactly (conv -> IDCT2 -> pixel shuffle).
    B, Cin, H, W = x.shape
    ws = window_size
    OC = out_channels
    y = jnp.einsum('bchw,oc->bohw', x, weight) + bias[None, :, None, None]
    if ws > 1:
        m = ortho_idct_matrix(ws)
        y = jnp.transpose(y, (0, 2, 3, 1)).reshape(B, H, W, OC, ws, ws)
        y = jnp.einsum('...hw,hi,wj->...ij', y, m, m)
        y = jnp.transpose(y, (0, 3, 1, 4, 2, 5)).reshape(B, OC, H * ws, W * ws)
    return y


if __name__ == "__main__":
    B, Cin, H, W = 2, 4, 16, 16
    OC, ws = 4, 4
    Cmid = OC * ws * ws

    key = jax.random.PRNGKey(0)
    kx, kw, kb = jax.random.split(key, 3)
    x = jax.random.normal(kx, (B, Cin, H, W), dtype=jnp.float32)
    # deterministic synthetic params (Conv2d 1x1 weight squeezed to (Cmid, Cin))
    weight = 0.1 * jax.random.normal(kw, (Cmid, Cin), dtype=jnp.float32)
    bias = 0.1 * jax.random.normal(kb, (Cmid,), dtype=jnp.float32)

    out = jax.block_until_ready(channel_idct_forward(x, weight, bias, OC, ws))
    assert out.shape == (B, OC, H * ws, W * ws), out.shape

    ref = jax.block_until_ready(channel_idct_reference(x, weight, bias, OC, ws))
    np.testing.assert_allclose(np.asarray(out), np.asarray(ref), rtol=1e-4, atol=1e-4)

    print("KERNEL_OK")
</pallas_src>

<mosaic_0001>
module attributes {stable_mosaic.version = 11 : i64} {
  func.func @kernel(%arg0: i32, %arg1: i32, %arg2: i32, %arg3: memref<1x4x8x16xf32, #tpu.memory_space<vmem>>, %arg4: memref<16x4x16x64xf32, #tpu.memory_space<vmem>>, %arg5: memref<16x1x64xf32, #tpu.memory_space<vmem>>, %arg6: memref<1x4x8x4x64xf32, #tpu.memory_space<vmem>>) attributes {dimension_semantics = [#tpu.dimension_semantics<parallel>, #tpu.dimension_semantics<parallel>, #tpu.dimension_semantics<parallel>], iteration_bounds = array<i64: 2, 2, 1>, scalar_prefetch = 0 : i64, scratch_operands = 0 : i64, tpu.core_type = #tpu.core_type<tc>, window_params = [{transform_indices = @transform_0, window_bounds = array<i64: 1, 4, 8, 16>}, {pipeline_mode = #tpu.pipeline_mode<synchronous>, transform_indices = @transform_1, window_bounds = array<i64: 16, 4, 16, 64>}, {pipeline_mode = #tpu.pipeline_mode<synchronous>, transform_indices = @transform_2, window_bounds = array<i64: 16, 1, 64>}, {transform_indices = @transform_3, window_bounds = array<i64: 1, 4, 8, 4, 64>}]} {
    %c0 = arith.constant 0 : index
    %c0_0 = arith.constant 0 : index
    %c0_1 = arith.constant 0 : index
    %c0_2 = arith.constant 0 : index
    %0 = vector.load %arg3[%c0, %c0_0, %c0_1, %c0_2] : memref<1x4x8x16xf32, #tpu.memory_space<vmem>>, vector<1x1x8x16xf32>
    %1 = vector.shape_cast %0 : vector<1x1x8x16xf32> to vector<8x16xf32>
    %c0_3 = arith.constant 0 : index
    %c0_4 = arith.constant 0 : index
    %c0_5 = arith.constant 0 : index
    %c0_6 = arith.constant 0 : index
    %2 = vector.load %arg4[%c0_3, %c0_4, %c0_5, %c0_6] : memref<16x4x16x64xf32, #tpu.memory_space<vmem>>, vector<1x1x16x64xf32>
    %3 = vector.shape_cast %2 : vector<1x1x16x64xf32> to vector<16x64xf32>
    %cst = arith.constant dense<0.000000e+00> : vector<8x64xf32>
    %4 = tpu.matmul %1, %3, %cst {dimension_numbers = #tpu.dot_dimension_numbers<[1], [0], [0], [1], [0, 0, 1, 1], [], []>} : vector<8x16xf32>, vector<16x64xf32>, vector<8x64xf32> -> vector<8x64xf32>
    %c0_7 = arith.constant 0 : index
    %c1 = arith.constant 1 : index
    %c0_8 = arith.constant 0 : index
    %c0_9 = arith.constant 0 : index
    %5 = vector.load %arg3[%c0_7, %c1, %c0_8, %c0_9] : memref<1x4x8x16xf32, #tpu.memory_space<vmem>>, vector<1x1x8x16xf32>
    %6 = vector.shape_cast %5 : vector<1x1x8x16xf32> to vector<8x16xf32>
    %c0_10 = arith.constant 0 : index
    %c1_11 = arith.constant 1 : index
    %c0_12 = arith.constant 0 : index
    %c0_13 = arith.constant 0 : index
    %7 = vector.load %arg4[%c0_10, %c1_11, %c0_12, %c0_13] : memref<16x4x16x64xf32, #tpu.memory_space<vmem>>, vector<1x1x16x64xf32>
    %8 = vector.shape_cast %7 : vector<1x1x16x64xf32> to vector<16x64xf32>
    %cst_14 = arith.constant dense<0.000000e+00> : vector<8x64xf32>
    %9 = tpu.matmul %6, %8, %cst_14 {dimension_numbers = #tpu.dot_dimension_numbers<[1], [0], [0], [1], [0, 0, 1, 1], [], []>} : vector<8x16xf32>, vector<16x64xf32>, vector<8x64xf32> -> vector<8x64xf32>
    %10 = arith.addf %4, %9 : vector<8x64xf32>
    %c0_15 = arith.constant 0 : index
    %c2 = arith.constant 2 : index
    %c0_16 = arith.constant 0 : index
    %c0_17 = arith.constant 0 : index
    %11 = vector.load %arg3[%c0_15, %c2, %c0_16, %c0_17] : memref<1x4x8x16xf32, #tpu.memory_space<vmem>>, vector<1x1x8x16xf32>
    %12 = vector.shape_cast %11 : vector<1x1x8x16xf32> to vector<8x16xf32>
    %c0_18 = arith.constant 0 : index
    %c2_19 = arith.constant 2 : index
    %c0_20 = arith.constant 0 : index
    %c0_21 = arith.constant 0 : index
    %13 = vector.load %arg4[%c0_18, %c2_19, %c0_20, %c0_21] : memref<16x4x16x64xf32, #tpu.memory_space<vmem>>, vector<1x1x16x64xf32>
    %14 = vector.shape_cast %13 : vector<1x1x16x64xf32> to vector<16x64xf32>
    %cst_22 = arith.constant dense<0.000000e+00> : vector<8x64xf32>
    %15 = tpu.matmul %12, %14, %cst_22 {dimension_numbers = #tpu.dot_dimension_numbers<[1], [0], [0], [1], [0, 0, 1, 1], [], []>} : vector<8x16xf32>, vector<16x64xf32>, vector<8x64xf32> -> vector<8x64xf32>
    %16 = arith.addf %10, %15 : vector<8x64xf32>
    %c0_23 = arith.constant 0 : index
    %c3 = arith.constant 3 : index
    %c0_24 = arith.constant 0 : index
    %c0_25 = arith.constant 0 : index
    %17 = vector.load %arg3[%c0_23, %c3, %c0_24, %c0_25] : memref<1x4x8x16xf32, #tpu.memory_space<vmem>>, vector<1x1x8x16xf32>
    %18 = vector.shape_cast %17 : vector<1x1x8x16xf32> to vector<8x16xf32>
    %c0_26 = arith.constant 0 : index
    %c3_27 = arith.constant 3 : index
    %c0_28 = arith.constant 0 : index
    %c0_29 = arith.constant 0 : index
    %19 = vector.load %arg4[%c0_26, %c3_27, %c0_28, %c0_29] : memref<16x4x16x64xf32, #tpu.memory_space<vmem>>, vector<1x1x16x64xf32>
    %20 = vector.shape_cast %19 : vector<1x1x16x64xf32> to vector<16x64xf32>
    %cst_30 = arith.constant dense<0.000000e+00> : vector<8x64xf32>
    %21 = tpu.matmul %18, %20, %cst_30 {dimension_numbers = #tpu.dot_dimension_numbers<[1], [0], [0], [1], [0, 0, 1, 1], [], []>} : vector<8x16xf32>, vector<16x64xf32>, vector<8x64xf32> -> vector<8x64xf32>
    %22 = arith.addf %16, %21 : vector<8x64xf32>
    %c0_31 = arith.constant 0 : index
    %c0_32 = arith.constant 0 : index
    %c0_33 = arith.constant 0 : index
    %23 = vector.load %arg5[%c0_31, %c0_32, %c0_33] : memref<16x1x64xf32, #tpu.memory_space<vmem>>, vector<1x1x64xf32>
    %24 = vector.shape_cast %23 : vector<1x1x64xf32> to vector<1x64xf32>
    %25 = vector.broadcast %24 : vector<1x64xf32> to vector<8x64xf32>
    %26 = arith.addf %22, %25 : vector<8x64xf32>
    %c0_34 = arith.constant 0 : index
    %c0_35 = arith.constant 0 : index
    %c0_36 = arith.constant 0 : index
    %c0_37 = arith.constant 0 : index
    %c0_38 = arith.constant 0 : index
    %27 = vector.load %arg6[%c0_34, %c0_35, %c0_36, %c0_37, %c0_38] : memref<1x4x8x4x64xf32, #tpu.memory_space<vmem>>, vector<1x1x8x1x64xf32>
    %28 = vector.shape_cast %27 : vector<1x1x8x1x64xf32> to vector<8x64xf32>
    %29 = vector.shape_cast %26 : vector<8x64xf32> to vector<1x1x8x1x64xf32>
    tpu.vector_store %arg6[%c0_34, %c0_35, %c0_36, %c0_37, %c0_38], %29 {strides = array<i32>} : memref<1x4x8x4x64xf32, #tpu.memory_space<vmem>>, vector<1x1x8x1x64xf32>,
    %c0_39 = arith.constant 0 : index
    %c0_40 = arith.constant 0 : index
    %c0_41 = arith.constant 0 : index
    %c0_42 = arith.constant 0 : index
    %30 = vector.load %arg3[%c0_39, %c0_40, %c0_41, %c0_42] : memref<1x4x8x16xf32, #tpu.memory_space<vmem>>, vector<1x1x8x16xf32>
    %31 = vector.shape_cast %30 : vector<1x1x8x16xf32> to vector<8x16xf32>
    %c1_43 = arith.constant 1 : index
    %c0_44 = arith.constant 0 : index
    %c0_45 = arith.constant 0 : index
    %c0_46 = arith.constant 0 : index
    %32 = vector.load %arg4[%c1_43, %c0_44, %c0_45, %c0_46] : memref<16x4x16x64xf32, #tpu.memory_space<vmem>>, vector<1x1x16x64xf32>
    %33 = vector.shape_cast %32 : vector<1x1x16x64xf32> to vector<16x64xf32>
    %cst_47 = arith.constant dense<0.000000e+00> : vector<8x64xf32>
    %34 = tpu.matmul %31, %33, %cst_47 {dimension_numbers = #tpu.dot_dimension_numbers<[1], [0], [0], [1], [0, 0, 1, 1], [], []>} : vector<8x16xf32>, vector<16x64xf32>, vector<8x64xf32> -> vector<8x64xf32>
    %c0_48 = arith.constant 0 : index
    %c1_49 = arith.constant 1 : index
    %c0_50 = arith.constant 0 : index
    %c0_51 = arith.constant 0 : index
    %35 = vector.load %arg3[%c0_48, %c1_49, %c0_50, %c0_51] : memref<1x4x8x16xf32, #tpu.memory_space<vmem>>, vector<1x1x8x16xf32>
    %36 = vector.shape_cast %35 : vector<1x1x8x16xf32> to vector<8x16xf32>
    %c1_52 = arith.constant 1 : index
    %c1_53 = arith.constant 1 : index
    %c0_54 = arith.constant 0 : index
    %c0_55 = arith.constant 0 : index
    %37 = vector.load %arg4[%c1_52, %c1_53, %c0_54, %c0_55] : memref<16x4x16x64xf32, #tpu.memory_space<vmem>>, vector<1x1x16x64xf32>
    %38 = vector.shape_cast %37 : vector<1x1x16x64xf32> to vector<16x64xf32>
    %cst_56 = arith.constant dense<0.000000e+00> : vector<8x64xf32>
    %39 = tpu.matmul %36, %38, %cst_56 {dimension_numbers = #tpu.dot_dimension_numbers<[1], [0], [0], [1], [0, 0, 1, 1], [], []>} : vector<8x16xf32>, vector<16x64xf32>, vector<8x64xf32> -> vector<8x64xf32>
    %40 = arith.addf %34, %39 : vector<8x64xf32>
    %c0_57 = arith.constant 0 : index
    %c2_58 = arith.constant 2 : index
    %c0_59 = arith.constant 0 : index
    %c0_60 = arith.constant 0 : index
    %41 = vector.load %arg3[%c0_57, %c2_58, %c0_59, %c0_60] : memref<1x4x8x16xf32, #tpu.memory_space<vmem>>, vector<1x1x8x16xf32>
    %42 = vector.shape_cast %41 : vector<1x1x8x16xf32> to vector<8x16xf32>
    %c1_61 = arith.constant 1 : index
    %c2_62 = arith.constant 2 : index
    %c0_63 = arith.constant 0 : index
    %c0_64 = arith.constant 0 : index
    %43 = vector.load %arg4[%c1_61, %c2_62, %c0_63, %c0_64] : memref<16x4x16x64xf32, #tpu.memory_space<vmem>>, vector<1x1x16x64xf32>
    %44 = vector.shape_cast %43 : vector<1x1x16x64xf32> to vector<16x64xf32>
    %cst_65 = arith.constant dense<0.000000e+00> : vector<8x64xf32>
    %45 = tpu.matmul %42, %44, %cst_65 {dimension_numbers = #tpu.dot_dimension_numbers<[1], [0], [0], [1], [0, 0, 1, 1], [], []>} : vector<8x16xf32>, vector<16x64xf32>, vector<8x64xf32> -> vector<8x64xf32>
    %46 = arith.addf %40, %45 : vector<8x64xf32>
    %c0_66 = arith.constant 0 : index
    %c3_67 = arith.constant 3 : index
    %c0_68 = arith.constant 0 : index
    %c0_69 = arith.constant 0 : index
    %47 = vector.load %arg3[%c0_66, %c3_67, %c0_68, %c0_69] : memref<1x4x8x16xf32, #tpu.memory_space<vmem>>, vector<1x1x8x16xf32>
    %48 = vector.shape_cast %47 : vector<1x1x8x16xf32> to vector<8x16xf32>
    %c1_70 = arith.constant 1 : index
    %c3_71 = arith.constant 3 : index
    %c0_72 = arith.constant 0 : index
    %c0_73 = arith.constant 0 : index
    %49 = vector.load %arg4[%c1_70, %c3_71, %c0_72, %c0_73] : memref<16x4x16x64xf32, #tpu.memory_space<vmem>>, vector<1x1x16x64xf32>
    %50 = vector.shape_cast %49 : vector<1x1x16x64xf32> to vector<16x64xf32>
    %cst_74 = arith.constant dense<0.000000e+00> : vector<8x64xf32>
    %51 = tpu.matmul %48, %50, %cst_74 {dimension_numbers = #tpu.dot_dimension_numbers<[1], [0], [0], [1], [0, 0, 1, 1], [], []>} : vector<8x16xf32>, vector<16x64xf32>, vector<8x64xf32> -> vector<8x64xf32>
    %52 = arith.addf %46, %51 : vector<8x64xf32>
    %c1_75 = arith.constant 1 : index
    %c0_76 = arith.constant 0 : index
    %c0_77 = arith.constant 0 : index
    %53 = vector.load %arg5[%c1_75, %c0_76, %c0_77] : memref<16x1x64xf32, #tpu.memory_space<vmem>>, vector<1x1x64xf32>
    %54 = vector.shape_cast %53 : vector<1x1x64xf32> to vector<1x64xf32>
    %55 = vector.broadcast %54 : vector<1x64xf32> to vector<8x64xf32>
    %56 = arith.addf %52, %55 : vector<8x64xf32>
    %c0_78 = arith.constant 0 : index
    %c0_79 = arith.constant 0 : index
    %c0_80 = arith.constant 0 : index
    %c1_81 = arith.constant 1 : index
    %c0_82 = arith.constant 0 : index
    %57 = vector.load %arg6[%c0_78, %c0_79, %c0_80, %c1_81, %c0_82] : memref<1x4x8x4x64xf32, #tpu.memory_space<vmem>>, vector<1x1x8x1x64xf32>
    %58 = vector.shape_cast %57 : vector<1x1x8x1x64xf32> to vector<8x64xf32>
    %59 = vector.shape_cast %56 : vector<8x64xf32> to vector<1x1x8x1x64xf32>
    tpu.vector_store %arg6[%c0_78, %c0_79, %c0_80, %c1_81, %c0_82], %59 {strides = array<i32>} : memref<1x4x8x4x64xf32, #tpu.memory_space<vmem>>, vector<1x1x8x1x64xf32>,
    %c0_83 = arith.constant 0 : index
    %c0_84 = arith.constant 0 : index
    %c0_85 = arith.constant 0 : index
    %c0_86 = arith.constant 0 : index
    %60 = vector.load %arg3[%c0_83, %c0_84, %c0_85, %c0_86] : memref<1x4x8x16xf32, #tpu.memory_space<vmem>>, vector<1x1x8x16xf32>
    %61 = vector.shape_cast %60 : vector<1x1x8x16xf32> to vector<8x16xf32>
    %c2_87 = arith.constant 2 : index
    %c0_88 = arith.constant 0 : index
    %c0_89 = arith.constant 0 : index
    %c0_90 = arith.constant 0 : index
    %62 = vector.load %arg4[%c2_87, %c0_88, %c0_89, %c0_90] : memref<16x4x16x64xf32, #tpu.memory_space<vmem>>, vector<1x1x16x64xf32>
    %63 = vector.shape_cast %62 : vector<1x1x16x64xf32> to vector<16x64xf32>
    %cst_91 = arith.constant dense<0.000000e+00> : vector<8x64xf32>
    %64 = tpu.matmul %61, %63, %cst_91 {dimension_numbers = #tpu.dot_dimension_numbers<[1], [0], [0], [1], [0, 0, 1, 1], [], []>} : vector<8x16xf32>, vector<16x64xf32>, vector<8x64xf32> -> vector<8x64xf32>
    %c0_92 = arith.constant 0 : index
    %c1_93 = arith.constant 1 : index
    %c0_94 = arith.constant 0 : index
    %c0_95 = arith.constant 0 : index
    %65 = vector.load %arg3[%c0_92, %c1_93, %c0_94, %c0_95] : memref<1x4x8x16xf32, #tpu.memory_space<vmem>>, vector<1x1x8x16xf32>
    %66 = vector.shape_cast %65 : vector<1x1x8x16xf32> to vector<8x16xf32>
    %c2_96 = arith.constant 2 : index
    %c1_97 = arith.constant 1 : index
    %c0_98 = arith.constant 0 : index
    %c0_99 = arith.constant 0 : index
    %67 = vector.load %arg4[%c2_96, %c1_97, %c0_98, %c0_99] : memref<16x4x16x64xf32, #tpu.memory_space<vmem>>, vector<1x1x16x64xf32>
    %68 = vector.shape_cast %67 : vector<1x1x16x64xf32> to vector<16x64xf32>
    %cst_100 = arith.constant dense<0.000000e+00> : vector<8x64xf32>
    %69 = tpu.matmul %66, %68, %cst_100 {dimension_numbers = #tpu.dot_dimension_numbers<[1], [0], [0], [1], [0, 0, 1, 1], [], []>} : vector<8x16xf32>, vector<16x64xf32>, vector<8x64xf32> -> vector<8x64xf32>
    %70 = arith.addf %64, %69 : vector<8x64xf32>
    %c0_101 = arith.constant 0 : index
    %c2_102 = arith.constant 2 : index
    %c0_103 = arith.constant 0 : index
    %c0_104 = arith.constant 0 : index
    %71 = vector.load %arg3[%c0_101, %c2_102, %c0_103, %c0_104] : memref<1x4x8x16xf32, #tpu.memory_space<vmem>>, vector<1x1x8x16xf32>
    %72 = vector.shape_cast %71 : vector<1x1x8x16xf32> to vector<8x16xf32>
    %c2_105 = arith.constant 2 : index
    %c2_106 = arith.constant 2 : index
    %c0_107 = arith.constant 0 : index
    %c0_108 = arith.constant 0 : index
    %73 = vector.load %arg4[%c2_105, %c2_106, %c0_107, %c0_108] : memref<16x4x16x64xf32, #tpu.memory_space<vmem>>, vector<1x1x16x64xf32>
    %74 = vector.shape_cast %73 : vector<1x1x16x64xf32> to vector<16x64xf32>
    %cst_109 = arith.constant dense<0.000000e+00> : vector<8x64xf32>
    %75 = tpu.matmul %72, %74, %cst_109 {dimension_numbers = #tpu.dot_dimension_numbers<[1], [0], [0], [1], [0, 0, 1, 1], [], []>} : vector<8x16xf32>, vector<16x64xf32>, vector<8x64xf32> -> vector<8x64xf32>
    %76 = arith.addf %70, %75 : vector<8x64xf32>
    %c0_110 = arith.constant 0 : index
    %c3_111 = arith.constant 3 : index
    %c0_112 = arith.constant 0 : index
    %c0_113 = arith.constant 0 : index
    %77 = vector.load %arg3[%c0_110, %c3_111, %c0_112, %c0_113] : memref<1x4x8x16xf32, #tpu.memory_space<vmem>>, vector<1x1x8x16xf32>
    %78 = vector.shape_cast %77 : vector<1x1x8x16xf32> to vector<8x16xf32>
    %c2_114 = arith.constant 2 : index
    %c3_115 = arith.constant 3 : index
    %c0_116 = arith.constant 0 : index
    %c0_117 = arith.constant 0 : index
    %79 = vector.load %arg4[%c2_114, %c3_115, %c0_116, %c0_117] : memref<16x4x16x64xf32, #tpu.memory_space<vmem>>, vector<1x1x16x64xf32>
    %80 = vector.shape_cast %79 : vector<1x1x16x64xf32> to vector<16x64xf32>
    %cst_118 = arith.constant dense<0.000000e+00> : vector<8x64xf32>
    %81 = tpu.matmul %78, %80, %cst_118 {dimension_numbers = #tpu.dot_dimension_numbers<[1], [0], [0], [1], [0, 0, 1, 1], [], []>} : vector<8x16xf32>, vector<16x64xf32>, vector<8x64xf32> -> vector<8x64xf32>
    %82 = arith.addf %76, %81 : vector<8x64xf32>
    %c2_119 = arith.constant 2 : index
    %c0_120 = arith.constant 0 : index
    %c0_121 = arith.constant 0 : index
    %83 = vector.load %arg5[%c2_119, %c0_120, %c0_121] : memref<16x1x64xf32, #tpu.memory_space<vmem>>, vector<1x1x64xf32>
    %84 = vector.shape_cast %83 : vector<1x1x64xf32> to vector<1x64xf32>
    %85 = vector.broadcast %84 : vector<1x64xf32> to vector<8x64xf32>
    %86 = arith.addf %82, %85 : vector<8x64xf32>
    %c0_122 = arith.constant 0 : index
    %c0_123 = arith.constant 0 : index
    %c0_124 = arith.constant 0 : index
    %c2_125 = arith.constant 2 : index
    %c0_126 = arith.constant 0 : index
    %87 = vector.load %arg6[%c0_122, %c0_123, %c0_124, %c2_125, %c0_126] : memref<1x4x8x4x64xf32, #tpu.memory_space<vmem>>, vector<1x1x8x1x64xf32>
    %88 = vector.shape_cast %87 : vector<1x1x8x1x64xf32> to vector<8x64xf32>
    %89 = vector.shape_cast %86 : vector<8x64xf32> to vector<1x1x8x1x64xf32>
    tpu.vector_store %arg6[%c0_122, %c0_123, %c0_124, %c2_125, %c0_126], %89 {strides = array<i32>} : memref<1x4x8x4x64xf32, #tpu.memory_space<vmem>>, vector<1x1x8x1x64xf32>,
    %c0_127 = arith.constant 0 : index
    %c0_128 = arith.constant 0 : index
    %c0_129 = arith.constant 0 : index
    %c0_130 = arith.constant 0 : index
    %90 = vector.load %arg3[%c0_127, %c0_128, %c0_129, %c0_130] : memref<1x4x8x16xf32, #tpu.memory_space<vmem>>, vector<1x1x8x16xf32>
    %91 = vector.shape_cast %90 : vector<1x1x8x16xf32> to vector<8x16xf32>
    %c3_131 = arith.constant 3 : index
    %c0_132 = arith.constant 0 : index
    %c0_133 = arith.constant 0 : index
    %c0_134 = arith.constant 0 : index
    %92 = vector.load %arg4[%c3_131, %c0_132, %c0_133, %c0_134] : memref<16x4x16x64xf32, #tpu.memory_space<vmem>>, vector<1x1x16x64xf32>
    %93 = vector.shape_cast %92 : vector<1x1x16x64xf32> to vector<16x64xf32>
    %cst_135 = arith.constant dense<0.000000e+00> : vector<8x64xf32>
    %94 = tpu.matmul %91, %93, %cst_135 {dimension_numbers = #tpu.dot_dimension_numbers<[1], [0], [0], [1], [0, 0, 1, 1], [], []>} : vector<8x16xf32>, vector<16x64xf32>, vector<8x64xf32> -> vector<8x64xf32>
    %c0_136 = arith.constant 0 : index
    %c1_137 = arith.constant 1 : index
    %c0_138 = arith.constant 0 : index
    %c0_139 = arith.constant 0 : index
    %95 = vector.load %arg3[%c0_136, %c1_137, %c0_138, %c0_139] : memref<1x4x8x16xf32, #tpu.memory_space<vmem>>, vector<1x1x8x16xf32>
    %96 = vector.shape_cast %95 : vector<1x1x8x16xf32> to vector<8x16xf32>
    %c3_140 = arith.constant 3 : index
    %c1_141 = arith.constant 1 : index
    %c0_142 = arith.constant 0 : index
    %c0_143 = arith.constant 0 : index
    %97 = vector.load %arg4[%c3_140, %c1_141, %c0_142, %c0_143] : memref<16x4x16x64xf32, #tpu.memory_space<vmem>>, vector<1x1x16x64xf32>
    %98 = vector.shape_cast %97 : vector<1x1x16x64xf32> to vector<16x64xf32>
    %cst_144 = arith.constant dense<0.000000e+00> : vector<8x64xf32>
    %99 = tpu.matmul %96, %98, %cst_144 {dimension_numbers = #tpu.dot_dimension_numbers<[1], [0], [0], [1], [0, 0, 1, 1], [], []>} : vector<8x16xf32>, vector<16x64xf32>, vector<8x64xf32> -> vector<8x64xf32>
    %100 = arith.addf %94, %99 : vector<8x64xf32>
    %c0_145 = arith.constant 0 : index
    %c2_146 = arith.constant 2 : index
    %c0_147 = arith.constant 0 : index
    %c0_148 = arith.constant 0 : index
    %101 = vector.load %arg3[%c0_145, %c2_146, %c0_147, %c0_148] : memref<1x4x8x16xf32, #tpu.memory_space<vmem>>, vector<1x1x8x16xf32>
    %102 = vector.shape_cast %101 : vector<1x1x8x16xf32> to vector<8x16xf32>
    %c3_149 = arith.constant 3 : index
    %c2_150 = arith.constant 2 : index
    %c0_151 = arith.constant 0 : index
    %c0_152 = arith.constant 0 : index
    %103 = vector.load %arg4[%c3_149, %c2_150, %c0_151, %c0_152] : memref<16x4x16x64xf32, #tpu.memory_space<vmem>>, vector<1x1x16x64xf32>
    %104 = vector.shape_cast %103 : vector<1x1x16x64xf32> to vector<16x64xf32>
    %cst_153 = arith.constant dense<0.000000e+00> : vector<8x64xf32>
    %105 = tpu.matmul %102, %104, %cst_153 {dimension_numbers = #tpu.dot_dimension_numbers<[1], [0], [0], [1], [0, 0, 1, 1], [], []>} : vector<8x16xf32>, vector<16x64xf32>, vector<8x64xf32> -> vector<8x64xf32>
    %106 = arith.addf %100, %105 : vector<8x64xf32>
    %c0_154 = arith.constant 0 : index
    %c3_155 = arith.constant 3 : index
    %c0_156 = arith.constant 0 : index
    %c0_157 = arith.constant 0 : index
    %107 = vector.load %arg3[%c0_154, %c3_155, %c0_156, %c0_157] : memref<1x4x8x16xf32, #tpu.memory_space<vmem>>, vector<1x1x8x16xf32>
    %108 = vector.shape_cast %107 : vector<1x1x8x16xf32> to vector<8x16xf32>
    %c3_158 = arith.constant 3 : index
    %c3_159 = arith.constant 3 : index
    %c0_160 = arith.constant 0 : index
    %c0_161 = arith.constant 0 : index
    %109 = vector.load %arg4[%c3_158, %c3_159, %c0_160, %c0_161] : memref<16x4x16x64xf32, #tpu.memory_space<vmem>>, vector<1x1x16x64xf32>
    %110 = vector.shape_cast %109 : vector<1x1x16x64xf32> to vector<16x64xf32>
    %cst_162 = arith.constant dense<0.000000e+00> : vector<8x64xf32>
    %111 = tpu.matmul %108, %110, %cst_162 {dimension_numbers = #tpu.dot_dimension_numbers<[1], [0], [0], [1], [0, 0, 1, 1], [], []>} : vector<8x16xf32>, vector<16x64xf32>, vector<8x64xf32> -> vector<8x64xf32>
    %112 = arith.addf %106, %111 : vector<8x64xf32>
    %c3_163 = arith.constant 3 : index
    %c0_164 = arith.constant 0 : index
    %c0_165 = arith.constant 0 : index
    %113 = vector.load %arg5[%c3_163, %c0_164, %c0_165] : memref<16x1x64xf32, #tpu.memory_space<vmem>>, vector<1x1x64xf32>
    %114 = vector.shape_cast %113 : vector<1x1x64xf32> to vector<1x64xf32>
    %115 = vector.broadcast %114 : vector<1x64xf32> to vector<8x64xf32>
    %116 = arith.addf %112, %115 : vector<8x64xf32>
    %c0_166 = arith.constant 0 : index
    %c0_167 = arith.constant 0 : index
    %c0_168 = arith.constant 0 : index
    %c3_169 = arith.constant 3 : index
    %c0_170 = arith.constant 0 : index
    %117 = vector.load %arg6[%c0_166, %c0_167, %c0_168, %c3_169, %c0_170] : memref<1x4x8x4x64xf32, #tpu.memory_space<vmem>>, vector<1x1x8x1x64xf32>
    %118 = vector.shape_cast %117 : vector<1x1x8x1x64xf32> to vector<8x64xf32>
    %119 = vector.shape_cast %116 : vector<8x64xf32> to vector<1x1x8x1x64xf32>
    tpu.vector_store %arg6[%c0_166, %c0_167, %c0_168, %c3_169, %c0_170], %119 {strides = array<i32>} : memref<1x4x8x4x64xf32, #tpu.memory_space<vmem>>, vector<1x1x8x1x64xf32>,
    %c0_171 = arith.constant 0 : index
    %c0_172 = arith.constant 0 : index
    %c0_173 = arith.constant 0 : index
    %c0_174 = arith.constant 0 : index
    %120 = vector.load %arg3[%c0_171, %c0_172, %c0_173, %c0_174] : memref<1x4x8x16xf32, #tpu.memory_space<vmem>>, vector<1x1x8x16xf32>
    %121 = vector.shape_cast %120 : vector<1x1x8x16xf32> to vector<8x16xf32>
    %c4 = arith.constant 4 : index
    %c0_175 = arith.constant 0 : index
    %c0_176 = arith.constant 0 : index
    %c0_177 = arith.constant 0 : index
    %122 = vector.load %arg4[%c4, %c0_175, %c0_176, %c0_177] : memref<16x4x16x64xf32, #tpu.memory_space<vmem>>, vector<1x1x16x64xf32>
    %123 = vector.shape_cast %122 : vector<1x1x16x64xf32> to vector<16x64xf32>
    %cst_178 = arith.constant dense<0.000000e+00> : vector<8x64xf32>
    %124 = tpu.matmul %121, %123, %cst_178 {dimension_numbers = #tpu.dot_dimension_numbers<[1], [0], [0], [1], [0, 0, 1, 1], [], []>} : vector<8x16xf32>, vector<16x64xf32>, vector<8x64xf32> -> vector<8x64xf32>
    %c0_179 = arith.constant 0 : index
    %c1_180 = arith.constant 1 : index
    %c0_181 = arith.constant 0 : index
    %c0_182 = arith.constant 0 : index
    %125 = vector.load %arg3[%c0_179, %c1_180, %c0_181, %c0_182] : memref<1x4x8x16xf32, #tpu.memory_space<vmem>>, vector<1x1x8x16xf32>
    %126 = vector.shape_cast %125 : vector<1x1x8x16xf32> to vector<8x16xf32>
    %c4_183 = arith.constant 4 : index
    %c1_184 = arith.constant 1 : index
    %c0_185 = arith.constant 0 : index
    %c0_186 = arith.constant 0 : index
    %127 = vector.load %arg4[%c4_183, %c1_184, %c0_185, %c0_186] : memref<16x4x16x64xf32, #tpu.memory_space<vmem>>, vector<1x1x16x64xf32>
    %128 = vector.shape_cast %127 : vector<1x1x16x64xf32> to vector<16x64xf32>
    %cst_187 = arith.constant dense<0.000000e+00> : vector<8x64xf32>
    %129 = tpu.matmul %126, %128, %cst_187 {dimension_numbers = #tpu.dot_dimension_numbers<[1], [0], [0], [1], [0, 0, 1, 1], [], []>} : vector<8x16xf32>, vector<16x64xf32>, vector<8x64xf32> -> vector<8x64xf32>
    %130 = arith.addf %124, %129 : vector<8x64xf32>
    %c0_188 = arith.constant 0 : index
    %c2_189 = arith.constant 2 : index
    %c0_190 = arith.constant 0 : index
    %c0_191 = arith.constant 0 : index
    %131 = vector.load %arg3[%c0_188, %c2_189, %c0_190, %c0_191] : memref<1x4x8x16xf32, #tpu.memory_space<vmem>>, vector<1x1x8x16xf32>
    %132 = vector.shape_cast %131 : vector<1x1x8x16xf32> to vector<8x16xf32>
    %c4_192 = arith.constant 4 : index
    %c2_193 = arith.constant 2 : index
    %c0_194 = arith.constant 0 : index
    %c0_195 = arith.constant 0 : index
    %133 = vector.load %arg4[%c4_192, %c2_193, %c0_194, %c0_195] : memref<16x4x16x64xf32, #tpu.memory_space<vmem>>, vector<1x1x16x64xf32>
    %134 = vector.shape_cast %133 : vector<1x1x16x64xf32> to vector<16x64xf32>
    %cst_196 = arith.constant dense<0.000000e+00> : vector<8x64xf32>
    %135 = tpu.matmul %132, %134, %cst_196 {dimension_numbers = #tpu.dot_dimension_numbers<[1], [0], [0], [1], [0, 0, 1, 1], [], []>} : vector<8x16xf32>, vector<16x64xf32>, vector<8x64xf32> -> vector<8x64xf32>
    %136 = arith.addf %130, %135 : vector<8x64xf32>
    %c0_197 = arith.constant 0 : index
    %c3_198 = arith.constant 3 : index
    %c0_199 = arith.constant 0 : index
    %c0_200 = arith.constant 0 : index
    %137 = vector.load %arg3[%c0_197, %c3_198, %c0_199, %c0_200] : memref<1x4x8x16xf32, #tpu.memory_space<vmem>>, vector<1x1x8x16xf32>
    %138 = vector.shape_cast %137 : vector<1x1x8x16xf32> to vector<8x16xf32>
    %c4_201 = arith.constant 4 : index
    %c3_202 = arith.constant 3 : index
    %c0_203 = arith.constant 0 : index
    %c0_204 = arith.constant 0 : index
    %139 = vector.load %arg4[%c4_201, %c3_202, %c0_203, %c0_204] : memref<16x4x16x64xf32, #tpu.memory_space<vmem>>, vector<1x1x16x64xf32>
    %140 = vector.shape_cast %139 : vector<1x1x16x64xf32> to vector<16x64xf32>
    %cst_205 = arith.constant dense<0.000000e+00> : vector<8x64xf32>
    %141 = tpu.matmul %138, %140, %cst_205 {dimension_numbers = #tpu.dot_dimension_numbers<[1], [0], [0], [1], [0, 0, 1, 1], [], []>} : vector<8x16xf32>, vector<16x64xf32>, vector<8x64xf32> -> vector<8x64xf32>
    %142 = arith.addf %136, %141 : vector<8x64xf32>
    %c4_206 = arith.constant 4 : index
    %c0_207 = arith.constant 0 : index
    %c0_208 = arith.constant 0 : index
    %143 = vector.load %arg5[%c4_206, %c0_207, %c0_208] : memref<16x1x64xf32, #tpu.memory_space<vmem>>, vector<1x1x64xf32>
    %144 = vector.shape_cast %143 : vector<1x1x64xf32> to vector<1x64xf32>
    %145 = vector.broadcast %144 : vector<1x64xf32> to vector<8x64xf32>
    %146 = arith.addf %142, %145 : vector<8x64xf32>
    %c0_209 = arith.constant 0 : index
    %c1_210 = arith.constant 1 : index
    %c0_211 = arith.constant 0 : index
    %c0_212 = arith.constant 0 : index
    %c0_213 = arith.constant 0 : index
    %147 = vector.load %arg6[%c0_209, %c1_210, %c0_211, %c0_212, %c0_213] : memref<1x4x8x4x64xf32, #tpu.memory_space<vmem>>, vector<1x1x8x1x64xf32>
    %148 = vector.shape_cast %147 : vector<1x1x8x1x64xf32> to vector<8x64xf32>
    %149 = vector.shape_cast %146 : vector<8x64xf32> to vector<1x1x8x1x64xf32>
    tpu.vector_store %arg6[%c0_209, %c1_210, %c0_211, %c0_212, %c0_213], %149 {strides = array<i32>} : memref<1x4x8x4x64xf32, #tpu.memory_space<vmem>>, vector<1x1x8x1x64xf32>,
    %c0_214 = arith.constant 0 : index
    %c0_215 = arith.constant 0 : index
    %c0_216 = arith.constant 0 : index
    %c0_217 = arith.constant 0 : index
    %150 = vector.load %arg3[%c0_214, %c0_215, %c0_216, %c0_217] : memref<1x4x8x16xf32, #tpu.memory_space<vmem>>, vector<1x1x8x16xf32>
    %151 = vector.shape_cast %150 : vector<1x1x8x16xf32> to vector<8x16xf32>
    %c5 = arith.constant 5 : index
    %c0_218 = arith.constant 0 : index
    %c0_219 = arith.constant 0 : index
    %c0_220 = arith.constant 0 : index
    %152 = vector.load %arg4[%c5, %c0_218, %c0_219, %c0_220] : memref<16x4x16x64xf32, #tpu.memory_space<vmem>>, vector<1x1x16x64xf32>
    %153 = vector.shape_cast %152 : vector<1x1x16x64xf32> to vector<16x64xf32>
    %cst_221 = arith.constant dense<0.000000e+00> : vector<8x64xf32>
    %154 = tpu.matmul %151, %153, %cst_221 {dimension_numbers = #tpu.dot_dimension_numbers<[1], [0], [0], [1], [0, 0, 1, 1], [], []>} : vector<8x16xf32>, vector<16x64xf32>, vector<8x64xf32> -> vector<8x64xf32>
    %c0_222 = arith.constant 0 : index
    %c1_223 = arith.constant 1 : index
    %c0_224 = arith.constant 0 : index
    %c0_225 = arith.constant 0 : index
    %155 = vector.load %arg3[%c0_222, %c1_223, %c0_224, %c0_225] : memref<1x4x8x16xf32, #tpu.memory_space<vmem>>, vector<1x1x8x16xf32>
    %156 = vector.shape_cast %155 : vector<1x1x8x16xf32> to vector<8x16xf32>
    %c5_226 = arith.constant 5 : index
    %c1_227 = arith.constant 1 : index
    %c0_228 = arith.constant 0 : index
    %c0_229 = arith.constant 0 : index
    %157 = vector.load %arg4[%c5_226, %c1_227, %c0_228, %c0_229] : memref<16x4x16x64xf32, #tpu.memory_space<vmem>>, vector<1x1x16x64xf32>
    %158 = vector.shape_cast %157 : vector<1x1x16x64xf32> to vector<16x64xf32>
    %cst_230 = arith.constant dense<0.000000e+00> : vector<8x64xf32>
    %159 = tpu.matmul %156, %158, %cst_230 {dimension_numbers = #tpu.dot_dimension_numbers<[1], [0], [0], [1], [0, 0, 1, 1], [], []>} : vector<8x16xf32>, vector<16x64xf32>, vector<8x64xf32> -> vector<8x64xf32>
    %160 = arith.addf %154, %159 : vector<8x64xf32>
    %c0_231 = arith.constant 0 : index
    %c2_232 = arith.constant 2 : index
    %c0_233 = arith.constant 0 : index
    %c0_234 = arith.constant 0 : index
    %161 = vector.load %arg3[%c0_231, %c2_232, %c0_233, %c0_234] : memref<1x4x8x16xf32, #tpu.memory_space<vmem>>, vector<1x1x8x16xf32>
    %162 = vector.shape_cast %161 : vector<1x1x8x16xf32> to vector<8x16xf32>
    %c5_235 = arith.constant 5 : index
    %c2_236 = arith.constant 2 : index
    %c0_237 = arith.constant 0 : index
    %c0_238 = arith.constant 0 : index
    %163 = vector.load %arg4[%c5_235, %c2_236, %c0_237, %c0_238] : memref<16x4x16x64xf32, #tpu.memory_space<vmem>>, vector<1x1x16x64xf32>
    %164 = vector.shape_cast %163 : vector<1x1x16x64xf32> to vector<16x64xf32>
    %cst_239 = arith.constant dense<0.000000e+00> : vector<8x64xf32>
    %165 = tpu.matmul %162, %164, %cst_239 {dimension_numbers = #tpu.dot_dimension_numbers<[1], [0], [0], [1], [0, 0, 1, 1], [], []>} : vector<8x16xf32>, vector<16x64xf32>, vector<8x64xf32> -> vector<8x64xf32>
    %166 = arith.addf %160, %165 : vector<8x64xf32>
    %c0_240 = arith.constant 0 : index
    %c3_241 = arith.constant 3 : index
    %c0_242 = arith.constant 0 : index
    %c0_243 = arith.constant 0 : index
    %167 = vector.load %arg3[%c0_240, %c3_241, %c0_242, %c0_243] : memref<1x4x8x16xf32, #tpu.memory_space<vmem>>, vector<1x1x8x16xf32>
    %168 = vector.shape_cast %167 : vector<1x1x8x16xf32> to vector<8x16xf32>
    %c5_244 = arith.constant 5 : index
    %c3_245 = arith.constant 3 : index
    %c0_246 = arith.constant 0 : index
    %c0_247 = arith.constant 0 : index
    %169 = vector.load %arg4[%c5_244, %c3_245, %c0_246, %c0_247] : memref<16x4x16x64xf32, #tpu.memory_space<vmem>>, vector<1x1x16x64xf32>
    %170 = vector.shape_cast %169 : vector<1x1x16x64xf32> to vector<16x64xf32>
    %cst_248 = arith.constant dense<0.000000e+00> : vector<8x64xf32>
    %171 = tpu.matmul %168, %170, %cst_248 {dimension_numbers = #tpu.dot_dimension_numbers<[1], [0], [0], [1], [0, 0, 1, 1], [], []>} : vector<8x16xf32>, vector<16x64xf32>, vector<8x64xf32> -> vector<8x64xf32>
    %172 = arith.addf %166, %171 : vector<8x64xf32>
    %c5_249 = arith.constant 5 : index
    %c0_250 = arith.constant 0 : index
    %c0_251 = arith.constant 0 : index
    %173 = vector.load %arg5[%c5_249, %c0_250, %c0_251] : memref<16x1x64xf32, #tpu.memory_space<vmem>>, vector<1x1x64xf32>
    %174 = vector.shape_cast %173 : vector<1x1x64xf32> to vector<1x64xf32>
    %175 = vector.broadcast %174 : vector<1x64xf32> to vector<8x64xf32>
    %176 = arith.addf %172, %175 : vector<8x64xf32>
    %c0_252 = arith.constant 0 : index
    %c1_253 = arith.constant 1 : index
    %c0_254 = arith.constant 0 : index
    %c1_255 = arith.constant 1 : index
    %c0_256 = arith.constant 0 : index
    %177 = vector.load %arg6[%c0_252, %c1_253, %c0_254, %c1_255, %c0_256] : memref<1x4x8x4x64xf32, #tpu.memory_space<vmem>>, vector<1x1x8x1x64xf32>
    %178 = vector.shape_cast %177 : vector<1x1x8x1x64xf32> to vector<8x64xf32>
    %179 = vector.shape_cast %176 : vector<8x64xf32> to vector<1x1x8x1x64xf32>
    tpu.vector_store %arg6[%c0_252, %c1_253, %c0_254, %c1_255, %c0_256], %179 {strides = array<i32>} : memref<1x4x8x4x64xf32, #tpu.memory_space<vmem>>, vector<1x1x8x1x64xf32>,
    %c0_257 = arith.constant 0 : index
    %c0_258 = arith.constant 0 : index
    %c0_259 = arith.constant 0 : index
    %c0_260 = arith.constant 0 : index
    %180 = vector.load %arg3[%c0_257, %c0_258, %c0_259, %c0_260] : memref<1x4x8x16xf32, #tpu.memory_space<vmem>>, vector<1x1x8x16xf32>
    %181 = vector.shape_cast %180 : vector<1x1x8x16xf32> to vector<8x16xf32>
    %c6 = arith.constant 6 : index
    %c0_261 = arith.constant 0 : index
    %c0_262 = arith.constant 0 : index
    %c0_263 = arith.constant 0 : index
    %182 = vector.load %arg4[%c6, %c0_261, %c0_262, %c0_263] : memref<16x4x16x64xf32, #tpu.memory_space<vmem>>, vector<1x1x16x64xf32>
    %183 = vector.shape_cast %182 : vector<1x1x16x64xf32> to vector<16x64xf32>
    %cst_264 = arith.constant dense<0.000000e+00> : vector<8x64xf32>
    %184 = tpu.matmul %181, %183, %cst_264 {dimension_numbers = #tpu.dot_dimension_numbers<[1], [0], [0], [1], [0, 0, 1, 1], [], []>} : vector<8x16xf32>, vector<16x64xf32>, vector<8x64xf32> -> vector<8x64xf32>
    %c0_265 = arith.constant 0 : index
    %c1_266 = arith.constant 1 : index
    %c0_267 = arith.constant 0 : index
    %c0_268 = arith.constant 0 : index
    %185 = vector.load %arg3[%c0_265, %c1_266, %c0_267, %c0_268] : memref<1x4x8x16xf32, #tpu.memory_space<vmem>>, vector<1x1x8x16xf32>
    %186 = vector.shape_cast %185 : vector<1x1x8x16xf32> to vector<8x16xf32>
    %c6_269 = arith.constant 6 : index
    %c1_270 = arith.constant 1 : index
    %c0_271 = arith.constant 0 : index
    %c0_272 = arith.constant 0 : index
    %187 = vector.load %arg4[%c6_269, %c1_270, %c0_271, %c0_272] : memref<16x4x16x64xf32, #tpu.memory_space<vmem>>, vector<1x1x16x64xf32>
    %188 = vector.shape_cast %187 : vector<1x1x16x64xf32> to vector<16x64xf32>
    %cst_273 = arith.constant dense<0.000000e+00> : vector<8x64xf32>
    %189 = tpu.matmul %186, %188, %cst_273 {dimension_numbers = #tpu.dot_dimension_numbers<[1], [0], [0], [1], [0, 0, 1, 1], [], []>} : vector<8x16xf32>, vector<16x64xf32>, vector<8x64xf32> -> vector<8x64xf32>
    %190 = arith.addf %184, %189 : vector<8x64xf32>
    %c0_274 = arith.constant 0 : index
    %c2_275 = arith.constant 2 : index
    %c0_276 = arith.constant 0 : index
    %c0_277 = arith.constant 0 : index
    %191 = vector.load %arg3[%c0_274, %c2_275, %c0_276, %c0_277] : memref<1x4x8x16xf32, #tpu.memory_space<vmem>>, vector<1x1x8x16xf32>
    %192 = vector.shape_cast %191 : vector<1x1x8x16xf32> to vector<8x16xf32>
    %c6_278 = arith.constant 6 : index
    %c2_279 = arith.constant 2 : index
    %c0_280 = arith.constant 0 : index
    %c0_281 = arith.constant 0 : index
    %193 = vector.load %arg4[%c6_278, %c2_279, %c0_280, %c0_281] : memref<16x4x16x64xf32, #tpu.memory_space<vmem>>, vector<1x1x16x64xf32>
    %194 = vector.shape_cast %193 : vector<1x1x16x64xf32> to vector<16x64xf32>
    %cst_282 = arith.constant dense<0.000000e+00> : vector<8x64xf32>
    %195 = tpu.matmul %192, %194, %cst_282 {dimension_numbers = #tpu.dot_dimension_numbers<[1], [0], [0], [1], [0, 0, 1, 1], [], []>} : vector<8x16xf32>, vector<16x64xf32>, vector<8x64xf32> -> vector<8x64xf32>
    %196 = arith.addf %190, %195 : vector<8x64xf32>
    %c0_283 = arith.constant 0 : index
    %c3_284 = arith.constant 3 : index
    %c0_285 = arith.constant 0 : index
    %c0_286 = arith.constant 0 : index
    %197 = vector.load %arg3[%c0_283, %c3_284, %c0_285, %c0_286] : memref<1x4x8x16xf32, #tpu.memory_space<vmem>>, vector<1x1x8x16xf32>
    %198 = vector.shape_cast %197 : vector<1x1x8x16xf32> to vector<8x16xf32>
    %c6_287 = arith.constant 6 : index
    %c3_288 = arith.constant 3 : index
    %c0_289 = arith.constant 0 : index
    %c0_290 = arith.constant 0 : index
    %199 = vector.load %arg4[%c6_287, %c3_288, %c0_289, %c0_290] : memref<16x4x16x64xf32, #tpu.memory_space<vmem>>, vector<1x1x16x64xf32>
    %200 = vector.shape_cast %199 : vector<1x1x16x64xf32> to vector<16x64xf32>
    %cst_291 = arith.constant dense<0.000000e+00> : vector<8x64xf32>
    %201 = tpu.matmul %198, %200, %cst_291 {dimension_numbers = #tpu.dot_dimension_numbers<[1], [0], [0], [1], [0, 0, 1, 1], [], []>} : vector<8x16xf32>, vector<16x64xf32>, vector<8x64xf32> -> vector<8x64xf32>
    %202 = arith.addf %196, %201 : vector<8x64xf32>
    %c6_292 = arith.constant 6 : index
    %c0_293 = arith.constant 0 : index
    %c0_294 = arith.constant 0 : index
    %203 = vector.load %arg5[%c6_292, %c0_293, %c0_294] : memref<16x1x64xf32, #tpu.memory_space<vmem>>, vector<1x1x64xf32>
    %204 = vector.shape_cast %203 : vector<1x1x64xf32> to vector<1x64xf32>
    %205 = vector.broadcast %204 : vector<1x64xf32> to vector<8x64xf32>
    %206 = arith.addf %202, %205 : vector<8x64xf32>
    %c0_295 = arith.constant 0 : index
    %c1_296 = arith.constant 1 : index
    %c0_297 = arith.constant 0 : index
    %c2_298 = arith.constant 2 : index
    %c0_299 = arith.constant 0 : index
    %207 = vector.load %arg6[%c0_295, %c1_296, %c0_297, %c2_298, %c0_299] : memref<1x4x8x4x64xf32, #tpu.memory_space<vmem>>, vector<1x1x8x1x64xf32>
    %208 = vector.shape_cast %207 : vector<1x1x8x1x64xf32> to vector<8x64xf32>
    %209 = vector.shape_cast %206 : vector<8x64xf32> to vector<1x1x8x1x64xf32>
    tpu.vector_store %arg6[%c0_295, %c1_296, %c0_297, %c2_298, %c0_299], %209 {strides = array<i32>} : memref<1x4x8x4x64xf32, #tpu.memory_space<vmem>>, vector<1x1x8x1x64xf32>,
    %c0_300 = arith.constant 0 : index
    %c0_301 = arith.constant 0 : index
    %c0_302 = arith.constant 0 : index
    %c0_303 = arith.constant 0 : index
    %210 = vector.load %arg3[%c0_300, %c0_301, %c0_302, %c0_303] : memref<1x4x8x16xf32, #tpu.memory_space<vmem>>, vector<1x1x8x16xf32>
    %211 = vector.shape_cast %210 : vector<1x1x8x16xf32> to vector<8x16xf32>
    %c7 = arith.constant 7 : index
    %c0_304 = arith.constant 0 : index
    %c0_305 = arith.constant 0 : index
    %c0_306 = arith.constant 0 : index
    %212 = vector.load %arg4[%c7, %c0_304, %c0_305, %c0_306] : memref<16x4x16x64xf32, #tpu.memory_space<vmem>>, vector<1x1x16x64xf32>
    %213 = vector.shape_cast %212 : vector<1x1x16x64xf32> to vector<16x64xf32>
    %cst_307 = arith.constant dense<0.000000e+00> : vector<8x64xf32>
    %214 = tpu.matmul %211, %213, %cst_307 {dimension_numbers = #tpu.dot_dimension_numbers<[1], [0], [0], [1], [0, 0, 1, 1], [], []>} : vector<8x16xf32>, vector<16x64xf32>, vector<8x64xf32> -> vector<8x64xf32>
    %c0_308 = arith.constant 0 : index
    %c1_309 = arith.constant 1 : index
    %c0_310 = arith.constant 0 : index
    %c0_311 = arith.constant 0 : index
    %215 = vector.load %arg3[%c0_308, %c1_309, %c0_310, %c0_311] : memref<1x4x8x16xf32, #tpu.memory_space<vmem>>, vector<1x1x8x16xf32>
    %216 = vector.shape_cast %215 : vector<1x1x8x16xf32> to vector<8x16xf32>
    %c7_312 = arith.constant 7 : index
    %c1_313 = arith.constant 1 : index
    %c0_314 = arith.constant 0 : index
    %c0_315 = arith.constant 0 : index
    %217 = vector.load %arg4[%c7_312, %c1_313, %c0_314, %c0_315] : memref<16x4x16x64xf32, #tpu.memory_space<vmem>>, vector<1x1x16x64xf32>
    %218 = vector.shape_cast %217 : vector<1x1x16x64xf32> to vector<16x64xf32>
    %cst_316 = arith.constant dense<0.000000e+00> : vector<8x64xf32>
    %219 = tpu.matmul %216, %218, %cst_316 {dimension_numbers = #tpu.dot_dimension_numbers<[1], [0], [0], [1], [0, 0, 1, 1], [], []>} : vector<8x16xf32>, vector<16x64xf32>, vector<8x64xf32> -> vector<8x64xf32>
    %220 = arith.addf %214, %219 : vector<8x64xf32>
    %c0_317 = arith.constant 0 : index
    %c2_318 = arith.constant 2 : index
    %c0_319 = arith.constant 0 : index
    %c0_320 = arith.constant 0 : index
    %221 = vector.load %arg3[%c0_317, %c2_318, %c0_319, %c0_320] : memref<1x4x8x16xf32, #tpu.memory_space<vmem>>, vector<1x1x8x16xf32>
    %222 = vector.shape_cast %221 : vector<1x1x8x16xf32> to vector<8x16xf32>
    %c7_321 = arith.constant 7 : index
    %c2_322 = arith.constant 2 : index
    %c0_323 = arith.constant 0 : index
    %c0_324 = arith.constant 0 : index
    %223 = vector.load %arg4[%c7_321, %c2_322, %c0_323, %c0_324] : memref<16x4x16x64xf32, #tpu.memory_space<vmem>>, vector<1x1x16x64xf32>
    %224 = vector.shape_cast %223 : vector<1x1x16x64xf32> to vector<16x64xf32>
    %cst_325 = arith.constant dense<0.000000e+00> : vector<8x64xf32>
    %225 = tpu.matmul %222, %224, %cst_325 {dimension_numbers = #tpu.dot_dimension_numbers<[1], [0], [0], [1], [0, 0, 1, 1], [], []>} : vector<8x16xf32>, vector<16x64xf32>, vector<8x64xf32> -> vector<8x64xf32>
    %226 = arith.addf %220, %225 : vector<8x64xf32>
    %c0_326 = arith.constant 0 : index
    %c3_327 = arith.constant 3 : index
    %c0_328 = arith.constant 0 : index
    %c0_329 = arith.constant 0 : index
    %227 = vector.load %arg3[%c0_326, %c3_327, %c0_328, %c0_329] : memref<1x4x8x16xf32, #tpu.memory_space<vmem>>, vector<1x1x8x16xf32>
    %228 = vector.shape_cast %227 : vector<1x1x8x16xf32> to vector<8x16xf32>
    %c7_330 = arith.constant 7 : index
    %c3_331 = arith.constant 3 : index
    %c0_332 = arith.constant 0 : index
    %c0_333 = arith.constant 0 : index
    %229 = vector.load %arg4[%c7_330, %c3_331, %c0_332, %c0_333] : memref<16x4x16x64xf32, #tpu.memory_space<vmem>>, vector<1x1x16x64xf32>
    %230 = vector.shape_cast %229 : vector<1x1x16x64xf32> to vector<16x64xf32>
    %cst_334 = arith.constant dense<0.000000e+00> : vector<8x64xf32>
    %231 = tpu.matmul %228, %230, %cst_334 {dimension_numbers = #tpu.dot_dimension_numbers<[1], [0], [0], [1], [0, 0, 1, 1], [], []>} : vector<8x16xf32>, vector<16x64xf32>, vector<8x64xf32> -> vector<8x64xf32>
    %232 = arith.addf %226, %231 : vector<8x64xf32>
    %c7_335 = arith.constant 7 : index
    %c0_336 = arith.constant 0 : index
    %c0_337 = arith.constant 0 : index
    %233 = vector.load %arg5[%c7_335, %c0_336, %c0_337] : memref<16x1x64xf32, #tpu.memory_space<vmem>>, vector<1x1x64xf32>
    %234 = vector.shape_cast %233 : vector<1x1x64xf32> to vector<1x64xf32>
    %235 = vector.broadcast %234 : vector<1x64xf32> to vector<8x64xf32>
    %236 = arith.addf %232, %235 : vector<8x64xf32>
    %c0_338 = arith.constant 0 : index
    %c1_339 = arith.constant 1 : index
    %c0_340 = arith.constant 0 : index
    %c3_341 = arith.constant 3 : index
    %c0_342 = arith.constant 0 : index
    %237 = vector.load %arg6[%c0_338, %c1_339, %c0_340, %c3_341, %c0_342] : memref<1x4x8x4x64xf32, #tpu.memory_space<vmem>>, vector<1x1x8x1x64xf32>
    %238 = vector.shape_cast %237 : vector<1x1x8x1x64xf32> to vector<8x64xf32>
    %239 = vector.shape_cast %236 : vector<8x64xf32> to vector<1x1x8x1x64xf32>
    tpu.vector_store %arg6[%c0_338, %c1_339, %c0_340, %c3_341, %c0_342], %239 {strides = array<i32>} : memref<1x4x8x4x64xf32, #tpu.memory_space<vmem>>, vector<1x1x8x1x64xf32>,
    %c0_343 = arith.constant 0 : index
    %c0_344 = arith.constant 0 : index
    %c0_345 = arith.constant 0 : index
    %c0_346 = arith.constant 0 : index
    %240 = vector.load %arg3[%c0_343, %c0_344, %c0_345, %c0_346] : memref<1x4x8x16xf32, #tpu.memory_space<vmem>>, vector<1x1x8x16xf32>
    %241 = vector.shape_cast %240 : vector<1x1x8x16xf32> to vector<8x16xf32>
    %c8 = arith.constant 8 : index
    %c0_347 = arith.constant 0 : index
    %c0_348 = arith.constant 0 : index
    %c0_349 = arith.constant 0 : index
    %242 = vector.load %arg4[%c8, %c0_347, %c0_348, %c0_349] : memref<16x4x16x64xf32, #tpu.memory_space<vmem>>, vector<1x1x16x64xf32>
    %243 = vector.shape_cast %242 : vector<1x1x16x64xf32> to vector<16x64xf32>
    %cst_350 = arith.constant dense<0.000000e+00> : vector<8x64xf32>
    %244 = tpu.matmul %241, %243, %cst_350 {dimension_numbers = #tpu.dot_dimension_numbers<[1], [0], [0], [1], [0, 0, 1, 1], [], []>} : vector<8x16xf32>, vector<16x64xf32>, vector<8x64xf32> -> vector<8x64xf32>
    %c0_351 = arith.constant 0 : index
    %c1_352 = arith.constant 1 : index
    %c0_353 = arith.constant 0 : index
    %c0_354 = arith.constant 0 : index
    %245 = vector.load %arg3[%c0_351, %c1_352, %c0_353, %c0_354] : memref<1x4x8x16xf32, #tpu.memory_space<vmem>>, vector<1x1x8x16xf32>
    %246 = vector.shape_cast %245 : vector<1x1x8x16xf32> to vector<8x16xf32>
    %c8_355 = arith.constant 8 : index
    %c1_356 = arith.constant 1 : index
    %c0_357 = arith.constant 0 : index
    %c0_358 = arith.constant 0 : index
    %247 = vector.load %arg4[%c8_355, %c1_356, %c0_357, %c0_358] : memref<16x4x16x64xf32, #tpu.memory_space<vmem>>, vector<1x1x16x64xf32>
    %248 = vector.shape_cast %247 : vector<1x1x16x64xf32> to vector<16x64xf32>
    %cst_359 = arith.constant dense<0.000000e+00> : vector<8x64xf32>
    %249 = tpu.matmul %246, %248, %cst_359 {dimension_numbers = #tpu.dot_dimension_numbers<[1], [0], [0], [1], [0, 0, 1, 1], [], []>} : vector<8x16xf32>, vector<16x64xf32>, vector<8x64xf32> -> vector<8x64xf32>
    %250 = arith.addf %244, %249 : vector<8x64xf32>
    %c0_360 = arith.constant 0 : index
    %c2_361 = arith.constant 2 : index
    %c0_362 = arith.constant 0 : index
    %c0_363 = arith.constant 0 : index
    %251 = vector.load %arg3[%c0_360, %c2_361, %c0_362, %c0_363] : memref<1x4x8x16xf32, #tpu.memory_space<vmem>>, vector<1x1x8x16xf32>
    %252 = vector.shape_cast %251 : vector<1x1x8x16xf32> to vector<8x16xf32>
    %c8_364 = arith.constant 8 : index
    %c2_365 = arith.constant 2 : index
    %c0_366 = arith.constant 0 : index
    %c0_367 = arith.constant 0 : index
    %253 = vector.load %arg4[%c8_364, %c2_365, %c0_366, %c0_367] : memref<16x4x16x64xf32, #tpu.memory_space<vmem>>, vector<1x1x16x64xf32>
    %254 = vector.shape_cast %253 : vector<1x1x16x64xf32> to vector<16x64xf32>
    %cst_368 = arith.constant dense<0.000000e+00> : vector<8x64xf32>
    %255 = tpu.matmul %252, %254, %cst_368 {dimension_numbers = #tpu.dot_dimension_numbers<[1], [0], [0], [1], [0, 0, 1, 1], [], []>} : vector<8x16xf32>, vector<16x64xf32>, vector<8x64xf32> -> vector<8x64xf32>
    %256 = arith.addf %250, %255 : vector<8x64xf32>
    %c0_369 = arith.constant 0 : index
    %c3_370 = arith.constant 3 : index
    %c0_371 = arith.constant 0 : index
    %c0_372 = arith.constant 0 : index
    %257 = vector.load %arg3[%c0_369, %c3_370, %c0_371, %c0_372] : memref<1x4x8x16xf32, #tpu.memory_space<vmem>>, vector<1x1x8x16xf32>
    %258 = vector.shape_cast %257 : vector<1x1x8x16xf32> to vector<8x16xf32>
    %c8_373 = arith.constant 8 : index
    %c3_374 = arith.constant 3 : index
    %c0_375 = arith.constant 0 : index
    %c0_376 = arith.constant 0 : index
    %259 = vector.load %arg4[%c8_373, %c3_374, %c0_375, %c0_376] : memref<16x4x16x64xf32, #tpu.memory_space<vmem>>, vector<1x1x16x64xf32>
    %260 = vector.shape_cast %259 : vector<1x1x16x64xf32> to vector<16x64xf32>
    %cst_377 = arith.constant dense<0.000000e+00> : vector<8x64xf32>
    %261 = tpu.matmul %258, %260, %cst_377 {dimension_numbers = #tpu.dot_dimension_numbers<[1], [0], [0], [1], [0, 0, 1, 1], [], []>} : vector<8x16xf32>, vector<16x64xf32>, vector<8x64xf32> -> vector<8x64xf32>
    %262 = arith.addf %256, %261 : vector<8x64xf32>
    %c8_378 = arith.constant 8 : index
    %c0_379 = arith.constant 0 : index
    %c0_380 = arith.constant 0 : index
    %263 = vector.load %arg5[%c8_378, %c0_379, %c0_380] : memref<16x1x64xf32, #tpu.memory_space<vmem>>, vector<1x1x64xf32>
    %264 = vector.shape_cast %263 : vector<1x1x64xf32> to vector<1x64xf32>
    %265 = vector.broadcast %264 : vector<1x64xf32> to vector<8x64xf32>
    %266 = arith.addf %262, %265 : vector<8x64xf32>
    %c0_381 = arith.constant 0 : index
    %c2_382 = arith.constant 2 : index
    %c0_383 = arith.constant 0 : index
    %c0_384 = arith.constant 0 : index
    %c0_385 = arith.constant 0 : index
    %267 = vector.load %arg6[%c0_381, %c2_382, %c0_383, %c0_384, %c0_385] : memref<1x4x8x4x64xf32, #tpu.memory_space<vmem>>, vector<1x1x8x1x64xf32>
    %268 = vector.shape_cast %267 : vector<1x1x8x1x64xf32> to vector<8x64xf32>
    %269 = vector.shape_cast %266 : vector<8x64xf32> to vector<1x1x8x1x64xf32>
    tpu.vector_store %arg6[%c0_381, %c2_382, %c0_383, %c0_384, %c0_385], %269 {strides = array<i32>} : memref<1x4x8x4x64xf32, #tpu.memory_space<vmem>>, vector<1x1x8x1x64xf32>,
    %c0_386 = arith.constant 0 : index
    %c0_387 = arith.constant 0 : index
    %c0_388 = arith.constant 0 : index
    %c0_389 = arith.constant 0 : index
    %270 = vector.load %arg3[%c0_386, %c0_387, %c0_388, %c0_389] : memref<1x4x8x16xf32, #tpu.memory_space<vmem>>, vector<1x1x8x16xf32>
    %271 = vector.shape_cast %270 : vector<1x1x8x16xf32> to vector<8x16xf32>
    %c9 = arith.constant 9 : index
    %c0_390 = arith.constant 0 : index
    %c0_391 = arith.constant 0 : index
    %c0_392 = arith.constant 0 : index
    %272 = vector.load %arg4[%c9, %c0_390, %c0_391, %c0_392] : memref<16x4x16x64xf32, #tpu.memory_space<vmem>>, vector<1x1x16x64xf32>
    %273 = vector.shape_cast %272 : vector<1x1x16x64xf32> to vector<16x64xf32>
    %cst_393 = arith.constant dense<0.000000e+00> : vector<8x64xf32>
    %274 = tpu.matmul %271, %273, %cst_393 {dimension_numbers = #tpu.dot_dimension_numbers<[1], [0], [0], [1], [0, 0, 1, 1], [], []>} : vector<8x16xf32>, vector<16x64xf32>, vector<8x64xf32> -> vector<8x64xf32>
    %c0_394 = arith.constant 0 : index
    %c1_395 = arith.constant 1 : index
    %c0_396 = arith.constant 0 : index
    %c0_397 = arith.constant 0 : index
    %275 = vector.load %arg3[%c0_394, %c1_395, %c0_396, %c0_397] : memref<1x4x8x16xf32, #tpu.memory_space<vmem>>, vector<1x1x8x16xf32>
    %276 = vector.shape_cast %275 : vector<1x1x8x16xf32> to vector<8x16xf32>
    %c9_398 = arith.constant 9 : index
    %c1_399 = arith.constant 1 : index
    %c0_400 = arith.constant 0 : index
    %c0_401 = arith.constant 0 : index
    %277 = vector.load %arg4[%c9_398, %c1_399, %c0_400, %c0_401] : memref<16x4x16x64xf32, #tpu.memory_space<vmem>>, vector<1x1x16x64xf32>
    %278 = vector.shape_cast %277 : vector<1x1x16x64xf32> to vector<16x64xf32>
    %cst_402 = arith.constant dense<0.000000e+00> : vector<8x64xf32>
    %279 = tpu.matmul %276, %278, %cst_402 {dimension_numbers = #tpu.dot_dimension_numbers<[1], [0], [0], [1], [0, 0, 1, 1], [], []>} : vector<8x16xf32>, vector<16x64xf32>, vector<8x64xf32> -> vector<8x64xf32>
    %280 = arith.addf %274, %279 : vector<8x64xf32>
    %c0_403 = arith.constant 0 : index
    %c2_404 = arith.constant 2 : index
    %c0_405 = arith.constant 0 : index
    %c0_406 = arith.constant 0 : index
    %281 = vector.load %arg3[%c0_403, %c2_404, %c0_405, %c0_406] : memref<1x4x8x16xf32, #tpu.memory_space<vmem>>, vector<1x1x8x16xf32>
    %282 = vector.shape_cast %281 : vector<1x1x8x16xf32> to vector<8x16xf32>
    %c9_407 = arith.constant 9 : index
    %c2_408 = arith.constant 2 : index
    %c0_409 = arith.constant 0 : index
    %c0_410 = arith.constant 0 : index
    %283 = vector.load %arg4[%c9_407, %c2_408, %c0_409, %c0_410] : memref<16x4x16x64xf32, #tpu.memory_space<vmem>>, vector<1x1x16x64xf32>
    %284 = vector.shape_cast %283 : vector<1x1x16x64xf32> to vector<16x64xf32>
    %cst_411 = arith.constant dense<0.000000e+00> : vector<8x64xf32>
    %285 = tpu.matmul %282, %284, %cst_411 {dimension_numbers = #tpu.dot_dimension_numbers<[1], [0], [0], [1], [0, 0, 1, 1], [], []>} : vector<8x16xf32>, vector<16x64xf32>, vector<8x64xf32> -> vector<8x64xf32>
    %286 = arith.addf %280, %285 : vector<8x64xf32>
    %c0_412 = arith.constant 0 : index
    %c3_413 = arith.constant 3 : index
    %c0_414 = arith.constant 0 : index
    %c0_415 = arith.constant 0 : index
    %287 = vector.load %arg3[%c0_412, %c3_413, %c0_414, %c0_415] : memref<1x4x8x16xf32, #tpu.memory_space<vmem>>, vector<1x1x8x16xf32>
    %288 = vector.shape_cast %287 : vector<1x1x8x16xf32> to vector<8x16xf32>
    %c9_416 = arith.constant 9 : index
    %c3_417 = arith.constant 3 : index
    %c0_418 = arith.constant 0 : index
    %c0_419 = arith.constant 0 : index
    %289 = vector.load %arg4[%c9_416, %c3_417, %c0_418, %c0_419] : memref<16x4x16x64xf32, #tpu.memory_space<vmem>>, vector<1x1x16x64xf32>
    %290 = vector.shape_cast %289 : vector<1x1x16x64xf32> to vector<16x64xf32>
    %cst_420 = arith.constant dense<0.000000e+00> : vector<8x64xf32>
    %291 = tpu.matmul %288, %290, %cst_420 {dimension_numbers = #tpu.dot_dimension_numbers<[1], [0], [0], [1], [0, 0, 1, 1], [], []>} : vector<8x16xf32>, vector<16x64xf32>, vector<8x64xf32> -> vector<8x64xf32>
    %292 = arith.addf %286, %291 : vector<8x64xf32>
    %c9_421 = arith.constant 9 : index
    %c0_422 = arith.constant 0 : index
    %c0_423 = arith.constant 0 : index
    %293 = vector.load %arg5[%c9_421, %c0_422, %c0_423] : memref<16x1x64xf32, #tpu.memory_space<vmem>>, vector<1x1x64xf32>
    %294 = vector.shape_cast %293 : vector<1x1x64xf32> to vector<1x64xf32>
    %295 = vector.broadcast %294 : vector<1x64xf32> to vector<8x64xf32>
    %296 = arith.addf %292, %295 : vector<8x64xf32>
    %c0_424 = arith.constant 0 : index
    %c2_425 = arith.constant 2 : index
    %c0_426 = arith.constant 0 : index
    %c1_427 = arith.constant 1 : index
    %c0_428 = arith.constant 0 : index
    %297 = vector.load %arg6[%c0_424, %c2_425, %c0_426, %c1_427, %c0_428] : memref<1x4x8x4x64xf32, #tpu.memory_space<vmem>>, vector<1x1x8x1x64xf32>
    %298 = vector.shape_cast %297 : vector<1x1x8x1x64xf32> to vector<8x64xf32>
    %299 = vector.shape_cast %296 : vector<8x64xf32> to vector<1x1x8x1x64xf32>
    tpu.vector_store %arg6[%c0_424, %c2_425, %c0_426, %c1_427, %c0_428], %299 {strides = array<i32>} : memref<1x4x8x4x64xf32, #tpu.memory_space<vmem>>, vector<1x1x8x1x64xf32>,
    %c0_429 = arith.constant 0 : index
    %c0_430 = arith.constant 0 : index
    %c0_431 = arith.constant 0 : index
    %c0_432 = arith.constant 0 : index
    %300 = vector.load %arg3[%c0_429, %c0_430, %c0_431, %c0_432] : memref<1x4x8x16xf32, #tpu.memory_space<vmem>>, vector<1x1x8x16xf32>
    %301 = vector.shape_cast %300 : vector<1x1x8x16xf32> to vector<8x16xf32>
    %c10 = arith.constant 10 : index
    %c0_433 = arith.constant 0 : index
    %c0_434 = arith.constant 0 : index
    %c0_435 = arith.constant 0 : index
    %302 = vector.load %arg4[%c10, %c0_433, %c0_434, %c0_435] : memref<16x4x16x64xf32, #tpu.memory_space<vmem>>, vector<1x1x16x64xf32>
    %303 = vector.shape_cast %302 : vector<1x1x16x64xf32> to vector<16x64xf32>
    %cst_436 = arith.constant dense<0.000000e+00> : vector<8x64xf32>
    %304 = tpu.matmul %301, %303, %cst_436 {dimension_numbers = #tpu.dot_dimension_numbers<[1], [0], [0], [1], [0, 0, 1, 1], [], []>} : vector<8x16xf32>, vector<16x64xf32>, vector<8x64xf32> -> vector<8x64xf32>
    %c0_437 = arith.constant 0 : index
    %c1_438 = arith.constant 1 : index
    %c0_439 = arith.constant 0 : index
    %c0_440 = arith.constant 0 : index
    %305 = vector.load %arg3[%c0_437, %c1_438, %c0_439, %c0_440] : memref<1x4x8x16xf32, #tpu.memory_space<vmem>>, vector<1x1x8x16xf32>
    %306 = vector.shape_cast %305 : vector<1x1x8x16xf32> to vector<8x16xf32>
    %c10_441 = arith.constant 10 : index
    %c1_442 = arith.constant 1 : index
    %c0_443 = arith.constant 0 : index
    %c0_444 = arith.constant 0 : index
    %307 = vector.load %arg4[%c10_441, %c1_442, %c0_443, %c0_444] : memref<16x4x16x64xf32, #tpu.memory_space<vmem>>, vector<1x1x16x64xf32>
    %308 = vector.shape_cast %307 : vector<1x1x16x64xf32> to vector<16x64xf32>
    %cst_445 = arith.constant dense<0.000000e+00> : vector<8x64xf32>
    %309 = tpu.matmul %306, %308, %cst_445 {dimension_numbers = #tpu.dot_dimension_numbers<[1], [0], [0], [1], [0, 0, 1, 1], [], []>} : vector<8x16xf32>, vector<16x64xf32>, vector<8x64xf32> -> vector<8x64xf32>
    %310 = arith.addf %304, %309 : vector<8x64xf32>
    %c0_446 = arith.constant 0 : index
    %c2_447 = arith.constant 2 : index
    %c0_448 = arith.constant 0 : index
    %c0_449 = arith.constant 0 : index
    %311 = vector.load %arg3[%c0_446, %c2_447, %c0_448, %c0_449] : memref<1x4x8x16xf32, #tpu.memory_space<vmem>>, vector<1x1x8x16xf32>
    %312 = vector.shape_cast %311 : vector<1x1x8x16xf32> to vector<8x16xf32>
    %c10_450 = arith.constant 10 : index
    %c2_451 = arith.constant 2 : index
    %c0_452 = arith.constant 0 : index
    %c0_453 = arith.constant 0 : index
    %313 = vector.load %arg4[%c10_450, %c2_451, %c0_452, %c0_453] : memref<16x4x16x64xf32, #tpu.memory_space<vmem>>, vector<1x1x16x64xf32>
    %314 = vector.shape_cast %313 : vector<1x1x16x64xf32> to vector<16x64xf32>
    %cst_454 = arith.constant dense<0.000000e+00> : vector<8x64xf32>
    %315 = tpu.matmul %312, %314, %cst_454 {dimension_numbers = #tpu.dot_dimension_numbers<[1], [0], [0], [1], [0, 0, 1, 1], [], []>} : vector<8x16xf32>, vector<16x64xf32>, vector<8x64xf32> -> vector<8x64xf32>
    %316 = arith.addf %310, %315 : vector<8x64xf32>
    %c0_455 = arith.constant 0 : index
    %c3_456 = arith.constant 3 : index
    %c0_457 = arith.constant 0 : index
    %c0_458 = arith.constant 0 : index
    %317 = vector.load %arg3[%c0_455, %c3_456, %c0_457, %c0_458] : memref<1x4x8x16xf32, #tpu.memory_space<vmem>>, vector<1x1x8x16xf32>
    %318 = vector.shape_cast %317 : vector<1x1x8x16xf32> to vector<8x16xf32>
    %c10_459 = arith.constant 10 : index
    %c3_460 = arith.constant 3 : index
    %c0_461 = arith.constant 0 : index
    %c0_462 = arith.constant 0 : index
    %319 = vector.load %arg4[%c10_459, %c3_460, %c0_461, %c0_462] : memref<16x4x16x64xf32, #tpu.memory_space<vmem>>, vector<1x1x16x64xf32>
    %320 = vector.shape_cast %319 : vector<1x1x16x64xf32> to vector<16x64xf32>
    %cst_463 = arith.constant dense<0.000000e+00> : vector<8x64xf32>
    %321 = tpu.matmul %318, %320, %cst_463 {dimension_numbers = #tpu.dot_dimension_numbers<[1], [0], [0], [1], [0, 0, 1, 1], [], []>} : vector<8x16xf32>, vector<16x64xf32>, vector<8x64xf32> -> vector<8x64xf32>
    %322 = arith.addf %316, %321 : vector<8x64xf32>
    %c10_464 = arith.constant 10 : index
    %c0_465 = arith.constant 0 : index
    %c0_466 = arith.constant 0 : index
    %323 = vector.load %arg5[%c10_464, %c0_465, %c0_466] : memref<16x1x64xf32, #tpu.memory_space<vmem>>, vector<1x1x64xf32>
    %324 = vector.shape_cast %323 : vector<1x1x64xf32> to vector<1x64xf32>
    %325 = vector.broadcast %324 : vector<1x64xf32> to vector<8x64xf32>
    %326 = arith.addf %322, %325 : vector<8x64xf32>
    %c0_467 = arith.constant 0 : index
    %c2_468 = arith.constant 2 : index
    %c0_469 = arith.constant 0 : index
    %c2_470 = arith.constant 2 : index
    %c0_471 = arith.constant 0 : index
    %327 = vector.load %arg6[%c0_467, %c2_468, %c0_469, %c2_470, %c0_471] : memref<1x4x8x4x64xf32, #tpu.memory_space<vmem>>, vector<1x1x8x1x64xf32>
    %328 = vector.shape_cast %327 : vector<1x1x8x1x64xf32> to vector<8x64xf32>
    %329 = vector.shape_cast %326 : vector<8x64xf32> to vector<1x1x8x1x64xf32>
    tpu.vector_store %arg6[%c0_467, %c2_468, %c0_469, %c2_470, %c0_471], %329 {strides = array<i32>} : memref<1x4x8x4x64xf32, #tpu.memory_space<vmem>>, vector<1x1x8x1x64xf32>,
    %c0_472 = arith.constant 0 : index
    %c0_473 = arith.constant 0 : index
    %c0_474 = arith.constant 0 : index
    %c0_475 = arith.constant 0 : index
    %330 = vector.load %arg3[%c0_472, %c0_473, %c0_474, %c0_475] : memref<1x4x8x16xf32, #tpu.memory_space<vmem>>, vector<1x1x8x16xf32>
    %331 = vector.shape_cast %330 : vector<1x1x8x16xf32> to vector<8x16xf32>
    %c11 = arith.constant 11 : index
    %c0_476 = arith.constant 0 : index
    %c0_477 = arith.constant 0 : index
    %c0_478 = arith.constant 0 : index
    %332 = vector.load %arg4[%c11, %c0_476, %c0_477, %c0_478] : memref<16x4x16x64xf32, #tpu.memory_space<vmem>>, vector<1x1x16x64xf32>
    %333 = vector.shape_cast %332 : vector<1x1x16x64xf32> to vector<16x64xf32>
    %cst_479 = arith.constant dense<0.000000e+00> : vector<8x64xf32>
    %334 = tpu.matmul %331, %333, %cst_479 {dimension_numbers = #tpu.dot_dimension_numbers<[1], [0], [0], [1], [0, 0, 1, 1], [], []>} : vector<8x16xf32>, vector<16x64xf32>, vector<8x64xf32> -> vector<8x64xf32>
    %c0_480 = arith.constant 0 : index
    %c1_481 = arith.constant 1 : index
    %c0_482 = arith.constant 0 : index
    %c0_483 = arith.constant 0 : index
    %335 = vector.load %arg3[%c0_480, %c1_481, %c0_482, %c0_483] : memref<1x4x8x16xf32, #tpu.memory_space<vmem>>, vector<1x1x8x16xf32>
    %336 = vector.shape_cast %335 : vector<1x1x8x16xf32> to vector<8x16xf32>
    %c11_484 = arith.constant 11 : index
    %c1_485 = arith.constant 1 : index
    %c0_486 = arith.constant 0 : index
    %c0_487 = arith.constant 0 : index
    %337 = vector.load %arg4[%c11_484, %c1_485, %c0_486, %c0_487] : memref<16x4x16x64xf32, #tpu.memory_space<vmem>>, vector<1x1x16x64xf32>
    %338 = vector.shape_cast %337 : vector<1x1x16x64xf32> to vector<16x64xf32>
    %cst_488 = arith.constant dense<0.000000e+00> : vector<8x64xf32>
    %339 = tpu.matmul %336, %338, %cst_488 {dimension_numbers = #tpu.dot_dimension_numbers<[1], [0], [0], [1], [0, 0, 1, 1], [], []>} : vector<8x16xf32>, vector<16x64xf32>, vector<8x64xf32> -> vector<8x64xf32>
    %340 = arith.addf %334, %339 : vector<8x64xf32>
    %c0_489 = arith.constant 0 : index
    %c2_490 = arith.constant 2 : index
    %c0_491 = arith.constant 0 : index
    %c0_492 = arith.constant 0 : index
    %341 = vector.load %arg3[%c0_489, %c2_490, %c0_491, %c0_492] : memref<1x4x8x16xf32, #tpu.memory_space<vmem>>, vector<1x1x8x16xf32>
    %342 = vector.shape_cast %341 : vector<1x1x8x16xf32> to vector<8x16xf32>
    %c11_493 = arith.constant 11 : index
    %c2_494 = arith.constant 2 : index
    %c0_495 = arith.constant 0 : index
    %c0_496 = arith.constant 0 : index
    %343 = vector.load %arg4[%c11_493, %c2_494, %c0_495, %c0_496] : memref<16x4x16x64xf32, #tpu.memory_space<vmem>>, vector<1x1x16x64xf32>
    %344 = vector.shape_cast %343 : vector<1x1x16x64xf32> to vector<16x64xf32>
    %cst_497 = arith.constant dense<0.000000e+00> : vector<8x64xf32>
    %345 = tpu.matmul %342, %344, %cst_497 {dimension_numbers = #tpu.dot_dimension_numbers<[1], [0], [0], [1], [0, 0, 1, 1], [], []>} : vector<8x16xf32>, vector<16x64xf32>, vector<8x64xf32> -> vector<8x64xf32>
    %346 = arith.addf %340, %345 : vector<8x64xf32>
    %c0_498 = arith.constant 0 : index
    %c3_499 = arith.constant 3 : index
    %c0_500 = arith.constant 0 : index
    %c0_501 = arith.constant 0 : index
    %347 = vector.load %arg3[%c0_498, %c3_499, %c0_500, %c0_501] : memref<1x4x8x16xf32, #tpu.memory_space<vmem>>, vector<1x1x8x16xf32>
    %348 = vector.shape_cast %347 : vector<1x1x8x16xf32> to vector<8x16xf32>
    %c11_502 = arith.constant 11 : index
    %c3_503 = arith.constant 3 : index
    %c0_504 = arith.constant 0 : index
    %c0_505 = arith.constant 0 : index
    %349 = vector.load %arg4[%c11_502, %c3_503, %c0_504, %c0_505] : memref<16x4x16x64xf32, #tpu.memory_space<vmem>>, vector<1x1x16x64xf32>
    %350 = vector.shape_cast %349 : vector<1x1x16x64xf32> to vector<16x64xf32>
    %cst_506 = arith.constant dense<0.000000e+00> : vector<8x64xf32>
    %351 = tpu.matmul %348, %350, %cst_506 {dimension_numbers = #tpu.dot_dimension_numbers<[1], [0], [0], [1], [0, 0, 1, 1], [], []>} : vector<8x16xf32>, vector<16x64xf32>, vector<8x64xf32> -> vector<8x64xf32>
    %352 = arith.addf %346, %351 : vector<8x64xf32>
    %c11_507 = arith.constant 11 : index
    %c0_508 = arith.constant 0 : index
    %c0_509 = arith.constant 0 : index
    %353 = vector.load %arg5[%c11_507, %c0_508, %c0_509] : memref<16x1x64xf32, #tpu.memory_space<vmem>>, vector<1x1x64xf32>
    %354 = vector.shape_cast %353 : vector<1x1x64xf32> to vector<1x64xf32>
    %355 = vector.broadcast %354 : vector<1x64xf32> to vector<8x64xf32>
    %356 = arith.addf %352, %355 : vector<8x64xf32>
    %c0_510 = arith.constant 0 : index
    %c2_511 = arith.constant 2 : index
    %c0_512 = arith.constant 0 : index
    %c3_513 = arith.constant 3 : index
    %c0_514 = arith.constant 0 : index
    %357 = vector.load %arg6[%c0_510, %c2_511, %c0_512, %c3_513, %c0_514] : memref<1x4x8x4x64xf32, #tpu.memory_space<vmem>>, vector<1x1x8x1x64xf32>
    %358 = vector.shape_cast %357 : vector<1x1x8x1x64xf32> to vector<8x64xf32>
    %359 = vector.shape_cast %356 : vector<8x64xf32> to vector<1x1x8x1x64xf32>
    tpu.vector_store %arg6[%c0_510, %c2_511, %c0_512, %c3_513, %c0_514], %359 {strides = array<i32>} : memref<1x4x8x4x64xf32, #tpu.memory_space<vmem>>, vector<1x1x8x1x64xf32>,
    %c0_515 = arith.constant 0 : index
    %c0_516 = arith.constant 0 : index
    %c0_517 = arith.constant 0 : index
    %c0_518 = arith.constant 0 : index
    %360 = vector.load %arg3[%c0_515, %c0_516, %c0_517, %c0_518] : memref<1x4x8x16xf32, #tpu.memory_space<vmem>>, vector<1x1x8x16xf32>
    %361 = vector.shape_cast %360 : vector<1x1x8x16xf32> to vector<8x16xf32>
    %c12 = arith.constant 12 : index
    %c0_519 = arith.constant 0 : index
    %c0_520 = arith.constant 0 : index
    %c0_521 = arith.constant 0 : index
    %362 = vector.load %arg4[%c12, %c0_519, %c0_520, %c0_521] : memref<16x4x16x64xf32, #tpu.memory_space<vmem>>, vector<1x1x16x64xf32>
    %363 = vector.shape_cast %362 : vector<1x1x16x64xf32> to vector<16x64xf32>
    %cst_522 = arith.constant dense<0.000000e+00> : vector<8x64xf32>
    %364 = tpu.matmul %361, %363, %cst_522 {dimension_numbers = #tpu.dot_dimension_numbers<[1], [0], [0], [1], [0, 0, 1, 1], [], []>} : vector<8x16xf32>, vector<16x64xf32>, vector<8x64xf32> -> vector<8x64xf32>
    %c0_523 = arith.constant 0 : index
    %c1_524 = arith.constant 1 : index
    %c0_525 = arith.constant 0 : index
    %c0_526 = arith.constant 0 : index
    %365 = vector.load %arg3[%c0_523, %c1_524, %c0_525, %c0_526] : memref<1x4x8x16xf32, #tpu.memory_space<vmem>>, vector<1x1x8x16xf32>
    %366 = vector.shape_cast %365 : vector<1x1x8x16xf32> to vector<8x16xf32>
    %c12_527 = arith.constant 12 : index
    %c1_528 = arith.constant 1 : index
    %c0_529 = arith.constant 0 : index
    %c0_530 = arith.constant 0 : index
    %367 = vector.load %arg4[%c12_527, %c1_528, %c0_529, %c0_530] : memref<16x4x16x64xf32, #tpu.memory_space<vmem>>, vector<1x1x16x64xf32>
    %368 = vector.shape_cast %367 : vector<1x1x16x64xf32> to vector<16x64xf32>
    %cst_531 = arith.constant dense<0.000000e+00> : vector<8x64xf32>
    %369 = tpu.matmul %366, %368, %cst_531 {dimension_numbers = #tpu.dot_dimension_numbers<[1], [0], [0], [1], [0, 0, 1, 1], [], []>} : vector<8x16xf32>, vector<16x64xf32>, vector<8x64xf32> -> vector<8x64xf32>
    %370 = arith.addf %364, %369 : vector<8x64xf32>
    %c0_532 = arith.constant 0 : index
    %c2_533 = arith.constant 2 : index
    %c0_534 = arith.constant 0 : index
    %c0_535 = arith.constant 0 : index
    %371 = vector.load %arg3[%c0_532, %c2_533, %c0_534, %c0_535] : memref<1x4x8x16xf32, #tpu.memory_space<vmem>>, vector<1x1x8x16xf32>
    %372 = vector.shape_cast %371 : vector<1x1x8x16xf32> to vector<8x16xf32>
    %c12_536 = arith.constant 12 : index
    %c2_537 = arith.constant 2 : index
    %c0_538 = arith.constant 0 : index
    %c0_539 = arith.constant 0 : index
    %373 = vector.load %arg4[%c12_536, %c2_537, %c0_538, %c0_539] : memref<16x4x16x64xf32, #tpu.memory_space<vmem>>, vector<1x1x16x64xf32>
    %374 = vector.shape_cast %373 : vector<1x1x16x64xf32> to vector<16x64xf32>
    %cst_540 = arith.constant dense<0.000000e+00> : vector<8x64xf32>
    %375 = tpu.matmul %372, %374, %cst_540 {dimension_numbers = #tpu.dot_dimension_numbers<[1], [0], [0], [1], [0, 0, 1, 1], [], []>} : vector<8x16xf32>, vector<16x64xf32>, vector<8x64xf32> -> vector<8x64xf32>
    %376 = arith.addf %370, %375 : vector<8x64xf32>
    %c0_541 = arith.constant 0 : index
    %c3_542 = arith.constant 3 : index
    %c0_543 = arith.constant 0 : index
    %c0_544 = arith.constant 0 : index
    %377 = vector.load %arg3[%c0_541, %c3_542, %c0_543, %c0_544] : memref<1x4x8x16xf32, #tpu.memory_space<vmem>>, vector<1x1x8x16xf32>
    %378 = vector.shape_cast %377 : vector<1x1x8x16xf32> to vector<8x16xf32>
    %c12_545 = arith.constant 12 : index
    %c3_546 = arith.constant 3 : index
    %c0_547 = arith.constant 0 : index
    %c0_548 = arith.constant 0 : index
    %379 = vector.load %arg4[%c12_545, %c3_546, %c0_547, %c0_548] : memref<16x4x16x64xf32, #tpu.memory_space<vmem>>, vector<1x1x16x64xf32>
    %380 = vector.shape_cast %379 : vector<1x1x16x64xf32> to vector<16x64xf32>
    %cst_549 = arith.constant dense<0.000000e+00> : vector<8x64xf32>
    %381 = tpu.matmul %378, %380, %cst_549 {dimension_numbers = #tpu.dot_dimension_numbers<[1], [0], [0], [1], [0, 0, 1, 1], [], []>} : vector<8x16xf32>, vector<16x64xf32>, vector<8x64xf32> -> vector<8x64xf32>
    %382 = arith.addf %376, %381 : vector<8x64xf32>
    %c12_550 = arith.constant 12 : index
    %c0_551 = arith.constant 0 : index
    %c0_552 = arith.constant 0 : index
    %383 = vector.load %arg5[%c12_550, %c0_551, %c0_552] : memref<16x1x64xf32, #tpu.memory_space<vmem>>, vector<1x1x64xf32>
    %384 = vector.shape_cast %383 : vector<1x1x64xf32> to vector<1x64xf32>
    %385 = vector.broadcast %384 : vector<1x64xf32> to vector<8x64xf32>
    %386 = arith.addf %382, %385 : vector<8x64xf32>
    %c0_553 = arith.constant 0 : index
    %c3_554 = arith.constant 3 : index
    %c0_555 = arith.constant 0 : index
    %c0_556 = arith.constant 0 : index
    %c0_557 = arith.constant 0 : index
    %387 = vector.load %arg6[%c0_553, %c3_554, %c0_555, %c0_556, %c0_557] : memref<1x4x8x4x64xf32, #tpu.memory_space<vmem>>, vector<1x1x8x1x64xf32>
    %388 = vector.shape_cast %387 : vector<1x1x8x1x64xf32> to vector<8x64xf32>
    %389 = vector.shape_cast %386 : vector<8x64xf32> to vector<1x1x8x1x64xf32>
    tpu.vector_store %arg6[%c0_553, %c3_554, %c0_555, %c0_556, %c0_557], %389 {strides = array<i32>} : memref<1x4x8x4x64xf32, #tpu.memory_space<vmem>>, vector<1x1x8x1x64xf32>,
    %c0_558 = arith.constant 0 : index
    %c0_559 = arith.constant 0 : index
    %c0_560 = arith.constant 0 : index
    %c0_561 = arith.constant 0 : index
    %390 = vector.load %arg3[%c0_558, %c0_559, %c0_560, %c0_561] : memref<1x4x8x16xf32, #tpu.memory_space<vmem>>, vector<1x1x8x16xf32>
    %391 = vector.shape_cast %390 : vector<1x1x8x16xf32> to vector<8x16xf32>
    %c13 = arith.constant 13 : index
    %c0_562 = arith.constant 0 : index
    %c0_563 = arith.constant 0 : index
    %c0_564 = arith.constant 0 : index
    %392 = vector.load %arg4[%c13, %c0_562, %c0_563, %c0_564] : memref<16x4x16x64xf32, #tpu.memory_space<vmem>>, vector<1x1x16x64xf32>
    %393 = vector.shape_cast %392 : vector<1x1x16x64xf32> to vector<16x64xf32>
    %cst_565 = arith.constant dense<0.000000e+00> : vector<8x64xf32>
    %394 = tpu.matmul %391, %393, %cst_565 {dimension_numbers = #tpu.dot_dimension_numbers<[1], [0], [0], [1], [0, 0, 1, 1], [], []>} : vector<8x16xf32>, vector<16x64xf32>, vector<8x64xf32> -> vector<8x64xf32>
    %c0_566 = arith.constant 0 : index
    %c1_567 = arith.constant 1 : index
    %c0_568 = arith.constant 0 : index
    %c0_569 = arith.constant 0 : index
    %395 = vector.load %arg3[%c0_566, %c1_567, %c0_568, %c0_569] : memref<1x4x8x16xf32, #tpu.memory_space<vmem>>, vector<1x1x8x16xf32>
    %396 = vector.shape_cast %395 : vector<1x1x8x16xf32> to vector<8x16xf32>
    %c13_570 = arith.constant 13 : index
    %c1_571 = arith.constant 1 : index
    %c0_572 = arith.constant 0 : index
    %c0_573 = arith.constant 0 : index
    %397 = vector.load %arg4[%c13_570, %c1_571, %c0_572, %c0_573] : memref<16x4x16x64xf32, #tpu.memory_space<vmem>>, vector<1x1x16x64xf32>
    %398 = vector.shape_cast %397 : vector<1x1x16x64xf32> to vector<16x64xf32>
    %cst_574 = arith.constant dense<0.000000e+00> : vector<8x64xf32>
    %399 = tpu.matmul %396, %398, %cst_574 {dimension_numbers = #tpu.dot_dimension_numbers<[1], [0], [0], [1], [0, 0, 1, 1], [], []>} : vector<8x16xf32>, vector<16x64xf32>, vector<8x64xf32> -> vector<8x64xf32>
    %400 = arith.addf %394, %399 : vector<8x64xf32>
    %c0_575 = arith.constant 0 : index
    %c2_576 = arith.constant 2 : index
    %c0_577 = arith.constant 0 : index
    %c0_578 = arith.constant 0 : index
    %401 = vector.load %arg3[%c0_575, %c2_576, %c0_577, %c0_578] : memref<1x4x8x16xf32, #tpu.memory_space<vmem>>, vector<1x1x8x16xf32>
    %402 = vector.shape_cast %401 : vector<1x1x8x16xf32> to vector<8x16xf32>
    %c13_579 = arith.constant 13 : index
    %c2_580 = arith.constant 2 : index
    %c0_581 = arith.constant 0 : index
    %c0_582 = arith.constant 0 : index
    %403 = vector.load %arg4[%c13_579, %c2_580, %c0_581, %c0_582] : memref<16x4x16x64xf32, #tpu.memory_space<vmem>>, vector<1x1x16x64xf32>
    %404 = vector.shape_cast %403 : vector<1x1x16x64xf32> to vector<16x64xf32>
    %cst_583 = arith.constant dense<0.000000e+00> : vector<8x64xf32>
    %405 = tpu.matmul %402, %404, %cst_583 {dimension_numbers = #tpu.dot_dimension_numbers<[1], [0], [0], [1], [0, 0, 1, 1], [], []>} : vector<8x16xf32>, vector<16x64xf32>, vector<8x64xf32> -> vector<8x64xf32>
    %406 = arith.addf %400, %405 : vector<8x64xf32>
    %c0_584 = arith.constant 0 : index
    %c3_585 = arith.constant 3 : index
    %c0_586 = arith.constant 0 : index
    %c0_587 = arith.constant 0 : index
    %407 = vector.load %arg3[%c0_584, %c3_585, %c0_586, %c0_587] : memref<1x4x8x16xf32, #tpu.memory_space<vmem>>, vector<1x1x8x16xf32>
    %408 = vector.shape_cast %407 : vector<1x1x8x16xf32> to vector<8x16xf32>
    %c13_588 = arith.constant 13 : index
    %c3_589 = arith.constant 3 : index
    %c0_590 = arith.constant 0 : index
    %c0_591 = arith.constant 0 : index
    %409 = vector.load %arg4[%c13_588, %c3_589, %c0_590, %c0_591] : memref<16x4x16x64xf32, #tpu.memory_space<vmem>>, vector<1x1x16x64xf32>
    %410 = vector.shape_cast %409 : vector<1x1x16x64xf32> to vector<16x64xf32>
    %cst_592 = arith.constant dense<0.000000e+00> : vector<8x64xf32>
    %411 = tpu.matmul %408, %410, %cst_592 {dimension_numbers = #tpu.dot_dimension_numbers<[1], [0], [0], [1], [0, 0, 1, 1], [], []>} : vector<8x16xf32>, vector<16x64xf32>, vector<8x64xf32> -> vector<8x64xf32>
    %412 = arith.addf %406, %411 : vector<8x64xf32>
    %c13_593 = arith.constant 13 : index
    %c0_594 = arith.constant 0 : index
    %c0_595 = arith.constant 0 : index
    %413 = vector.load %arg5[%c13_593, %c0_594, %c0_595] : memref<16x1x64xf32, #tpu.memory_space<vmem>>, vector<1x1x64xf32>
    %414 = vector.shape_cast %413 : vector<1x1x64xf32> to vector<1x64xf32>
    %415 = vector.broadcast %414 : vector<1x64xf32> to vector<8x64xf32>
    %416 = arith.addf %412, %415 : vector<8x64xf32>
    %c0_596 = arith.constant 0 : index
    %c3_597 = arith.constant 3 : index
    %c0_598 = arith.constant 0 : index
    %c1_599 = arith.constant 1 : index
    %c0_600 = arith.constant 0 : index
    %417 = vector.load %arg6[%c0_596, %c3_597, %c0_598, %c1_599, %c0_600] : memref<1x4x8x4x64xf32, #tpu.memory_space<vmem>>, vector<1x1x8x1x64xf32>
    %418 = vector.shape_cast %417 : vector<1x1x8x1x64xf32> to vector<8x64xf32>
    %419 = vector.shape_cast %416 : vector<8x64xf32> to vector<1x1x8x1x64xf32>
    tpu.vector_store %arg6[%c0_596, %c3_597, %c0_598, %c1_599, %c0_600], %419 {strides = array<i32>} : memref<1x4x8x4x64xf32, #tpu.memory_space<vmem>>, vector<1x1x8x1x64xf32>,
    %c0_601 = arith.constant 0 : index
    %c0_602 = arith.constant 0 : index
    %c0_603 = arith.constant 0 : index
    %c0_604 = arith.constant 0 : index
    %420 = vector.load %arg3[%c0_601, %c0_602, %c0_603, %c0_604] : memref<1x4x8x16xf32, #tpu.memory_space<vmem>>, vector<1x1x8x16xf32>
    %421 = vector.shape_cast %420 : vector<1x1x8x16xf32> to vector<8x16xf32>
    %c14 = arith.constant 14 : index
    %c0_605 = arith.constant 0 : index
    %c0_606 = arith.constant 0 : index
    %c0_607 = arith.constant 0 : index
    %422 = vector.load %arg4[%c14, %c0_605, %c0_606, %c0_607] : memref<16x4x16x64xf32, #tpu.memory_space<vmem>>, vector<1x1x16x64xf32>
    %423 = vector.shape_cast %422 : vector<1x1x16x64xf32> to vector<16x64xf32>
    %cst_608 = arith.constant dense<0.000000e+00> : vector<8x64xf32>
    %424 = tpu.matmul %421, %423, %cst_608 {dimension_numbers = #tpu.dot_dimension_numbers<[1], [0], [0], [1], [0, 0, 1, 1], [], []>} : vector<8x16xf32>, vector<16x64xf32>, vector<8x64xf32> -> vector<8x64xf32>
    %c0_609 = arith.constant 0 : index
    %c1_610 = arith.constant 1 : index
    %c0_611 = arith.constant 0 : index
    %c0_612 = arith.constant 0 : index
    %425 = vector.load %arg3[%c0_609, %c1_610, %c0_611, %c0_612] : memref<1x4x8x16xf32, #tpu.memory_space<vmem>>, vector<1x1x8x16xf32>
    %426 = vector.shape_cast %425 : vector<1x1x8x16xf32> to vector<8x16xf32>
    %c14_613 = arith.constant 14 : index
    %c1_614 = arith.constant 1 : index
    %c0_615 = arith.constant 0 : index
    %c0_616 = arith.constant 0 : index
    %427 = vector.load %arg4[%c14_613, %c1_614, %c0_615, %c0_616] : memref<16x4x16x64xf32, #tpu.memory_space<vmem>>, vector<1x1x16x64xf32>
    %428 = vector.shape_cast %427 : vector<1x1x16x64xf32> to vector<16x64xf32>
    %cst_617 = arith.constant dense<0.000000e+00> : vector<8x64xf32>
    %429 = tpu.matmul %426, %428, %cst_617 {dimension_numbers = #tpu.dot_dimension_numbers<[1], [0], [0], [1], [0, 0, 1, 1], [], []>} : vector<8x16xf32>, vector<16x64xf32>, vector<8x64xf32> -> vector<8x64xf32>
    %430 = arith.addf %424, %429 : vector<8x64xf32>
    %c0_618 = arith.constant 0 : index
    %c2_619 = arith.constant 2 : index
    %c0_620 = arith.constant 0 : index
    %c0_621 = arith.constant 0 : index
    %431 = vector.load %arg3[%c0_618, %c2_619, %c0_620, %c0_621] : memref<1x4x8x16xf32, #tpu.memory_space<vmem>>, vector<1x1x8x16xf32>
    %432 = vector.shape_cast %431 : vector<1x1x8x16xf32> to vector<8x16xf32>
    %c14_622 = arith.constant 14 : index
    %c2_623 = arith.constant 2 : index
    %c0_624 = arith.constant 0 : index
    %c0_625 = arith.constant 0 : index
    %433 = vector.load %arg4[%c14_622, %c2_623, %c0_624, %c0_625] : memref<16x4x16x64xf32, #tpu.memory_space<vmem>>, vector<1x1x16x64xf32>
    %434 = vector.shape_cast %433 : vector<1x1x16x64xf32> to vector<16x64xf32>
    %cst_626 = arith.constant dense<0.000000e+00> : vector<8x64xf32>
    %435 = tpu.matmul %432, %434, %cst_626 {dimension_numbers = #tpu.dot_dimension_numbers<[1], [0], [0], [1], [0, 0, 1, 1], [], []>} : vector<8x16xf32>, vector<16x64xf32>, vector<8x64xf32> -> vector<8x64xf32>
    %436 = arith.addf %430, %435 : vector<8x64xf32>
    %c0_627 = arith.constant 0 : index
    %c3_628 = arith.constant 3 : index
    %c0_629 = arith.constant 0 : index
    %c0_630 = arith.constant 0 : index
    %437 = vector.load %arg3[%c0_627, %c3_628, %c0_629, %c0_630] : memref<1x4x8x16xf32, #tpu.memory_space<vmem>>, vector<1x1x8x16xf32>
    %438 = vector.shape_cast %437 : vector<1x1x8x16xf32> to vector<8x16xf32>
    %c14_631 = arith.constant 14 : index
    %c3_632 = arith.constant 3 : index
    %c0_633 = arith.constant 0 : index
    %c0_634 = arith.constant 0 : index
    %439 = vector.load %arg4[%c14_631, %c3_632, %c0_633, %c0_634] : memref<16x4x16x64xf32, #tpu.memory_space<vmem>>, vector<1x1x16x64xf32>
    %440 = vector.shape_cast %439 : vector<1x1x16x64xf32> to vector<16x64xf32>
    %cst_635 = arith.constant dense<0.000000e+00> : vector<8x64xf32>
    %441 = tpu.matmul %438, %440, %cst_635 {dimension_numbers = #tpu.dot_dimension_numbers<[1], [0], [0], [1], [0, 0, 1, 1], [], []>} : vector<8x16xf32>, vector<16x64xf32>, vector<8x64xf32> -> vector<8x64xf32>
    %442 = arith.addf %436, %441 : vector<8x64xf32>
    %c14_636 = arith.constant 14 : index
    %c0_637 = arith.constant 0 : index
    %c0_638 = arith.constant 0 : index
    %443 = vector.load %arg5[%c14_636, %c0_637, %c0_638] : memref<16x1x64xf32, #tpu.memory_space<vmem>>, vector<1x1x64xf32>
    %444 = vector.shape_cast %443 : vector<1x1x64xf32> to vector<1x64xf32>
    %445 = vector.broadcast %444 : vector<1x64xf32> to vector<8x64xf32>
    %446 = arith.addf %442, %445 : vector<8x64xf32>
    %c0_639 = arith.constant 0 : index
    %c3_640 = arith.constant 3 : index
    %c0_641 = arith.constant 0 : index
    %c2_642 = arith.constant 2 : index
    %c0_643 = arith.constant 0 : index
    %447 = vector.load %arg6[%c0_639, %c3_640, %c0_641, %c2_642, %c0_643] : memref<1x4x8x4x64xf32, #tpu.memory_space<vmem>>, vector<1x1x8x1x64xf32>
    %448 = vector.shape_cast %447 : vector<1x1x8x1x64xf32> to vector<8x64xf32>
    %449 = vector.shape_cast %446 : vector<8x64xf32> to vector<1x1x8x1x64xf32>
    tpu.vector_store %arg6[%c0_639, %c3_640, %c0_641, %c2_642, %c0_643], %449 {strides = array<i32>} : memref<1x4x8x4x64xf32, #tpu.memory_space<vmem>>, vector<1x1x8x1x64xf32>,
    %c0_644 = arith.constant 0 : index
    %c0_645 = arith.constant 0 : index
    %c0_646 = arith.constant 0 : index
    %c0_647 = arith.constant 0 : index
    %450 = vector.load %arg3[%c0_644, %c0_645, %c0_646, %c0_647] : memref<1x4x8x16xf32, #tpu.memory_space<vmem>>, vector<1x1x8x16xf32>
    %451 = vector.shape_cast %450 : vector<1x1x8x16xf32> to vector<8x16xf32>
    %c15 = arith.constant 15 : index
    %c0_648 = arith.constant 0 : index
    %c0_649 = arith.constant 0 : index
    %c0_650 = arith.constant 0 : index
    %452 = vector.load %arg4[%c15, %c0_648, %c0_649, %c0_650] : memref<16x4x16x64xf32, #tpu.memory_space<vmem>>, vector<1x1x16x64xf32>
    %453 = vector.shape_cast %452 : vector<1x1x16x64xf32> to vector<16x64xf32>
    %cst_651 = arith.constant dense<0.000000e+00> : vector<8x64xf32>
    %454 = tpu.matmul %451, %453, %cst_651 {dimension_numbers = #tpu.dot_dimension_numbers<[1], [0], [0], [1], [0, 0, 1, 1], [], []>} : vector<8x16xf32>, vector<16x64xf32>, vector<8x64xf32> -> vector<8x64xf32>
    %c0_652 = arith.constant 0 : index
    %c1_653 = arith.constant 1 : index
    %c0_654 = arith.constant 0 : index
    %c0_655 = arith.constant 0 : index
    %455 = vector.load %arg3[%c0_652, %c1_653, %c0_654, %c0_655] : memref<1x4x8x16xf32, #tpu.memory_space<vmem>>, vector<1x1x8x16xf32>
    %456 = vector.shape_cast %455 : vector<1x1x8x16xf32> to vector<8x16xf32>
    %c15_656 = arith.constant 15 : index
    %c1_657 = arith.constant 1 : index
    %c0_658 = arith.constant 0 : index
    %c0_659 = arith.constant 0 : index
    %457 = vector.load %arg4[%c15_656, %c1_657, %c0_658, %c0_659] : memref<16x4x16x64xf32, #tpu.memory_space<vmem>>, vector<1x1x16x64xf32>
    %458 = vector.shape_cast %457 : vector<1x1x16x64xf32> to vector<16x64xf32>
    %cst_660 = arith.constant dense<0.000000e+00> : vector<8x64xf32>
    %459 = tpu.matmul %456, %458, %cst_660 {dimension_numbers = #tpu.dot_dimension_numbers<[1], [0], [0], [1], [0, 0, 1, 1], [], []>} : vector<8x16xf32>, vector<16x64xf32>, vector<8x64xf32> -> vector<8x64xf32>
    %460 = arith.addf %454, %459 : vector<8x64xf32>
    %c0_661 = arith.constant 0 : index
    %c2_662 = arith.constant 2 : index
    %c0_663 = arith.constant 0 : index
    %c0_664 = arith.constant 0 : index
    %461 = vector.load %arg3[%c0_661, %c2_662, %c0_663, %c0_664] : memref<1x4x8x16xf32, #tpu.memory_space<vmem>>, vector<1x1x8x16xf32>
    %462 = vector.shape_cast %461 : vector<1x1x8x16xf32> to vector<8x16xf32>
    %c15_665 = arith.constant 15 : index
    %c2_666 = arith.constant 2 : index
    %c0_667 = arith.constant 0 : index
    %c0_668 = arith.constant 0 : index
    %463 = vector.load %arg4[%c15_665, %c2_666, %c0_667, %c0_668] : memref<16x4x16x64xf32, #tpu.memory_space<vmem>>, vector<1x1x16x64xf32>
    %464 = vector.shape_cast %463 : vector<1x1x16x64xf32> to vector<16x64xf32>
    %cst_669 = arith.constant dense<0.000000e+00> : vector<8x64xf32>
    %465 = tpu.matmul %462, %464, %cst_669 {dimension_numbers = #tpu.dot_dimension_numbers<[1], [0], [0], [1], [0, 0, 1, 1], [], []>} : vector<8x16xf32>, vector<16x64xf32>, vector<8x64xf32> -> vector<8x64xf32>
    %466 = arith.addf %460, %465 : vector<8x64xf32>
    %c0_670 = arith.constant 0 : index
    %c3_671 = arith.constant 3 : index
    %c0_672 = arith.constant 0 : index
    %c0_673 = arith.constant 0 : index
    %467 = vector.load %arg3[%c0_670, %c3_671, %c0_672, %c0_673] : memref<1x4x8x16xf32, #tpu.memory_space<vmem>>, vector<1x1x8x16xf32>
    %468 = vector.shape_cast %467 : vector<1x1x8x16xf32> to vector<8x16xf32>
    %c15_674 = arith.constant 15 : index
    %c3_675 = arith.constant 3 : index
    %c0_676 = arith.constant 0 : index
    %c0_677 = arith.constant 0 : index
    %469 = vector.load %arg4[%c15_674, %c3_675, %c0_676, %c0_677] : memref<16x4x16x64xf32, #tpu.memory_space<vmem>>, vector<1x1x16x64xf32>
    %470 = vector.shape_cast %469 : vector<1x1x16x64xf32> to vector<16x64xf32>
    %cst_678 = arith.constant dense<0.000000e+00> : vector<8x64xf32>
    %471 = tpu.matmul %468, %470, %cst_678 {dimension_numbers = #tpu.dot_dimension_numbers<[1], [0], [0], [1], [0, 0, 1, 1], [], []>} : vector<8x16xf32>, vector<16x64xf32>, vector<8x64xf32> -> vector<8x64xf32>
    %472 = arith.addf %466, %471 : vector<8x64xf32>
    %c15_679 = arith.constant 15 : index
    %c0_680 = arith.constant 0 : index
    %c0_681 = arith.constant 0 : index
    %473 = vector.load %arg5[%c15_679, %c0_680, %c0_681] : memref<16x1x64xf32, #tpu.memory_space<vmem>>, vector<1x1x64xf32>
    %474 = vector.shape_cast %473 : vector<1x1x64xf32> to vector<1x64xf32>
    %475 = vector.broadcast %474 : vector<1x64xf32> to vector<8x64xf32>
    %476 = arith.addf %472, %475 : vector<8x64xf32>
    %c0_682 = arith.constant 0 : index
    %c3_683 = arith.constant 3 : index
    %c0_684 = arith.constant 0 : index
    %c3_685 = arith.constant 3 : index
    %c0_686 = arith.constant 0 : index
    %477 = vector.load %arg6[%c0_682, %c3_683, %c0_684, %c3_685, %c0_686] : memref<1x4x8x4x64xf32, #tpu.memory_space<vmem>>, vector<1x1x8x1x64xf32>
    %478 = vector.shape_cast %477 : vector<1x1x8x1x64xf32> to vector<8x64xf32>
    %479 = vector.shape_cast %476 : vector<8x64xf32> to vector<1x1x8x1x64xf32>
    tpu.vector_store %arg6[%c0_682, %c3_683, %c0_684, %c3_685, %c0_686], %479 {strides = array<i32>} : memref<1x4x8x4x64xf32, #tpu.memory_space<vmem>>, vector<1x1x8x1x64xf32>,
    return
  }
  func.func @transform_0(%arg0: i32, %arg1: i32, %arg2: i32) -> (i32, i32, i32, i32) {
    %c0_i32 = arith.constant 0 : i32
    %c0_i32_0 = arith.constant 0 : i32
    return %arg0, %c0_i32, %arg1, %arg2 : i32, i32, i32, i32
  }
  func.func @transform_1(%arg0: i32, %arg1: i32, %arg2: i32) -> (i32, i32, i32, i32) {
    %c0_i32 = arith.constant 0 : i32
    %c0_i32_0 = arith.constant 0 : i32
    %c0_i32_1 = arith.constant 0 : i32
    %c0_i32_2 = arith.constant 0 : i32
    %c0_i32_3 = arith.constant 0 : i32
    return %c0_i32, %c0_i32_0, %c0_i32_1, %c0_i32_2 : i32, i32, i32, i32
  }
  func.func @transform_2(%arg0: i32, %arg1: i32, %arg2: i32) -> (i32, i32, i32) {
    %c0_i32 = arith.constant 0 : i32
    %c0_i32_0 = arith.constant 0 : i32
    %c0_i32_1 = arith.constant 0 : i32
    %c0_i32_2 = arith.constant 0 : i32
    return %c0_i32, %c0_i32_0, %c0_i32_1 : i32, i32, i32
  }
  func.func @transform_3(%arg0: i32, %arg1: i32, %arg2: i32) -> (i32, i32, i32, i32, i32) {
    %c0_i32 = arith.constant 0 : i32
    %c0_i32_0 = arith.constant 0 : i32
    %c0_i32_1 = arith.constant 0 : i32
    return %arg0, %c0_i32, %arg1, %c0_i32_0, %arg2 : i32, i32, i32, i32, i32
  }
}

</mosaic_0001>

<llo_original>
// kernel: tpu_custom_call.1
$region0: #{tpu_custom_call.1}
  #allocation0 [shape = 'u32[]', space=smem, size = 0x4, offset = 0x4, fixed_abs, tag = 'smem constant byte address 0x4 - core index']
  #allocation1 [shape = 'u32[144,128]{1,0:T(1,128)}', space=vmem, size = 0x12000, scoped, tag = 'internal scratch']
  #allocation9 [shape = 's32[]', space=sflag, size = 0x4, offset = 0, fixed_abs, tag = 'sflag constant byte address 0x0 - dummy sync flag']
  %s0 = inlined_call_operand.hbm [shape: f32[2,4,16,16], index: 0, kind: input, shape index: {}]
  %s1 = inlined_call_operand.hbm [shape: f32[16,4,16,64], index: 1, kind: input, shape index: {}]
  %s2 = inlined_call_operand.hbm [shape: f32[16,1,64], index: 2, kind: input, shape index: {}]
  %s3 = inlined_call_operand.hbm [shape: f32[2,4,16,4,64], index: 3, kind: output, shape index: {}]
  %s4 = sld [smem:[#allocation0]]
  $region57: #{tpu_custom_call.1} parent=0
    _
  %s6 = ssub.s32 1, %s4
  %s7 = scalar_select 0, %s6, %s4
  $region1: #{tpu_custom_call.1} parent=0
    #allocation2 [shape = 'u8[32768]{0}', space=vmem, size = 0x8000, scoped, tag = 'input window, operand 0']
    #allocation3 [shape = 's32[2]{0}', space=sflag, size = 0x8, scoped, tag = 'scoped memory for tpu_custom_call.1']
    #allocation4 [shape = 's32[2]{0}', space=sflag, size = 0x8, scoped, tag = 'scoped memory for tpu_custom_call.1']
    #allocation5 [shape = 'u8[524288]{0}', space=vmem, size = 0x80000, scoped, tag = 'input window, operand 1, single buffered']
    #allocation6 [shape = 's32[1]{0}', space=sflag, size = 0x4, scoped, tag = 'scoped memory for tpu_custom_call.1']
    #allocation7 [shape = 'u8[8192]{0}', space=vmem, size = 0x2000, scoped, tag = 'input window, operand 2, single buffered']
    #allocation8 [shape = 'u8[131072]{0}', space=vmem, size = 0x20000, scoped, tag = 'output window, operand 0']
    %8 = vsyncpa [#allocation3], 0
    %s9 = scalar_lea.sflag [#allocation3], 1
    %10 = vsyncpa %s9, 0
    %11 = vsyncpa [#allocation6], 0
    %12 = vsyncpa [#allocation4], 0
    %s13 = scalar_lea.sflag [#allocation4], 1
    %14 = vsyncpa %s13, 0
    loop: start=0, step=1, limit=6
    $region2: #{tpu_custom_call.1} parent=1 // loop_pre_header
      _
    $region3: #{tpu_custom_call.1} parent=1 // loop_header
      %s16 = sphi 0, %s20
      %p17 = scmp.ge.s32.totalorder %s16, 6
      %s23 = sphi 0, %s42
      %s24 = sphi 0, %s38
      %s25 = sphi 0, %s34
      %s26 = sphi 0, %s23
      %s27 = sphi 0, %s24
      %s28 = sphi 0, %s25
      %s29 = sphi 0, %s26
      %s30 = sphi 0, %s27
      %s31 = sphi 0, %s28
      %s49 = sphi 0, %s51
      %s52 = sphi 0, %s49
      %s53 = sphi 0, %s52
      %s69 = sphi 0, %s53
      %s73 = sphi 0, %s73
      %s75 = sphi 0, %s73
      %s76 = sphi 0, %s75
      %s90 = sphi 0, %s76
      %s94 = sphi 0, %s94
      %s96 = sphi 0, %s94
      %s97 = sphi 0, %s96
      %s111 = sphi 0, %s97
      %s121 = sphi 0, %s123
      %s124 = sphi 0, %s121
      %s125 = sphi 0, %s124
      %s141 = sphi 0, %s125
    $region4: #{tpu_custom_call.1} parent=1 // loop_header_branch
      %19 = sbr.rel (%p17) target = $region8
    $region5: #{tpu_custom_call.1} parent=1 // loop_body
      %s21 = ssub.s32 %s16, 1
      %s22 = ssub.s32 %s16, 2
      %s32 = sadd.s32 1, %s25
      %p33 = scmp.ge.s32.totalorder %s32, 1
      %s34 = scalar_select %p33, 0, %s32
      %s35 = sadd.s32 1, %s24
      %s36 = scalar_select %p33, %s35, %s24
      %p37 = scmp.ge.s32.totalorder %s36, 2
      %s38 = scalar_select %p37, 0, %s36
      %s39 = sadd.s32 1, %s23
      %s40 = scalar_select %p37, %s39, %s23
      %p41 = scmp.ge.s32.totalorder %s40, 2
      %s42 = scalar_select %p41, 0, %s40
      %s43 = ssub.s32 %s23, %s42
      %s44 = ssub.s32 %s24, %s38
      %s45 = sor.u32 %s43, %s44
      %s46 = ssub.s32 %s25, %s34
      %s47 = sor.u32 %s45, %s46
      %p48 = scmp.eq.s32.totalorder %s47, 0
      %s50 = sadd.s32 %s49, 1
      %s51 = scalar_select %p48, %s49, %s50
      %p54 = pneg %p48
      %p55 = scmp.eq.s32.totalorder %s16, 3
      %p56 = por %p54, %p55
      %p57 = scmp.ne.s32.totalorder %s49, %s52
      %p58 = scmp.eq.s32.totalorder %s16, 0
      %p59 = por %p57, %p58
      %p60 = scmp.ne.s32.totalorder %s49, %s52
      %p61 = scmp.eq.s32.totalorder %s21, 3
      %p62 = por %p60, %p61
      %p63 = scmp.ne.s32.totalorder %s52, %s53
      %p64 = scmp.eq.s32.totalorder %s21, 0
      %p65 = por %p63, %p64
      %p66 = scmp.ne.s32.totalorder %s52, %s53
      %p67 = scmp.eq.s32.totalorder %s22, 3
      %p68 = por %p66, %p67
      %p70 = scmp.ne.s32.totalorder %s53, %s69
      %p71 = scmp.eq.s32.totalorder %s22, 0
      %p72 = por %p70, %p71
      %s74 = sadd.s32 %s73, 1
      %p77 = scmp.eq.s32.totalorder %s16, 3
      %p78 = scmp.ne.s32.totalorder %s73, %s75
      %p79 = scmp.eq.s32.totalorder %s16, 0
      %p80 = por %p78, %p79
      %p81 = scmp.ne.s32.totalorder %s73, %s75
      %p82 = scmp.eq.s32.totalorder %s21, 3
      %p83 = por %p81, %p82
      %p84 = scmp.ne.s32.totalorder %s75, %s76
      %p85 = scmp.eq.s32.totalorder %s21, 0
      %p86 = por %p84, %p85
      %p87 = scmp.ne.s32.totalorder %s75, %s76
      %p88 = scmp.eq.s32.totalorder %s22, 3
      %p89 = por %p87, %p88
      %p91 = scmp.ne.s32.totalorder %s76, %s90
      %p92 = scmp.eq.s32.totalorder %s22, 0
      %p93 = por %p91, %p92
      %s95 = sadd.s32 %s94, 1
      %p98 = scmp.eq.s32.totalorder %s16, 3
      %p99 = scmp.ne.s32.totalorder %s94, %s96
      %p100 = scmp.eq.s32.totalorder %s16, 0
      %p101 = por %p99, %p100
      %p102 = scmp.ne.s32.totalorder %s94, %s96
      %p103 = scmp.eq.s32.totalorder %s21, 3
      %p104 = por %p102, %p103
      %p105 = scmp.ne.s32.totalorder %s96, %s97
      %p106 = scmp.eq.s32.totalorder %s21, 0
      %p107 = por %p105, %p106
      %p108 = scmp.ne.s32.totalorder %s96, %s97
      %p109 = scmp.eq.s32.totalorder %s22, 3
      %p110 = por %p108, %p109
      %p112 = scmp.ne.s32.totalorder %s97, %s111
      %p113 = scmp.eq.s32.totalorder %s22, 0
      %p114 = por %p112, %p113
      %s115 = ssub.s32 %s23, %s42
      %s116 = ssub.s32 %s24, %s38
      %s117 = sor.u32 %s115, %s116
      %s118 = ssub.s32 %s25, %s34
      %s119 = sor.u32 %s117, %s118
      %p120 = scmp.eq.s32.totalorder %s119, 0
      %s122 = sadd.s32 %s121, 1
      %s123 = scalar_select %p120, %s121, %s122
      %p126 = pneg %p120
      %p127 = scmp.eq.s32.totalorder %s16, 3
      %p128 = por %p126, %p127
      %p129 = scmp.ne.s32.totalorder %s121, %s124
      %p130 = scmp.eq.s32.totalorder %s16, 0
      %p131 = por %p129, %p130
      %p132 = scmp.ne.s32.totalorder %s121, %s124
      %p133 = scmp.eq.s32.totalorder %s21, 3
      %p134 = por %p132, %p133
      %p135 = scmp.ne.s32.totalorder %s124, %s125
      %p136 = scmp.eq.s32.totalorder %s21, 0
      %p137 = por %p135, %p136
      %p138 = scmp.ne.s32.totalorder %s124, %s125
      %p139 = scmp.eq.s32.totalorder %s22, 3
      %p140 = por %p138, %p139
      %p142 = scmp.ne.s32.totalorder %s125, %s141
      %p143 = scmp.eq.s32.totalorder %s22, 0
      %p144 = por %p142, %p143
      %p145 = scmp.le.s32.totalorder 1, %s16
      %p146 = scmp.lt.s32.totalorder %s16, 5
      %p147 = pnand %p145, %p146
      %p148 = pneg %p147
      // Predicated region
      $region9: #{tpu_custom_call.1} parent=5 // pred_check
        _
      $region10: #{tpu_custom_call.1} parent=5 // pred_check_branch
        %150 = sbr.rel (%p147) target = $region12
      $region11: #{tpu_custom_call.1} parent=5 // pred_region
        %s151 = ssub.s32 %s16, 1
        // Predicated region
        $region13: #{tpu_custom_call.1} parent=11 // pred_check
          %p152 = pneg %p86
        $region14: #{tpu_custom_call.1} parent=11 // pred_check_branch
          %154 = sbr.rel (%p152) target = $region16
        $region15: #{tpu_custom_call.1} parent=11 // pred_region
          %s156 = ssub.s32 16384, 16384
          %157 = vsyncadd [#allocation6], %s156
          %s158 = sshll.u32 [#allocation5], 4
          %s159 = int_to_ptr.vmem [resolvable:$true] %s158
          %164 = dma.hbm_to_vmem [thread:$0]  %s1, 16384, %s159, [#allocation6], 128, 128, 8
        $region16: #{tpu_custom_call.1} parent=11 // pred_fallthru
          _
        // Predicated region
        $region17: #{tpu_custom_call.1} parent=11 // pred_check
          %p165 = pneg %p107
        $region18: #{tpu_custom_call.1} parent=11 // pred_check_branch
          %167 = sbr.rel (%p165) target = $region20
        $region19: #{tpu_custom_call.1} parent=11 // pred_region
          %s169 = ssub.s32 256, 256
          %170 = vsyncadd [#allocation6], %s169
          %s171 = sshll.u32 [#allocation7], 4
          %s172 = int_to_ptr.vmem [resolvable:$true] %s171
          %177 = dma.hbm_to_vmem [thread:$0]  %s2, 256, %s172, [#allocation6], 16, 16, 1
        $region20: #{tpu_custom_call.1} parent=11 // pred_fallthru
          _
      $region12: #{tpu_custom_call.1} parent=5 // pred_fallthru
        _
      %p178 = scmp.lt.s32.totalorder %s16, 4
      // Predicated region
      $region21: #{tpu_custom_call.1} parent=5 // pred_check
        %p179 = pneg %p178
      $region22: #{tpu_custom_call.1} parent=5 // pred_check_branch
        %181 = sbr.rel (%p179) target = $region24
      $region23: #{tpu_custom_call.1} parent=5 // pred_region
        // Predicated region
        $region25: #{tpu_custom_call.1} parent=23 // pred_check
          %p182 = pneg %p59
        $region26: #{tpu_custom_call.1} parent=23 // pred_check_branch
          %184 = sbr.rel (%p182) target = $region28
        $region27: #{tpu_custom_call.1} parent=23 // pred_region
          %s185 = sand.u32 %s49, 1
          %s186 = scalar_lea.sflag [#allocation3], %s185
          %s187 = sand.u32 %s49, 1
          %s188 = smul.addr %s187, 32
          %s189 = scalar_lea.vmem [#allocation2], %s188
          %s191 = ssub.s32 512, 512
          %192 = vsyncadd %s186, %s191
          %s193 = sadd.s32 %s25, %s24
          %s194 = smul.addr %s23, 8
          %s195 = sadd.s32 %s193, %s194
          %s196 = smul.addr %s195, 128
          %s197 = scalar_lea.hbm %s0, %s196
          %s198 = sshll.u32 %s189, 4
          %s199 = int_to_ptr.vmem [resolvable:$true] %s198
          %204 = dma.hbm_to_vmem [thread:$0]  %s197, 512, %s199, %s186, 256, 128, 8
        $region28: #{tpu_custom_call.1} parent=23 // pred_fallthru
          _
      $region24: #{tpu_custom_call.1} parent=5 // pred_fallthru
        _
      %p205 = scmp.le.s32.totalorder 1, %s16
      %p206 = scmp.lt.s32.totalorder %s16, 5
      %p207 = pnand %p205, %p206
      %p208 = pneg %p207
      // Predicated region
      $region29: #{tpu_custom_call.1} parent=5 // pred_check
        _
      $region30: #{tpu_custom_call.1} parent=5 // pred_check_branch
        %210 = sbr.rel (%p207) target = $region32
      $region31: #{tpu_custom_call.1} parent=5 // pred_region
        %s211 = ssub.s32 %s16, 1
        %s212 = sand.u32 %s52, 1
        %s213 = scalar_lea.sflag [#allocation3], %s212
        %s214 = sand.u32 %s52, 1
        %s215 = smul.addr %s214, 32
        %s216 = scalar_lea.vmem [#allocation2], %s215
        // Predicated region
        $region33: #{tpu_custom_call.1} parent=31 // pred_check
          %p217 = pneg %p65
        $region34: #{tpu_custom_call.1} parent=31 // pred_check_branch
          %219 = sbr.rel (%p217) target = $region36
        $region35: #{tpu_custom_call.1} parent=31 // pred_region
          %220 = dma.done %s213, 512
        $region36: #{tpu_custom_call.1} parent=31 // pred_fallthru
          _
        // Predicated region
        $region37: #{tpu_custom_call.1} parent=31 // pred_check
          %p221 = pneg %p86
        $region38: #{tpu_custom_call.1} parent=31 // pred_check_branch
          %223 = sbr.rel (%p221) target = $region40
        $region39: #{tpu_custom_call.1} parent=31 // pred_region
          %224 = dma.done [#allocation6], 16384
        $region40: #{tpu_custom_call.1} parent=31 // pred_fallthru
          _
        // Predicated region
        $region41: #{tpu_custom_call.1} parent=31 // pred_check
          %p225 = pneg %p107
        $region42: #{tpu_custom_call.1} parent=31 // pred_check_branch
          %227 = sbr.rel (%p225) target = $region44
        $region43: #{tpu_custom_call.1} parent=31 // pred_region
          %228 = dma.done [#allocation6], 256
        $region44: #{tpu_custom_call.1} parent=31 // pred_fallthru
          _
        %s229 = sand.u32 %s52, 1
        %s230 = scalar_lea.sflag [#allocation3], %s229
        %s231 = sand.u32 %s52, 1
        %s232 = smul.addr %s231, 32
        %s233 = scalar_lea.vmem [#allocation2], %s232
        %p234 = pneg %p65
        %p235 = pneg %p62
        %p236 = pneg %p86
        %p237 = pneg %p83
        %p238 = pneg %p107
        %p239 = pneg %p104
        %p240 = pneg %p137
        %p241 = pneg %p134
        %s242 = sand.u32 %s124, 1
        %s243 = scalar_lea.sflag [#allocation4], %s242
        %s244 = sand.u32 %s124, 1
        %s245 = smul.addr %s244, 128
        %s246 = scalar_lea.vmem [#allocation8], %s245
        %s247 = smul.u32 8, %s27
        %v248 = vld [vmem:[%s216] sm:$0xff]
        %v249 = vld [vmem:[#allocation5] sm:$0xff]
        %v250 = vld [vmem:[#allocation5 + $0x8] sm:$0xff]
        %s251 = scalar_lea.vmem %s216, 8 [#allocation2]
        %v252 = vld [vmem:[%s251] sm:$0xff]
        %s253 = scalar_lea.vmem [#allocation5], 16
        %v254 = vld [vmem:[%s253] sm:$0xff]
        %v255 = vld [vmem:[%s253 + $0x8] sm:$0xff]
        %vm256 = vcmask 130048
        %v258 = vsel %vm256, %v252, 0
        %260 = vmatprep.subr.mxu0 0.0
        %261 = vmatpush1.msra.mxu0 %v254
        %262 = vmatprep.subr.mxu0 0.0
        %263 = vmatpush1.msra.mxu0 %v255
        %264 = vmatprep.subr.mxu0 0.0
        %265 = vmatpush1.msra.mxu0 0.0
        %266 = vmatprep.subr.mxu0 0.0
        %267 = vmatpush1.msra.mxu0 0.0
        %268 = vmatprep.subr.mxu0 0.0
        %269 = vmatpush1.msra.mxu0 0.0
        %270 = vmatprep.subr.mxu0 0.0
        %271 = vmatpush1.msra.mxu0 0.0
        %272 = vmatprep.subr.mxu0 0.0
        %273 = vmatpush1.msra.mxu0 0.0
        %274 = vmatprep.subr.mxu0 0.0
        %275 = vmatpush1.msra.mxu0 0.0
        %276 = vmatprep.subr.mxu0 0.0
        %277 = vmatpush1.msra.mxu0 0.0
        %278 = vmatprep.subr.mxu0 0.0
        %279 = vmatpush1.msra.mxu0 0.0
        %280 = vmatprep.subr.mxu0 0.0
        %281 = vmatpush1.msra.mxu0 0.0
        %282 = vmatprep.subr.mxu0 0.0
        %283 = vmatpush1.msra.mxu0 0.0
        %284 = vmatprep.subr.mxu0 0.0
        %285 = vmatpush1.msra.mxu0 0.0
        %286 = vmatprep.subr.mxu0 0.0
        %287 = vmatpush1.msra.mxu0 0.0
        %288 = vmatprep.subr.mxu0 0.0
        %289 = vmatpush1.msra.mxu0 0.0
        %290 = vmatprep.subr.mxu0 0.0
        %291 = vmatpush1.msra.mxu0 0.0
        %292 = vmatprep.subr.mxu0 0.0
        %293 = vmatpush1.msra.mxu0 0.0
        %294 = vmatprep.subr.mxu0 0.0
        %295 = vmatpush1.msra.mxu0 0.0
        %296 = vmatprep.subr.mxu0 0.0
        %297 = vmatpush1.msra.mxu0 0.0
        %298 = vmatprep.subr.mxu0 0.0
        %299 = vmatpush1.msra.mxu0 0.0
        %300 = vmatprep.subr.mxu0 0.0
        %301 = vmatpush1.msra.mxu0 0.0
        %302 = vmatprep.subr.mxu0 0.0
        %303 = vmatpush1.msra.mxu0 0.0
        %304 = vmatprep.subr.mxu0 0.0
        %305 = vmatpush1.msra.mxu0 0.0
        %306 = vmatprep.subr.mxu0 0.0
        %307 = vmatpush1.msra.mxu0 0.0
        %308 = vmatprep.subr.mxu0 0.0
        %309 = vmatpush1.msra.mxu0 0.0
        %310 = vmatprep.subr.mxu0 0.0
        %311 = vmatpush1.msra.mxu0 0.0
        %312 = vmatprep.subr.mxu0 0.0
        %313 = vmatpush1.msra.mxu0 0.0
        %314 = vmatprep.subr.mxu0 0.0
        %315 = vmatpush1.msra.mxu0 0.0
        %316 = vmatprep.subr.mxu0 0.0
        %317 = vmatpush1.msra.mxu0 0.0
        %318 = vmatprep.subr.mxu0 0.0
        %319 = vmatpush1.msra.mxu0 0.0
        %320 = vmatprep.subr.mxu0 0.0
        %321 = vmatpush1.msra.mxu0 0.0
        %322 = vmatprep.subr.mxu0 0.0
        %323 = vmatpush1.msra.mxu0 0.0
        %324 = vmatprep.mubr.f32.mxu0 0.0
        %325 = vmatmul.mubr.f32.gmra.mrb[0].mxu0 %v258
        %v326 = vpop.f32.mrb[0].mxu0
        %v327 = vadd.f32 0.0, %v326
        %v328 = vpop.f32.mrb[0].mxu0
        %329 = vdwg.mxu0
        %v331 = vsel %vm256, %v248, 0
        %333 = vmatprep.subr.mxu0 0.0
        %334 = vmatpush1.msra.mxu0 %v249
        %335 = vmatprep.subr.mxu0 0.0
        %336 = vmatpush1.msra.mxu0 %v250
        %337 = vmatprep.subr.mxu0 0.0
        %338 = vmatpush1.msra.mxu0 0.0
        %339 = vmatprep.subr.mxu0 0.0
        %340 = vmatpush1.msra.mxu0 0.0
        %341 = vmatprep.subr.mxu0 0.0
        %342 = vmatpush1.msra.mxu0 0.0
        %343 = vmatprep.subr.mxu0 0.0
        %344 = vmatpush1.msra.mxu0 0.0
        %345 = vmatprep.subr.mxu0 0.0
        %346 = vmatpush1.msra.mxu0 0.0
        %347 = vmatprep.subr.mxu0 0.0
        %348 = vmatpush1.msra.mxu0 0.0
        %349 = vmatprep.subr.mxu0 0.0
        %350 = vmatpush1.msra.mxu0 0.0
        %351 = vmatprep.subr.mxu0 0.0
        %352 = vmatpush1.msra.mxu0 0.0
        %353 = vmatprep.subr.mxu0 0.0
        %354 = vmatpush1.msra.mxu0 0.0
        %355 = vmatprep.subr.mxu0 0.0
        %356 = vmatpush1.msra.mxu0 0.0
        %357 = vmatprep.subr.mxu0 0.0
        %358 = vmatpush1.msra.mxu0 0.0
        %359 = vmatprep.subr.mxu0 0.0
        %360 = vmatpush1.msra.mxu0 0.0
        %361 = vmatprep.subr.mxu0 0.0
        %362 = vmatpush1.msra.mxu0 0.0
        %363 = vmatprep.subr.mxu0 0.0
        %364 = vmatpush1.msra.mxu0 0.0
        %365 = vmatprep.subr.mxu0 0.0
        %366 = vmatpush1.msra.mxu0 0.0
        %367 = vmatprep.subr.mxu0 0.0
        %368 = vmatpush1.msra.mxu0 0.0
        %369 = vmatprep.subr.mxu0 0.0
        %370 = vmatpush1.msra.mxu0 0.0
        %371 = vmatprep.subr.mxu0 0.0
        %372 = vmatpush1.msra.mxu0 0.0
        %373 = vmatprep.subr.mxu0 0.0
        %374 = vmatpush1.msra.mxu0 0.0
        %375 = vmatprep.subr.mxu0 0.0
        %376 = vmatpush1.msra.mxu0 0.0
        %377 = vmatprep.subr.mxu0 0.0
        %378 = vmatpush1.msra.mxu0 0.0
        %379 = vmatprep.subr.mxu0 0.0
        %380 = vmatpush1.msra.mxu0 0.0
        %381 = vmatprep.subr.mxu0 0.0
        %382 = vmatpush1.msra.mxu0 0.0
        %383 = vmatprep.subr.mxu0 0.0
        %384 = vmatpush1.msra.mxu0 0.0
        %385 = vmatprep.subr.mxu0 0.0
        %386 = vmatpush1.msra.mxu0 0.0
        %387 = vmatprep.subr.mxu0 0.0
        %388 = vmatpush1.msra.mxu0 0.0
        %389 = vmatprep.subr.mxu0 0.0
        %390 = vmatpush1.msra.mxu0 0.0
        %391 = vmatprep.subr.mxu0 0.0
        %392 = vmatpush1.msra.mxu0 0.0
        %393 = vmatprep.subr.mxu0 0.0
        %394 = vmatpush1.msra.mxu0 0.0
        %395 = vmatprep.subr.mxu0 0.0
        %396 = vmatpush1.msra.mxu0 0.0
        %397 = vmatprep.mubr.f32.mxu0 0.0
        %398 = vmatmul.mubr.f32.gmra.mrb[0].mxu0 %v331
        %v399 = vpop.f32.mrb[0].mxu0
        %v400 = vadd.f32 %v327, %v399
        %v401 = vpop.f32.mrb[0].mxu0
        %402 = vdwg.mxu0
        %s403 = scalar_lea.vmem %s216, 16 [#allocation2]
        %v404 = vld [vmem:[%s403] sm:$0xff]
        %s405 = scalar_lea.vmem [#allocation5], 32
        %v406 = vld [vmem:[%s405] sm:$0xff]
        %v407 = vld [vmem:[%s405 + $0x8] sm:$0xff]
        %v409 = vsel %vm256, %v404, 0
        %411 = vmatprep.subr.mxu0 0.0
        %412 = vmatpush1.msra.mxu0 %v406
        %413 = vmatprep.subr.mxu0 0.0
        %414 = vmatpush1.msra.mxu0 %v407
        %415 = vmatprep.subr.mxu0 0.0
        %416 = vmatpush1.msra.mxu0 0.0
        %417 = vmatprep.subr.mxu0 0.0
        %418 = vmatpush1.msra.mxu0 0.0
        %419 = vmatprep.subr.mxu0 0.0
        %420 = vmatpush1.msra.mxu0 0.0
        %421 = vmatprep.subr.mxu0 0.0
        %422 = vmatpush1.msra.mxu0 0.0
        %423 = vmatprep.subr.mxu0 0.0
        %424 = vmatpush1.msra.mxu0 0.0
        %425 = vmatprep.subr.mxu0 0.0
        %426 = vmatpush1.msra.mxu0 0.0
        %427 = vmatprep.subr.mxu0 0.0
        %428 = vmatpush1.msra.mxu0 0.0
        %429 = vmatprep.subr.mxu0 0.0
        %430 = vmatpush1.msra.mxu0 0.0
        %431 = vmatprep.subr.mxu0 0.0
        %432 = vmatpush1.msra.mxu0 0.0
        %433 = vmatprep.subr.mxu0 0.0
        %434 = vmatpush1.msra.mxu0 0.0
        %435 = vmatprep.subr.mxu0 0.0
        %436 = vmatpush1.msra.mxu0 0.0
        %437 = vmatprep.subr.mxu0 0.0
        %438 = vmatpush1.msra.mxu0 0.0
        %439 = vmatprep.subr.mxu0 0.0
        %440 = vmatpush1.msra.mxu0 0.0
        %441 = vmatprep.subr.mxu0 0.0
        %442 = vmatpush1.msra.mxu0 0.0
        %443 = vmatprep.subr.mxu0 0.0
        %444 = vmatpush1.msra.mxu0 0.0
        %445 = vmatprep.subr.mxu0 0.0
        %446 = vmatpush1.msra.mxu0 0.0
        %447 = vmatprep.subr.mxu0 0.0
        %448 = vmatpush1.msra.mxu0 0.0
        %449 = vmatprep.subr.mxu0 0.0
        %450 = vmatpush1.msra.mxu0 0.0
        %451 = vmatprep.subr.mxu0 0.0
        %452 = vmatpush1.msra.mxu0 0.0
        %453 = vmatprep.subr.mxu0 0.0
        %454 = vmatpush1.msra.mxu0 0.0
        %455 = vmatprep.subr.mxu0 0.0
        %456 = vmatpush1.msra.mxu0 0.0
        %457 = vmatprep.subr.mxu0 0.0
        %458 = vmatpush1.msra.mxu0 0.0
        %459 = vmatprep.subr.mxu0 0.0
        %460 = vmatpush1.msra.mxu0 0.0
        %461 = vmatprep.subr.mxu0 0.0
        %462 = vmatpush1.msra.mxu0 0.0
        %463 = vmatprep.subr.mxu0 0.0
        %464 = vmatpush1.msra.mxu0 0.0
        %465 = vmatprep.subr.mxu0 0.0
        %466 = vmatpush1.msra.mxu0 0.0
        %467 = vmatprep.subr.mxu0 0.0
        %468 = vmatpush1.msra.mxu0 0.0
        %469 = vmatprep.subr.mxu0 0.0
        %470 = vmatpush1.msra.mxu0 0.0
        %471 = vmatprep.subr.mxu0 0.0
        %472 = vmatpush1.msra.mxu0 0.0
        %473 = vmatprep.subr.mxu0 0.0
        %474 = vmatpush1.msra.mxu0 0.0
        %475 = vmatprep.mubr.f32.mxu0 0.0
        %476 = vmatmul.mubr.f32.gmra.mrb[0].mxu0 %v409
        %v477 = vpop.f32.mrb[0].mxu0
        %v478 = vadd.f32 0.0, %v477
        %v479 = vpop.f32.mrb[0].mxu0
        %480 = vdwg.mxu0
        %v481 = vadd.f32 %v400, %v478
        %s482 = scalar_lea.vmem %s216, 24 [#allocation2]
        %v483 = vld [vmem:[%s482] sm:$0xff]
        %s484 = scalar_lea.vmem [#allocation5], 48
        %v485 = vld [vmem:[%s484] sm:$0xff]
        %v486 = vld [vmem:[%s484 + $0x8] sm:$0xff]
        %v488 = vsel %vm256, %v483, 0
        %490 = vmatprep.subr.mxu0 0.0
        %491 = vmatpush1.msra.mxu0 %v485
        %492 = vmatprep.subr.mxu0 0.0
        %493 = vmatpush1.msra.mxu0 %v486
        %494 = vmatprep.subr.mxu0 0.0
        %495 = vmatpush1.msra.mxu0 0.0
        %496 = vmatprep.subr.mxu0 0.0
        %497 = vmatpush1.msra.mxu0 0.0
        %498 = vmatprep.subr.mxu0 0.0
        %499 = vmatpush1.msra.mxu0 0.0
        %500 = vmatprep.subr.mxu0 0.0
        %501 = vmatpush1.msra.mxu0 0.0
        %502 = vmatprep.subr.mxu0 0.0
        %503 = vmatpush1.msra.mxu0 0.0
        %504 = vmatprep.subr.mxu0 0.0
        %505 = vmatpush1.msra.mxu0 0.0
        %506 = vmatprep.subr.mxu0 0.0
        %507 = vmatpush1.msra.mxu0 0.0
        %508 = vmatprep.subr.mxu0 0.0
        %509 = vmatpush1.msra.mxu0 0.0
        %510 = vmatprep.subr.mxu0 0.0
        %511 = vmatpush1.msra.mxu0 0.0
        %512 = vmatprep.subr.mxu0 0.0
        %513 = vmatpush1.msra.mxu0 0.0
        %514 = vmatprep.subr.mxu0 0.0
        %515 = vmatpush1.msra.mxu0 0.0
        %516 = vmatprep.subr.mxu0 0.0
        %517 = vmatpush1.msra.mxu0 0.0
        %518 = vmatprep.subr.mxu0 0.0
        %519 = vmatpush1.msra.mxu0 0.0
        %520 = vmatprep.subr.mxu0 0.0
        %521 = vmatpush1.msra.mxu0 0.0
        %522 = vmatprep.subr.mxu0 0.0
        %523 = vmatpush1.msra.mxu0 0.0
        %524 = vmatprep.subr.mxu0 0.0
        %525 = vmatpush1.msra.mxu0 0.0
        %526 = vmatprep.subr.mxu0 0.0
        %527 = vmatpush1.msra.mxu0 0.0
        %528 = vmatprep.subr.mxu0 0.0
        %529 = vmatpush1.msra.mxu0 0.0
        %530 = vmatprep.subr.mxu0 0.0
        %531 = vmatpush1.msra.mxu0 0.0
        %532 = vmatprep.subr.mxu0 0.0
        %533 = vmatpush1.msra.mxu0 0.0
        %534 = vmatprep.subr.mxu0 0.0
        %535 = vmatpush1.msra.mxu0 0.0
        %536 = vmatprep.subr.mxu0 0.0
        %537 = vmatpush1.msra.mxu0 0.0
        %538 = vmatprep.subr.mxu0 0.0
        %539 = vmatpush1.msra.mxu0 0.0
        %540 = vmatprep.subr.mxu0 0.0
        %541 = vmatpush1.msra.mxu0 0.0
        %542 = vmatprep.subr.mxu0 0.0
        %543 = vmatpush1.msra.mxu0 0.0
        %544 = vmatprep.subr.mxu0 0.0
        %545 = vmatpush1.msra.mxu0 0.0
        %546 = vmatprep.subr.mxu0 0.0
        %547 = vmatpush1.msra.mxu0 0.0
        %548 = vmatprep.subr.mxu0 0.0
        %549 = vmatpush1.msra.mxu0 0.0
        %550 = vmatprep.subr.mxu0 0.0
        %551 = vmatpush1.msra.mxu0 0.0
        %552 = vmatprep.subr.mxu0 0.0
        %553 = vmatpush1.msra.mxu0 0.0
        %554 = vmatprep.mubr.f32.mxu0 0.0
        %555 = vmatmul.mubr.f32.gmra.mrb[0].mxu0 %v488
        %v556 = vpop.f32.mrb[0].mxu0
        %v557 = vadd.f32 0.0, %v556
        %v558 = vpop.f32.mrb[0].mxu0
        %559 = vdwg.mxu0
        %v560 = vadd.f32 %v481, %v557
        %v561 = vld [vmem:[#allocation7] sm:$0x1]
        %v563 = vlaneseq
        %v564 = vshrl.u32 %v563, 7
        %v565 = vsub.s32 0, %v564
        %v566 = vrot.slane %v561, %v565
        %v568 = vadd.f32 %v560, %v566
        %v570 = vcombine.high %v568, %v568
        %v572 = vunpack.c.l.s4 1966171168
        %v573 = vunpack.c.0.s8 %v572
        %v574 = vlaneseq
        %v575 = vshrl.u32 %v574, 7
        %v576 = vsub.s32 %v573, %v575
        %v577 = vrot.slane %v568, %v576
        %v579 = vunpack.c.l.s4 1966171168
        %v580 = vunpack.c.0.s8 %v579
        %v581 = vlaneseq
        %v582 = vshrl.u32 %v581, 7
        %v583 = vsub.s32 %v580, %v582
        %v584 = vrot.slane %v570, %v583
        %v585 = vcombine.high %v577, %v577
        %v586 = vcombine.high %v584, %v584
        %v588 = vunpack.c.l.s4 1966171168
        %v589 = vunpack.c.0.s8 %v588
        %v590 = vlaneseq
        %v591 = vshrl.u32 %v590, 7
        %v592 = vsub.s32 %v589, %v591
        %v593 = vrot.slane %v577, %v592
        %v595 = vunpack.c.l.s4 1966171168
        %v596 = vunpack.c.0.s8 %v595
        %v597 = vlaneseq
        %v598 = vshrl.u32 %v597, 7
        %v599 = vsub.s32 %v596, %v598
        %v600 = vrot.slane %v584, %v599
        %v602 = vunpack.c.l.s4 1966171168
        %v603 = vunpack.c.0.s8 %v602
        %v604 = vlaneseq
        %v605 = vshrl.u32 %v604, 7
        %v606 = vsub.s32 %v603, %v605
        %v607 = vrot.slane %v585, %v606
        %v609 = vunpack.c.l.s4 1966171168
        %v610 = vunpack.c.0.s8 %v609
        %v611 = vlaneseq
        %v612 = vshrl.u32 %v611, 7
        %v613 = vsub.s32 %v610, %v612
        %v614 = vrot.slane %v586, %v613
        %v615 = vcombine.high %v593, %v593
        %v616 = vcombine.high %v600, %v600
        %v617 = vcombine.high %v607, %v607
        %v618 = vcombine.high %v614, %v614
        %vm627 = vcmask 516096
        %628 = vst.msk [vmem:[%s246] sm:$0x1] %vm627, %v593
        %629 = vst.msk [vmem:[%s246 + $0x4] sm:$0x1] %vm627, %v607
        %630 = vst.msk [vmem:[%s246 + $0x8] sm:$0x1] %vm627, %v615
        %631 = vst.msk [vmem:[%s246 + $0xc] sm:$0x1] %vm627, %v617
        %632 = vst.msk [vmem:[%s246 + $0x10] sm:$0x1] %vm627, %v600
        %633 = vst.msk [vmem:[%s246 + $0x14] sm:$0x1] %vm627, %v614
        %634 = vst.msk [vmem:[%s246 + $0x18] sm:$0x1] %vm627, %v616
        %635 = vst.msk [vmem:[%s246 + $0x1c] sm:$0x1] %vm627, %v618
        %v636 = vld [vmem:[%s216] sm:$0xff]
        %s637 = scalar_lea.vmem [#allocation5], 64
        %v638 = vld [vmem:[%s637] sm:$0xff]
        %v639 = vld [vmem:[%s637 + $0x8] sm:$0xff]
        %v640 = vld [vmem:[%s251] sm:$0xff]
        %s641 = scalar_lea.vmem [#allocation5], 80
        %v642 = vld [vmem:[%s641] sm:$0xff]
        %v643 = vld [vmem:[%s641 + $0x8] sm:$0xff]
        %v645 = vsel %vm256, %v640, 0
        %647 = vmatprep.subr.mxu0 0.0
        %648 = vmatpush1.msra.mxu0 %v642
        %649 = vmatprep.subr.mxu0 0.0
        %650 = vmatpush1.msra.mxu0 %v643
        %651 = vmatprep.subr.mxu0 0.0
        %652 = vmatpush1.msra.mxu0 0.0
        %653 = vmatprep.subr.mxu0 0.0
        %654 = vmatpush1.msra.mxu0 0.0
        %655 = vmatprep.subr.mxu0 0.0
        %656 = vmatpush1.msra.mxu0 0.0
        %657 = vmatprep.subr.mxu0 0.0
        %658 = vmatpush1.msra.mxu0 0.0
        %659 = vmatprep.subr.mxu0 0.0
        %660 = vmatpush1.msra.mxu0 0.0
        %661 = vmatprep.subr.mxu0 0.0
        %662 = vmatpush1.msra.mxu0 0.0
        %663 = vmatprep.subr.mxu0 0.0
        %664 = vmatpush1.msra.mxu0 0.0
        %665 = vmatprep.subr.mxu0 0.0
        %666 = vmatpush1.msra.mxu0 0.0
        %667 = vmatprep.subr.mxu0 0.0
        %668 = vmatpush1.msra.mxu0 0.0
        %669 = vmatprep.subr.mxu0 0.0
        %670 = vmatpush1.msra.mxu0 0.0
        %671 = vmatprep.subr.mxu0 0.0
        %672 = vmatpush1.msra.mxu0 0.0
        %673 = vmatprep.subr.mxu0 0.0
        %674 = vmatpush1.msra.mxu0 0.0
        %675 = vmatprep.subr.mxu0 0.0
        %676 = vmatpush1.msra.mxu0 0.0
        %677 = vmatprep.subr.mxu0 0.0
        %678 = vmatpush1.msra.mxu0 0.0
        %679 = vmatprep.subr.mxu0 0.0
        %680 = vmatpush1.msra.mxu0 0.0
        %681 = vmatprep.subr.mxu0 0.0
        %682 = vmatpush1.msra.mxu0 0.0
        %683 = vmatprep.subr.mxu0 0.0
        %684 = vmatpush1.msra.mxu0 0.0
        %685 = vmatprep.subr.mxu0 0.0
        %686 = vmatpush1.msra.mxu0 0.0
        %687 = vmatprep.subr.mxu0 0.0
        %688 = vmatpush1.msra.mxu0 0.0
        %689 = vmatprep.subr.mxu0 0.0
        %690 = vmatpush1.msra.mxu0 0.0
        %691 = vmatprep.subr.mxu0 0.0
        %692 = vmatpush1.msra.mxu0 0.0
        %693 = vmatprep.subr.mxu0 0.0
        %694 = vmatpush1.msra.mxu0 0.0
        %695 = vmatprep.subr.mxu0 0.0
        %696 = vmatpush1.msra.mxu0 0.0
        %697 = vmatprep.subr.mxu0 0.0
        %698 = vmatpush1.msra.mxu0 0.0
        %699 = vmatprep.subr.mxu0 0.0
        %700 = vmatpush1.msra.mxu0 0.0
        %701 = vmatprep.subr.mxu0 0.0
        %702 = vmatpush1.msra.mxu0 0.0
        %703 = vmatprep.subr.mxu0 0.0
        %704 = vmatpush1.msra.mxu0 0.0
        %705 = vmatprep.subr.mxu0 0.0
        %706 = vmatpush1.msra.mxu0 0.0
        %707 = vmatprep.subr.mxu0 0.0
        %708 = vmatpush1.msra.mxu0 0.0
        %709 = vmatprep.subr.mxu0 0.0
        %710 = vmatpush1.msra.mxu0 0.0
        %711 = vmatprep.mubr.f32.mxu0 0.0
        %712 = vmatmul.mubr.f32.gmra.mrb[0].mxu0 %v645
        %v713 = vpop.f32.mrb[0].mxu0
        %v714 = vadd.f32 0.0, %v713
        %v715 = vpop.f32.mrb[0].mxu0
        %716 = vdwg.mxu0
        %v718 = vsel %vm256, %v636, 0
        %720 = vmatprep.subr.mxu0 0.0
        %721 = vmatpush1.msra.mxu0 %v638
        %722 = vmatprep.subr.mxu0 0.0
        %723 = vmatpush1.msra.mxu0 %v639
        %724 = vmatprep.subr.mxu0 0.0
        %725 = vmatpush1.msra.mxu0 0.0
        %726 = vmatprep.subr.mxu0 0.0
        %727 = vmatpush1.msra.mxu0 0.0
        %728 = vmatprep.subr.mxu0 0.0
        %729 = vmatpush1.msra.mxu0 0.0
        %730 = vmatprep.subr.mxu0 0.0
        %731 = vmatpush1.msra.mxu0 0.0
        %732 = vmatprep.subr.mxu0 0.0
        %733 = vmatpush1.msra.mxu0 0.0
        %734 = vmatprep.subr.mxu0 0.0
        %735 = vmatpush1.msra.mxu0 0.0
        %736 = vmatprep.subr.mxu0 0.0
        %737 = vmatpush1.msra.mxu0 0.0
        %738 = vmatprep.subr.mxu0 0.0
        %739 = vmatpush1.msra.mxu0 0.0
        %740 = vmatprep.subr.mxu0 0.0
        %741 = vmatpush1.msra.mxu0 0.0
        %742 = vmatprep.subr.mxu0 0.0
        %743 = vmatpush1.msra.mxu0 0.0
        %744 = vmatprep.subr.mxu0 0.0
        %745 = vmatpush1.msra.mxu0 0.0
        %746 = vmatprep.subr.mxu0 0.0
        %747 = vmatpush1.msra.mxu0 0.0
        %748 = vmatprep.subr.mxu0 0.0
        %749 = vmatpush1.msra.mxu0 0.0
        %750 = vmatprep.subr.mxu0 0.0
        %751 = vmatpush1.msra.mxu0 0.0
        %752 = vmatprep.subr.mxu0 0.0
        %753 = vmatpush1.msra.mxu0 0.0
        %754 = vmatprep.subr.mxu0 0.0
        %755 = vmatpush1.msra.mxu0 0.0
        %756 = vmatprep.subr.mxu0 0.0
        %757 = vmatpush1.msra.mxu0 0.0
        %758 = vmatprep.subr.mxu0 0.0
        %759 = vmatpush1.msra.mxu0 0.0
        %760 = vmatprep.subr.mxu0 0.0
        %761 = vmatpush1.msra.mxu0 0.0
        %762 = vmatprep.subr.mxu0 0.0
        %763 = vmatpush1.msra.mxu0 0.0
        %764 = vmatprep.subr.mxu0 0.0
        %765 = vmatpush1.msra.mxu0 0.0
        %766 = vmatprep.subr.mxu0 0.0
        %767 = vmatpush1.msra.mxu0 0.0
        %768 = vmatprep.subr.mxu0 0.0
        %769 = vmatpush1.msra.mxu0 0.0
        %770 = vmatprep.subr.mxu0 0.0
        %771 = vmatpush1.msra.mxu0 0.0
        %772 = vmatprep.subr.mxu0 0.0
        %773 = vmatpush1.msra.mxu0 0.0
        %774 = vmatprep.subr.mxu0 0.0
        %775 = vmatpush1.msra.mxu0 0.0
        %776 = vmatprep.subr.mxu0 0.0
        %777 = vmatpush1.msra.mxu0 0.0
        %778 = vmatprep.subr.mxu0 0.0
        %779 = vmatpush1.msra.mxu0 0.0
        %780 = vmatprep.subr.mxu0 0.0
        %781 = vmatpush1.msra.mxu0 0.0
        %782 = vmatprep.subr.mxu0 0.0
        %783 = vmatpush1.msra.mxu0 0.0
        %784 = vmatprep.mubr.f32.mxu0 0.0
        %785 = vmatmul.mubr.f32.gmra.mrb[0].mxu0 %v718
        %v786 = vpop.f32.mrb[0].mxu0
        %v787 = vadd.f32 %v714, %v786
        %v788 = vpop.f32.mrb[0].mxu0
        %789 = vdwg.mxu0
        %v790 = vld [vmem:[%s403] sm:$0xff]
        %s791 = scalar_lea.vmem [#allocation5], 96
        %v792 = vld [vmem:[%s791] sm:$0xff]
        %v793 = vld [vmem:[%s791 + $0x8] sm:$0xff]
        %v795 = vsel %vm256, %v790, 0
        %797 = vmatprep.subr.mxu0 0.0
        %798 = vmatpush1.msra.mxu0 %v792
        %799 = vmatprep.subr.mxu0 0.0
        %800 = vmatpush1.msra.mxu0 %v793
        %801 = vmatprep.subr.mxu0 0.0
        %802 = vmatpush1.msra.mxu0 0.0
        %803 = vmatprep.subr.mxu0 0.0
        %804 = vmatpush1.msra.mxu0 0.0
        %805 = vmatprep.subr.mxu0 0.0
        %806 = vmatpush1.msra.mxu0 0.0
        %807 = vmatprep.subr.mxu0 0.0
        %808 = vmatpush1.msra.mxu0 0.0
        %809 = vmatprep.subr.mxu0 0.0
        %810 = vmatpush1.msra.mxu0 0.0
        %811 = vmatprep.subr.mxu0 0.0
        %812 = vmatpush1.msra.mxu0 0.0
        %813 = vmatprep.subr.mxu0 0.0
        %814 = vmatpush1.msra.mxu0 0.0
        %815 = vmatprep.subr.mxu0 0.0
        %816 = vmatpush1.msra.mxu0 0.0
        %817 = vmatprep.subr.mxu0 0.0
        %818 = vmatpush1.msra.mxu0 0.0
        %819 = vmatprep.subr.mxu0 0.0
        %820 = vmatpush1.msra.mxu0 0.0
        %821 = vmatprep.subr.mxu0 0.0
        %822 = vmatpush1.msra.mxu0 0.0
        %823 = vmatprep.subr.mxu0 0.0
        %824 = vmatpush1.msra.mxu0 0.0
        %825 = vmatprep.subr.mxu0 0.0
        %826 = vmatpush1.msra.mxu0 0.0
        %827 = vmatprep.subr.mxu0 0.0
        %828 = vmatpush1.msra.mxu0 0.0
        %829 = vmatprep.subr.mxu0 0.0
        %830 = vmatpush1.msra.mxu0 0.0
        %831 = vmatprep.subr.mxu0 0.0
        %832 = vmatpush1.msra.mxu0 0.0
        %833 = vmatprep.subr.mxu0 0.0
        %834 = vmatpush1.msra.mxu0 0.0
        %835 = vmatprep.subr.mxu0 0.0
        %836 = vmatpush1.msra.mxu0 0.0
        %837 = vmatprep.subr.mxu0 0.0
        %838 = vmatpush1.msra.mxu0 0.0
        %839 = vmatprep.subr.mxu0 0.0
        %840 = vmatpush1.msra.mxu0 0.0
        %841 = vmatprep.subr.mxu0 0.0
        %842 = vmatpush1.msra.mxu0 0.0
        %843 = vmatprep.subr.mxu0 0.0
        %844 = vmatpush1.msra.mxu0 0.0
        %845 = vmatprep.subr.mxu0 0.0
        %846 = vmatpush1.msra.mxu0 0.0
        %847 = vmatprep.subr.mxu0 0.0
        %848 = vmatpush1.msra.mxu0 0.0
        %849 = vmatprep.subr.mxu0 0.0
        %850 = vmatpush1.msra.mxu0 0.0
        %851 = vmatprep.subr.mxu0 0.0
        %852 = vmatpush1.msra.mxu0 0.0
        %853 = vmatprep.subr.mxu0 0.0
        %854 = vmatpush1.msra.mxu0 0.0
        %855 = vmatprep.subr.mxu0 0.0
        %856 = vmatpush1.msra.mxu0 0.0
        %857 = vmatprep.subr.mxu0 0.0
        %858 = vmatpush1.msra.mxu0 0.0
        %859 = vmatprep.subr.mxu0 0.0
        %860 = vmatpush1.msra.mxu0 0.0
        %861 = vmatprep.mubr.f32.mxu0 0.0
        %862 = vmatmul.mubr.f32.gmra.mrb[0].mxu0 %v795
        %v863 = vpop.f32.mrb[0].mxu0
        %v864 = vadd.f32 0.0, %v863
        %v865 = vpop.f32.mrb[0].mxu0
        %866 = vdwg.mxu0
        %v867 = vadd.f32 %v787, %v864
        %v868 = vld [vmem:[%s482] sm:$0xff]
        %s869 = scalar_lea.vmem [#allocation5], 112
        %v870 = vld [vmem:[%s869] sm:$0xff]
        %v871 = vld [vmem:[%s869 + $0x8] sm:$0xff]
        %v873 = vsel %vm256, %v868, 0
        %875 = vmatprep.subr.mxu0 0.0
        %876 = vmatpush1.msra.mxu0 %v870
        %877 = vmatprep.subr.mxu0 0.0
        %878 = vmatpush1.msra.mxu0 %v871
        %879 = vmatprep.subr.mxu0 0.0
        %880 = vmatpush1.msra.mxu0 0.0
        %881 = vmatprep.subr.mxu0 0.0
        %882 = vmatpush1.msra.mxu0 0.0
        %883 = vmatprep.subr.mxu0 0.0
        %884 = vmatpush1.msra.mxu0 0.0
        %885 = vmatprep.subr.mxu0 0.0
        %886 = vmatpush1.msra.mxu0 0.0
        %887 = vmatprep.subr.mxu0 0.0
        %888 = vmatpush1.msra.mxu0 0.0
        %889 = vmatprep.subr.mxu0 0.0
        %890 = vmatpush1.msra.mxu0 0.0
        %891 = vmatprep.subr.mxu0 0.0
        %892 = vmatpush1.msra.mxu0 0.0
        %893 = vmatprep.subr.mxu0 0.0
        %894 = vmatpush1.msra.mxu0 0.0
        %895 = vmatprep.subr.mxu0 0.0
        %896 = vmatpush1.msra.mxu0 0.0
        %897 = vmatprep.subr.mxu0 0.0
        %898 = vmatpush1.msra.mxu0 0.0
        %899 = vmatprep.subr.mxu0 0.0
        %900 = vmatpush1.msra.mxu0 0.0
        %901 = vmatprep.subr.mxu0 0.0
        %902 = vmatpush1.msra.mxu0 0.0
        %903 = vmatprep.subr.mxu0 0.0
        %904 = vmatpush1.msra.mxu0 0.0
        %905 = vmatprep.subr.mxu0 0.0
        %906 = vmatpush1.msra.mxu0 0.0
        %907 = vmatprep.subr.mxu0 0.0
        %908 = vmatpush1.msra.mxu0 0.0
        %909 = vmatprep.subr.mxu0 0.0
        %910 = vmatpush1.msra.mxu0 0.0
        %911 = vmatprep.subr.mxu0 0.0
        %912 = vmatpush1.msra.mxu0 0.0
        %913 = vmatprep.subr.mxu0 0.0
        %914 = vmatpush1.msra.mxu0 0.0
        %915 = vmatprep.subr.mxu0 0.0
        %916 = vmatpush1.msra.mxu0 0.0
        %917 = vmatprep.subr.mxu0 0.0
        %918 = vmatpush1.msra.mxu0 0.0
        %919 = vmatprep.subr.mxu0 0.0
        %920 = vmatpush1.msra.mxu0 0.0
        %921 = vmatprep.subr.mxu0 0.0
        %922 = vmatpush1.msra.mxu0 0.0
        %923 = vmatprep.subr.mxu0 0.0
        %924 = vmatpush1.msra.mxu0 0.0
        %925 = vmatprep.subr.mxu0 0.0
        %926 = vmatpush1.msra.mxu0 0.0
        %927 = vmatprep.subr.mxu0 0.0
        %928 = vmatpush1.msra.mxu0 0.0
        %929 = vmatprep.subr.mxu0 0.0
        %930 = vmatpush1.msra.mxu0 0.0
        %931 = vmatprep.subr.mxu0 0.0
        %932 = vmatpush1.msra.mxu0 0.0
        %933 = vmatprep.subr.mxu0 0.0
        %934 = vmatpush1.msra.mxu0 0.0
        %935 = vmatprep.subr.mxu0 0.0
        %936 = vmatpush1.msra.mxu0 0.0
        %937 = vmatprep.subr.mxu0 0.0
        %938 = vmatpush1.msra.mxu0 0.0
        %939 = vmatprep.mubr.f32.mxu0 0.0
        %940 = vmatmul.mubr.f32.gmra.mrb[0].mxu0 %v873
        %v941 = vpop.f32.mrb[0].mxu0
        %v942 = vadd.f32 0.0, %v941
        %v943 = vpop.f32.mrb[0].mxu0
        %944 = vdwg.mxu0
        %v945 = vadd.f32 %v867, %v942
        %s946 = scalar_lea.vmem [#allocation7], 1
        %v947 = vld [vmem:[%s946] sm:$0x1]
        %v949 = vlaneseq
        %v950 = vshrl.u32 %v949, 7
        %v951 = vsub.s32 0, %v950
        %v952 = vrot.slane %v947, %v951
        %v954 = vadd.f32 %v945, %v952
        %v956 = vcombine.high %v954, %v954
        %v958 = vunpack.c.l.s4 1966171168
        %v959 = vunpack.c.0.s8 %v958
        %v960 = vlaneseq
        %v961 = vshrl.u32 %v960, 7
        %v962 = vsub.s32 %v959, %v961
        %v963 = vrot.slane %v954, %v962
        %v965 = vunpack.c.l.s4 1966171168
        %v966 = vunpack.c.0.s8 %v965
        %v967 = vlaneseq
        %v968 = vshrl.u32 %v967, 7
        %v969 = vsub.s32 %v966, %v968
        %v970 = vrot.slane %v956, %v969
        %v971 = vcombine.high %v963, %v963
        %v972 = vcombine.high %v970, %v970
        %v974 = vunpack.c.l.s4 1966171168
        %v975 = vunpack.c.0.s8 %v974
        %v976 = vlaneseq
        %v977 = vshrl.u32 %v976, 7
        %v978 = vsub.s32 %v975, %v977
        %v979 = vrot.slane %v963, %v978
        %v981 = vunpack.c.l.s4 1966171168
        %v982 = vunpack.c.0.s8 %v981
        %v983 = vlaneseq
        %v984 = vshrl.u32 %v983, 7
        %v985 = vsub.s32 %v982, %v984
        %v986 = vrot.slane %v970, %v985
        %v988 = vunpack.c.l.s4 1966171168
        %v989 = vunpack.c.0.s8 %v988
        %v990 = vlaneseq
        %v991 = vshrl.u32 %v990, 7
        %v992 = vsub.s32 %v989, %v991
        %v993 = vrot.slane %v971, %v992
        %v995 = vunpack.c.l.s4 1966171168
        %v996 = vunpack.c.0.s8 %v995
        %v997 = vlaneseq
        %v998 = vshrl.u32 %v997, 7
        %v999 = vsub.s32 %v996, %v998
        %v1000 = vrot.slane %v972, %v999
        %v1001 = vcombine.high %v979, %v979
        %v1002 = vcombine.high %v986, %v986
        %v1003 = vcombine.high %v993, %v993
        %v1004 = vcombine.high %v1000, %v1000
        %1013 = vst.msk [vmem:[%s246 + $0x1] sm:$0x1] %vm627, %v979
        %1014 = vst.msk [vmem:[%s246 + $0x5] sm:$0x1] %vm627, %v993
        %1015 = vst.msk [vmem:[%s246 + $0x9] sm:$0x1] %vm627, %v1001
        %1016 = vst.msk [vmem:[%s246 + $0xd] sm:$0x1] %vm627, %v1003
        %1017 = vst.msk [vmem:[%s246 + $0x11] sm:$0x1] %vm627, %v986
        %1018 = vst.msk [vmem:[%s246 + $0x15] sm:$0x1] %vm627, %v1000
        %1019 = vst.msk [vmem:[%s246 + $0x19] sm:$0x1] %vm627, %v1002
        %1020 = vst.msk [vmem:[%s246 + $0x1d] sm:$0x1] %vm627, %v1004
        %v1021 = vld [vmem:[%s216] sm:$0xff]
        %s1022 = scalar_lea.vmem [#allocation5], 128
        %v1023 = vld [vmem:[%s1022] sm:$0xff]
        %v1024 = vld [vmem:[%s1022 + $0x8] sm:$0xff]
        %v1025 = vld [vmem:[%s251] sm:$0xff]
        %s1026 = scalar_lea.vmem [#allocation5], 144
        %v1027 = vld [vmem:[%s1026] sm:$0xff]
        %v1028 = vld [vmem:[%s1026 + $0x8] sm:$0xff]
        %v1030 = vsel %vm256, %v1025, 0
        %1032 = vmatprep.subr.mxu0 0.0
        %1033 = vmatpush1.msra.mxu0 %v1027
        %1034 = vmatprep.subr.mxu0 0.0
        %1035 = vmatpush1.msra.mxu0 %v1028
        %1036 = vmatprep.subr.mxu0 0.0
        %1037 = vmatpush1.msra.mxu0 0.0
        %1038 = vmatprep.subr.mxu0 0.0
        %1039 = vmatpush1.msra.mxu0 0.0
        %1040 = vmatprep.subr.mxu0 0.0
        %1041 = vmatpush1.msra.mxu0 0.0
        %1042 = vmatprep.subr.mxu0 0.0
        %1043 = vmatpush1.msra.mxu0 0.0
        %1044 = vmatprep.subr.mxu0 0.0
        %1045 = vmatpush1.msra.mxu0 0.0
        %1046 = vmatprep.subr.mxu0 0.0
        %1047 = vmatpush1.msra.mxu0 0.0
        %1048 = vmatprep.subr.mxu0 0.0
        %1049 = vmatpush1.msra.mxu0 0.0
        %1050 = vmatprep.subr.mxu0 0.0
        %1051 = vmatpush1.msra.mxu0 0.0
        %1052 = vmatprep.subr.mxu0 0.0
        %1053 = vmatpush1.msra.mxu0 0.0
        %1054 = vmatprep.subr.mxu0 0.0
        %1055 = vmatpush1.msra.mxu0 0.0
        %1056 = vmatprep.subr.mxu0 0.0
        %1057 = vmatpush1.msra.mxu0 0.0
        %1058 = vmatprep.subr.mxu0 0.0
        %1059 = vmatpush1.msra.mxu0 0.0
        %1060 = vmatprep.subr.mxu0 0.0
        %1061 = vmatpush1.msra.mxu0 0.0
        %1062 = vmatprep.subr.mxu0 0.0
        %1063 = vmatpush1.msra.mxu0 0.0
        %1064 = vmatprep.subr.mxu0 0.0
        %1065 = vmatpush1.msra.mxu0 0.0
        %1066 = vmatprep.subr.mxu0 0.0
        %1067 = vmatpush1.msra.mxu0 0.0
        %1068 = vmatprep.subr.mxu0 0.0
        %1069 = vmatpush1.msra.mxu0 0.0
        %1070 = vmatprep.subr.mxu0 0.0
        %1071 = vmatpush1.msra.mxu0 0.0
        %1072 = vmatprep.subr.mxu0 0.0
        %1073 = vmatpush1.msra.mxu0 0.0
        %1074 = vmatprep.subr.mxu0 0.0
        %1075 = vmatpush1.msra.mxu0 0.0
        %1076 = vmatprep.subr.mxu0 0.0
        %1077 = vmatpush1.msra.mxu0 0.0
        %1078 = vmatprep.subr.mxu0 0.0
        %1079 = vmatpush1.msra.mxu0 0.0
        %1080 = vmatprep.subr.mxu0 0.0
        %1081 = vmatpush1.msra.mxu0 0.0
        %1082 = vmatprep.subr.mxu0 0.0
        %1083 = vmatpush1.msra.mxu0 0.0
        %1084 = vmatprep.subr.mxu0 0.0
        %1085 = vmatpush1.msra.mxu0 0.0
        %1086 = vmatprep.subr.mxu0 0.0
        %1087 = vmatpush1.msra.mxu0 0.0
        %1088 = vmatprep.subr.mxu0 0.0
        %1089 = vmatpush1.msra.mxu0 0.0
        %1090 = vmatprep.subr.mxu0 0.0
        %1091 = vmatpush1.msra.mxu0 0.0
        %1092 = vmatprep.subr.mxu0 0.0
        %1093 = vmatpush1.msra.mxu0 0.0
        %1094 = vmatprep.subr.mxu0 0.0
        %1095 = vmatpush1.msra.mxu0 0.0
        %1096 = vmatprep.mubr.f32.mxu0 0.0
        %1097 = vmatmul.mubr.f32.gmra.mrb[0].mxu0 %v1030
        %v1098 = vpop.f32.mrb[0].mxu0
        %v1099 = vadd.f32 0.0, %v1098
        %v1100 = vpop.f32.mrb[0].mxu0
        %1101 = vdwg.mxu0
        %v1103 = vsel %vm256, %v1021, 0
        %1105 = vmatprep.subr.mxu0 0.0
        %1106 = vmatpush1.msra.mxu0 %v1023
        %1107 = vmatprep.subr.mxu0 0.0
        %1108 = vmatpush1.msra.mxu0 %v1024
        %1109 = vmatprep.subr.mxu0 0.0
        %1110 = vmatpush1.msra.mxu0 0.0
        %1111 = vmatprep.subr.mxu0 0.0
        %1112 = vmatpush1.msra.mxu0 0.0
        %1113 = vmatprep.subr.mxu0 0.0
        %1114 = vmatpush1.msra.mxu0 0.0
        %1115 = vmatprep.subr.mxu0 0.0
        %1116 = vmatpush1.msra.mxu0 0.0
        %1117 = vmatprep.subr.mxu0 0.0
        %1118 = vmatpush1.msra.mxu0 0.0
        %1119 = vmatprep.subr.mxu0 0.0
        %1120 = vmatpush1.msra.mxu0 0.0
        %1121 = vmatprep.subr.mxu0 0.0
        %1122 = vmatpush1.msra.mxu0 0.0
        %1123 = vmatprep.subr.mxu0 0.0
        %1124 = vmatpush1.msra.mxu0 0.0
        %1125 = vmatprep.subr.mxu0 0.0
        %1126 = vmatpush1.msra.mxu0 0.0
        %1127 = vmatprep.subr.mxu0 0.0
        %1128 = vmatpush1.msra.mxu0 0.0
        %1129 = vmatprep.subr.mxu0 0.0
        %1130 = vmatpush1.msra.mxu0 0.0
        %1131 = vmatprep.subr.mxu0 0.0
        %1132 = vmatpush1.msra.mxu0 0.0
        %1133 = vmatprep.subr.mxu0 0.0
        %1134 = vmatpush1.msra.mxu0 0.0
        %1135 = vmatprep.subr.mxu0 0.0
        %1136 = vmatpush1.msra.mxu0 0.0
        %1137 = vmatprep.subr.mxu0 0.0
        %1138 = vmatpush1.msra.mxu0 0.0
        %1139 = vmatprep.subr.mxu0 0.0
        %1140 = vmatpush1.msra.mxu0 0.0
        %1141 = vmatprep.subr.mxu0 0.0
        %1142 = vmatpush1.msra.mxu0 0.0
        %1143 = vmatprep.subr.mxu0 0.0
        %1144 = vmatpush1.msra.mxu0 0.0
        %1145 = vmatprep.subr.mxu0 0.0
        %1146 = vmatpush1.msra.mxu0 0.0
        %1147 = vmatprep.subr.mxu0 0.0
        %1148 = vmatpush1.msra.mxu0 0.0
        %1149 = vmatprep.subr.mxu0 0.0
        %1150 = vmatpush1.msra.mxu0 0.0
        %1151 = vmatprep.subr.mxu0 0.0
        %1152 = vmatpush1.msra.mxu0 0.0
        %1153 = vmatprep.subr.mxu0 0.0
        %1154 = vmatpush1.msra.mxu0 0.0
        %1155 = vmatprep.subr.mxu0 0.0
        %1156 = vmatpush1.msra.mxu0 0.0
        %1157 = vmatprep.subr.mxu0 0.0
        %1158 = vmatpush1.msra.mxu0 0.0
        %1159 = vmatprep.subr.mxu0 0.0
        %1160 = vmatpush1.msra.mxu0 0.0
        %1161 = vmatprep.subr.mxu0 0.0
        %1162 = vmatpush1.msra.mxu0 0.0
        %1163 = vmatprep.subr.mxu0 0.0
        %1164 = vmatpush1.msra.mxu0 0.0
        %1165 = vmatprep.subr.mxu0 0.0
        %1166 = vmatpush1.msra.mxu0 0.0
        %1167 = vmatprep.subr.mxu0 0.0
        %1168 = vmatpush1.msra.mxu0 0.0
        %1169 = vmatprep.mubr.f32.mxu0 0.0
        %1170 = vmatmul.mubr.f32.gmra.mrb[0].mxu0 %v1103
        %v1171 = vpop.f32.mrb[0].mxu0
        %v1172 = vadd.f32 %v1099, %v1171
        %v1173 = vpop.f32.mrb[0].mxu0
        %1174 = vdwg.mxu0
        %v1175 = vld [vmem:[%s403] sm:$0xff]
        %s1176 = scalar_lea.vmem [#allocation5], 160
        %v1177 = vld [vmem:[%s1176] sm:$0xff]
        %v1178 = vld [vmem:[%s1176 + $0x8] sm:$0xff]
        %v1180 = vsel %vm256, %v1175, 0
        %1182 = vmatprep.subr.mxu0 0.0
        %1183 = vmatpush1.msra.mxu0 %v1177
        %1184 = vmatprep.subr.mxu0 0.0
        %1185 = vmatpush1.msra.mxu0 %v1178
        %1186 = vmatprep.subr.mxu0 0.0
        %1187 = vmatpush1.msra.mxu0 0.0
        %1188 = vmatprep.subr.mxu0 0.0
        %1189 = vmatpush1.msra.mxu0 0.0
        %1190 = vmatprep.subr.mxu0 0.0
        %1191 = vmatpush1.msra.mxu0 0.0
        %1192 = vmatprep.subr.mxu0 0.0
        %1193 = vmatpush1.msra.mxu0 0.0
        %1194 = vmatprep.subr.mxu0 0.0
        %1195 = vmatpush1.msra.mxu0 0.0
        %1196 = vmatprep.subr.mxu0 0.0
        %1197 = vmatpush1.msra.mxu0 0.0
        %1198 = vmatprep.subr.mxu0 0.0
        %1199 = vmatpush1.msra.mxu0 0.0
        %1200 = vmatprep.subr.mxu0 0.0
        %1201 = vmatpush1.msra.mxu0 0.0
        %1202 = vmatprep.subr.mxu0 0.0
        %1203 = vmatpush1.msra.mxu0 0.0
        %1204 = vmatprep.subr.mxu0 0.0
        %1205 = vmatpush1.msra.mxu0 0.0
        %1206 = vmatprep.subr.mxu0 0.0
        %1207 = vmatpush1.msra.mxu0 0.0
        %1208 = vmatprep.subr.mxu0 0.0
        %1209 = vmatpush1.msra.mxu0 0.0
        %1210 = vmatprep.subr.mxu0 0.0
        %1211 = vmatpush1.msra.mxu0 0.0
        %1212 = vmatprep.subr.mxu0 0.0
        %1213 = vmatpush1.msra.mxu0 0.0
        %1214 = vmatprep.subr.mxu0 0.0
        %1215 = vmatpush1.msra.mxu0 0.0
        %1216 = vmatprep.subr.mxu0 0.0
        %1217 = vmatpush1.msra.mxu0 0.0
        %1218 = vmatprep.subr.mxu0 0.0
        %1219 = vmatpush1.msra.mxu0 0.0
        %1220 = vmatprep.subr.mxu0 0.0
        %1221 = vmatpush1.msra.mxu0 0.0
        %1222 = vmatprep.subr.mxu0 0.0
        %1223 = vmatpush1.msra.mxu0 0.0
        %1224 = vmatprep.subr.mxu0 0.0
        %1225 = vmatpush1.msra.mxu0 0.0
        %1226 = vmatprep.subr.mxu0 0.0
        %1227 = vmatpush1.msra.mxu0 0.0
        %1228 = vmatprep.subr.mxu0 0.0
        %1229 = vmatpush1.msra.mxu0 0.0
        %1230 = vmatprep.subr.mxu0 0.0
        %1231 = vmatpush1.msra.mxu0 0.0
        %1232 = vmatprep.subr.mxu0 0.0
        %1233 = vmatpush1.msra.mxu0 0.0
        %1234 = vmatprep.subr.mxu0 0.0
        %1235 = vmatpush1.msra.mxu0 0.0
        %1236 = vmatprep.subr.mxu0 0.0
        %1237 = vmatpush1.msra.mxu0 0.0
        %1238 = vmatprep.subr.mxu0 0.0
        %1239 = vmatpush1.msra.mxu0 0.0
        %1240 = vmatprep.subr.mxu0 0.0
        %1241 = vmatpush1.msra.mxu0 0.0
        %1242 = vmatprep.subr.mxu0 0.0
        %1243 = vmatpush1.msra.mxu0 0.0
        %1244 = vmatprep.subr.mxu0 0.0
        %1245 = vmatpush1.msra.mxu0 0.0
        %1246 = vmatprep.mubr.f32.mxu0 0.0
        %1247 = vmatmul.mubr.f32.gmra.mrb[0].mxu0 %v1180
        %v1248 = vpop.f32.mrb[0].mxu0
        %v1249 = vadd.f32 0.0, %v1248
        %v1250 = vpop.f32.mrb[0].mxu0
        %1251 = vdwg.mxu0
        %v1252 = vadd.f32 %v1172, %v1249
        %v1253 = vld [vmem:[%s482] sm:$0xff]
        %s1254 = scalar_lea.vmem [#allocation5], 176
        %v1255 = vld [vmem:[%s1254] sm:$0xff]
        %v1256 = vld [vmem:[%s1254 + $0x8] sm:$0xff]
        %v1258 = vsel %vm256, %v1253, 0
        %1260 = vmatprep.subr.mxu0 0.0
        %1261 = vmatpush1.msra.mxu0 %v1255
        %1262 = vmatprep.subr.mxu0 0.0
        %1263 = vmatpush1.msra.mxu0 %v1256
        %1264 = vmatprep.subr.mxu0 0.0
        %1265 = vmatpush1.msra.mxu0 0.0
        %1266 = vmatprep.subr.mxu0 0.0
        %1267 = vmatpush1.msra.mxu0 0.0
        %1268 = vmatprep.subr.mxu0 0.0
        %1269 = vmatpush1.msra.mxu0 0.0
        %1270 = vmatprep.subr.mxu0 0.0
        %1271 = vmatpush1.msra.mxu0 0.0
        %1272 = vmatprep.subr.mxu0 0.0
        %1273 = vmatpush1.msra.mxu0 0.0
        %1274 = vmatprep.subr.mxu0 0.0
        %1275 = vmatpush1.msra.mxu0 0.0
        %1276 = vmatprep.subr.mxu0 0.0
        %1277 = vmatpush1.msra.mxu0 0.0
        %1278 = vmatprep.subr.mxu0 0.0
        %1279 = vmatpush1.msra.mxu0 0.0
        %1280 = vmatprep.subr.mxu0 0.0
        %1281 = vmatpush1.msra.mxu0 0.0
        %1282 = vmatprep.subr.mxu0 0.0
        %1283 = vmatpush1.msra.mxu0 0.0
        %1284 = vmatprep.subr.mxu0 0.0
        %1285 = vmatpush1.msra.mxu0 0.0
        %1286 = vmatprep.subr.mxu0 0.0
        %1287 = vmatpush1.msra.mxu0 0.0
        %1288 = vmatprep.subr.mxu0 0.0
        %1289 = vmatpush1.msra.mxu0 0.0
        %1290 = vmatprep.subr.mxu0 0.0
        %1291 = vmatpush1.msra.mxu0 0.0
        %1292 = vmatprep.subr.mxu0 0.0
        %1293 = vmatpush1.msra.mxu0 0.0
        %1294 = vmatprep.subr.mxu0 0.0
        %1295 = vmatpush1.msra.mxu0 0.0
        %1296 = vmatprep.subr.mxu0 0.0
        %1297 = vmatpush1.msra.mxu0 0.0
        %1298 = vmatprep.subr.mxu0 0.0
        %1299 = vmatpush1.msra.mxu0 0.0
        %1300 = vmatprep.subr.mxu0 0.0
        %1301 = vmatpush1.msra.mxu0 0.0
        %1302 = vmatprep.subr.mxu0 0.0
        %1303 = vmatpush1.msra.mxu0 0.0
        %1304 = vmatprep.subr.mxu0 0.0
        %1305 = vmatpush1.msra.mxu0 0.0
        %1306 = vmatprep.subr.mxu0 0.0
        %1307 = vmatpush1.msra.mxu0 0.0
        %1308 = vmatprep.subr.mxu0 0.0
        %1309 = vmatpush1.msra.mxu0 0.0
        %1310 = vmatprep.subr.mxu0 0.0
        %1311 = vmatpush1.msra.mxu0 0.0
        %1312 = vmatprep.subr.mxu0 0.0
        %1313 = vmatpush1.msra.mxu0 0.0
        %1314 = vmatprep.subr.mxu0 0.0
        %1315 = vmatpush1.msra.mxu0 0.0
        %1316 = vmatprep.subr.mxu0 0.0
        %1317 = vmatpush1.msra.mxu0 0.0
        %1318 = vmatprep.subr.mxu0 0.0
        %1319 = vmatpush1.msra.mxu0 0.0
        %1320 = vmatprep.subr.mxu0 0.0
        %1321 = vmatpush1.msra.mxu0 0.0
        %1322 = vmatprep.subr.mxu0 0.0
        %1323 = vmatpush1.msra.mxu0 0.0
        %1324 = vmatprep.mubr.f32.mxu0 0.0
        %1325 = vmatmul.mubr.f32.gmra.mrb[0].mxu0 %v1258
        %v1326 = vpop.f32.mrb[0].mxu0
        %v1327 = vadd.f32 0.0, %v1326
        %v1328 = vpop.f32.mrb[0].mxu0
        %1329 = vdwg.mxu0
        %v1330 = vadd.f32 %v1252, %v1327
        %s1331 = scalar_lea.vmem [#allocation7], 2
        %v1332 = vld [vmem:[%s1331] sm:$0x1]
        %v1334 = vlaneseq
        %v1335 = vshrl.u32 %v1334, 7
        %v1336 = vsub.s32 0, %v1335
        %v1337 = vrot.slane %v1332, %v1336
        %v1339 = vadd.f32 %v1330, %v1337
        %v1341 = vcombine.high %v1339, %v1339
        %v1343 = vunpack.c.l.s4 1966171168
        %v1344 = vunpack.c.0.s8 %v1343
        %v1345 = vlaneseq
        %v1346 = vshrl.u32 %v1345, 7
        %v1347 = vsub.s32 %v1344, %v1346
        %v1348 = vrot.slane %v1339, %v1347
        %v1350 = vunpack.c.l.s4 1966171168
        %v1351 = vunpack.c.0.s8 %v1350
        %v1352 = vlaneseq
        %v1353 = vshrl.u32 %v1352, 7
        %v1354 = vsub.s32 %v1351, %v1353
        %v1355 = vrot.slane %v1341, %v1354
        %v1356 = vcombine.high %v1348, %v1348
        %v1357 = vcombine.high %v1355, %v1355
        %v1359 = vunpack.c.l.s4 1966171168
        %v1360 = vunpack.c.0.s8 %v1359
        %v1361 = vlaneseq
        %v1362 = vshrl.u32 %v1361, 7
        %v1363 = vsub.s32 %v1360, %v1362
        %v1364 = vrot.slane %v1348, %v1363
        %v1366 = vunpack.c.l.s4 1966171168
        %v1367 = vunpack.c.0.s8 %v1366
        %v1368 = vlaneseq
        %v1369 = vshrl.u32 %v1368, 7
        %v1370 = vsub.s32 %v1367, %v1369
        %v1371 = vrot.slane %v1355, %v1370
        %v1373 = vunpack.c.l.s4 1966171168
        %v1374 = vunpack.c.0.s8 %v1373
        %v1375 = vlaneseq
        %v1376 = vshrl.u32 %v1375, 7
        %v1377 = vsub.s32 %v1374, %v1376
        %v1378 = vrot.slane %v1356, %v1377
        %v1380 = vunpack.c.l.s4 1966171168
        %v1381 = vunpack.c.0.s8 %v1380
        %v1382 = vlaneseq
        %v1383 = vshrl.u32 %v1382, 7
        %v1384 = vsub.s32 %v1381, %v1383
        %v1385 = vrot.slane %v1357, %v1384
        %v1386 = vcombine.high %v1364, %v1364
        %v1387 = vcombine.high %v1371, %v1371
        %v1388 = vcombine.high %v1378, %v1378
        %v1389 = vcombine.high %v1385, %v1385
        %1398 = vst.msk [vmem:[%s246 + $0x2] sm:$0x1] %vm627, %v1364
        %1399 = vst.msk [vmem:[%s246 + $0x6] sm:$0x1] %vm627, %v1378
        %1400 = vst.msk [vmem:[%s246 + $0xa] sm:$0x1] %vm627, %v1386
        %1401 = vst.msk [vmem:[%s246 + $0xe] sm:$0x1] %vm627, %v1388
        %1402 = vst.msk [vmem:[%s246 + $0x12] sm:$0x1] %vm627, %v1371
        %1403 = vst.msk [vmem:[%s246 + $0x16] sm:$0x1] %vm627, %v1385
        %1404 = vst.msk [vmem:[%s246 + $0x1a] sm:$0x1] %vm627, %v1387
        %1405 = vst.msk [vmem:[%s246 + $0x1e] sm:$0x1] %vm627, %v1389
        %v1406 = vld [vmem:[%s216] sm:$0xff]
        %s1407 = scalar_lea.vmem [#allocation5], 192
        %v1408 = vld [vmem:[%s1407] sm:$0xff]
        %v1409 = vld [vmem:[%s1407 + $0x8] sm:$0xff]
        %v1410 = vld [vmem:[%s251] sm:$0xff]
        %s1411 = scalar_lea.vmem [#allocation5], 208
        %v1412 = vld [vmem:[%s1411] sm:$0xff]
        %v1413 = vld [vmem:[%s1411 + $0x8] sm:$0xff]
        %v1415 = vsel %vm256, %v1410, 0
        %1417 = vmatprep.subr.mxu0 0.0
        %1418 = vmatpush1.msra.mxu0 %v1412
        %1419 = vmatprep.subr.mxu0 0.0
        %1420 = vmatpush1.msra.mxu0 %v1413
        %1421 = vmatprep.subr.mxu0 0.0
        %1422 = vmatpush1.msra.mxu0 0.0
        %1423 = vmatprep.subr.mxu0 0.0
        %1424 = vmatpush1.msra.mxu0 0.0
        %1425 = vmatprep.subr.mxu0 0.0
        %1426 = vmatpush1.msra.mxu0 0.0
        %1427 = vmatprep.subr.mxu0 0.0
        %1428 = vmatpush1.msra.mxu0 0.0
        %1429 = vmatprep.subr.mxu0 0.0
        %1430 = vmatpush1.msra.mxu0 0.0
        %1431 = vmatprep.subr.mxu0 0.0
        %1432 = vmatpush1.msra.mxu0 0.0
        %1433 = vmatprep.subr.mxu0 0.0
        %1434 = vmatpush1.msra.mxu0 0.0
        %1435 = vmatprep.subr.mxu0 0.0
        %1436 = vmatpush1.msra.mxu0 0.0
        %1437 = vmatprep.subr.mxu0 0.0
        %1438 = vmatpush1.msra.mxu0 0.0
        %1439 = vmatprep.subr.mxu0 0.0
        %1440 = vmatpush1.msra.mxu0 0.0
        %1441 = vmatprep.subr.mxu0 0.0
        %1442 = vmatpush1.msra.mxu0 0.0
        %1443 = vmatprep.subr.mxu0 0.0
        %1444 = vmatpush1.msra.mxu0 0.0
        %1445 = vmatprep.subr.mxu0 0.0
        %1446 = vmatpush1.msra.mxu0 0.0
        %1447 = vmatprep.subr.mxu0 0.0
        %1448 = vmatpush1.msra.mxu0 0.0
        %1449 = vmatprep.subr.mxu0 0.0
        %1450 = vmatpush1.msra.mxu0 0.0
        %1451 = vmatprep.subr.mxu0 0.0
        %1452 = vmatpush1.msra.mxu0 0.0
        %1453 = vmatprep.subr.mxu0 0.0
        %1454 = vmatpush1.msra.mxu0 0.0
        %1455 = vmatprep.subr.mxu0 0.0
        %1456 = vmatpush1.msra.mxu0 0.0
        %1457 = vmatprep.subr.mxu0 0.0
        %1458 = vmatpush1.msra.mxu0 0.0
        %1459 = vmatprep.subr.mxu0 0.0
        %1460 = vmatpush1.msra.mxu0 0.0
        %1461 = vmatprep.subr.mxu0 0.0
        %1462 = vmatpush1.msra.mxu0 0.0
        %1463 = vmatprep.subr.mxu0 0.0
        %1464 = vmatpush1.msra.mxu0 0.0
        %1465 = vmatprep.subr.mxu0 0.0
        %1466 = vmatpush1.msra.mxu0 0.0
        %1467 = vmatprep.subr.mxu0 0.0
        %1468 = vmatpush1.msra.mxu0 0.0
        %1469 = vmatprep.subr.mxu0 0.0
        %1470 = vmatpush1.msra.mxu0 0.0
        %1471 = vmatprep.subr.mxu0 0.0
        %1472 = vmatpush1.msra.mxu0 0.0
        %1473 = vmatprep.subr.mxu0 0.0
        %1474 = vmatpush1.msra.mxu0 0.0
        %1475 = vmatprep.subr.mxu0 0.0
        %1476 = vmatpush1.msra.mxu0 0.0
        %1477 = vmatprep.subr.mxu0 0.0
        %1478 = vmatpush1.msra.mxu0 0.0
        %1479 = vmatprep.subr.mxu0 0.0
        %1480 = vmatpush1.msra.mxu0 0.0
        %1481 = vmatprep.mubr.f32.mxu0 0.0
        %1482 = vmatmul.mubr.f32.gmra.mrb[0].mxu0 %v1415
        %v1483 = vpop.f32.mrb[0].mxu0
        %v1484 = vadd.f32 0.0, %v1483
        %v1485 = vpop.f32.mrb[0].mxu0
        %1486 = vdwg.mxu0
        %v1488 = vsel %vm256, %v1406, 0
        %1490 = vmatprep.subr.mxu0 0.0
        %1491 = vmatpush1.msra.mxu0 %v1408
        %1492 = vmatprep.subr.mxu0 0.0
        %1493 = vmatpush1.msra.mxu0 %v1409
        %1494 = vmatprep.subr.mxu0 0.0
        %1495 = vmatpush1.msra.mxu0 0.0
        %1496 = vmatprep.subr.mxu0 0.0
        %1497 = vmatpush1.msra.mxu0 0.0
        %1498 = vmatprep.subr.mxu0 0.0
        %1499 = vmatpush1.msra.mxu0 0.0
        %1500 = vmatprep.subr.mxu0 0.0
        %1501 = vmatpush1.msra.mxu0 0.0
        %1502 = vmatprep.subr.mxu0 0.0
        %1503 = vmatpush1.msra.mxu0 0.0
        %1504 = vmatprep.subr.mxu0 0.0
        %1505 = vmatpush1.msra.mxu0 0.0
        %1506 = vmatprep.subr.mxu0 0.0
        %1507 = vmatpush1.msra.mxu0 0.0
        %1508 = vmatprep.subr.mxu0 0.0
        %1509 = vmatpush1.msra.mxu0 0.0
        %1510 = vmatprep.subr.mxu0 0.0
        %1511 = vmatpush1.msra.mxu0 0.0
        %1512 = vmatprep.subr.mxu0 0.0
        %1513 = vmatpush1.msra.mxu0 0.0
        %1514 = vmatprep.subr.mxu0 0.0
        %1515 = vmatpush1.msra.mxu0 0.0
        %1516 = vmatprep.subr.mxu0 0.0
        %1517 = vmatpush1.msra.mxu0 0.0
        %1518 = vmatprep.subr.mxu0 0.0
        %1519 = vmatpush1.msra.mxu0 0.0
        %1520 = vmatprep.subr.mxu0 0.0
        %1521 = vmatpush1.msra.mxu0 0.0
        %1522 = vmatprep.subr.mxu0 0.0
        %1523 = vmatpush1.msra.mxu0 0.0
        %1524 = vmatprep.subr.mxu0 0.0
        %1525 = vmatpush1.msra.mxu0 0.0
        %1526 = vmatprep.subr.mxu0 0.0
        %1527 = vmatpush1.msra.mxu0 0.0
        %1528 = vmatprep.subr.mxu0 0.0
        %1529 = vmatpush1.msra.mxu0 0.0
        %1530 = vmatprep.subr.mxu0 0.0
        %1531 = vmatpush1.msra.mxu0 0.0
        %1532 = vmatprep.subr.mxu0 0.0
        %1533 = vmatpush1.msra.mxu0 0.0
        %1534 = vmatprep.subr.mxu0 0.0
        %1535 = vmatpush1.msra.mxu0 0.0
        %1536 = vmatprep.subr.mxu0 0.0
        %1537 = vmatpush1.msra.mxu0 0.0
        %1538 = vmatprep.subr.mxu0 0.0
        %1539 = vmatpush1.msra.mxu0 0.0
        %1540 = vmatprep.subr.mxu0 0.0
        %1541 = vmatpush1.msra.mxu0 0.0
        %1542 = vmatprep.subr.mxu0 0.0
        %1543 = vmatpush1.msra.mxu0 0.0
        %1544 = vmatprep.subr.mxu0 0.0
        %1545 = vmatpush1.msra.mxu0 0.0
        %1546 = vmatprep.subr.mxu0 0.0
        %1547 = vmatpush1.msra.mxu0 0.0
        %1548 = vmatprep.subr.mxu0 0.0
        %1549 = vmatpush1.msra.mxu0 0.0
        %1550 = vmatprep.subr.mxu0 0.0
        %1551 = vmatpush1.msra.mxu0 0.0
        %1552 = vmatprep.subr.mxu0 0.0
        %1553 = vmatpush1.msra.mxu0 0.0
        %1554 = vmatprep.mubr.f32.mxu0 0.0
        %1555 = vmatmul.mubr.f32.gmra.mrb[0].mxu0 %v1488
        %v1556 = vpop.f32.mrb[0].mxu0
        %v1557 = vadd.f32 %v1484, %v1556
        %v1558 = vpop.f32.mrb[0].mxu0
        %1559 = vdwg.mxu0
        %v1560 = vld [vmem:[%s403] sm:$0xff]
        %s1561 = scalar_lea.vmem [#allocation5], 224
        %v1562 = vld [vmem:[%s1561] sm:$0xff]
        %v1563 = vld [vmem:[%s1561 + $0x8] sm:$0xff]
        %v1565 = vsel %vm256, %v1560, 0
        %1567 = vmatprep.subr.mxu0 0.0
        %1568 = vmatpush1.msra.mxu0 %v1562
        %1569 = vmatprep.subr.mxu0 0.0
        %1570 = vmatpush1.msra.mxu0 %v1563
        %1571 = vmatprep.subr.mxu0 0.0
        %1572 = vmatpush1.msra.mxu0 0.0
        %1573 = vmatprep.subr.mxu0 0.0
        %1574 = vmatpush1.msra.mxu0 0.0
        %1575 = vmatprep.subr.mxu0 0.0
        %1576 = vmatpush1.msra.mxu0 0.0
        %1577 = vmatprep.subr.mxu0 0.0
        %1578 = vmatpush1.msra.mxu0 0.0
        %1579 = vmatprep.subr.mxu0 0.0
        %1580 = vmatpush1.msra.mxu0 0.0
        %1581 = vmatprep.subr.mxu0 0.0
        %1582 = vmatpush1.msra.mxu0 0.0
        %1583 = vmatprep.subr.mxu0 0.0
        %1584 = vmatpush1.msra.mxu0 0.0
        %1585 = vmatprep.subr.mxu0 0.0
        %1586 = vmatpush1.msra.mxu0 0.0
        %1587 = vmatprep.subr.mxu0 0.0
        %1588 = vmatpush1.msra.mxu0 0.0
        %1589 = vmatprep.subr.mxu0 0.0
        %1590 = vmatpush1.msra.mxu0 0.0
        %1591 = vmatprep.subr.mxu0 0.0
        %1592 = vmatpush1.msra.mxu0 0.0
        %1593 = vmatprep.subr.mxu0 0.0
        %1594 = vmatpush1.msra.mxu0 0.0
        %1595 = vmatprep.subr.mxu0 0.0
        %1596 = vmatpush1.msra.mxu0 0.0
        %1597 = vmatprep.subr.mxu0 0.0
        %1598 = vmatpush1.msra.mxu0 0.0
        %1599 = vmatprep.subr.mxu0 0.0
        %1600 = vmatpush1.msra.mxu0 0.0
        %1601 = vmatprep.subr.mxu0 0.0
        %1602 = vmatpush1.msra.mxu0 0.0
        %1603 = vmatprep.subr.mxu0 0.0
        %1604 = vmatpush1.msra.mxu0 0.0
        %1605 = vmatprep.subr.mxu0 0.0
        %1606 = vmatpush1.msra.mxu0 0.0
        %1607 = vmatprep.subr.mxu0 0.0
        %1608 = vmatpush1.msra.mxu0 0.0
        %1609 = vmatprep.subr.mxu0 0.0
        %1610 = vmatpush1.msra.mxu0 0.0
        %1611 = vmatprep.subr.mxu0 0.0
        %1612 = vmatpush1.msra.mxu0 0.0
        %1613 = vmatprep.subr.mxu0 0.0
        %1614 = vmatpush1.msra.mxu0 0.0
        %1615 = vmatprep.subr.mxu0 0.0
        %1616 = vmatpush1.msra.mxu0 0.0
        %1617 = vmatprep.subr.mxu0 0.0
        %1618 = vmatpush1.msra.mxu0 0.0
        %1619 = vmatprep.subr.mxu0 0.0
        %1620 = vmatpush1.msra.mxu0 0.0
        %1621 = vmatprep.subr.mxu0 0.0
        %1622 = vmatpush1.msra.mxu0 0.0
        %1623 = vmatprep.subr.mxu0 0.0
        %1624 = vmatpush1.msra.mxu0 0.0
        %1625 = vmatprep.subr.mxu0 0.0
        %1626 = vmatpush1.msra.mxu0 0.0
        %1627 = vmatprep.subr.mxu0 0.0
        %1628 = vmatpush1.msra.mxu0 0.0
        %1629 = vmatprep.subr.mxu0 0.0
        %1630 = vmatpush1.msra.mxu0 0.0
        %1631 = vmatprep.mubr.f32.mxu0 0.0
        %1632 = vmatmul.mubr.f32.gmra.mrb[0].mxu0 %v1565
        %v1633 = vpop.f32.mrb[0].mxu0
        %v1634 = vadd.f32 0.0, %v1633
        %v1635 = vpop.f32.mrb[0].mxu0
        %1636 = vdwg.mxu0
        %v1637 = vadd.f32 %v1557, %v1634
        %v1638 = vld [vmem:[%s482] sm:$0xff]
        %s1639 = scalar_lea.vmem [#allocation5], 240
        %v1640 = vld [vmem:[%s1639] sm:$0xff]
        %v1641 = vld [vmem:[%s1639 + $0x8] sm:$0xff]
        %v1643 = vsel %vm256, %v1638, 0
        %1645 = vmatprep.subr.mxu0 0.0
        %1646 = vmatpush1.msra.mxu0 %v1640
        %1647 = vmatprep.subr.mxu0 0.0
        %1648 = vmatpush1.msra.mxu0 %v1641
        %1649 = vmatprep.subr.mxu0 0.0
        %1650 = vmatpush1.msra.mxu0 0.0
        %1651 = vmatprep.subr.mxu0 0.0
        %1652 = vmatpush1.msra.mxu0 0.0
        %1653 = vmatprep.subr.mxu0 0.0
        %1654 = vmatpush1.msra.mxu0 0.0
        %1655 = vmatprep.subr.mxu0 0.0
        %1656 = vmatpush1.msra.mxu0 0.0
        %1657 = vmatprep.subr.mxu0 0.0
        %1658 = vmatpush1.msra.mxu0 0.0
        %1659 = vmatprep.subr.mxu0 0.0
        %1660 = vmatpush1.msra.mxu0 0.0
        %1661 = vmatprep.subr.mxu0 0.0
        %1662 = vmatpush1.msra.mxu0 0.0
        %1663 = vmatprep.subr.mxu0 0.0
        %1664 = vmatpush1.msra.mxu0 0.0
        %1665 = vmatprep.subr.mxu0 0.0
        %1666 = vmatpush1.msra.mxu0 0.0
        %1667 = vmatprep.subr.mxu0 0.0
        %1668 = vmatpush1.msra.mxu0 0.0
        %1669 = vmatprep.subr.mxu0 0.0
        %1670 = vmatpush1.msra.mxu0 0.0
        %1671 = vmatprep.subr.mxu0 0.0
        %1672 = vmatpush1.msra.mxu0 0.0
        %1673 = vmatprep.subr.mxu0 0.0
        %1674 = vmatpush1.msra.mxu0 0.0
        %1675 = vmatprep.subr.mxu0 0.0
        %1676 = vmatpush1.msra.mxu0 0.0
        %1677 = vmatprep.subr.mxu0 0.0
        %1678 = vmatpush1.msra.mxu0 0.0
        %1679 = vmatprep.subr.mxu0 0.0
        %1680 = vmatpush1.msra.mxu0 0.0
        %1681 = vmatprep.subr.mxu0 0.0
        %1682 = vmatpush1.msra.mxu0 0.0
        %1683 = vmatprep.subr.mxu0 0.0
        %1684 = vmatpush1.msra.mxu0 0.0
        %1685 = vmatprep.subr.mxu0 0.0
        %1686 = vmatpush1.msra.mxu0 0.0
        %1687 = vmatprep.subr.mxu0 0.0
        %1688 = vmatpush1.msra.mxu0 0.0
        %1689 = vmatprep.subr.mxu0 0.0
        %1690 = vmatpush1.msra.mxu0 0.0
        %1691 = vmatprep.subr.mxu0 0.0
        %1692 = vmatpush1.msra.mxu0 0.0
        %1693 = vmatprep.subr.mxu0 0.0
        %1694 = vmatpush1.msra.mxu0 0.0
        %1695 = vmatprep.subr.mxu0 0.0
        %1696 = vmatpush1.msra.mxu0 0.0
        %1697 = vmatprep.subr.mxu0 0.0
        %1698 = vmatpush1.msra.mxu0 0.0
        %1699 = vmatprep.subr.mxu0 0.0
        %1700 = vmatpush1.msra.mxu0 0.0
        %1701 = vmatprep.subr.mxu0 0.0
        %1702 = vmatpush1.msra.mxu0 0.0
        %1703 = vmatprep.subr.mxu0 0.0
        %1704 = vmatpush1.msra.mxu0 0.0
        %1705 = vmatprep.subr.mxu0 0.0
        %1706 = vmatpush1.msra.mxu0 0.0
        %1707 = vmatprep.subr.mxu0 0.0
        %1708 = vmatpush1.msra.mxu0 0.0
        %1709 = vmatprep.mubr.f32.mxu0 0.0
        %1710 = vmatmul.mubr.f32.gmra.mrb[0].mxu0 %v1643
        %v1711 = vpop.f32.mrb[0].mxu0
        %v1712 = vadd.f32 0.0, %v1711
        %v1713 = vpop.f32.mrb[0].mxu0
        %1714 = vdwg.mxu0
        %v1715 = vadd.f32 %v1637, %v1712
        %s1716 = scalar_lea.vmem [#allocation7], 3
        %v1717 = vld [vmem:[%s1716] sm:$0x1]
        %v1719 = vlaneseq
        %v1720 = vshrl.u32 %v1719, 7
        %v1721 = vsub.s32 0, %v1720
        %v1722 = vrot.slane %v1717, %v1721
        %v1724 = vadd.f32 %v1715, %v1722
        %v1726 = vcombine.high %v1724, %v1724
        %v1728 = vunpack.c.l.s4 1966171168
        %v1729 = vunpack.c.0.s8 %v1728
        %v1730 = vlaneseq
        %v1731 = vshrl.u32 %v1730, 7
        %v1732 = vsub.s32 %v1729, %v1731
        %v1733 = vrot.slane %v1724, %v1732
        %v1735 = vunpack.c.l.s4 1966171168
        %v1736 = vunpack.c.0.s8 %v1735
        %v1737 = vlaneseq
        %v1738 = vshrl.u32 %v1737, 7
        %v1739 = vsub.s32 %v1736, %v1738
        %v1740 = vrot.slane %v1726, %v1739
        %v1741 = vcombine.high %v1733, %v1733
        %v1742 = vcombine.high %v1740, %v1740
        %v1744 = vunpack.c.l.s4 1966171168
        %v1745 = vunpack.c.0.s8 %v1744
        %v1746 = vlaneseq
        %v1747 = vshrl.u32 %v1746, 7
        %v1748 = vsub.s32 %v1745, %v1747
        %v1749 = vrot.slane %v1733, %v1748
        %v1751 = vunpack.c.l.s4 1966171168
        %v1752 = vunpack.c.0.s8 %v1751
        %v1753 = vlaneseq
        %v1754 = vshrl.u32 %v1753, 7
        %v1755 = vsub.s32 %v1752, %v1754
        %v1756 = vrot.slane %v1740, %v1755
        %v1758 = vunpack.c.l.s4 1966171168
        %v1759 = vunpack.c.0.s8 %v1758
        %v1760 = vlaneseq
        %v1761 = vshrl.u32 %v1760, 7
        %v1762 = vsub.s32 %v1759, %v1761
        %v1763 = vrot.slane %v1741, %v1762
        %v1765 = vunpack.c.l.s4 1966171168
        %v1766 = vunpack.c.0.s8 %v1765
        %v1767 = vlaneseq
        %v1768 = vshrl.u32 %v1767, 7
        %v1769 = vsub.s32 %v1766, %v1768
        %v1770 = vrot.slane %v1742, %v1769
        %v1771 = vcombine.high %v1749, %v1749
        %v1772 = vcombine.high %v1756, %v1756
        %v1773 = vcombine.high %v1763, %v1763
        %v1774 = vcombine.high %v1770, %v1770
        %1783 = vst.msk [vmem:[%s246 + $0x3] sm:$0x1] %vm627, %v1749
        %1784 = vst.msk [vmem:[%s246 + $0x7] sm:$0x1] %vm627, %v1763
        %1785 = vst.msk [vmem:[%s246 + $0xb] sm:$0x1] %vm627, %v1771
        %1786 = vst.msk [vmem:[%s246 + $0xf] sm:$0x1] %vm627, %v1773
        %1787 = vst.msk [vmem:[%s246 + $0x13] sm:$0x1] %vm627, %v1756
        %1788 = vst.msk [vmem:[%s246 + $0x17] sm:$0x1] %vm627, %v1770
        %1789 = vst.msk [vmem:[%s246 + $0x1b] sm:$0x1] %vm627, %v1772
        %1790 = vst.msk [vmem:[%s246 + $0x1f] sm:$0x1] %vm627, %v1774
        %v1791 = vld [vmem:[%s216] sm:$0xff]
        %s1792 = scalar_lea.vmem [#allocation5], 256
        %v1793 = vld [vmem:[%s1792] sm:$0xff]
        %v1794 = vld [vmem:[%s1792 + $0x8] sm:$0xff]
        %v1795 = vld [vmem:[%s251] sm:$0xff]
        %s1796 = scalar_lea.vmem [#allocation5], 272
        %v1797 = vld [vmem:[%s1796] sm:$0xff]
        %v1798 = vld [vmem:[%s1796 + $0x8] sm:$0xff]
        %v1800 = vsel %vm256, %v1795, 0
        %1802 = vmatprep.subr.mxu0 0.0
        %1803 = vmatpush1.msra.mxu0 %v1797
        %1804 = vmatprep.subr.mxu0 0.0
        %1805 = vmatpush1.msra.mxu0 %v1798
        %1806 = vmatprep.subr.mxu0 0.0
        %1807 = vmatpush1.msra.mxu0 0.0
        %1808 = vmatprep.subr.mxu0 0.0
        %1809 = vmatpush1.msra.mxu0 0.0
        %1810 = vmatprep.subr.mxu0 0.0
        %1811 = vmatpush1.msra.mxu0 0.0
        %1812 = vmatprep.subr.mxu0 0.0
        %1813 = vmatpush1.msra.mxu0 0.0
        %1814 = vmatprep.subr.mxu0 0.0
        %1815 = vmatpush1.msra.mxu0 0.0
        %1816 = vmatprep.subr.mxu0 0.0
        %1817 = vmatpush1.msra.mxu0 0.0
        %1818 = vmatprep.subr.mxu0 0.0
        %1819 = vmatpush1.msra.mxu0 0.0
        %1820 = vmatprep.subr.mxu0 0.0
        %1821 = vmatpush1.msra.mxu0 0.0
        %1822 = vmatprep.subr.mxu0 0.0
        %1823 = vmatpush1.msra.mxu0 0.0
        %1824 = vmatprep.subr.mxu0 0.0
        %1825 = vmatpush1.msra.mxu0 0.0
        %1826 = vmatprep.subr.mxu0 0.0
        %1827 = vmatpush1.msra.mxu0 0.0
        %1828 = vmatprep.subr.mxu0 0.0
        %1829 = vmatpush1.msra.mxu0 0.0
        %1830 = vmatprep.subr.mxu0 0.0
        %1831 = vmatpush1.msra.mxu0 0.0
        %1832 = vmatprep.subr.mxu0 0.0
        %1833 = vmatpush1.msra.mxu0 0.0
        %1834 = vmatprep.subr.mxu0 0.0
        %1835 = vmatpush1.msra.mxu0 0.0
        %1836 = vmatprep.subr.mxu0 0.0
        %1837 = vmatpush1.msra.mxu0 0.0
        %1838 = vmatprep.subr.mxu0 0.0
        %1839 = vmatpush1.msra.mxu0 0.0
        %1840 = vmatprep.subr.mxu0 0.0
        %1841 = vmatpush1.msra.mxu0 0.0
        %1842 = vmatprep.subr.mxu0 0.0
        %1843 = vmatpush1.msra.mxu0 0.0
        %1844 = vmatprep.subr.mxu0 0.0
        %1845 = vmatpush1.msra.mxu0 0.0
        %1846 = vmatprep.subr.mxu0 0.0
        %1847 = vmatpush1.msra.mxu0 0.0
        %1848 = vmatprep.subr.mxu0 0.0
        %1849 = vmatpush1.msra.mxu0 0.0
        %1850 = vmatprep.subr.mxu0 0.0
        %1851 = vmatpush1.msra.mxu0 0.0
        %1852 = vmatprep.subr.mxu0 0.0
        %1853 = vmatpush1.msra.mxu0 0.0
        %1854 = vmatprep.subr.mxu0 0.0
        %1855 = vmatpush1.msra.mxu0 0.0
        %1856 = vmatprep.subr.mxu0 0.0
        %1857 = vmatpush1.msra.mxu0 0.0
        %1858 = vmatprep.subr.mxu0 0.0
        %1859 = vmatpush1.msra.mxu0 0.0
        %1860 = vmatprep.subr.mxu0 0.0
        %1861 = vmatpush1.msra.mxu0 0.0
        %1862 = vmatprep.subr.mxu0 0.0
        %1863 = vmatpush1.msra.mxu0 0.0
        %1864 = vmatprep.subr.mxu0 0.0
        %1865 = vmatpush1.msra.mxu0 0.0
        %1866 = vmatprep.mubr.f32.mxu0 0.0
        %1867 = vmatmul.mubr.f32.gmra.mrb[0].mxu0 %v1800
        %v1868 = vpop.f32.mrb[0].mxu0
        %v1869 = vadd.f32 0.0, %v1868
        %v1870 = vpop.f32.mrb[0].mxu0
        %1871 = vdwg.mxu0
        %v1873 = vsel %vm256, %v1791, 0
        %1875 = vmatprep.subr.mxu0 0.0
        %1876 = vmatpush1.msra.mxu0 %v1793
        %1877 = vmatprep.subr.mxu0 0.0
        %1878 = vmatpush1.msra.mxu0 %v1794
        %1879 = vmatprep.subr.mxu0 0.0
        %1880 = vmatpush1.msra.mxu0 0.0
        %1881 = vmatprep.subr.mxu0 0.0
        %1882 = vmatpush1.msra.mxu0 0.0
        %1883 = vmatprep.subr.mxu0 0.0
        %1884 = vmatpush1.msra.mxu0 0.0
        %1885 = vmatprep.subr.mxu0 0.0
        %1886 = vmatpush1.msra.mxu0 0.0
        %1887 = vmatprep.subr.mxu0 0.0
        %1888 = vmatpush1.msra.mxu0 0.0
        %1889 = vmatprep.subr.mxu0 0.0
        %1890 = vmatpush1.msra.mxu0 0.0
        %1891 = vmatprep.subr.mxu0 0.0
        %1892 = vmatpush1.msra.mxu0 0.0
        %1893 = vmatprep.subr.mxu0 0.0
        %1894 = vmatpush1.msra.mxu0 0.0
        %1895 = vmatprep.subr.mxu0 0.0
        %1896 = vmatpush1.msra.mxu0 0.0
        %1897 = vmatprep.subr.mxu0 0.0
        %1898 = vmatpush1.msra.mxu0 0.0
        %1899 = vmatprep.subr.mxu0 0.0
        %1900 = vmatpush1.msra.mxu0 0.0
        %1901 = vmatprep.subr.mxu0 0.0
        %1902 = vmatpush1.msra.mxu0 0.0
        %1903 = vmatprep.subr.mxu0 0.0
        %1904 = vmatpush1.msra.mxu0 0.0
        %1905 = vmatprep.subr.mxu0 0.0
        %1906 = vmatpush1.msra.mxu0 0.0
        %1907 = vmatprep.subr.mxu0 0.0
        %1908 = vmatpush1.msra.mxu0 0.0
        %1909 = vmatprep.subr.mxu0 0.0
        %1910 = vmatpush1.msra.mxu0 0.0
        %1911 = vmatprep.subr.mxu0 0.0
        %1912 = vmatpush1.msra.mxu0 0.0
        %1913 = vmatprep.subr.mxu0 0.0
        %1914 = vmatpush1.msra.mxu0 0.0
        %1915 = vmatprep.subr.mxu0 0.0
        %1916 = vmatpush1.msra.mxu0 0.0
        %1917 = vmatprep.subr.mxu0 0.0
        %1918 = vmatpush1.msra.mxu0 0.0
        %1919 = vmatprep.subr.mxu0 0.0
        %1920 = vmatpush1.msra.mxu0 0.0
        %1921 = vmatprep.subr.mxu0 0.0
        %1922 = vmatpush1.msra.mxu0 0.0
        %1923 = vmatprep.subr.mxu0 0.0
        %1924 = vmatpush1.msra.mxu0 0.0
        %1925 = vmatprep.subr.mxu0 0.0
        %1926 = vmatpush1.msra.mxu0 0.0
        %1927 = vmatprep.subr.mxu0 0.0
        %1928 = vmatpush1.msra.mxu0 0.0
        %1929 = vmatprep.subr.mxu0 0.0
        %1930 = vmatpush1.msra.mxu0 0.0
        %1931 = vmatprep.subr.mxu0 0.0
        %1932 = vmatpush1.msra.mxu0 0.0
        %1933 = vmatprep.subr.mxu0 0.0
        %1934 = vmatpush1.msra.mxu0 0.0
        %1935 = vmatprep.subr.mxu0 0.0
        %1936 = vmatpush1.msra.mxu0 0.0
        %1937 = vmatprep.subr.mxu0 0.0
        %1938 = vmatpush1.msra.mxu0 0.0
        %1939 = vmatprep.mubr.f32.mxu0 0.0
        %1940 = vmatmul.mubr.f32.gmra.mrb[0].mxu0 %v1873
        %v1941 = vpop.f32.mrb[0].mxu0
        %v1942 = vadd.f32 %v1869, %v1941
        %v1943 = vpop.f32.mrb[0].mxu0
        %1944 = vdwg.mxu0
        %v1945 = vld [vmem:[%s403] sm:$0xff]
        %s1946 = scalar_lea.vmem [#allocation5], 288
        %v1947 = vld [vmem:[%s1946] sm:$0xff]
        %v1948 = vld [vmem:[%s1946 + $0x8] sm:$0xff]
        %v1950 = vsel %vm256, %v1945, 0
        %1952 = vmatprep.subr.mxu0 0.0
        %1953 = vmatpush1.msra.mxu0 %v1947
        %1954 = vmatprep.subr.mxu0 0.0
        %1955 = vmatpush1.msra.mxu0 %v1948
        %1956 = vmatprep.subr.mxu0 0.0
        %1957 = vmatpush1.msra.mxu0 0.0
        %1958 = vmatprep.subr.mxu0 0.0
        %1959 = vmatpush1.msra.mxu0 0.0
        %1960 = vmatprep.subr.mxu0 0.0
        %1961 = vmatpush1.msra.mxu0 0.0
        %1962 = vmatprep.subr.mxu0 0.0
        %1963 = vmatpush1.msra.mxu0 0.0
        %1964 = vmatprep.subr.mxu0 0.0
        %1965 = vmatpush1.msra.mxu0 0.0
        %1966 = vmatprep.subr.mxu0 0.0
        %1967 = vmatpush1.msra.mxu0 0.0
        %1968 = vmatprep.subr.mxu0 0.0
        %1969 = vmatpush1.msra.mxu0 0.0
        %1970 = vmatprep.subr.mxu0 0.0
        %1971 = vmatpush1.msra.mxu0 0.0
        %1972 = vmatprep.subr.mxu0 0.0
        %1973 = vmatpush1.msra.mxu0 0.0
        %1974 = vmatprep.subr.mxu0 0.0
        %1975 = vmatpush1.msra.mxu0 0.0
        %1976 = vmatprep.subr.mxu0 0.0
        %1977 = vmatpush1.msra.mxu0 0.0
        %1978 = vmatprep.subr.mxu0 0.0
        %1979 = vmatpush1.msra.mxu0 0.0
        %1980 = vmatprep.subr.mxu0 0.0
        %1981 = vmatpush1.msra.mxu0 0.0
        %1982 = vmatprep.subr.mxu0 0.0
        %1983 = vmatpush1.msra.mxu0 0.0
        %1984 = vmatprep.subr.mxu0 0.0
        %1985 = vmatpush1.msra.mxu0 0.0
        %1986 = vmatprep.subr.mxu0 0.0
        %1987 = vmatpush1.msra.mxu0 0.0
        %1988 = vmatprep.subr.mxu0 0.0
        %1989 = vmatpush1.msra.mxu0 0.0
        %1990 = vmatprep.subr.mxu0 0.0
        %1991 = vmatpush1.msra.mxu0 0.0
        %1992 = vmatprep.subr.mxu0 0.0
        %1993 = vmatpush1.msra.mxu0 0.0
        %1994 = vmatprep.subr.mxu0 0.0
        %1995 = vmatpush1.msra.mxu0 0.0
        %1996 = vmatprep.subr.mxu0 0.0
        %1997 = vmatpush1.msra.mxu0 0.0
        %1998 = vmatprep.subr.mxu0 0.0
        %1999 = vmatpush1.msra.mxu0 0.0
        %2000 = vmatprep.subr.mxu0 0.0
        %2001 = vmatpush1.msra.mxu0 0.0
        %2002 = vmatprep.subr.mxu0 0.0
        %2003 = vmatpush1.msra.mxu0 0.0
        %2004 = vmatprep.subr.mxu0 0.0
        %2005 = vmatpush1.msra.mxu0 0.0
        %2006 = vmatprep.subr.mxu0 0.0
        %2007 = vmatpush1.msra.mxu0 0.0
        %2008 = vmatprep.subr.mxu0 0.0
        %2009 = vmatpush1.msra.mxu0 0.0
        %2010 = vmatprep.subr.mxu0 0.0
        %2011 = vmatpush1.msra.mxu0 0.0
        %2012 = vmatprep.subr.mxu0 0.0
        %2013 = vmatpush1.msra.mxu0 0.0
        %2014 = vmatprep.subr.mxu0 0.0
        %2015 = vmatpush1.msra.mxu0 0.0
        %2016 = vmatprep.mubr.f32.mxu0 0.0
        %2017 = vmatmul.mubr.f32.gmra.mrb[0].mxu0 %v1950
        %v2018 = vpop.f32.mrb[0].mxu0
        %v2019 = vadd.f32 0.0, %v2018
        %v2020 = vpop.f32.mrb[0].mxu0
        %2021 = vdwg.mxu0
        %v2022 = vadd.f32 %v1942, %v2019
        %v2023 = vld [vmem:[%s482] sm:$0xff]
        %s2024 = scalar_lea.vmem [#allocation5], 304
        %v2025 = vld [vmem:[%s2024] sm:$0xff]
        %v2026 = vld [vmem:[%s2024 + $0x8] sm:$0xff]
        %v2028 = vsel %vm256, %v2023, 0
        %2030 = vmatprep.subr.mxu0 0.0
        %2031 = vmatpush1.msra.mxu0 %v2025
        %2032 = vmatprep.subr.mxu0 0.0
        %2033 = vmatpush1.msra.mxu0 %v2026
        %2034 = vmatprep.subr.mxu0 0.0
        %2035 = vmatpush1.msra.mxu0 0.0
        %2036 = vmatprep.subr.mxu0 0.0
        %2037 = vmatpush1.msra.mxu0 0.0
        %2038 = vmatprep.subr.mxu0 0.0
        %2039 = vmatpush1.msra.mxu0 0.0
        %2040 = vmatprep.subr.mxu0 0.0
        %2041 = vmatpush1.msra.mxu0 0.0
        %2042 = vmatprep.subr.mxu0 0.0
        %2043 = vmatpush1.msra.mxu0 0.0
        %2044 = vmatprep.subr.mxu0 0.0
        %2045 = vmatpush1.msra.mxu0 0.0
        %2046 = vmatprep.subr.mxu0 0.0
        %2047 = vmatpush1.msra.mxu0 0.0
        %2048 = vmatprep.subr.mxu0 0.0
        %2049 = vmatpush1.msra.mxu0 0.0
        %2050 = vmatprep.subr.mxu0 0.0
        %2051 = vmatpush1.msra.mxu0 0.0
        %2052 = vmatprep.subr.mxu0 0.0
        %2053 = vmatpush1.msra.mxu0 0.0
        %2054 = vmatprep.subr.mxu0 0.0
        %2055 = vmatpush1.msra.mxu0 0.0
        %2056 = vmatprep.subr.mxu0 0.0
        %2057 = vmatpush1.msra.mxu0 0.0
        %2058 = vmatprep.subr.mxu0 0.0
        %2059 = vmatpush1.msra.mxu0 0.0
        %2060 = vmatprep.subr.mxu0 0.0
        %2061 = vmatpush1.msra.mxu0 0.0
        %2062 = vmatprep.subr.mxu0 0.0
        %2063 = vmatpush1.msra.mxu0 0.0
        %2064 = vmatprep.subr.mxu0 0.0
        %2065 = vmatpush1.msra.mxu0 0.0
        %2066 = vmatprep.subr.mxu0 0.0
        %2067 = vmatpush1.msra.mxu0 0.0
        %2068 = vmatprep.subr.mxu0 0.0
        %2069 = vmatpush1.msra.mxu0 0.0
        %2070 = vmatprep.subr.mxu0 0.0
        %2071 = vmatpush1.msra.mxu0 0.0
        %2072 = vmatprep.subr.mxu0 0.0
        %2073 = vmatpush1.msra.mxu0 0.0
        %2074 = vmatprep.subr.mxu0 0.0
        %2075 = vmatpush1.msra.mxu0 0.0
        %2076 = vmatprep.subr.mxu0 0.0
        %2077 = vmatpush1.msra.mxu0 0.0
        %2078 = vmatprep.subr.mxu0 0.0
        %2079 = vmatpush1.msra.mxu0 0.0
        %2080 = vmatprep.subr.mxu0 0.0
        %2081 = vmatpush1.msra.mxu0 0.0
        %2082 = vmatprep.subr.mxu0 0.0
        %2083 = vmatpush1.msra.mxu0 0.0
        %2084 = vmatprep.subr.mxu0 0.0
        %2085 = vmatpush1.msra.mxu0 0.0
        %2086 = vmatprep.subr.mxu0 0.0
        %2087 = vmatpush1.msra.mxu0 0.0
        %2088 = vmatprep.subr.mxu0 0.0
        %2089 = vmatpush1.msra.mxu0 0.0
        %2090 = vmatprep.subr.mxu0 0.0
        %2091 = vmatpush1.msra.mxu0 0.0
        %2092 = vmatprep.subr.mxu0 0.0
        %2093 = vmatpush1.msra.mxu0 0.0
        %2094 = vmatprep.mubr.f32.mxu0 0.0
        %2095 = vmatmul.mubr.f32.gmra.mrb[0].mxu0 %v2028
        %v2096 = vpop.f32.mrb[0].mxu0
        %v2097 = vadd.f32 0.0, %v2096
        %v2098 = vpop.f32.mrb[0].mxu0
        %2099 = vdwg.mxu0
        %v2100 = vadd.f32 %v2022, %v2097
        %s2101 = scalar_lea.vmem [#allocation7], 4
        %v2102 = vld [vmem:[%s2101] sm:$0x1]
        %v2104 = vlaneseq
        %v2105 = vshrl.u32 %v2104, 7
        %v2106 = vsub.s32 0, %v2105
        %v2107 = vrot.slane %v2102, %v2106
        %v2109 = vadd.f32 %v2100, %v2107
        %v2111 = vcombine.high %v2109, %v2109
        %v2113 = vunpack.c.l.s4 1966171168
        %v2114 = vunpack.c.0.s8 %v2113
        %v2115 = vlaneseq
        %v2116 = vshrl.u32 %v2115, 7
        %v2117 = vsub.s32 %v2114, %v2116
        %v2118 = vrot.slane %v2109, %v2117
        %v2120 = vunpack.c.l.s4 1966171168
        %v2121 = vunpack.c.0.s8 %v2120
        %v2122 = vlaneseq
        %v2123 = vshrl.u32 %v2122, 7
        %v2124 = vsub.s32 %v2121, %v2123
        %v2125 = vrot.slane %v2111, %v2124
        %v2126 = vcombine.high %v2118, %v2118
        %v2127 = vcombine.high %v2125, %v2125
        %v2129 = vunpack.c.l.s4 1966171168
        %v2130 = vunpack.c.0.s8 %v2129
        %v2131 = vlaneseq
        %v2132 = vshrl.u32 %v2131, 7
        %v2133 = vsub.s32 %v2130, %v2132
        %v2134 = vrot.slane %v2118, %v2133
        %v2136 = vunpack.c.l.s4 1966171168
        %v2137 = vunpack.c.0.s8 %v2136
        %v2138 = vlaneseq
        %v2139 = vshrl.u32 %v2138, 7
        %v2140 = vsub.s32 %v2137, %v2139
        %v2141 = vrot.slane %v2125, %v2140
        %v2143 = vunpack.c.l.s4 1966171168
        %v2144 = vunpack.c.0.s8 %v2143
        %v2145 = vlaneseq
        %v2146 = vshrl.u32 %v2145, 7
        %v2147 = vsub.s32 %v2144, %v2146
        %v2148 = vrot.slane %v2126, %v2147
        %v2150 = vunpack.c.l.s4 1966171168
        %v2151 = vunpack.c.0.s8 %v2150
        %v2152 = vlaneseq
        %v2153 = vshrl.u32 %v2152, 7
        %v2154 = vsub.s32 %v2151, %v2153
        %v2155 = vrot.slane %v2127, %v2154
        %v2156 = vcombine.high %v2134, %v2134
        %v2157 = vcombine.high %v2141, %v2141
        %v2158 = vcombine.high %v2148, %v2148
        %v2159 = vcombine.high %v2155, %v2155
        %s2168 = scalar_lea.vmem %s246, 32 [#allocation8]
        %2169 = vst.msk [vmem:[%s2168] sm:$0x1] %vm627, %v2134
        %2170 = vst.msk [vmem:[%s2168 + $0x4] sm:$0x1] %vm627, %v2148
        %2171 = vst.msk [vmem:[%s2168 + $0x8] sm:$0x1] %vm627, %v2156
        %2172 = vst.msk [vmem:[%s2168 + $0xc] sm:$0x1] %vm627, %v2158
        %2173 = vst.msk [vmem:[%s2168 + $0x10] sm:$0x1] %vm627, %v2141
        %2174 = vst.msk [vmem:[%s2168 + $0x14] sm:$0x1] %vm627, %v2155
        %2175 = vst.msk [vmem:[%s2168 + $0x18] sm:$0x1] %vm627, %v2157
        %2176 = vst.msk [vmem:[%s2168 + $0x1c] sm:$0x1] %vm627, %v2159
        %v2177 = vld [vmem:[%s216] sm:$0xff]
        %s2178 = scalar_lea.vmem [#allocation5], 320
        %v2179 = vld [vmem:[%s2178] sm:$0xff]
        %v2180 = vld [vmem:[%s2178 + $0x8] sm:$0xff]
        %v2181 = vld [vmem:[%s251] sm:$0xff]
        %s2182 = scalar_lea.vmem [#allocation5], 336
        %v2183 = vld [vmem:[%s2182] sm:$0xff]
        %v2184 = vld [vmem:[%s2182 + $0x8] sm:$0xff]
        %v2186 = vsel %vm256, %v2181, 0
        %2188 = vmatprep.subr.mxu0 0.0
        %2189 = vmatpush1.msra.mxu0 %v2183
        %2190 = vmatprep.subr.mxu0 0.0
        %2191 = vmatpush1.msra.mxu0 %v2184
        %2192 = vmatprep.subr.mxu0 0.0
        %2193 = vmatpush1.msra.mxu0 0.0
        %2194 = vmatprep.subr.mxu0 0.0
        %2195 = vmatpush1.msra.mxu0 0.0
        %2196 = vmatprep.subr.mxu0 0.0
        %2197 = vmatpush1.msra.mxu0 0.0
        %2198 = vmatprep.subr.mxu0 0.0
        %2199 = vmatpush1.msra.mxu0 0.0
        %2200 = vmatprep.subr.mxu0 0.0
        %2201 = vmatpush1.msra.mxu0 0.0
        %2202 = vmatprep.subr.mxu0 0.0
        %2203 = vmatpush1.msra.mxu0 0.0
        %2204 = vmatprep.subr.mxu0 0.0
        %2205 = vmatpush1.msra.mxu0 0.0
        %2206 = vmatprep.subr.mxu0 0.0
        %2207 = vmatpush1.msra.mxu0 0.0
        %2208 = vmatprep.subr.mxu0 0.0
        %2209 = vmatpush1.msra.mxu0 0.0
        %2210 = vmatprep.subr.mxu0 0.0
        %2211 = vmatpush1.msra.mxu0 0.0
        %2212 = vmatprep.subr.mxu0 0.0
        %2213 = vmatpush1.msra.mxu0 0.0
        %2214 = vmatprep.subr.mxu0 0.0
        %2215 = vmatpush1.msra.mxu0 0.0
        %2216 = vmatprep.subr.mxu0 0.0
        %2217 = vmatpush1.msra.mxu0 0.0
        %2218 = vmatprep.subr.mxu0 0.0
        %2219 = vmatpush1.msra.mxu0 0.0
        %2220 = vmatprep.subr.mxu0 0.0
        %2221 = vmatpush1.msra.mxu0 0.0
        %2222 = vmatprep.subr.mxu0 0.0
        %2223 = vmatpush1.msra.mxu0 0.0
        %2224 = vmatprep.subr.mxu0 0.0
        %2225 = vmatpush1.msra.mxu0 0.0
        %2226 = vmatprep.subr.mxu0 0.0
        %2227 = vmatpush1.msra.mxu0 0.0
        %2228 = vmatprep.subr.mxu0 0.0
        %2229 = vmatpush1.msra.mxu0 0.0
        %2230 = vmatprep.subr.mxu0 0.0
        %2231 = vmatpush1.msra.mxu0 0.0
        %2232 = vmatprep.subr.mxu0 0.0
        %2233 = vmatpush1.msra.mxu0 0.0
        %2234 = vmatprep.subr.mxu0 0.0
        %2235 = vmatpush1.msra.mxu0 0.0
        %2236 = vmatprep.subr.mxu0 0.0
        %2237 = vmatpush1.msra.mxu0 0.0
        %2238 = vmatprep.subr.mxu0 0.0
        %2239 = vmatpush1.msra.mxu0 0.0
        %2240 = vmatprep.subr.mxu0 0.0
        %2241 = vmatpush1.msra.mxu0 0.0
        %2242 = vmatprep.subr.mxu0 0.0
        %2243 = vmatpush1.msra.mxu0 0.0
        %2244 = vmatprep.subr.mxu0 0.0
        %2245 = vmatpush1.msra.mxu0 0.0
        %2246 = vmatprep.subr.mxu0 0.0
        %2247 = vmatpush1.msra.mxu0 0.0
        %2248 = vmatprep.subr.mxu0 0.0
        %2249 = vmatpush1.msra.mxu0 0.0
        %2250 = vmatprep.subr.mxu0 0.0
        %2251 = vmatpush1.msra.mxu0 0.0
        %2252 = vmatprep.mubr.f32.mxu0 0.0
        %2253 = vmatmul.mubr.f32.gmra.mrb[0].mxu0 %v2186
        %v2254 = vpop.f32.mrb[0].mxu0
        %v2255 = vadd.f32 0.0, %v2254
        %v2256 = vpop.f32.mrb[0].mxu0
        %2257 = vdwg.mxu0
        %v2259 = vsel %vm256, %v2177, 0
        %2261 = vmatprep.subr.mxu0 0.0
        %2262 = vmatpush1.msra.mxu0 %v2179
        %2263 = vmatprep.subr.mxu0 0.0
        %2264 = vmatpush1.msra.mxu0 %v2180
        %2265 = vmatprep.subr.mxu0 0.0
        %2266 = vmatpush1.msra.mxu0 0.0
        %2267 = vmatprep.subr.mxu0 0.0
        %2268 = vmatpush1.msra.mxu0 0.0
        %2269 = vmatprep.subr.mxu0 0.0
        %2270 = vmatpush1.msra.mxu0 0.0
        %2271 = vmatprep.subr.mxu0 0.0
        %2272 = vmatpush1.msra.mxu0 0.0
        %2273 = vmatprep.subr.mxu0 0.0
        %2274 = vmatpush1.msra.mxu0 0.0
        %2275 = vmatprep.subr.mxu0 0.0
        %2276 = vmatpush1.msra.mxu0 0.0
        %2277 = vmatprep.subr.mxu0 0.0
        %2278 = vmatpush1.msra.mxu0 0.0
        %2279 = vmatprep.subr.mxu0 0.0
        %2280 = vmatpush1.msra.mxu0 0.0
        %2281 = vmatprep.subr.mxu0 0.0
        %2282 = vmatpush1.msra.mxu0 0.0
        %2283 = vmatprep.subr.mxu0 0.0
        %2284 = vmatpush1.msra.mxu0 0.0
        %2285 = vmatprep.subr.mxu0 0.0
        %2286 = vmatpush1.msra.mxu0 0.0
        %2287 = vmatprep.subr.mxu0 0.0
        %2288 = vmatpush1.msra.mxu0 0.0
        %2289 = vmatprep.subr.mxu0 0.0
        %2290 = vmatpush1.msra.mxu0 0.0
        %2291 = vmatprep.subr.mxu0 0.0
        %2292 = vmatpush1.msra.mxu0 0.0
        %2293 = vmatprep.subr.mxu0 0.0
        %2294 = vmatpush1.msra.mxu0 0.0
        %2295 = vmatprep.subr.mxu0 0.0
        %2296 = vmatpush1.msra.mxu0 0.0
        %2297 = vmatprep.subr.mxu0 0.0
        %2298 = vmatpush1.msra.mxu0 0.0
        %2299 = vmatprep.subr.mxu0 0.0
        %2300 = vmatpush1.msra.mxu0 0.0
        %2301 = vmatprep.subr.mxu0 0.0
        %2302 = vmatpush1.msra.mxu0 0.0
        %2303 = vmatprep.subr.mxu0 0.0
        %2304 = vmatpush1.msra.mxu0 0.0
        %2305 = vmatprep.subr.mxu0 0.0
        %2306 = vmatpush1.msra.mxu0 0.0
        %2307 = vmatprep.subr.mxu0 0.0
        %2308 = vmatpush1.msra.mxu0 0.0
        %2309 = vmatprep.subr.mxu0 0.0
        %2310 = vmatpush1.msra.mxu0 0.0
        %2311 = vmatprep.subr.mxu0 0.0
        %2312 = vmatpush1.msra.mxu0 0.0
        %2313 = vmatprep.subr.mxu0 0.0
        %2314 = vmatpush1.msra.mxu0 0.0
        %2315 = vmatprep.subr.mxu0 0.0
        %2316 = vmatpush1.msra.mxu0 0.0
        %2317 = vmatprep.subr.mxu0 0.0
        %2318 = vmatpush1.msra.mxu0 0.0
        %2319 = vmatprep.subr.mxu0 0.0
        %2320 = vmatpush1.msra.mxu0 0.0
        %2321 = vmatprep.subr.mxu0 0.0
        %2322 = vmatpush1.msra.mxu0 0.0
        %2323 = vmatprep.subr.mxu0 0.0
        %2324 = vmatpush1.msra.mxu0 0.0
        %2325 = vmatprep.mubr.f32.mxu0 0.0
        %2326 = vmatmul.mubr.f32.gmra.mrb[0].mxu0 %v2259
        %v2327 = vpop.f32.mrb[0].mxu0
        %v2328 = vadd.f32 %v2255, %v2327
        %v2329 = vpop.f32.mrb[0].mxu0
        %2330 = vdwg.mxu0
        %v2331 = vld [vmem:[%s403] sm:$0xff]
        %s2332 = scalar_lea.vmem [#allocation5], 352
        %v2333 = vld [vmem:[%s2332] sm:$0xff]
        %v2334 = vld [vmem:[%s2332 + $0x8] sm:$0xff]
        %v2336 = vsel %vm256, %v2331, 0
        %2338 = vmatprep.subr.mxu0 0.0
        %2339 = vmatpush1.msra.mxu0 %v2333
        %2340 = vmatprep.subr.mxu0 0.0
        %2341 = vmatpush1.msra.mxu0 %v2334
        %2342 = vmatprep.subr.mxu0 0.0
        %2343 = vmatpush1.msra.mxu0 0.0
        %2344 = vmatprep.subr.mxu0 0.0
        %2345 = vmatpush1.msra.mxu0 0.0
        %2346 = vmatprep.subr.mxu0 0.0
        %2347 = vmatpush1.msra.mxu0 0.0
        %2348 = vmatprep.subr.mxu0 0.0
        %2349 = vmatpush1.msra.mxu0 0.0
        %2350 = vmatprep.subr.mxu0 0.0
        %2351 = vmatpush1.msra.mxu0 0.0
        %2352 = vmatprep.subr.mxu0 0.0
        %2353 = vmatpush1.msra.mxu0 0.0
        %2354 = vmatprep.subr.mxu0 0.0
        %2355 = vmatpush1.msra.mxu0 0.0
        %2356 = vmatprep.subr.mxu0 0.0
        %2357 = vmatpush1.msra.mxu0 0.0
        %2358 = vmatprep.subr.mxu0 0.0
        %2359 = vmatpush1.msra.mxu0 0.0
        %2360 = vmatprep.subr.mxu0 0.0
        %2361 = vmatpush1.msra.mxu0 0.0
        %2362 = vmatprep.subr.mxu0 0.0
        %2363 = vmatpush1.msra.mxu0 0.0
        %2364 = vmatprep.subr.mxu0 0.0
        %2365 = vmatpush1.msra.mxu0 0.0
        %2366 = vmatprep.subr.mxu0 0.0
        %2367 = vmatpush1.msra.mxu0 0.0
        %2368 = vmatprep.subr.mxu0 0.0
        %2369 = vmatpush1.msra.mxu0 0.0
        %2370 = vmatprep.subr.mxu0 0.0
        %2371 = vmatpush1.msra.mxu0 0.0
        %2372 = vmatprep.subr.mxu0 0.0
        %2373 = vmatpush1.msra.mxu0 0.0
        %2374 = vmatprep.subr.mxu0 0.0
        %2375 = vmatpush1.msra.mxu0 0.0
        %2376 = vmatprep.subr.mxu0 0.0
        %2377 = vmatpush1.msra.mxu0 0.0
        %2378 = vmatprep.subr.mxu0 0.0
        %2379 = vmatpush1.msra.mxu0 0.0
        %2380 = vmatprep.subr.mxu0 0.0
        %2381 = vmatpush1.msra.mxu0 0.0
        %2382 = vmatprep.subr.mxu0 0.0
        %2383 = vmatpush1.msra.mxu0 0.0
        %2384 = vmatprep.subr.mxu0 0.0
        %2385 = vmatpush1.msra.mxu0 0.0
        %2386 = vmatprep.subr.mxu0 0.0
        %2387 = vmatpush1.msra.mxu0 0.0
        %2388 = vmatprep.subr.mxu0 0.0
        %2389 = vmatpush1.msra.mxu0 0.0
        %2390 = vmatprep.subr.mxu0 0.0
        %2391 = vmatpush1.msra.mxu0 0.0
        %2392 = vmatprep.subr.mxu0 0.0
        %2393 = vmatpush1.msra.mxu0 0.0
        %2394 = vmatprep.subr.mxu0 0.0
        %2395 = vmatpush1.msra.mxu0 0.0
        %2396 = vmatprep.subr.mxu0 0.0
        %2397 = vmatpush1.msra.mxu0 0.0
        %2398 = vmatprep.subr.mxu0 0.0
        %2399 = vmatpush1.msra.mxu0 0.0
        %2400 = vmatprep.subr.mxu0 0.0
        %2401 = vmatpush1.msra.mxu0 0.0
        %2402 = vmatprep.mubr.f32.mxu0 0.0
        %2403 = vmatmul.mubr.f32.gmra.mrb[0].mxu0 %v2336
        %v2404 = vpop.f32.mrb[0].mxu0
        %v2405 = vadd.f32 0.0, %v2404
        %v2406 = vpop.f32.mrb[0].mxu0
        %2407 = vdwg.mxu0
        %v2408 = vadd.f32 %v2328, %v2405
        %v2409 = vld [vmem:[%s482] sm:$0xff]
        %s2410 = scalar_lea.vmem [#allocation5], 368
        %v2411 = vld [vmem:[%s2410] sm:$0xff]
        %v2412 = vld [vmem:[%s2410 + $0x8] sm:$0xff]
        %v2414 = vsel %vm256, %v2409, 0
        %2416 = vmatprep.subr.mxu0 0.0
        %2417 = vmatpush1.msra.mxu0 %v2411
        %2418 = vmatprep.subr.mxu0 0.0
        %2419 = vmatpush1.msra.mxu0 %v2412
        %2420 = vmatprep.subr.mxu0 0.0
        %2421 = vmatpush1.msra.mxu0 0.0
        %2422 = vmatprep.subr.mxu0 0.0
        %2423 = vmatpush1.msra.mxu0 0.0
        %2424 = vmatprep.subr.mxu0 0.0
        %2425 = vmatpush1.msra.mxu0 0.0
        %2426 = vmatprep.subr.mxu0 0.0
        %2427 = vmatpush1.msra.mxu0 0.0
        %2428 = vmatprep.subr.mxu0 0.0
        %2429 = vmatpush1.msra.mxu0 0.0
        %2430 = vmatprep.subr.mxu0 0.0
        %2431 = vmatpush1.msra.mxu0 0.0
        %2432 = vmatprep.subr.mxu0 0.0
        %2433 = vmatpush1.msra.mxu0 0.0
        %2434 = vmatprep.subr.mxu0 0.0
        %2435 = vmatpush1.msra.mxu0 0.0
        %2436 = vmatprep.subr.mxu0 0.0
        %2437 = vmatpush1.msra.mxu0 0.0
        %2438 = vmatprep.subr.mxu0 0.0
        %2439 = vmatpush1.msra.mxu0 0.0
        %2440 = vmatprep.subr.mxu0 0.0
        %2441 = vmatpush1.msra.mxu0 0.0
        %2442 = vmatprep.subr.mxu0 0.0
        %2443 = vmatpush1.msra.mxu0 0.0
        %2444 = vmatprep.subr.mxu0 0.0
        %2445 = vmatpush1.msra.mxu0 0.0
        %2446 = vmatprep.subr.mxu0 0.0
        %2447 = vmatpush1.msra.mxu0 0.0
        %2448 = vmatprep.subr.mxu0 0.0
        %2449 = vmatpush1.msra.mxu0 0.0
        %2450 = vmatprep.subr.mxu0 0.0
        %2451 = vmatpush1.msra.mxu0 0.0
        %2452 = vmatprep.subr.mxu0 0.0
        %2453 = vmatpush1.msra.mxu0 0.0
        %2454 = vmatprep.subr.mxu0 0.0
        %2455 = vmatpush1.msra.mxu0 0.0
        %2456 = vmatprep.subr.mxu0 0.0
        %2457 = vmatpush1.msra.mxu0 0.0
        %2458 = vmatprep.subr.mxu0 0.0
        %2459 = vmatpush1.msra.mxu0 0.0
        %2460 = vmatprep.subr.mxu0 0.0
        %2461 = vmatpush1.msra.mxu0 0.0
        %2462 = vmatprep.subr.mxu0 0.0
        %2463 = vmatpush1.msra.mxu0 0.0
        %2464 = vmatprep.subr.mxu0 0.0
        %2465 = vmatpush1.msra.mxu0 0.0
        %2466 = vmatprep.subr.mxu0 0.0
        %2467 = vmatpush1.msra.mxu0 0.0
        %2468 = vmatprep.subr.mxu0 0.0
        %2469 = vmatpush1.msra.mxu0 0.0
        %2470 = vmatprep.subr.mxu0 0.0
        %2471 = vmatpush1.msra.mxu0 0.0
        %2472 = vmatprep.subr.mxu0 0.0
        %2473 = vmatpush1.msra.mxu0 0.0
        %2474 = vmatprep.subr.mxu0 0.0
        %2475 = vmatpush1.msra.mxu0 0.0
        %2476 = vmatprep.subr.mxu0 0.0
        %2477 = vmatpush1.msra.mxu0 0.0
        %2478 = vmatprep.subr.mxu0 0.0
        %2479 = vmatpush1.msra.mxu0 0.0
        %2480 = vmatprep.mubr.f32.mxu0 0.0
        %2481 = vmatmul.mubr.f32.gmra.mrb[0].mxu0 %v2414
        %v2482 = vpop.f32.mrb[0].mxu0
        %v2483 = vadd.f32 0.0, %v2482
        %v2484 = vpop.f32.mrb[0].mxu0
        %2485 = vdwg.mxu0
        %v2486 = vadd.f32 %v2408, %v2483
        %s2487 = scalar_lea.vmem [#allocation7], 5
        %v2488 = vld [vmem:[%s2487] sm:$0x1]
        %v2490 = vlaneseq
        %v2491 = vshrl.u32 %v2490, 7
        %v2492 = vsub.s32 0, %v2491
        %v2493 = vrot.slane %v2488, %v2492
        %v2495 = vadd.f32 %v2486, %v2493
        %v2497 = vcombine.high %v2495, %v2495
        %v2499 = vunpack.c.l.s4 1966171168
        %v2500 = vunpack.c.0.s8 %v2499
        %v2501 = vlaneseq
        %v2502 = vshrl.u32 %v2501, 7
        %v2503 = vsub.s32 %v2500, %v2502
        %v2504 = vrot.slane %v2495, %v2503
        %v2506 = vunpack.c.l.s4 1966171168
        %v2507 = vunpack.c.0.s8 %v2506
        %v2508 = vlaneseq
        %v2509 = vshrl.u32 %v2508, 7
        %v2510 = vsub.s32 %v2507, %v2509
        %v2511 = vrot.slane %v2497, %v2510
        %v2512 = vcombine.high %v2504, %v2504
        %v2513 = vcombine.high %v2511, %v2511
        %v2515 = vunpack.c.l.s4 1966171168
        %v2516 = vunpack.c.0.s8 %v2515
        %v2517 = vlaneseq
        %v2518 = vshrl.u32 %v2517, 7
        %v2519 = vsub.s32 %v2516, %v2518
        %v2520 = vrot.slane %v2504, %v2519
        %v2522 = vunpack.c.l.s4 1966171168
        %v2523 = vunpack.c.0.s8 %v2522
        %v2524 = vlaneseq
        %v2525 = vshrl.u32 %v2524, 7
        %v2526 = vsub.s32 %v2523, %v2525
        %v2527 = vrot.slane %v2511, %v2526
        %v2529 = vunpack.c.l.s4 1966171168
        %v2530 = vunpack.c.0.s8 %v2529
        %v2531 = vlaneseq
        %v2532 = vshrl.u32 %v2531, 7
        %v2533 = vsub.s32 %v2530, %v2532
        %v2534 = vrot.slane %v2512, %v2533
        %v2536 = vunpack.c.l.s4 1966171168
        %v2537 = vunpack.c.0.s8 %v2536
        %v2538 = vlaneseq
        %v2539 = vshrl.u32 %v2538, 7
        %v2540 = vsub.s32 %v2537, %v2539
        %v2541 = vrot.slane %v2513, %v2540
        %v2542 = vcombine.high %v2520, %v2520
        %v2543 = vcombine.high %v2527, %v2527
        %v2544 = vcombine.high %v2534, %v2534
        %v2545 = vcombine.high %v2541, %v2541
        %2554 = vst.msk [vmem:[%s2168 + $0x1] sm:$0x1] %vm627, %v2520
        %2555 = vst.msk [vmem:[%s2168 + $0x5] sm:$0x1] %vm627, %v2534
        %2556 = vst.msk [vmem:[%s2168 + $0x9] sm:$0x1] %vm627, %v2542
        %2557 = vst.msk [vmem:[%s2168 + $0xd] sm:$0x1] %vm627, %v2544
        %2558 = vst.msk [vmem:[%s2168 + $0x11] sm:$0x1] %vm627, %v2527
        %2559 = vst.msk [vmem:[%s2168 + $0x15] sm:$0x1] %vm627, %v2541
        %2560 = vst.msk [vmem:[%s2168 + $0x19] sm:$0x1] %vm627, %v2543
        %2561 = vst.msk [vmem:[%s2168 + $0x1d] sm:$0x1] %vm627, %v2545
        %v2562 = vld [vmem:[%s216] sm:$0xff]
        %s2563 = scalar_lea.vmem [#allocation5], 384
        %v2564 = vld [vmem:[%s2563] sm:$0xff]
        %v2565 = vld [vmem:[%s2563 + $0x8] sm:$0xff]
        %v2566 = vld [vmem:[%s251] sm:$0xff]
        %s2567 = scalar_lea.vmem [#allocation5], 400
        %v2568 = vld [vmem:[%s2567] sm:$0xff]
        %v2569 = vld [vmem:[%s2567 + $0x8] sm:$0xff]
        %v2571 = vsel %vm256, %v2566, 0
        %2573 = vmatprep.subr.mxu0 0.0
        %2574 = vmatpush1.msra.mxu0 %v2568
        %2575 = vmatprep.subr.mxu0 0.0
        %2576 = vmatpush1.msra.mxu0 %v2569
        %2577 = vmatprep.subr.mxu0 0.0
        %2578 = vmatpush1.msra.mxu0 0.0
        %2579 = vmatprep.subr.mxu0 0.0
        %2580 = vmatpush1.msra.mxu0 0.0
        %2581 = vmatprep.subr.mxu0 0.0
        %2582 = vmatpush1.msra.mxu0 0.0
        %2583 = vmatprep.subr.mxu0 0.0
        %2584 = vmatpush1.msra.mxu0 0.0
        %2585 = vmatprep.subr.mxu0 0.0
        %2586 = vmatpush1.msra.mxu0 0.0
        %2587 = vmatprep.subr.mxu0 0.0
        %2588 = vmatpush1.msra.mxu0 0.0
        %2589 = vmatprep.subr.mxu0 0.0
        %2590 = vmatpush1.msra.mxu0 0.0
        %2591 = vmatprep.subr.mxu0 0.0
        %2592 = vmatpush1.msra.mxu0 0.0
        %2593 = vmatprep.subr.mxu0 0.0
        %2594 = vmatpush1.msra.mxu0 0.0
        %2595 = vmatprep.subr.mxu0 0.0
        %2596 = vmatpush1.msra.mxu0 0.0
        %2597 = vmatprep.subr.mxu0 0.0
        %2598 = vmatpush1.msra.mxu0 0.0
        %2599 = vmatprep.subr.mxu0 0.0
        %2600 = vmatpush1.msra.mxu0 0.0
        %2601 = vmatprep.subr.mxu0 0.0
        %2602 = vmatpush1.msra.mxu0 0.0
        %2603 = vmatprep.subr.mxu0 0.0
        %2604 = vmatpush1.msra.mxu0 0.0
        %2605 = vmatprep.subr.mxu0 0.0
        %2606 = vmatpush1.msra.mxu0 0.0
        %2607 = vmatprep.subr.mxu0 0.0
        %2608 = vmatpush1.msra.mxu0 0.0
        %2609 = vmatprep.subr.mxu0 0.0
        %2610 = vmatpush1.msra.mxu0 0.0
        %2611 = vmatprep.subr.mxu0 0.0
        %2612 = vmatpush1.msra.mxu0 0.0
        %2613 = vmatprep.subr.mxu0 0.0
        %2614 = vmatpush1.msra.mxu0 0.0
        %2615 = vmatprep.subr.mxu0 0.0
        %2616 = vmatpush1.msra.mxu0 0.0
        %2617 = vmatprep.subr.mxu0 0.0
        %2618 = vmatpush1.msra.mxu0 0.0
        %2619 = vmatprep.subr.mxu0 0.0
        %2620 = vmatpush1.msra.mxu0 0.0
        %2621 = vmatprep.subr.mxu0 0.0
        %2622 = vmatpush1.msra.mxu0 0.0
        %2623 = vmatprep.subr.mxu0 0.0
        %2624 = vmatpush1.msra.mxu0 0.0
        %2625 = vmatprep.subr.mxu0 0.0
        %2626 = vmatpush1.msra.mxu0 0.0
        %2627 = vmatprep.subr.mxu0 0.0
        %2628 = vmatpush1.msra.mxu0 0.0
        %2629 = vmatprep.subr.mxu0 0.0
        %2630 = vmatpush1.msra.mxu0 0.0
        %2631 = vmatprep.subr.mxu0 0.0
        %2632 = vmatpush1.msra.mxu0 0.0
        %2633 = vmatprep.subr.mxu0 0.0
        %2634 = vmatpush1.msra.mxu0 0.0
        %2635 = vmatprep.subr.mxu0 0.0
        %2636 = vmatpush1.msra.mxu0 0.0
        %2637 = vmatprep.mubr.f32.mxu0 0.0
        %2638 = vmatmul.mubr.f32.gmra.mrb[0].mxu0 %v2571
        %v2639 = vpop.f32.mrb[0].mxu0
        %v2640 = vadd.f32 0.0, %v2639
        %v2641 = vpop.f32.mrb[0].mxu0
        %2642 = vdwg.mxu0
        %v2644 = vsel %vm256, %v2562, 0
        %2646 = vmatprep.subr.mxu0 0.0
        %2647 = vmatpush1.msra.mxu0 %v2564
        %2648 = vmatprep.subr.mxu0 0.0
        %2649 = vmatpush1.msra.mxu0 %v2565
        %2650 = vmatprep.subr.mxu0 0.0
        %2651 = vmatpush1.msra.mxu0 0.0
        %2652 = vmatprep.subr.mxu0 0.0
        %2653 = vmatpush1.msra.mxu0 0.0
        %2654 = vmatprep.subr.mxu0 0.0
        %2655 = vmatpush1.msra.mxu0 0.0
        %2656 = vmatprep.subr.mxu0 0.0
        %2657 = vmatpush1.msra.mxu0 0.0
        %2658 = vmatprep.subr.mxu0 0.0
        %2659 = vmatpush1.msra.mxu0 0.0
        %2660 = vmatprep.subr.mxu0 0.0
        %2661 = vmatpush1.msra.mxu0 0.0
        %2662 = vmatprep.subr.mxu0 0.0
        %2663 = vmatpush1.msra.mxu0 0.0
        %2664 = vmatprep.subr.mxu0 0.0
        %2665 = vmatpush1.msra.mxu0 0.0
        %2666 = vmatprep.subr.mxu0 0.0
        %2667 = vmatpush1.msra.mxu0 0.0
        %2668 = vmatprep.subr.mxu0 0.0
        %2669 = vmatpush1.msra.mxu0 0.0
        %2670 = vmatprep.subr.mxu0 0.0
        %2671 = vmatpush1.msra.mxu0 0.0
        %2672 = vmatprep.subr.mxu0 0.0
        %2673 = vmatpush1.msra.mxu0 0.0
        %2674 = vmatprep.subr.mxu0 0.0
        %2675 = vmatpush1.msra.mxu0 0.0
        %2676 = vmatprep.subr.mxu0 0.0
        %2677 = vmatpush1.msra.mxu0 0.0
        %2678 = vmatprep.subr.mxu0 0.0
        %2679 = vmatpush1.msra.mxu0 0.0
        %2680 = vmatprep.subr.mxu0 0.0
        %2681 = vmatpush1.msra.mxu0 0.0
        %2682 = vmatprep.subr.mxu0 0.0
        %2683 = vmatpush1.msra.mxu0 0.0
        %2684 = vmatprep.subr.mxu0 0.0
        %2685 = vmatpush1.msra.mxu0 0.0
        %2686 = vmatprep.subr.mxu0 0.0
        %2687 = vmatpush1.msra.mxu0 0.0
        %2688 = vmatprep.subr.mxu0 0.0
        %2689 = vmatpush1.msra.mxu0 0.0
        %2690 = vmatprep.subr.mxu0 0.0
        %2691 = vmatpush1.msra.mxu0 0.0
        %2692 = vmatprep.subr.mxu0 0.0
        %2693 = vmatpush1.msra.mxu0 0.0
        %2694 = vmatprep.subr.mxu0 0.0
        %2695 = vmatpush1.msra.mxu0 0.0
        %2696 = vmatprep.subr.mxu0 0.0
        %2697 = vmatpush1.msra.mxu0 0.0
        %2698 = vmatprep.subr.mxu0 0.0
        %2699 = vmatpush1.msra.mxu0 0.0
        %2700 = vmatprep.subr.mxu0 0.0
        %2701 = vmatpush1.msra.mxu0 0.0
        %2702 = vmatprep.subr.mxu0 0.0
        %2703 = vmatpush1.msra.mxu0 0.0
        %2704 = vmatprep.subr.mxu0 0.0
        %2705 = vmatpush1.msra.mxu0 0.0
        %2706 = vmatprep.subr.mxu0 0.0
        %2707 = vmatpush1.msra.mxu0 0.0
        %2708 = vmatprep.subr.mxu0 0.0
        %2709 = vmatpush1.msra.mxu0 0.0
        %2710 = vmatprep.mubr.f32.mxu0 0.0
        %2711 = vmatmul.mubr.f32.gmra.mrb[0].mxu0 %v2644
        %v2712 = vpop.f32.mrb[0].mxu0
        %v2713 = vadd.f32 %v2640, %v2712
        %v2714 = vpop.f32.mrb[0].mxu0
        %2715 = vdwg.mxu0
        %v2716 = vld [vmem:[%s403] sm:$0xff]
        %s2717 = scalar_lea.vmem [#allocation5], 416
        %v2718 = vld [vmem:[%s2717] sm:$0xff]
        %v2719 = vld [vmem:[%s2717 + $0x8] sm:$0xff]
        %v2721 = vsel %vm256, %v2716, 0
        %2723 = vmatprep.subr.mxu0 0.0
        %2724 = vmatpush1.msra.mxu0 %v2718
        %2725 = vmatprep.subr.mxu0 0.0
        %2726 = vmatpush1.msra.mxu0 %v2719
        %2727 = vmatprep.subr.mxu0 0.0
        %2728 = vmatpush1.msra.mxu0 0.0
        %2729 = vmatprep.subr.mxu0 0.0
        %2730 = vmatpush1.msra.mxu0 0.0
        %2731 = vmatprep.subr.mxu0 0.0
        %2732 = vmatpush1.msra.mxu0 0.0
        %2733 = vmatprep.subr.mxu0 0.0
        %2734 = vmatpush1.msra.mxu0 0.0
        %2735 = vmatprep.subr.mxu0 0.0
        %2736 = vmatpush1.msra.mxu0 0.0
        %2737 = vmatprep.subr.mxu0 0.0
        %2738 = vmatpush1.msra.mxu0 0.0
        %2739 = vmatprep.subr.mxu0 0.0
        %2740 = vmatpush1.msra.mxu0 0.0
        %2741 = vmatprep.subr.mxu0 0.0
        %2742 = vmatpush1.msra.mxu0 0.0
        %2743 = vmatprep.subr.mxu0 0.0
        %2744 = vmatpush1.msra.mxu0 0.0
        %2745 = vmatprep.subr.mxu0 0.0
        %2746 = vmatpush1.msra.mxu0 0.0
        %2747 = vmatprep.subr.mxu0 0.0
        %2748 = vmatpush1.msra.mxu0 0.0
        %2749 = vmatprep.subr.mxu0 0.0
        %2750 = vmatpush1.msra.mxu0 0.0
        %2751 = vmatprep.subr.mxu0 0.0
        %2752 = vmatpush1.msra.mxu0 0.0
        %2753 = vmatprep.subr.mxu0 0.0
        %2754 = vmatpush1.msra.mxu0 0.0
        %2755 = vmatprep.subr.mxu0 0.0
        %2756 = vmatpush1.msra.mxu0 0.0
        %2757 = vmatprep.subr.mxu0 0.0
        %2758 = vmatpush1.msra.mxu0 0.0
        %2759 = vmatprep.subr.mxu0 0.0
        %2760 = vmatpush1.msra.mxu0 0.0
        %2761 = vmatprep.subr.mxu0 0.0
        %2762 = vmatpush1.msra.mxu0 0.0
        %2763 = vmatprep.subr.mxu0 0.0
        %2764 = vmatpush1.msra.mxu0 0.0
        %2765 = vmatprep.subr.mxu0 0.0
        %2766 = vmatpush1.msra.mxu0 0.0
        %2767 = vmatprep.subr.mxu0 0.0
        %2768 = vmatpush1.msra.mxu0 0.0
        %2769 = vmatprep.subr.mxu0 0.0
        %2770 = vmatpush1.msra.mxu0 0.0
        %2771 = vmatprep.subr.mxu0 0.0
        %2772 = vmatpush1.msra.mxu0 0.0
        %2773 = vmatprep.subr.mxu0 0.0
        %2774 = vmatpush1.msra.mxu0 0.0
        %2775 = vmatprep.subr.mxu0 0.0
        %2776 = vmatpush1.msra.mxu0 0.0
        %2777 = vmatprep.subr.mxu0 0.0
        %2778 = vmatpush1.msra.mxu0 0.0
        %2779 = vmatprep.subr.mxu0 0.0
        %2780 = vmatpush1.msra.mxu0 0.0
        %2781 = vmatprep.subr.mxu0 0.0
        %2782 = vmatpush1.msra.mxu0 0.0
        %2783 = vmatprep.subr.mxu0 0.0
        %2784 = vmatpush1.msra.mxu0 0.0
        %2785 = vmatprep.subr.mxu0 0.0
        %2786 = vmatpush1.msra.mxu0 0.0
        %2787 = vmatprep.mubr.f32.mxu0 0.0
        %2788 = vmatmul.mubr.f32.gmra.mrb[0].mxu0 %v2721
        %v2789 = vpop.f32.mrb[0].mxu0
        %v2790 = vadd.f32 0.0, %v2789
        %v2791 = vpop.f32.mrb[0].mxu0
        %2792 = vdwg.mxu0
        %v2793 = vadd.f32 %v2713, %v2790
        %v2794 = vld [vmem:[%s482] sm:$0xff]
        %s2795 = scalar_lea.vmem [#allocation5], 432
        %v2796 = vld [vmem:[%s2795] sm:$0xff]
        %v2797 = vld [vmem:[%s2795 + $0x8] sm:$0xff]
        %v2799 = vsel %vm256, %v2794, 0
        %2801 = vmatprep.subr.mxu0 0.0
        %2802 = vmatpush1.msra.mxu0 %v2796
        %2803 = vmatprep.subr.mxu0 0.0
        %2804 = vmatpush1.msra.mxu0 %v2797
        %2805 = vmatprep.subr.mxu0 0.0
        %2806 = vmatpush1.msra.mxu0 0.0
        %2807 = vmatprep.subr.mxu0 0.0
        %2808 = vmatpush1.msra.mxu0 0.0
        %2809 = vmatprep.subr.mxu0 0.0
        %2810 = vmatpush1.msra.mxu0 0.0
        %2811 = vmatprep.subr.mxu0 0.0
        %2812 = vmatpush1.msra.mxu0 0.0
        %2813 = vmatprep.subr.mxu0 0.0
        %2814 = vmatpush1.msra.mxu0 0.0
        %2815 = vmatprep.subr.mxu0 0.0
        %2816 = vmatpush1.msra.mxu0 0.0
        %2817 = vmatprep.subr.mxu0 0.0
        %2818 = vmatpush1.msra.mxu0 0.0
        %2819 = vmatprep.subr.mxu0 0.0
        %2820 = vmatpush1.msra.mxu0 0.0
        %2821 = vmatprep.subr.mxu0 0.0
        %2822 = vmatpush1.msra.mxu0 0.0
        %2823 = vmatprep.subr.mxu0 0.0
        %2824 = vmatpush1.msra.mxu0 0.0
        %2825 = vmatprep.subr.mxu0 0.0
        %2826 = vmatpush1.msra.mxu0 0.0
        %2827 = vmatprep.subr.mxu0 0.0
        %2828 = vmatpush1.msra.mxu0 0.0
        %2829 = vmatprep.subr.mxu0 0.0
        %2830 = vmatpush1.msra.mxu0 0.0
        %2831 = vmatprep.subr.mxu0 0.0
        %2832 = vmatpush1.msra.mxu0 0.0
        %2833 = vmatprep.subr.mxu0 0.0
        %2834 = vmatpush1.msra.mxu0 0.0
        %2835 = vmatprep.subr.mxu0 0.0
        %2836 = vmatpush1.msra.mxu0 0.0
        %2837 = vmatprep.subr.mxu0 0.0
        %2838 = vmatpush1.msra.mxu0 0.0
        %2839 = vmatprep.subr.mxu0 0.0
        %2840 = vmatpush1.msra.mxu0 0.0
        %2841 = vmatprep.subr.mxu0 0.0
        %2842 = vmatpush1.msra.mxu0 0.0
        %2843 = vmatprep.subr.mxu0 0.0
        %2844 = vmatpush1.msra.mxu0 0.0
        %2845 = vmatprep.subr.mxu0 0.0
        %2846 = vmatpush1.msra.mxu0 0.0
        %2847 = vmatprep.subr.mxu0 0.0
        %2848 = vmatpush1.msra.mxu0 0.0
        %2849 = vmatprep.subr.mxu0 0.0
        %2850 = vmatpush1.msra.mxu0 0.0
        %2851 = vmatprep.subr.mxu0 0.0
        %2852 = vmatpush1.msra.mxu0 0.0
        %2853 = vmatprep.subr.mxu0 0.0
        %2854 = vmatpush1.msra.mxu0 0.0
        %2855 = vmatprep.subr.mxu0 0.0
        %2856 = vmatpush1.msra.mxu0 0.0
        %2857 = vmatprep.subr.mxu0 0.0
        %2858 = vmatpush1.msra.mxu0 0.0
        %2859 = vmatprep.subr.mxu0 0.0
        %2860 = vmatpush1.msra.mxu0 0.0
        %2861 = vmatprep.subr.mxu0 0.0
        %2862 = vmatpush1.msra.mxu0 0.0
        %2863 = vmatprep.subr.mxu0 0.0
        %2864 = vmatpush1.msra.mxu0 0.0
        %2865 = vmatprep.mubr.f32.mxu0 0.0
        %2866 = vmatmul.mubr.f32.gmra.mrb[0].mxu0 %v2799
        %v2867 = vpop.f32.mrb[0].mxu0
        %v2868 = vadd.f32 0.0, %v2867
        %v2869 = vpop.f32.mrb[0].mxu0
        %2870 = vdwg.mxu0
        %v2871 = vadd.f32 %v2793, %v2868
        %s2872 = scalar_lea.vmem [#allocation7], 6
        %v2873 = vld [vmem:[%s2872] sm:$0x1]
        %v2875 = vlaneseq
        %v2876 = vshrl.u32 %v2875, 7
        %v2877 = vsub.s32 0, %v2876
        %v2878 = vrot.slane %v2873, %v2877
        %v2880 = vadd.f32 %v2871, %v2878
        %v2882 = vcombine.high %v2880, %v2880
        %v2884 = vunpack.c.l.s4 1966171168
        %v2885 = vunpack.c.0.s8 %v2884
        %v2886 = vlaneseq
        %v2887 = vshrl.u32 %v2886, 7
        %v2888 = vsub.s32 %v2885, %v2887
        %v2889 = vrot.slane %v2880, %v2888
        %v2891 = vunpack.c.l.s4 1966171168
        %v2892 = vunpack.c.0.s8 %v2891
        %v2893 = vlaneseq
        %v2894 = vshrl.u32 %v2893, 7
        %v2895 = vsub.s32 %v2892, %v2894
        %v2896 = vrot.slane %v2882, %v2895
        %v2897 = vcombine.high %v2889, %v2889
        %v2898 = vcombine.high %v2896, %v2896
        %v2900 = vunpack.c.l.s4 1966171168
        %v2901 = vunpack.c.0.s8 %v2900
        %v2902 = vlaneseq
        %v2903 = vshrl.u32 %v2902, 7
        %v2904 = vsub.s32 %v2901, %v2903
        %v2905 = vrot.slane %v2889, %v2904
        %v2907 = vunpack.c.l.s4 1966171168
        %v2908 = vunpack.c.0.s8 %v2907
        %v2909 = vlaneseq
        %v2910 = vshrl.u32 %v2909, 7
        %v2911 = vsub.s32 %v2908, %v2910
        %v2912 = vrot.slane %v2896, %v2911
        %v2914 = vunpack.c.l.s4 1966171168
        %v2915 = vunpack.c.0.s8 %v2914
        %v2916 = vlaneseq
        %v2917 = vshrl.u32 %v2916, 7
        %v2918 = vsub.s32 %v2915, %v2917
        %v2919 = vrot.slane %v2897, %v2918
        %v2921 = vunpack.c.l.s4 1966171168
        %v2922 = vunpack.c.0.s8 %v2921
        %v2923 = vlaneseq
        %v2924 = vshrl.u32 %v2923, 7
        %v2925 = vsub.s32 %v2922, %v2924
        %v2926 = vrot.slane %v2898, %v2925
        %v2927 = vcombine.high %v2905, %v2905
        %v2928 = vcombine.high %v2912, %v2912
        %v2929 = vcombine.high %v2919, %v2919
        %v2930 = vcombine.high %v2926, %v2926
        %2939 = vst.msk [vmem:[%s2168 + $0x2] sm:$0x1] %vm627, %v2905
        %2940 = vst.msk [vmem:[%s2168 + $0x6] sm:$0x1] %vm627, %v2919
        %2941 = vst.msk [vmem:[%s2168 + $0xa] sm:$0x1] %vm627, %v2927
        %2942 = vst.msk [vmem:[%s2168 + $0xe] sm:$0x1] %vm627, %v2929
        %2943 = vst.msk [vmem:[%s2168 + $0x12] sm:$0x1] %vm627, %v2912
        %2944 = vst.msk [vmem:[%s2168 + $0x16] sm:$0x1] %vm627, %v2926
        %2945 = vst.msk [vmem:[%s2168 + $0x1a] sm:$0x1] %vm627, %v2928
        %2946 = vst.msk [vmem:[%s2168 + $0x1e] sm:$0x1] %vm627, %v2930
        %v2947 = vld [vmem:[%s216] sm:$0xff]
        %s2948 = scalar_lea.vmem [#allocation5], 448
        %v2949 = vld [vmem:[%s2948] sm:$0xff]
        %v2950 = vld [vmem:[%s2948 + $0x8] sm:$0xff]
        %v2951 = vld [vmem:[%s251] sm:$0xff]
        %s2952 = scalar_lea.vmem [#allocation5], 464
        %v2953 = vld [vmem:[%s2952] sm:$0xff]
        %v2954 = vld [vmem:[%s2952 + $0x8] sm:$0xff]
        %v2956 = vsel %vm256, %v2951, 0
        %2958 = vmatprep.subr.mxu0 0.0
        %2959 = vmatpush1.msra.mxu0 %v2953
        %2960 = vmatprep.subr.mxu0 0.0
        %2961 = vmatpush1.msra.mxu0 %v2954
        %2962 = vmatprep.subr.mxu0 0.0
        %2963 = vmatpush1.msra.mxu0 0.0
        %2964 = vmatprep.subr.mxu0 0.0
        %2965 = vmatpush1.msra.mxu0 0.0
        %2966 = vmatprep.subr.mxu0 0.0
        %2967 = vmatpush1.msra.mxu0 0.0
        %2968 = vmatprep.subr.mxu0 0.0
        %2969 = vmatpush1.msra.mxu0 0.0
        %2970 = vmatprep.subr.mxu0 0.0
        %2971 = vmatpush1.msra.mxu0 0.0
        %2972 = vmatprep.subr.mxu0 0.0
        %2973 = vmatpush1.msra.mxu0 0.0
        %2974 = vmatprep.subr.mxu0 0.0
        %2975 = vmatpush1.msra.mxu0 0.0
        %2976 = vmatprep.subr.mxu0 0.0
        %2977 = vmatpush1.msra.mxu0 0.0
        %2978 = vmatprep.subr.mxu0 0.0
        %2979 = vmatpush1.msra.mxu0 0.0
        %2980 = vmatprep.subr.mxu0 0.0
        %2981 = vmatpush1.msra.mxu0 0.0
        %2982 = vmatprep.subr.mxu0 0.0
        %2983 = vmatpush1.msra.mxu0 0.0
        %2984 = vmatprep.subr.mxu0 0.0
        %2985 = vmatpush1.msra.mxu0 0.0
        %2986 = vmatprep.subr.mxu0 0.0
        %2987 = vmatpush1.msra.mxu0 0.0
        %2988 = vmatprep.subr.mxu0 0.0
        %2989 = vmatpush1.msra.mxu0 0.0
        %2990 = vmatprep.subr.mxu0 0.0
        %2991 = vmatpush1.msra.mxu0 0.0
        %2992 = vmatprep.subr.mxu0 0.0
        %2993 = vmatpush1.msra.mxu0 0.0
        %2994 = vmatprep.subr.mxu0 0.0
        %2995 = vmatpush1.msra.mxu0 0.0
        %2996 = vmatprep.subr.mxu0 0.0
        %2997 = vmatpush1.msra.mxu0 0.0
        %2998 = vmatprep.subr.mxu0 0.0
        %2999 = vmatpush1.msra.mxu0 0.0
        %3000 = vmatprep.subr.mxu0 0.0
        %3001 = vmatpush1.msra.mxu0 0.0
        %3002 = vmatprep.subr.mxu0 0.0
        %3003 = vmatpush1.msra.mxu0 0.0
        %3004 = vmatprep.subr.mxu0 0.0
        %3005 = vmatpush1.msra.mxu0 0.0
        %3006 = vmatprep.subr.mxu0 0.0
        %3007 = vmatpush1.msra.mxu0 0.0
        %3008 = vmatprep.subr.mxu0 0.0
        %3009 = vmatpush1.msra.mxu0 0.0
        %3010 = vmatprep.subr.mxu0 0.0
        %3011 = vmatpush1.msra.mxu0 0.0
        %3012 = vmatprep.subr.mxu0 0.0
        %3013 = vmatpush1.msra.mxu0 0.0
        %3014 = vmatprep.subr.mxu0 0.0
        %3015 = vmatpush1.msra.mxu0 0.0
        %3016 = vmatprep.subr.mxu0 0.0
        %3017 = vmatpush1.msra.mxu0 0.0
        %3018 = vmatprep.subr.mxu0 0.0
        %3019 = vmatpush1.msra.mxu0 0.0
        %3020 = vmatprep.subr.mxu0 0.0
        %3021 = vmatpush1.msra.mxu0 0.0
        %3022 = vmatprep.mubr.f32.mxu0 0.0
        %3023 = vmatmul.mubr.f32.gmra.mrb[0].mxu0 %v2956
        %v3024 = vpop.f32.mrb[0].mxu0
        %v3025 = vadd.f32 0.0, %v3024
        %v3026 = vpop.f32.mrb[0].mxu0
        %3027 = vdwg.mxu0
        %v3029 = vsel %vm256, %v2947, 0
        %3031 = vmatprep.subr.mxu0 0.0
        %3032 = vmatpush1.msra.mxu0 %v2949
        %3033 = vmatprep.subr.mxu0 0.0
        %3034 = vmatpush1.msra.mxu0 %v2950
        %3035 = vmatprep.subr.mxu0 0.0
        %3036 = vmatpush1.msra.mxu0 0.0
        %3037 = vmatprep.subr.mxu0 0.0
        %3038 = vmatpush1.msra.mxu0 0.0
        %3039 = vmatprep.subr.mxu0 0.0
        %3040 = vmatpush1.msra.mxu0 0.0
        %3041 = vmatprep.subr.mxu0 0.0
        %3042 = vmatpush1.msra.mxu0 0.0
        %3043 = vmatprep.subr.mxu0 0.0
        %3044 = vmatpush1.msra.mxu0 0.0
        %3045 = vmatprep.subr.mxu0 0.0
        %3046 = vmatpush1.msra.mxu0 0.0
        %3047 = vmatprep.subr.mxu0 0.0
        %3048 = vmatpush1.msra.mxu0 0.0
        %3049 = vmatprep.subr.mxu0 0.0
        %3050 = vmatpush1.msra.mxu0 0.0
        %3051 = vmatprep.subr.mxu0 0.0
        %3052 = vmatpush1.msra.mxu0 0.0
        %3053 = vmatprep.subr.mxu0 0.0
        %3054 = vmatpush1.msra.mxu0 0.0
        %3055 = vmatprep.subr.mxu0 0.0
        %3056 = vmatpush1.msra.mxu0 0.0
        %3057 = vmatprep.subr.mxu0 0.0
        %3058 = vmatpush1.msra.mxu0 0.0
        %3059 = vmatprep.subr.mxu0 0.0
        %3060 = vmatpush1.msra.mxu0 0.0
        %3061 = vmatprep.subr.mxu0 0.0
        %3062 = vmatpush1.msra.mxu0 0.0
        %3063 = vmatprep.subr.mxu0 0.0
        %3064 = vmatpush1.msra.mxu0 0.0
        %3065 = vmatprep.subr.mxu0 0.0
        %3066 = vmatpush1.msra.mxu0 0.0
        %3067 = vmatprep.subr.mxu0 0.0
        %3068 = vmatpush1.msra.mxu0 0.0
        %3069 = vmatprep.subr.mxu0 0.0
        %3070 = vmatpush1.msra.mxu0 0.0
        %3071 = vmatprep.subr.mxu0 0.0
        %3072 = vmatpush1.msra.mxu0 0.0
        %3073 = vmatprep.subr.mxu0 0.0
        %3074 = vmatpush1.msra.mxu0 0.0
        %3075 = vmatprep.subr.mxu0 0.0
        %3076 = vmatpush1.msra.mxu0 0.0
        %3077 = vmatprep.subr.mxu0 0.0
        %3078 = vmatpush1.msra.mxu0 0.0
        %3079 = vmatprep.subr.mxu0 0.0
        %3080 = vmatpush1.msra.mxu0 0.0
        %3081 = vmatprep.subr.mxu0 0.0
        %3082 = vmatpush1.msra.mxu0 0.0
        %3083 = vmatprep.subr.mxu0 0.0
        %3084 = vmatpush1.msra.mxu0 0.0
        %3085 = vmatprep.subr.mxu0 0.0
        %3086 = vmatpush1.msra.mxu0 0.0
        %3087 = vmatprep.subr.mxu0 0.0
        %3088 = vmatpush1.msra.mxu0 0.0
        %3089 = vmatprep.subr.mxu0 0.0
        %3090 = vmatpush1.msra.mxu0 0.0
        %3091 = vmatprep.subr.mxu0 0.0
        %3092 = vmatpush1.msra.mxu0 0.0
        %3093 = vmatprep.subr.mxu0 0.0
        %3094 = vmatpush1.msra.mxu0 0.0
        %3095 = vmatprep.mubr.f32.mxu0 0.0
        %3096 = vmatmul.mubr.f32.gmra.mrb[0].mxu0 %v3029
        %v3097 = vpop.f32.mrb[0].mxu0
        %v3098 = vadd.f32 %v3025, %v3097
        %v3099 = vpop.f32.mrb[0].mxu0
        %3100 = vdwg.mxu0
        %v3101 = vld [vmem:[%s403] sm:$0xff]
        %s3102 = scalar_lea.vmem [#allocation5], 480
        %v3103 = vld [vmem:[%s3102] sm:$0xff]
        %v3104 = vld [vmem:[%s3102 + $0x8] sm:$0xff]
        %v3106 = vsel %vm256, %v3101, 0
        %3108 = vmatprep.subr.mxu0 0.0
        %3109 = vmatpush1.msra.mxu0 %v3103
        %3110 = vmatprep.subr.mxu0 0.0
        %3111 = vmatpush1.msra.mxu0 %v3104
        %3112 = vmatprep.subr.mxu0 0.0
        %3113 = vmatpush1.msra.mxu0 0.0
        %3114 = vmatprep.subr.mxu0 0.0
        %3115 = vmatpush1.msra.mxu0 0.0
        %3116 = vmatprep.subr.mxu0 0.0
        %3117 = vmatpush1.msra.mxu0 0.0
        %3118 = vmatprep.subr.mxu0 0.0
        %3119 = vmatpush1.msra.mxu0 0.0
        %3120 = vmatprep.subr.mxu0 0.0
        %3121 = vmatpush1.msra.mxu0 0.0
        %3122 = vmatprep.subr.mxu0 0.0
        %3123 = vmatpush1.msra.mxu0 0.0
        %3124 = vmatprep.subr.mxu0 0.0
        %3125 = vmatpush1.msra.mxu0 0.0
        %3126 = vmatprep.subr.mxu0 0.0
        %3127 = vmatpush1.msra.mxu0 0.0
        %3128 = vmatprep.subr.mxu0 0.0
        %3129 = vmatpush1.msra.mxu0 0.0
        %3130 = vmatprep.subr.mxu0 0.0
        %3131 = vmatpush1.msra.mxu0 0.0
        %3132 = vmatprep.subr.mxu0 0.0
        %3133 = vmatpush1.msra.mxu0 0.0
        %3134 = vmatprep.subr.mxu0 0.0
        %3135 = vmatpush1.msra.mxu0 0.0
        %3136 = vmatprep.subr.mxu0 0.0
        %3137 = vmatpush1.msra.mxu0 0.0
        %3138 = vmatprep.subr.mxu0 0.0
        %3139 = vmatpush1.msra.mxu0 0.0
        %3140 = vmatprep.subr.mxu0 0.0
        %3141 = vmatpush1.msra.mxu0 0.0
        %3142 = vmatprep.subr.mxu0 0.0
        %3143 = vmatpush1.msra.mxu0 0.0
        %3144 = vmatprep.subr.mxu0 0.0
        %3145 = vmatpush1.msra.mxu0 0.0
        %3146 = vmatprep.subr.mxu0 0.0
        %3147 = vmatpush1.msra.mxu0 0.0
        %3148 = vmatprep.subr.mxu0 0.0
        %3149 = vmatpush1.msra.mxu0 0.0
        %3150 = vmatprep.subr.mxu0 0.0
        %3151 = vmatpush1.msra.mxu0 0.0
        %3152 = vmatprep.subr.mxu0 0.0
        %3153 = vmatpush1.msra.mxu0 0.0
        %3154 = vmatprep.subr.mxu0 0.0
        %3155 = vmatpush1.msra.mxu0 0.0
        %3156 = vmatprep.subr.mxu0 0.0
        %3157 = vmatpush1.msra.mxu0 0.0
        %3158 = vmatprep.subr.mxu0 0.0
        %3159 = vmatpush1.msra.mxu0 0.0
        %3160 = vmatprep.subr.mxu0 0.0
        %3161 = vmatpush1.msra.mxu0 0.0
        %3162 = vmatprep.subr.mxu0 0.0
        %3163 = vmatpush1.msra.mxu0 0.0
        %3164 = vmatprep.subr.mxu0 0.0
        %3165 = vmatpush1.msra.mxu0 0.0
        %3166 = vmatprep.subr.mxu0 0.0
        %3167 = vmatpush1.msra.mxu0 0.0
        %3168 = vmatprep.subr.mxu0 0.0
        %3169 = vmatpush1.msra.mxu0 0.0
        %3170 = vmatprep.subr.mxu0 0.0
        %3171 = vmatpush1.msra.mxu0 0.0
        %3172 = vmatprep.mubr.f32.mxu0 0.0
        %3173 = vmatmul.mubr.f32.gmra.mrb[0].mxu0 %v3106
        %v3174 = vpop.f32.mrb[0].mxu0
        %v3175 = vadd.f32 0.0, %v3174
        %v3176 = vpop.f32.mrb[0].mxu0
        %3177 = vdwg.mxu0
        %v3178 = vadd.f32 %v3098, %v3175
        %v3179 = vld [vmem:[%s482] sm:$0xff]
        %s3180 = scalar_lea.vmem [#allocation5], 496
        %v3181 = vld [vmem:[%s3180] sm:$0xff]
        %v3182 = vld [vmem:[%s3180 + $0x8] sm:$0xff]
        %v3184 = vsel %vm256, %v3179, 0
        %3186 = vmatprep.subr.mxu0 0.0
        %3187 = vmatpush1.msra.mxu0 %v3181
        %3188 = vmatprep.subr.mxu0 0.0
        %3189 = vmatpush1.msra.mxu0 %v3182
        %3190 = vmatprep.subr.mxu0 0.0
        %3191 = vmatpush1.msra.mxu0 0.0
        %3192 = vmatprep.subr.mxu0 0.0
        %3193 = vmatpush1.msra.mxu0 0.0
        %3194 = vmatprep.subr.mxu0 0.0
        %3195 = vmatpush1.msra.mxu0 0.0
        %3196 = vmatprep.subr.mxu0 0.0
        %3197 = vmatpush1.msra.mxu0 0.0
        %3198 = vmatprep.subr.mxu0 0.0
        %3199 = vmatpush1.msra.mxu0 0.0
        %3200 = vmatprep.subr.mxu0 0.0
        %3201 = vmatpush1.msra.mxu0 0.0
        %3202 = vmatprep.subr.mxu0 0.0
        %3203 = vmatpush1.msra.mxu0 0.0
        %3204 = vmatprep.subr.mxu0 0.0
        %3205 = vmatpush1.msra.mxu0 0.0
        %3206 = vmatprep.subr.mxu0 0.0
        %3207 = vmatpush1.msra.mxu0 0.0
        %3208 = vmatprep.subr.mxu0 0.0
        %3209 = vmatpush1.msra.mxu0 0.0
        %3210 = vmatprep.subr.mxu0 0.0
        %3211 = vmatpush1.msra.mxu0 0.0
        %3212 = vmatprep.subr.mxu0 0.0
        %3213 = vmatpush1.msra.mxu0 0.0
        %3214 = vmatprep.subr.mxu0 0.0
        %3215 = vmatpush1.msra.mxu0 0.0
        %3216 = vmatprep.subr.mxu0 0.0
        %3217 = vmatpush1.msra.mxu0 0.0
        %3218 = vmatprep.subr.mxu0 0.0
        %3219 = vmatpush1.msra.mxu0 0.0
        %3220 = vmatprep.subr.mxu0 0.0
        %3221 = vmatpush1.msra.mxu0 0.0
        %3222 = vmatprep.subr.mxu0 0.0
        %3223 = vmatpush1.msra.mxu0 0.0
        %3224 = vmatprep.subr.mxu0 0.0
        %3225 = vmatpush1.msra.mxu0 0.0
        %3226 = vmatprep.subr.mxu0 0.0
        %3227 = vmatpush1.msra.mxu0 0.0
        %3228 = vmatprep.subr.mxu0 0.0
        %3229 = vmatpush1.msra.mxu0 0.0
        %3230 = vmatprep.subr.mxu0 0.0
        %3231 = vmatpush1.msra.mxu0 0.0
        %3232 = vmatprep.subr.mxu0 0.0
        %3233 = vmatpush1.msra.mxu0 0.0
        %3234 = vmatprep.subr.mxu0 0.0
        %3235 = vmatpush1.msra.mxu0 0.0
        %3236 = vmatprep.subr.mxu0 0.0
        %3237 = vmatpush1.msra.mxu0 0.0
        %3238 = vmatprep.subr.mxu0 0.0
        %3239 = vmatpush1.msra.mxu0 0.0
        %3240 = vmatprep.subr.mxu0 0.0
        %3241 = vmatpush1.msra.mxu0 0.0
        %3242 = vmatprep.subr.mxu0 0.0
        %3243 = vmatpush1.msra.mxu0 0.0
        %3244 = vmatprep.subr.mxu0 0.0
        %3245 = vmatpush1.msra.mxu0 0.0
        %3246 = vmatprep.subr.mxu0 0.0
        %3247 = vmatpush1.msra.mxu0 0.0
        %3248 = vmatprep.subr.mxu0 0.0
        %3249 = vmatpush1.msra.mxu0 0.0
        %3250 = vmatprep.mubr.f32.mxu0 0.0
        %3251 = vmatmul.mubr.f32.gmra.mrb[0].mxu0 %v3184
        %v3252 = vpop.f32.mrb[0].mxu0
        %v3253 = vadd.f32 0.0, %v3252
        %v3254 = vpop.f32.mrb[0].mxu0
        %3255 = vdwg.mxu0
        %v3256 = vadd.f32 %v3178, %v3253
        %s3257 = scalar_lea.vmem [#allocation7], 7
        %v3258 = vld [vmem:[%s3257] sm:$0x1]
        %v3260 = vlaneseq
        %v3261 = vshrl.u32 %v3260, 7
        %v3262 = vsub.s32 0, %v3261
        %v3263 = vrot.slane %v3258, %v3262
        %v3265 = vadd.f32 %v3256, %v3263
        %v3267 = vcombine.high %v3265, %v3265
        %v3269 = vunpack.c.l.s4 1966171168
        %v3270 = vunpack.c.0.s8 %v3269
        %v3271 = vlaneseq
        %v3272 = vshrl.u32 %v3271, 7
        %v3273 = vsub.s32 %v3270, %v3272
        %v3274 = vrot.slane %v3265, %v3273
        %v3276 = vunpack.c.l.s4 1966171168
        %v3277 = vunpack.c.0.s8 %v3276
        %v3278 = vlaneseq
        %v3279 = vshrl.u32 %v3278, 7
        %v3280 = vsub.s32 %v3277, %v3279
        %v3281 = vrot.slane %v3267, %v3280
        %v3282 = vcombine.high %v3274, %v3274
        %v3283 = vcombine.high %v3281, %v3281
        %v3285 = vunpack.c.l.s4 1966171168
        %v3286 = vunpack.c.0.s8 %v3285
        %v3287 = vlaneseq
        %v3288 = vshrl.u32 %v3287, 7
        %v3289 = vsub.s32 %v3286, %v3288
        %v3290 = vrot.slane %v3274, %v3289
        %v3292 = vunpack.c.l.s4 1966171168
        %v3293 = vunpack.c.0.s8 %v3292
        %v3294 = vlaneseq
        %v3295 = vshrl.u32 %v3294, 7
        %v3296 = vsub.s32 %v3293, %v3295
        %v3297 = vrot.slane %v3281, %v3296
        %v3299 = vunpack.c.l.s4 1966171168
        %v3300 = vunpack.c.0.s8 %v3299
        %v3301 = vlaneseq
        %v3302 = vshrl.u32 %v3301, 7
        %v3303 = vsub.s32 %v3300, %v3302
        %v3304 = vrot.slane %v3282, %v3303
        %v3306 = vunpack.c.l.s4 1966171168
        %v3307 = vunpack.c.0.s8 %v3306
        %v3308 = vlaneseq
        %v3309 = vshrl.u32 %v3308, 7
        %v3310 = vsub.s32 %v3307, %v3309
        %v3311 = vrot.slane %v3283, %v3310
        %v3312 = vcombine.high %v3290, %v3290
        %v3313 = vcombine.high %v3297, %v3297
        %v3314 = vcombine.high %v3304, %v3304
        %v3315 = vcombine.high %v3311, %v3311
        %3324 = vst.msk [vmem:[%s2168 + $0x3] sm:$0x1] %vm627, %v3290
        %3325 = vst.msk [vmem:[%s2168 + $0x7] sm:$0x1] %vm627, %v3304
        %3326 = vst.msk [vmem:[%s2168 + $0xb] sm:$0x1] %vm627, %v3312
        %3327 = vst.msk [vmem:[%s2168 + $0xf] sm:$0x1] %vm627, %v3314
        %3328 = vst.msk [vmem:[%s2168 + $0x13] sm:$0x1] %vm627, %v3297
        %3329 = vst.msk [vmem:[%s2168 + $0x17] sm:$0x1] %vm627, %v3311
        %3330 = vst.msk [vmem:[%s2168 + $0x1b] sm:$0x1] %vm627, %v3313
        %3331 = vst.msk [vmem:[%s2168 + $0x1f] sm:$0x1] %vm627, %v3315
        %v3332 = vld [vmem:[%s216] sm:$0xff]
        %s3333 = scalar_lea.vmem [#allocation5], 512
        %v3334 = vld [vmem:[%s3333] sm:$0xff]
        %v3335 = vld [vmem:[%s3333 + $0x8] sm:$0xff]
        %v3336 = vld [vmem:[%s251] sm:$0xff]
        %s3337 = scalar_lea.vmem [#allocation5], 528
        %v3338 = vld [vmem:[%s3337] sm:$0xff]
        %v3339 = vld [vmem:[%s3337 + $0x8] sm:$0xff]
        %v3341 = vsel %vm256, %v3336, 0
        %3343 = vmatprep.subr.mxu0 0.0
        %3344 = vmatpush1.msra.mxu0 %v3338
        %3345 = vmatprep.subr.mxu0 0.0
        %3346 = vmatpush1.msra.mxu0 %v3339
        %3347 = vmatprep.subr.mxu0 0.0
        %3348 = vmatpush1.msra.mxu0 0.0
        %3349 = vmatprep.subr.mxu0 0.0
        %3350 = vmatpush1.msra.mxu0 0.0
        %3351 = vmatprep.subr.mxu0 0.0
        %3352 = vmatpush1.msra.mxu0 0.0
        %3353 = vmatprep.subr.mxu0 0.0
        %3354 = vmatpush1.msra.mxu0 0.0
        %3355 = vmatprep.subr.mxu0 0.0
        %3356 = vmatpush1.msra.mxu0 0.0
        %3357 = vmatprep.subr.mxu0 0.0
        %3358 = vmatpush1.msra.mxu0 0.0
        %3359 = vmatprep.subr.mxu0 0.0
        %3360 = vmatpush1.msra.mxu0 0.0
        %3361 = vmatprep.subr.mxu0 0.0
        %3362 = vmatpush1.msra.mxu0 0.0
        %3363 = vmatprep.subr.mxu0 0.0
        %3364 = vmatpush1.msra.mxu0 0.0
        %3365 = vmatprep.subr.mxu0 0.0
        %3366 = vmatpush1.msra.mxu0 0.0
        %3367 = vmatprep.subr.mxu0 0.0
        %3368 = vmatpush1.msra.mxu0 0.0
        %3369 = vmatprep.subr.mxu0 0.0
        %3370 = vmatpush1.msra.mxu0 0.0
        %3371 = vmatprep.subr.mxu0 0.0
        %3372 = vmatpush1.msra.mxu0 0.0
        %3373 = vmatprep.subr.mxu0 0.0
        %3374 = vmatpush1.msra.mxu0 0.0
        %3375 = vmatprep.subr.mxu0 0.0
        %3376 = vmatpush1.msra.mxu0 0.0
        %3377 = vmatprep.subr.mxu0 0.0
        %3378 = vmatpush1.msra.mxu0 0.0
        %3379 = vmatprep.subr.mxu0 0.0
        %3380 = vmatpush1.msra.mxu0 0.0
        %3381 = vmatprep.subr.mxu0 0.0
        %3382 = vmatpush1.msra.mxu0 0.0
        %3383 = vmatprep.subr.mxu0 0.0
        %3384 = vmatpush1.msra.mxu0 0.0
        %3385 = vmatprep.subr.mxu0 0.0
        %3386 = vmatpush1.msra.mxu0 0.0
        %3387 = vmatprep.subr.mxu0 0.0
        %3388 = vmatpush1.msra.mxu0 0.0
        %3389 = vmatprep.subr.mxu0 0.0
        %3390 = vmatpush1.msra.mxu0 0.0
        %3391 = vmatprep.subr.mxu0 0.0
        %3392 = vmatpush1.msra.mxu0 0.0
        %3393 = vmatprep.subr.mxu0 0.0
        %3394 = vmatpush1.msra.mxu0 0.0
        %3395 = vmatprep.subr.mxu0 0.0
        %3396 = vmatpush1.msra.mxu0 0.0
        %3397 = vmatprep.subr.mxu0 0.0
        %3398 = vmatpush1.msra.mxu0 0.0
        %3399 = vmatprep.subr.mxu0 0.0
        %3400 = vmatpush1.msra.mxu0 0.0
        %3401 = vmatprep.subr.mxu0 0.0
        %3402 = vmatpush1.msra.mxu0 0.0
        %3403 = vmatprep.subr.mxu0 0.0
        %3404 = vmatpush1.msra.mxu0 0.0
        %3405 = vmatprep.subr.mxu0 0.0
        %3406 = vmatpush1.msra.mxu0 0.0
        %3407 = vmatprep.mubr.f32.mxu0 0.0
        %3408 = vmatmul.mubr.f32.gmra.mrb[0].mxu0 %v3341
        %v3409 = vpop.f32.mrb[0].mxu0
        %v3410 = vadd.f32 0.0, %v3409
        %v3411 = vpop.f32.mrb[0].mxu0
        %3412 = vdwg.mxu0
        %v3414 = vsel %vm256, %v3332, 0
        %3416 = vmatprep.subr.mxu0 0.0
        %3417 = vmatpush1.msra.mxu0 %v3334
        %3418 = vmatprep.subr.mxu0 0.0
        %3419 = vmatpush1.msra.mxu0 %v3335
        %3420 = vmatprep.subr.mxu0 0.0
        %3421 = vmatpush1.msra.mxu0 0.0
        %3422 = vmatprep.subr.mxu0 0.0
        %3423 = vmatpush1.msra.mxu0 0.0
        %3424 = vmatprep.subr.mxu0 0.0
        %3425 = vmatpush1.msra.mxu0 0.0
        %3426 = vmatprep.subr.mxu0 0.0
        %3427 = vmatpush1.msra.mxu0 0.0
        %3428 = vmatprep.subr.mxu0 0.0
        %3429 = vmatpush1.msra.mxu0 0.0
        %3430 = vmatprep.subr.mxu0 0.0
        %3431 = vmatpush1.msra.mxu0 0.0
        %3432 = vmatprep.subr.mxu0 0.0
        %3433 = vmatpush1.msra.mxu0 0.0
        %3434 = vmatprep.subr.mxu0 0.0
        %3435 = vmatpush1.msra.mxu0 0.0
        %3436 = vmatprep.subr.mxu0 0.0
        %3437 = vmatpush1.msra.mxu0 0.0
        %3438 = vmatprep.subr.mxu0 0.0
        %3439 = vmatpush1.msra.mxu0 0.0
        %3440 = vmatprep.subr.mxu0 0.0
        %3441 = vmatpush1.msra.mxu0 0.0
        %3442 = vmatprep.subr.mxu0 0.0
        %3443 = vmatpush1.msra.mxu0 0.0
        %3444 = vmatprep.subr.mxu0 0.0
        %3445 = vmatpush1.msra.mxu0 0.0
        %3446 = vmatprep.subr.mxu0 0.0
        %3447 = vmatpush1.msra.mxu0 0.0
        %3448 = vmatprep.subr.mxu0 0.0
        %3449 = vmatpush1.msra.mxu0 0.0
        %3450 = vmatprep.subr.mxu0 0.0
        %3451 = vmatpush1.msra.mxu0 0.0
        %3452 = vmatprep.subr.mxu0 0.0
        %3453 = vmatpush1.msra.mxu0 0.0
        %3454 = vmatprep.subr.mxu0 0.0
        %3455 = vmatpush1.msra.mxu0 0.0
        %3456 = vmatprep.subr.mxu0 0.0
        %3457 = vmatpush1.msra.mxu0 0.0
        %3458 = vmatprep.subr.mxu0 0.0
        %3459 = vmatpush1.msra.mxu0 0.0
        %3460 = vmatprep.subr.mxu0 0.0
        %3461 = vmatpush1.msra.mxu0 0.0
        %3462 = vmatprep.subr.mxu0 0.0
        %3463 = vmatpush1.msra.mxu0 0.0
        %3464 = vmatprep.subr.mxu0 0.0
        %3465 = vmatpush1.msra.mxu0 0.0
        %3466 = vmatprep.subr.mxu0 0.0
        %3467 = vmatpush1.msra.mxu0 0.0
        %3468 = vmatprep.subr.mxu0 0.0
        %3469 = vmatpush1.msra.mxu0 0.0
        %3470 = vmatprep.subr.mxu0 0.0
        %3471 = vmatpush1.msra.mxu0 0.0
        %3472 = vmatprep.subr.mxu0 0.0
        %3473 = vmatpush1.msra.mxu0 0.0
        %3474 = vmatprep.subr.mxu0 0.0
        %3475 = vmatpush1.msra.mxu0 0.0
        %3476 = vmatprep.subr.mxu0 0.0
        %3477 = vmatpush1.msra.mxu0 0.0
        %3478 = vmatprep.subr.mxu0 0.0
        %3479 = vmatpush1.msra.mxu0 0.0
        %3480 = vmatprep.mubr.f32.mxu0 0.0
        %3481 = vmatmul.mubr.f32.gmra.mrb[0].mxu0 %v3414
        %v3482 = vpop.f32.mrb[0].mxu0
        %v3483 = vadd.f32 %v3410, %v3482
        %v3484 = vpop.f32.mrb[0].mxu0
        %3485 = vdwg.mxu0
        %v3486 = vld [vmem:[%s403] sm:$0xff]
        %s3487 = scalar_lea.vmem [#allocation5], 544
        %v3488 = vld [vmem:[%s3487] sm:$0xff]
        %v3489 = vld [vmem:[%s3487 + $0x8] sm:$0xff]
        %v3491 = vsel %vm256, %v3486, 0
        %3493 = vmatprep.subr.mxu0 0.0
        %3494 = vmatpush1.msra.mxu0 %v3488
        %3495 = vmatprep.subr.mxu0 0.0
        %3496 = vmatpush1.msra.mxu0 %v3489
        %3497 = vmatprep.subr.mxu0 0.0
        %3498 = vmatpush1.msra.mxu0 0.0
        %3499 = vmatprep.subr.mxu0 0.0
        %3500 = vmatpush1.msra.mxu0 0.0
        %3501 = vmatprep.subr.mxu0 0.0
        %3502 = vmatpush1.msra.mxu0 0.0
        %3503 = vmatprep.subr.mxu0 0.0
        %3504 = vmatpush1.msra.mxu0 0.0
        %3505 = vmatprep.subr.mxu0 0.0
        %3506 = vmatpush1.msra.mxu0 0.0
        %3507 = vmatprep.subr.mxu0 0.0
        %3508 = vmatpush1.msra.mxu0 0.0
        %3509 = vmatprep.subr.mxu0 0.0
        %3510 = vmatpush1.msra.mxu0 0.0
        %3511 = vmatprep.subr.mxu0 0.0
        %3512 = vmatpush1.msra.mxu0 0.0
        %3513 = vmatprep.subr.mxu0 0.0
        %3514 = vmatpush1.msra.mxu0 0.0
        %3515 = vmatprep.subr.mxu0 0.0
        %3516 = vmatpush1.msra.mxu0 0.0
        %3517 = vmatprep.subr.mxu0 0.0
        %3518 = vmatpush1.msra.mxu0 0.0
        %3519 = vmatprep.subr.mxu0 0.0
        %3520 = vmatpush1.msra.mxu0 0.0
        %3521 = vmatprep.subr.mxu0 0.0
        %3522 = vmatpush1.msra.mxu0 0.0
        %3523 = vmatprep.subr.mxu0 0.0
        %3524 = vmatpush1.msra.mxu0 0.0
        %3525 = vmatprep.subr.mxu0 0.0
        %3526 = vmatpush1.msra.mxu0 0.0
        %3527 = vmatprep.subr.mxu0 0.0
        %3528 = vmatpush1.msra.mxu0 0.0
        %3529 = vmatprep.subr.mxu0 0.0
        %3530 = vmatpush1.msra.mxu0 0.0
        %3531 = vmatprep.subr.mxu0 0.0
        %3532 = vmatpush1.msra.mxu0 0.0
        %3533 = vmatprep.subr.mxu0 0.0
        %3534 = vmatpush1.msra.mxu0 0.0
        %3535 = vmatprep.subr.mxu0 0.0
        %3536 = vmatpush1.msra.mxu0 0.0
        %3537 = vmatprep.subr.mxu0 0.0
        %3538 = vmatpush1.msra.mxu0 0.0
        %3539 = vmatprep.subr.mxu0 0.0
        %3540 = vmatpush1.msra.mxu0 0.0
        %3541 = vmatprep.subr.mxu0 0.0
        %3542 = vmatpush1.msra.mxu0 0.0
        %3543 = vmatprep.subr.mxu0 0.0
        %3544 = vmatpush1.msra.mxu0 0.0
        %3545 = vmatprep.subr.mxu0 0.0
        %3546 = vmatpush1.msra.mxu0 0.0
        %3547 = vmatprep.subr.mxu0 0.0
        %3548 = vmatpush1.msra.mxu0 0.0
        %3549 = vmatprep.subr.mxu0 0.0
        %3550 = vmatpush1.msra.mxu0 0.0
        %3551 = vmatprep.subr.mxu0 0.0
        %3552 = vmatpush1.msra.mxu0 0.0
        %3553 = vmatprep.subr.mxu0 0.0
        %3554 = vmatpush1.msra.mxu0 0.0
        %3555 = vmatprep.subr.mxu0 0.0
        %3556 = vmatpush1.msra.mxu0 0.0
        %3557 = vmatprep.mubr.f32.mxu0 0.0
        %3558 = vmatmul.mubr.f32.gmra.mrb[0].mxu0 %v3491
        %v3559 = vpop.f32.mrb[0].mxu0
        %v3560 = vadd.f32 0.0, %v3559
        %v3561 = vpop.f32.mrb[0].mxu0
        %3562 = vdwg.mxu0
        %v3563 = vadd.f32 %v3483, %v3560
        %v3564 = vld [vmem:[%s482] sm:$0xff]
        %s3565 = scalar_lea.vmem [#allocation5], 560
        %v3566 = vld [vmem:[%s3565] sm:$0xff]
        %v3567 = vld [vmem:[%s3565 + $0x8] sm:$0xff]
        %v3569 = vsel %vm256, %v3564, 0
        %3571 = vmatprep.subr.mxu0 0.0
        %3572 = vmatpush1.msra.mxu0 %v3566
        %3573 = vmatprep.subr.mxu0 0.0
        %3574 = vmatpush1.msra.mxu0 %v3567
        %3575 = vmatprep.subr.mxu0 0.0
        %3576 = vmatpush1.msra.mxu0 0.0
        %3577 = vmatprep.subr.mxu0 0.0
        %3578 = vmatpush1.msra.mxu0 0.0
        %3579 = vmatprep.subr.mxu0 0.0
        %3580 = vmatpush1.msra.mxu0 0.0
        %3581 = vmatprep.subr.mxu0 0.0
        %3582 = vmatpush1.msra.mxu0 0.0
        %3583 = vmatprep.subr.mxu0 0.0
        %3584 = vmatpush1.msra.mxu0 0.0
        %3585 = vmatprep.subr.mxu0 0.0
        %3586 = vmatpush1.msra.mxu0 0.0
        %3587 = vmatprep.subr.mxu0 0.0
        %3588 = vmatpush1.msra.mxu0 0.0
        %3589 = vmatprep.subr.mxu0 0.0
        %3590 = vmatpush1.msra.mxu0 0.0
        %3591 = vmatprep.subr.mxu0 0.0
        %3592 = vmatpush1.msra.mxu0 0.0
        %3593 = vmatprep.subr.mxu0 0.0
        %3594 = vmatpush1.msra.mxu0 0.0
        %3595 = vmatprep.subr.mxu0 0.0
        %3596 = vmatpush1.msra.mxu0 0.0
        %3597 = vmatprep.subr.mxu0 0.0
        %3598 = vmatpush1.msra.mxu0 0.0
        %3599 = vmatprep.subr.mxu0 0.0
        %3600 = vmatpush1.msra.mxu0 0.0
        %3601 = vmatprep.subr.mxu0 0.0
        %3602 = vmatpush1.msra.mxu0 0.0
        %3603 = vmatprep.subr.mxu0 0.0
        %3604 = vmatpush1.msra.mxu0 0.0
        %3605 = vmatprep.subr.mxu0 0.0
        %3606 = vmatpush1.msra.mxu0 0.0
        %3607 = vmatprep.subr.mxu0 0.0
        %3608 = vmatpush1.msra.mxu0 0.0
        %3609 = vmatprep.subr.mxu0 0.0
        %3610 = vmatpush1.msra.mxu0 0.0
        %3611 = vmatprep.subr.mxu0 0.0
        %3612 = vmatpush1.msra.mxu0 0.0
        %3613 = vmatprep.subr.mxu0 0.0
        %3614 = vmatpush1.msra.mxu0 0.0
        %3615 = vmatprep.subr.mxu0 0.0
        %3616 = vmatpush1.msra.mxu0 0.0
        %3617 = vmatprep.subr.mxu0 0.0
        %3618 = vmatpush1.msra.mxu0 0.0
        %3619 = vmatprep.subr.mxu0 0.0
        %3620 = vmatpush1.msra.mxu0 0.0
        %3621 = vmatprep.subr.mxu0 0.0
        %3622 = vmatpush1.msra.mxu0 0.0
        %3623 = vmatprep.subr.mxu0 0.0
        %3624 = vmatpush1.msra.mxu0 0.0
        %3625 = vmatprep.subr.mxu0 0.0
        %3626 = vmatpush1.msra.mxu0 0.0
        %3627 = vmatprep.subr.mxu0 0.0
        %3628 = vmatpush1.msra.mxu0 0.0
        %3629 = vmatprep.subr.mxu0 0.0
        %3630 = vmatpush1.msra.mxu0 0.0
        %3631 = vmatprep.subr.mxu0 0.0
        %3632 = vmatpush1.msra.mxu0 0.0
        %3633 = vmatprep.subr.mxu0 0.0
        %3634 = vmatpush1.msra.mxu0 0.0
        %3635 = vmatprep.mubr.f32.mxu0 0.0
        %3636 = vmatmul.mubr.f32.gmra.mrb[0].mxu0 %v3569
        %v3637 = vpop.f32.mrb[0].mxu0
        %v3638 = vadd.f32 0.0, %v3637
        %v3639 = vpop.f32.mrb[0].mxu0
        %3640 = vdwg.mxu0
        %v3641 = vadd.f32 %v3563, %v3638
        %s3642 = scalar_lea.vmem [#allocation7], 8
        %v3643 = vld [vmem:[%s3642] sm:$0x1]
        %v3645 = vlaneseq
        %v3646 = vshrl.u32 %v3645, 7
        %v3647 = vsub.s32 0, %v3646
        %v3648 = vrot.slane %v3643, %v3647
        %v3650 = vadd.f32 %v3641, %v3648
        %v3652 = vcombine.high %v3650, %v3650
        %v3654 = vunpack.c.l.s4 1966171168
        %v3655 = vunpack.c.0.s8 %v3654
        %v3656 = vlaneseq
        %v3657 = vshrl.u32 %v3656, 7
        %v3658 = vsub.s32 %v3655, %v3657
        %v3659 = vrot.slane %v3650, %v3658
        %v3661 = vunpack.c.l.s4 1966171168
        %v3662 = vunpack.c.0.s8 %v3661
        %v3663 = vlaneseq
        %v3664 = vshrl.u32 %v3663, 7
        %v3665 = vsub.s32 %v3662, %v3664
        %v3666 = vrot.slane %v3652, %v3665
        %v3667 = vcombine.high %v3659, %v3659
        %v3668 = vcombine.high %v3666, %v3666
        %v3670 = vunpack.c.l.s4 1966171168
        %v3671 = vunpack.c.0.s8 %v3670
        %v3672 = vlaneseq
        %v3673 = vshrl.u32 %v3672, 7
        %v3674 = vsub.s32 %v3671, %v3673
        %v3675 = vrot.slane %v3659, %v3674
        %v3677 = vunpack.c.l.s4 1966171168
        %v3678 = vunpack.c.0.s8 %v3677
        %v3679 = vlaneseq
        %v3680 = vshrl.u32 %v3679, 7
        %v3681 = vsub.s32 %v3678, %v3680
        %v3682 = vrot.slane %v3666, %v3681
        %v3684 = vunpack.c.l.s4 1966171168
        %v3685 = vunpack.c.0.s8 %v3684
        %v3686 = vlaneseq
        %v3687 = vshrl.u32 %v3686, 7
        %v3688 = vsub.s32 %v3685, %v3687
        %v3689 = vrot.slane %v3667, %v3688
        %v3691 = vunpack.c.l.s4 1966171168
        %v3692 = vunpack.c.0.s8 %v3691
        %v3693 = vlaneseq
        %v3694 = vshrl.u32 %v3693, 7
        %v3695 = vsub.s32 %v3692, %v3694
        %v3696 = vrot.slane %v3668, %v3695
        %v3697 = vcombine.high %v3675, %v3675
        %v3698 = vcombine.high %v3682, %v3682
        %v3699 = vcombine.high %v3689, %v3689
        %v3700 = vcombine.high %v3696, %v3696
        %s3709 = scalar_lea.vmem %s246, 64 [#allocation8]
        %3710 = vst.msk [vmem:[%s3709] sm:$0x1] %vm627, %v3675
        %3711 = vst.msk [vmem:[%s3709 + $0x4] sm:$0x1] %vm627, %v3689
        %3712 = vst.msk [vmem:[%s3709 + $0x8] sm:$0x1] %vm627, %v3697
        %3713 = vst.msk [vmem:[%s3709 + $0xc] sm:$0x1] %vm627, %v3699
        %3714 = vst.msk [vmem:[%s3709 + $0x10] sm:$0x1] %vm627, %v3682
        %3715 = vst.msk [vmem:[%s3709 + $0x14] sm:$0x1] %vm627, %v3696
        %3716 = vst.msk [vmem:[%s3709 + $0x18] sm:$0x1] %vm627, %v3698
        %3717 = vst.msk [vmem:[%s3709 + $0x1c] sm:$0x1] %vm627, %v3700
        %v3718 = vld [vmem:[%s216] sm:$0xff]
        %s3719 = scalar_lea.vmem [#allocation5], 576
        %v3720 = vld [vmem:[%s3719] sm:$0xff]
        %v3721 = vld [vmem:[%s3719 + $0x8] sm:$0xff]
        %v3722 = vld [vmem:[%s251] sm:$0xff]
        %s3723 = scalar_lea.vmem [#allocation5], 592
        %v3724 = vld [vmem:[%s3723] sm:$0xff]
        %v3725 = vld [vmem:[%s3723 + $0x8] sm:$0xff]
        %v3727 = vsel %vm256, %v3722, 0
        %3729 = vmatprep.subr.mxu0 0.0
        %3730 = vmatpush1.msra.mxu0 %v3724
        %3731 = vmatprep.subr.mxu0 0.0
        %3732 = vmatpush1.msra.mxu0 %v3725
        %3733 = vmatprep.subr.mxu0 0.0
        %3734 = vmatpush1.msra.mxu0 0.0
        %3735 = vmatprep.subr.mxu0 0.0
        %3736 = vmatpush1.msra.mxu0 0.0
        %3737 = vmatprep.subr.mxu0 0.0
        %3738 = vmatpush1.msra.mxu0 0.0
        %3739 = vmatprep.subr.mxu0 0.0
        %3740 = vmatpush1.msra.mxu0 0.0
        %3741 = vmatprep.subr.mxu0 0.0
        %3742 = vmatpush1.msra.mxu0 0.0
        %3743 = vmatprep.subr.mxu0 0.0
        %3744 = vmatpush1.msra.mxu0 0.0
        %3745 = vmatprep.subr.mxu0 0.0
        %3746 = vmatpush1.msra.mxu0 0.0
        %3747 = vmatprep.subr.mxu0 0.0
        %3748 = vmatpush1.msra.mxu0 0.0
        %3749 = vmatprep.subr.mxu0 0.0
        %3750 = vmatpush1.msra.mxu0 0.0
        %3751 = vmatprep.subr.mxu0 0.0
        %3752 = vmatpush1.msra.mxu0 0.0
        %3753 = vmatprep.subr.mxu0 0.0
        %3754 = vmatpush1.msra.mxu0 0.0
        %3755 = vmatprep.subr.mxu0 0.0
        %3756 = vmatpush1.msra.mxu0 0.0
        %3757 = vmatprep.subr.mxu0 0.0
        %3758 = vmatpush1.msra.mxu0 0.0
        %3759 = vmatprep.subr.mxu0 0.0
        %3760 = vmatpush1.msra.mxu0 0.0
        %3761 = vmatprep.subr.mxu0 0.0
        %3762 = vmatpush1.msra.mxu0 0.0
        %3763 = vmatprep.subr.mxu0 0.0
        %3764 = vmatpush1.msra.mxu0 0.0
        %3765 = vmatprep.subr.mxu0 0.0
        %3766 = vmatpush1.msra.mxu0 0.0
        %3767 = vmatprep.subr.mxu0 0.0
        %3768 = vmatpush1.msra.mxu0 0.0
        %3769 = vmatprep.subr.mxu0 0.0
        %3770 = vmatpush1.msra.mxu0 0.0
        %3771 = vmatprep.subr.mxu0 0.0
        %3772 = vmatpush1.msra.mxu0 0.0
        %3773 = vmatprep.subr.mxu0 0.0
        %3774 = vmatpush1.msra.mxu0 0.0
        %3775 = vmatprep.subr.mxu0 0.0
        %3776 = vmatpush1.msra.mxu0 0.0
        %3777 = vmatprep.subr.mxu0 0.0
        %3778 = vmatpush1.msra.mxu0 0.0
        %3779 = vmatprep.subr.mxu0 0.0
        %3780 = vmatpush1.msra.mxu0 0.0
        %3781 = vmatprep.subr.mxu0 0.0
        %3782 = vmatpush1.msra.mxu0 0.0
        %3783 = vmatprep.subr.mxu0 0.0
        %3784 = vmatpush1.msra.mxu0 0.0
        %3785 = vmatprep.subr.mxu0 0.0
        %3786 = vmatpush1.msra.mxu0 0.0
        %3787 = vmatprep.subr.mxu0 0.0
        %3788 = vmatpush1.msra.mxu0 0.0
        %3789 = vmatprep.subr.mxu0 0.0
        %3790 = vmatpush1.msra.mxu0 0.0
        %3791 = vmatprep.subr.mxu0 0.0
        %3792 = vmatpush1.msra.mxu0 0.0
        %3793 = vmatprep.mubr.f32.mxu0 0.0
        %3794 = vmatmul.mubr.f32.gmra.mrb[0].mxu0 %v3727
        %v3795 = vpop.f32.mrb[0].mxu0
        %v3796 = vadd.f32 0.0, %v3795
        %v3797 = vpop.f32.mrb[0].mxu0
        %3798 = vdwg.mxu0
        %v3800 = vsel %vm256, %v3718, 0
        %3802 = vmatprep.subr.mxu0 0.0
        %3803 = vmatpush1.msra.mxu0 %v3720
        %3804 = vmatprep.subr.mxu0 0.0
        %3805 = vmatpush1.msra.mxu0 %v3721
        %3806 = vmatprep.subr.mxu0 0.0
        %3807 = vmatpush1.msra.mxu0 0.0
        %3808 = vmatprep.subr.mxu0 0.0
        %3809 = vmatpush1.msra.mxu0 0.0
        %3810 = vmatprep.subr.mxu0 0.0
        %3811 = vmatpush1.msra.mxu0 0.0
        %3812 = vmatprep.subr.mxu0 0.0
        %3813 = vmatpush1.msra.mxu0 0.0
        %3814 = vmatprep.subr.mxu0 0.0
        %3815 = vmatpush1.msra.mxu0 0.0
        %3816 = vmatprep.subr.mxu0 0.0
        %3817 = vmatpush1.msra.mxu0 0.0
        %3818 = vmatprep.subr.mxu0 0.0
        %3819 = vmatpush1.msra.mxu0 0.0
        %3820 = vmatprep.subr.mxu0 0.0
        %3821 = vmatpush1.msra.mxu0 0.0
        %3822 = vmatprep.subr.mxu0 0.0
        %3823 = vmatpush1.msra.mxu0 0.0
        %3824 = vmatprep.subr.mxu0 0.0
        %3825 = vmatpush1.msra.mxu0 0.0
        %3826 = vmatprep.subr.mxu0 0.0
        %3827 = vmatpush1.msra.mxu0 0.0
        %3828 = vmatprep.subr.mxu0 0.0
        %3829 = vmatpush1.msra.mxu0 0.0
        %3830 = vmatprep.subr.mxu0 0.0
        %3831 = vmatpush1.msra.mxu0 0.0
        %3832 = vmatprep.subr.mxu0 0.0
        %3833 = vmatpush1.msra.mxu0 0.0
        %3834 = vmatprep.subr.mxu0 0.0
        %3835 = vmatpush1.msra.mxu0 0.0
        %3836 = vmatprep.subr.mxu0 0.0
        %3837 = vmatpush1.msra.mxu0 0.0
        %3838 = vmatprep.subr.mxu0 0.0
        %3839 = vmatpush1.msra.mxu0 0.0
        %3840 = vmatprep.subr.mxu0 0.0
        %3841 = vmatpush1.msra.mxu0 0.0
        %3842 = vmatprep.subr.mxu0 0.0
        %3843 = vmatpush1.msra.mxu0 0.0
        %3844 = vmatprep.subr.mxu0 0.0
        %3845 = vmatpush1.msra.mxu0 0.0
        %3846 = vmatprep.subr.mxu0 0.0
        %3847 = vmatpush1.msra.mxu0 0.0
        %3848 = vmatprep.subr.mxu0 0.0
        %3849 = vmatpush1.msra.mxu0 0.0
        %3850 = vmatprep.subr.mxu0 0.0
        %3851 = vmatpush1.msra.mxu0 0.0
        %3852 = vmatprep.subr.mxu0 0.0
        %3853 = vmatpush1.msra.mxu0 0.0
        %3854 = vmatprep.subr.mxu0 0.0
        %3855 = vmatpush1.msra.mxu0 0.0
        %3856 = vmatprep.subr.mxu0 0.0
        %3857 = vmatpush1.msra.mxu0 0.0
        %3858 = vmatprep.subr.mxu0 0.0
        %3859 = vmatpush1.msra.mxu0 0.0
        %3860 = vmatprep.subr.mxu0 0.0
        %3861 = vmatpush1.msra.mxu0 0.0
        %3862 = vmatprep.subr.mxu0 0.0
        %3863 = vmatpush1.msra.mxu0 0.0
        %3864 = vmatprep.subr.mxu0 0.0
        %3865 = vmatpush1.msra.mxu0 0.0
        %3866 = vmatprep.mubr.f32.mxu0 0.0
        %3867 = vmatmul.mubr.f32.gmra.mrb[0].mxu0 %v3800
        %v3868 = vpop.f32.mrb[0].mxu0
        %v3869 = vadd.f32 %v3796, %v3868
        %v3870 = vpop.f32.mrb[0].mxu0
        %3871 = vdwg.mxu0
        %v3872 = vld [vmem:[%s403] sm:$0xff]
        %s3873 = scalar_lea.vmem [#allocation5], 608
        %v3874 = vld [vmem:[%s3873] sm:$0xff]
        %v3875 = vld [vmem:[%s3873 + $0x8] sm:$0xff]
        %v3877 = vsel %vm256, %v3872, 0
        %3879 = vmatprep.subr.mxu0 0.0
        %3880 = vmatpush1.msra.mxu0 %v3874
        %3881 = vmatprep.subr.mxu0 0.0
        %3882 = vmatpush1.msra.mxu0 %v3875
        %3883 = vmatprep.subr.mxu0 0.0
        %3884 = vmatpush1.msra.mxu0 0.0
        %3885 = vmatprep.subr.mxu0 0.0
        %3886 = vmatpush1.msra.mxu0 0.0
        %3887 = vmatprep.subr.mxu0 0.0
        %3888 = vmatpush1.msra.mxu0 0.0
        %3889 = vmatprep.subr.mxu0 0.0
        %3890 = vmatpush1.msra.mxu0 0.0
        %3891 = vmatprep.subr.mxu0 0.0
        %3892 = vmatpush1.msra.mxu0 0.0
        %3893 = vmatprep.subr.mxu0 0.0
        %3894 = vmatpush1.msra.mxu0 0.0
        %3895 = vmatprep.subr.mxu0 0.0
        %3896 = vmatpush1.msra.mxu0 0.0
        %3897 = vmatprep.subr.mxu0 0.0
        %3898 = vmatpush1.msra.mxu0 0.0
        %3899 = vmatprep.subr.mxu0 0.0
        %3900 = vmatpush1.msra.mxu0 0.0
        %3901 = vmatprep.subr.mxu0 0.0
        %3902 = vmatpush1.msra.mxu0 0.0
        %3903 = vmatprep.subr.mxu0 0.0
        %3904 = vmatpush1.msra.mxu0 0.0
        %3905 = vmatprep.subr.mxu0 0.0
        %3906 = vmatpush1.msra.mxu0 0.0
        %3907 = vmatprep.subr.mxu0 0.0
        %3908 = vmatpush1.msra.mxu0 0.0
        %3909 = vmatprep.subr.mxu0 0.0
        %3910 = vmatpush1.msra.mxu0 0.0
        %3911 = vmatprep.subr.mxu0 0.0
        %3912 = vmatpush1.msra.mxu0 0.0
        %3913 = vmatprep.subr.mxu0 0.0
        %3914 = vmatpush1.msra.mxu0 0.0
        %3915 = vmatprep.subr.mxu0 0.0
        %3916 = vmatpush1.msra.mxu0 0.0
        %3917 = vmatprep.subr.mxu0 0.0
        %3918 = vmatpush1.msra.mxu0 0.0
        %3919 = vmatprep.subr.mxu0 0.0
        %3920 = vmatpush1.msra.mxu0 0.0
        %3921 = vmatprep.subr.mxu0 0.0
        %3922 = vmatpush1.msra.mxu0 0.0
        %3923 = vmatprep.subr.mxu0 0.0
        %3924 = vmatpush1.msra.mxu0 0.0
        %3925 = vmatprep.subr.mxu0 0.0
        %3926 = vmatpush1.msra.mxu0 0.0
        %3927 = vmatprep.subr.mxu0 0.0
        %3928 = vmatpush1.msra.mxu0 0.0
        %3929 = vmatprep.subr.mxu0 0.0
        %3930 = vmatpush1.msra.mxu0 0.0
        %3931 = vmatprep.subr.mxu0 0.0
        %3932 = vmatpush1.msra.mxu0 0.0
        %3933 = vmatprep.subr.mxu0 0.0
        %3934 = vmatpush1.msra.mxu0 0.0
        %3935 = vmatprep.subr.mxu0 0.0
        %3936 = vmatpush1.msra.mxu0 0.0
        %3937 = vmatprep.subr.mxu0 0.0
        %3938 = vmatpush1.msra.mxu0 0.0
        %3939 = vmatprep.subr.mxu0 0.0
        %3940 = vmatpush1.msra.mxu0 0.0
        %3941 = vmatprep.subr.mxu0 0.0
        %3942 = vmatpush1.msra.mxu0 0.0
        %3943 = vmatprep.mubr.f32.mxu0 0.0
        %3944 = vmatmul.mubr.f32.gmra.mrb[0].mxu0 %v3877
        %v3945 = vpop.f32.mrb[0].mxu0
        %v3946 = vadd.f32 0.0, %v3945
        %v3947 = vpop.f32.mrb[0].mxu0
        %3948 = vdwg.mxu0
        %v3949 = vadd.f32 %v3869, %v3946
        %v3950 = vld [vmem:[%s482] sm:$0xff]
        %s3951 = scalar_lea.vmem [#allocation5], 624
        %v3952 = vld [vmem:[%s3951] sm:$0xff]
        %v3953 = vld [vmem:[%s3951 + $0x8] sm:$0xff]
        %v3955 = vsel %vm256, %v3950, 0
        %3957 = vmatprep.subr.mxu0 0.0
        %3958 = vmatpush1.msra.mxu0 %v3952
        %3959 = vmatprep.subr.mxu0 0.0
        %3960 = vmatpush1.msra.mxu0 %v3953
        %3961 = vmatprep.subr.mxu0 0.0
        %3962 = vmatpush1.msra.mxu0 0.0
        %3963 = vmatprep.subr.mxu0 0.0
        %3964 = vmatpush1.msra.mxu0 0.0
        %3965 = vmatprep.subr.mxu0 0.0
        %3966 = vmatpush1.msra.mxu0 0.0
        %3967 = vmatprep.subr.mxu0 0.0
        %3968 = vmatpush1.msra.mxu0 0.0
        %3969 = vmatprep.subr.mxu0 0.0
        %3970 = vmatpush1.msra.mxu0 0.0
        %3971 = vmatprep.subr.mxu0 0.0
        %3972 = vmatpush1.msra.mxu0 0.0
        %3973 = vmatprep.subr.mxu0 0.0
        %3974 = vmatpush1.msra.mxu0 0.0
        %3975 = vmatprep.subr.mxu0 0.0
        %3976 = vmatpush1.msra.mxu0 0.0
        %3977 = vmatprep.subr.mxu0 0.0
        %3978 = vmatpush1.msra.mxu0 0.0
        %3979 = vmatprep.subr.mxu0 0.0
        %3980 = vmatpush1.msra.mxu0 0.0
        %3981 = vmatprep.subr.mxu0 0.0
        %3982 = vmatpush1.msra.mxu0 0.0
        %3983 = vmatprep.subr.mxu0 0.0
        %3984 = vmatpush1.msra.mxu0 0.0
        %3985 = vmatprep.subr.mxu0 0.0
        %3986 = vmatpush1.msra.mxu0 0.0
        %3987 = vmatprep.subr.mxu0 0.0
        %3988 = vmatpush1.msra.mxu0 0.0
        %3989 = vmatprep.subr.mxu0 0.0
        %3990 = vmatpush1.msra.mxu0 0.0
        %3991 = vmatprep.subr.mxu0 0.0
        %3992 = vmatpush1.msra.mxu0 0.0
        %3993 = vmatprep.subr.mxu0 0.0
        %3994 = vmatpush1.msra.mxu0 0.0
        %3995 = vmatprep.subr.mxu0 0.0
        %3996 = vmatpush1.msra.mxu0 0.0
        %3997 = vmatprep.subr.mxu0 0.0
        %3998 = vmatpush1.msra.mxu0 0.0
        %3999 = vmatprep.subr.mxu0 0.0
        %4000 = vmatpush1.msra.mxu0 0.0
        %4001 = vmatprep.subr.mxu0 0.0
        %4002 = vmatpush1.msra.mxu0 0.0
        %4003 = vmatprep.subr.mxu0 0.0
        %4004 = vmatpush1.msra.mxu0 0.0
        %4005 = vmatprep.subr.mxu0 0.0
        %4006 = vmatpush1.msra.mxu0 0.0
        %4007 = vmatprep.subr.mxu0 0.0
        %4008 = vmatpush1.msra.mxu0 0.0
        %4009 = vmatprep.subr.mxu0 0.0
        %4010 = vmatpush1.msra.mxu0 0.0
        %4011 = vmatprep.subr.mxu0 0.0
        %4012 = vmatpush1.msra.mxu0 0.0
        %4013 = vmatprep.subr.mxu0 0.0
        %4014 = vmatpush1.msra.mxu0 0.0
        %4015 = vmatprep.subr.mxu0 0.0
        %4016 = vmatpush1.msra.mxu0 0.0
        %4017 = vmatprep.subr.mxu0 0.0
        %4018 = vmatpush1.msra.mxu0 0.0
        %4019 = vmatprep.subr.mxu0 0.0
        %4020 = vmatpush1.msra.mxu0 0.0
        %4021 = vmatprep.mubr.f32.mxu0 0.0
        %4022 = vmatmul.mubr.f32.gmra.mrb[0].mxu0 %v3955
        %v4023 = vpop.f32.mrb[0].mxu0
        %v4024 = vadd.f32 0.0, %v4023
        %v4025 = vpop.f32.mrb[0].mxu0
        %4026 = vdwg.mxu0
        %v4027 = vadd.f32 %v3949, %v4024
        %s4028 = scalar_lea.vmem [#allocation7], 9
        %v4029 = vld [vmem:[%s4028] sm:$0x1]
        %v4031 = vlaneseq
        %v4032 = vshrl.u32 %v4031, 7
        %v4033 = vsub.s32 0, %v4032
        %v4034 = vrot.slane %v4029, %v4033
        %v4036 = vadd.f32 %v4027, %v4034
        %v4038 = vcombine.high %v4036, %v4036
        %v4040 = vunpack.c.l.s4 1966171168
        %v4041 = vunpack.c.0.s8 %v4040
        %v4042 = vlaneseq
        %v4043 = vshrl.u32 %v4042, 7
        %v4044 = vsub.s32 %v4041, %v4043
        %v4045 = vrot.slane %v4036, %v4044
        %v4047 = vunpack.c.l.s4 1966171168
        %v4048 = vunpack.c.0.s8 %v4047
        %v4049 = vlaneseq
        %v4050 = vshrl.u32 %v4049, 7
        %v4051 = vsub.s32 %v4048, %v4050
        %v4052 = vrot.slane %v4038, %v4051
        %v4053 = vcombine.high %v4045, %v4045
        %v4054 = vcombine.high %v4052, %v4052
        %v4056 = vunpack.c.l.s4 1966171168
        %v4057 = vunpack.c.0.s8 %v4056
        %v4058 = vlaneseq
        %v4059 = vshrl.u32 %v4058, 7
        %v4060 = vsub.s32 %v4057, %v4059
        %v4061 = vrot.slane %v4045, %v4060
        %v4063 = vunpack.c.l.s4 1966171168
        %v4064 = vunpack.c.0.s8 %v4063
        %v4065 = vlaneseq
        %v4066 = vshrl.u32 %v4065, 7
        %v4067 = vsub.s32 %v4064, %v4066
        %v4068 = vrot.slane %v4052, %v4067
        %v4070 = vunpack.c.l.s4 1966171168
        %v4071 = vunpack.c.0.s8 %v4070
        %v4072 = vlaneseq
        %v4073 = vshrl.u32 %v4072, 7
        %v4074 = vsub.s32 %v4071, %v4073
        %v4075 = vrot.slane %v4053, %v4074
        %v4077 = vunpack.c.l.s4 1966171168
        %v4078 = vunpack.c.0.s8 %v4077
        %v4079 = vlaneseq
        %v4080 = vshrl.u32 %v4079, 7
        %v4081 = vsub.s32 %v4078, %v4080
        %v4082 = vrot.slane %v4054, %v4081
        %v4083 = vcombine.high %v4061, %v4061
        %v4084 = vcombine.high %v4068, %v4068
        %v4085 = vcombine.high %v4075, %v4075
        %v4086 = vcombine.high %v4082, %v4082
        %4095 = vst.msk [vmem:[%s3709 + $0x1] sm:$0x1] %vm627, %v4061
        %4096 = vst.msk [vmem:[%s3709 + $0x5] sm:$0x1] %vm627, %v4075
        %4097 = vst.msk [vmem:[%s3709 + $0x9] sm:$0x1] %vm627, %v4083
        %4098 = vst.msk [vmem:[%s3709 + $0xd] sm:$0x1] %vm627, %v4085
        %4099 = vst.msk [vmem:[%s3709 + $0x11] sm:$0x1] %vm627, %v4068
        %4100 = vst.msk [vmem:[%s3709 + $0x15] sm:$0x1] %vm627, %v4082
        %4101 = vst.msk [vmem:[%s3709 + $0x19] sm:$0x1] %vm627, %v4084
        %4102 = vst.msk [vmem:[%s3709 + $0x1d] sm:$0x1] %vm627, %v4086
        %v4103 = vld [vmem:[%s216] sm:$0xff]
        %s4104 = scalar_lea.vmem [#allocation5], 640
        %v4105 = vld [vmem:[%s4104] sm:$0xff]
        %v4106 = vld [vmem:[%s4104 + $0x8] sm:$0xff]
        %v4107 = vld [vmem:[%s251] sm:$0xff]
        %s4108 = scalar_lea.vmem [#allocation5], 656
        %v4109 = vld [vmem:[%s4108] sm:$0xff]
        %v4110 = vld [vmem:[%s4108 + $0x8] sm:$0xff]
        %v4112 = vsel %vm256, %v4107, 0
        %4114 = vmatprep.subr.mxu0 0.0
        %4115 = vmatpush1.msra.mxu0 %v4109
        %4116 = vmatprep.subr.mxu0 0.0
        %4117 = vmatpush1.msra.mxu0 %v4110
        %4118 = vmatprep.subr.mxu0 0.0
        %4119 = vmatpush1.msra.mxu0 0.0
        %4120 = vmatprep.subr.mxu0 0.0
        %4121 = vmatpush1.msra.mxu0 0.0
        %4122 = vmatprep.subr.mxu0 0.0
        %4123 = vmatpush1.msra.mxu0 0.0
        %4124 = vmatprep.subr.mxu0 0.0
        %4125 = vmatpush1.msra.mxu0 0.0
        %4126 = vmatprep.subr.mxu0 0.0
        %4127 = vmatpush1.msra.mxu0 0.0
        %4128 = vmatprep.subr.mxu0 0.0
        %4129 = vmatpush1.msra.mxu0 0.0
        %4130 = vmatprep.subr.mxu0 0.0
        %4131 = vmatpush1.msra.mxu0 0.0
        %4132 = vmatprep.subr.mxu0 0.0
        %4133 = vmatpush1.msra.mxu0 0.0
        %4134 = vmatprep.subr.mxu0 0.0
        %4135 = vmatpush1.msra.mxu0 0.0
        %4136 = vmatprep.subr.mxu0 0.0
        %4137 = vmatpush1.msra.mxu0 0.0
        %4138 = vmatprep.subr.mxu0 0.0
        %4139 = vmatpush1.msra.mxu0 0.0
        %4140 = vmatprep.subr.mxu0 0.0
        %4141 = vmatpush1.msra.mxu0 0.0
        %4142 = vmatprep.subr.mxu0 0.0
        %4143 = vmatpush1.msra.mxu0 0.0
        %4144 = vmatprep.subr.mxu0 0.0
        %4145 = vmatpush1.msra.mxu0 0.0
        %4146 = vmatprep.subr.mxu0 0.0
        %4147 = vmatpush1.msra.mxu0 0.0
        %4148 = vmatprep.subr.mxu0 0.0
        %4149 = vmatpush1.msra.mxu0 0.0
        %4150 = vmatprep.subr.mxu0 0.0
        %4151 = vmatpush1.msra.mxu0 0.0
        %4152 = vmatprep.subr.mxu0 0.0
        %4153 = vmatpush1.msra.mxu0 0.0
        %4154 = vmatprep.subr.mxu0 0.0
        %4155 = vmatpush1.msra.mxu0 0.0
        %4156 = vmatprep.subr.mxu0 0.0
        %4157 = vmatpush1.msra.mxu0 0.0
        %4158 = vmatprep.subr.mxu0 0.0
        %4159 = vmatpush1.msra.mxu0 0.0
        %4160 = vmatprep.subr.mxu0 0.0
        %4161 = vmatpush1.msra.mxu0 0.0
        %4162 = vmatprep.subr.mxu0 0.0
        %4163 = vmatpush1.msra.mxu0 0.0
        %4164 = vmatprep.subr.mxu0 0.0
        %4165 = vmatpush1.msra.mxu0 0.0
        %4166 = vmatprep.subr.mxu0 0.0
        %4167 = vmatpush1.msra.mxu0 0.0
        %4168 = vmatprep.subr.mxu0 0.0
        %4169 = vmatpush1.msra.mxu0 0.0
        %4170 = vmatprep.subr.mxu0 0.0
        %4171 = vmatpush1.msra.mxu0 0.0
        %4172 = vmatprep.subr.mxu0 0.0
        %4173 = vmatpush1.msra.mxu0 0.0
        %4174 = vmatprep.subr.mxu0 0.0
        %4175 = vmatpush1.msra.mxu0 0.0
        %4176 = vmatprep.subr.mxu0 0.0
        %4177 = vmatpush1.msra.mxu0 0.0
        %4178 = vmatprep.mubr.f32.mxu0 0.0
        %4179 = vmatmul.mubr.f32.gmra.mrb[0].mxu0 %v4112
        %v4180 = vpop.f32.mrb[0].mxu0
        %v4181 = vadd.f32 0.0, %v4180
        %v4182 = vpop.f32.mrb[0].mxu0
        %4183 = vdwg.mxu0
        %v4185 = vsel %vm256, %v4103, 0
        %4187 = vmatprep.subr.mxu0 0.0
        %4188 = vmatpush1.msra.mxu0 %v4105
        %4189 = vmatprep.subr.mxu0 0.0
        %4190 = vmatpush1.msra.mxu0 %v4106
        %4191 = vmatprep.subr.mxu0 0.0
        %4192 = vmatpush1.msra.mxu0 0.0
        %4193 = vmatprep.subr.mxu0 0.0
        %4194 = vmatpush1.msra.mxu0 0.0
        %4195 = vmatprep.subr.mxu0 0.0
        %4196 = vmatpush1.msra.mxu0 0.0
        %4197 = vmatprep.subr.mxu0 0.0
        %4198 = vmatpush1.msra.mxu0 0.0
        %4199 = vmatprep.subr.mxu0 0.0
        %4200 = vmatpush1.msra.mxu0 0.0
        %4201 = vmatprep.subr.mxu0 0.0
        %4202 = vmatpush1.msra.mxu0 0.0
        %4203 = vmatprep.subr.mxu0 0.0
        %4204 = vmatpush1.msra.mxu0 0.0
        %4205 = vmatprep.subr.mxu0 0.0
        %4206 = vmatpush1.msra.mxu0 0.0
        %4207 = vmatprep.subr.mxu0 0.0
        %4208 = vmatpush1.msra.mxu0 0.0
        %4209 = vmatprep.subr.mxu0 0.0
        %4210 = vmatpush1.msra.mxu0 0.0
        %4211 = vmatprep.subr.mxu0 0.0
        %4212 = vmatpush1.msra.mxu0 0.0
        %4213 = vmatprep.subr.mxu0 0.0
        %4214 = vmatpush1.msra.mxu0 0.0
        %4215 = vmatprep.subr.mxu0 0.0
        %4216 = vmatpush1.msra.mxu0 0.0
        %4217 = vmatprep.subr.mxu0 0.0
        %4218 = vmatpush1.msra.mxu0 0.0
        %4219 = vmatprep.subr.mxu0 0.0
        %4220 = vmatpush1.msra.mxu0 0.0
        %4221 = vmatprep.subr.mxu0 0.0
        %4222 = vmatpush1.msra.mxu0 0.0
        %4223 = vmatprep.subr.mxu0 0.0
        %4224 = vmatpush1.msra.mxu0 0.0
        %4225 = vmatprep.subr.mxu0 0.0
        %4226 = vmatpush1.msra.mxu0 0.0
        %4227 = vmatprep.subr.mxu0 0.0
        %4228 = vmatpush1.msra.mxu0 0.0
        %4229 = vmatprep.subr.mxu0 0.0
        %4230 = vmatpush1.msra.mxu0 0.0
        %4231 = vmatprep.subr.mxu0 0.0
        %4232 = vmatpush1.msra.mxu0 0.0
        %4233 = vmatprep.subr.mxu0 0.0
        %4234 = vmatpush1.msra.mxu0 0.0
        %4235 = vmatprep.subr.mxu0 0.0
        %4236 = vmatpush1.msra.mxu0 0.0
        %4237 = vmatprep.subr.mxu0 0.0
        %4238 = vmatpush1.msra.mxu0 0.0
        %4239 = vmatprep.subr.mxu0 0.0
        %4240 = vmatpush1.msra.mxu0 0.0
        %4241 = vmatprep.subr.mxu0 0.0
        %4242 = vmatpush1.msra.mxu0 0.0
        %4243 = vmatprep.subr.mxu0 0.0
        %4244 = vmatpush1.msra.mxu0 0.0
        %4245 = vmatprep.subr.mxu0 0.0
        %4246 = vmatpush1.msra.mxu0 0.0
        %4247 = vmatprep.subr.mxu0 0.0
        %4248 = vmatpush1.msra.mxu0 0.0
        %4249 = vmatprep.subr.mxu0 0.0
        %4250 = vmatpush1.msra.mxu0 0.0
        %4251 = vmatprep.mubr.f32.mxu0 0.0
        %4252 = vmatmul.mubr.f32.gmra.mrb[0].mxu0 %v4185
        %v4253 = vpop.f32.mrb[0].mxu0
        %v4254 = vadd.f32 %v4181, %v4253
        %v4255 = vpop.f32.mrb[0].mxu0
        %4256 = vdwg.mxu0
        %v4257 = vld [vmem:[%s403] sm:$0xff]
        %s4258 = scalar_lea.vmem [#allocation5], 672
        %v4259 = vld [vmem:[%s4258] sm:$0xff]
        %v4260 = vld [vmem:[%s4258 + $0x8] sm:$0xff]
        %v4262 = vsel %vm256, %v4257, 0
        %4264 = vmatprep.subr.mxu0 0.0
        %4265 = vmatpush1.msra.mxu0 %v4259
        %4266 = vmatprep.subr.mxu0 0.0
        %4267 = vmatpush1.msra.mxu0 %v4260
        %4268 = vmatprep.subr.mxu0 0.0
        %4269 = vmatpush1.msra.mxu0 0.0
        %4270 = vmatprep.subr.mxu0 0.0
        %4271 = vmatpush1.msra.mxu0 0.0
        %4272 = vmatprep.subr.mxu0 0.0
        %4273 = vmatpush1.msra.mxu0 0.0
        %4274 = vmatprep.subr.mxu0 0.0
        %4275 = vmatpush1.msra.mxu0 0.0
        %4276 = vmatprep.subr.mxu0 0.0
        %4277 = vmatpush1.msra.mxu0 0.0
        %4278 = vmatprep.subr.mxu0 0.0
        %4279 = vmatpush1.msra.mxu0 0.0
        %4280 = vmatprep.subr.mxu0 0.0
        %4281 = vmatpush1.msra.mxu0 0.0
        %4282 = vmatprep.subr.mxu0 0.0
        %4283 = vmatpush1.msra.mxu0 0.0
        %4284 = vmatprep.subr.mxu0 0.0
        %4285 = vmatpush1.msra.mxu0 0.0
        %4286 = vmatprep.subr.mxu0 0.0
        %4287 = vmatpush1.msra.mxu0 0.0
        %4288 = vmatprep.subr.mxu0 0.0
        %4289 = vmatpush1.msra.mxu0 0.0
        %4290 = vmatprep.subr.mxu0 0.0
        %4291 = vmatpush1.msra.mxu0 0.0
        %4292 = vmatprep.subr.mxu0 0.0
        %4293 = vmatpush1.msra.mxu0 0.0
        %4294 = vmatprep.subr.mxu0 0.0
        %4295 = vmatpush1.msra.mxu0 0.0
        %4296 = vmatprep.subr.mxu0 0.0
        %4297 = vmatpush1.msra.mxu0 0.0
        %4298 = vmatprep.subr.mxu0 0.0
        %4299 = vmatpush1.msra.mxu0 0.0
        %4300 = vmatprep.subr.mxu0 0.0
        %4301 = vmatpush1.msra.mxu0 0.0
        %4302 = vmatprep.subr.mxu0 0.0
        %4303 = vmatpush1.msra.mxu0 0.0
        %4304 = vmatprep.subr.mxu0 0.0
        %4305 = vmatpush1.msra.mxu0 0.0
        %4306 = vmatprep.subr.mxu0 0.0
        %4307 = vmatpush1.msra.mxu0 0.0
        %4308 = vmatprep.subr.mxu0 0.0
        %4309 = vmatpush1.msra.mxu0 0.0
        %4310 = vmatprep.subr.mxu0 0.0
        %4311 = vmatpush1.msra.mxu0 0.0
        %4312 = vmatprep.subr.mxu0 0.0
        %4313 = vmatpush1.msra.mxu0 0.0
        %4314 = vmatprep.subr.mxu0 0.0
        %4315 = vmatpush1.msra.mxu0 0.0
        %4316 = vmatprep.subr.mxu0 0.0
        %4317 = vmatpush1.msra.mxu0 0.0
        %4318 = vmatprep.subr.mxu0 0.0
        %4319 = vmatpush1.msra.mxu0 0.0
        %4320 = vmatprep.subr.mxu0 0.0
        %4321 = vmatpush1.msra.mxu0 0.0
        %4322 = vmatprep.subr.mxu0 0.0
        %4323 = vmatpush1.msra.mxu0 0.0
        %4324 = vmatprep.subr.mxu0 0.0
        %4325 = vmatpush1.msra.mxu0 0.0
        %4326 = vmatprep.subr.mxu0 0.0
        %4327 = vmatpush1.msra.mxu0 0.0
        %4328 = vmatprep.mubr.f32.mxu0 0.0
        %4329 = vmatmul.mubr.f32.gmra.mrb[0].mxu0 %v4262
        %v4330 = vpop.f32.mrb[0].mxu0
        %v4331 = vadd.f32 0.0, %v4330
        %v4332 = vpop.f32.mrb[0].mxu0
        %4333 = vdwg.mxu0
        %v4334 = vadd.f32 %v4254, %v4331
        %v4335 = vld [vmem:[%s482] sm:$0xff]
        %s4336 = scalar_lea.vmem [#allocation5], 688
        %v4337 = vld [vmem:[%s4336] sm:$0xff]
        %v4338 = vld [vmem:[%s4336 + $0x8] sm:$0xff]
        %v4340 = vsel %vm256, %v4335, 0
        %4342 = vmatprep.subr.mxu0 0.0
        %4343 = vmatpush1.msra.mxu0 %v4337
        %4344 = vmatprep.subr.mxu0 0.0
        %4345 = vmatpush1.msra.mxu0 %v4338
        %4346 = vmatprep.subr.mxu0 0.0
        %4347 = vmatpush1.msra.mxu0 0.0
        %4348 = vmatprep.subr.mxu0 0.0
        %4349 = vmatpush1.msra.mxu0 0.0
        %4350 = vmatprep.subr.mxu0 0.0
        %4351 = vmatpush1.msra.mxu0 0.0
        %4352 = vmatprep.subr.mxu0 0.0
        %4353 = vmatpush1.msra.mxu0 0.0
        %4354 = vmatprep.subr.mxu0 0.0
        %4355 = vmatpush1.msra.mxu0 0.0
        %4356 = vmatprep.subr.mxu0 0.0
        %4357 = vmatpush1.msra.mxu0 0.0
        %4358 = vmatprep.subr.mxu0 0.0
        %4359 = vmatpush1.msra.mxu0 0.0
        %4360 = vmatprep.subr.mxu0 0.0
        %4361 = vmatpush1.msra.mxu0 0.0
        %4362 = vmatprep.subr.mxu0 0.0
        %4363 = vmatpush1.msra.mxu0 0.0
        %4364 = vmatprep.subr.mxu0 0.0
        %4365 = vmatpush1.msra.mxu0 0.0
        %4366 = vmatprep.subr.mxu0 0.0
        %4367 = vmatpush1.msra.mxu0 0.0
        %4368 = vmatprep.subr.mxu0 0.0
        %4369 = vmatpush1.msra.mxu0 0.0
        %4370 = vmatprep.subr.mxu0 0.0
        %4371 = vmatpush1.msra.mxu0 0.0
        %4372 = vmatprep.subr.mxu0 0.0
        %4373 = vmatpush1.msra.mxu0 0.0
        %4374 = vmatprep.subr.mxu0 0.0
        %4375 = vmatpush1.msra.mxu0 0.0
        %4376 = vmatprep.subr.mxu0 0.0
        %4377 = vmatpush1.msra.mxu0 0.0
        %4378 = vmatprep.subr.mxu0 0.0
        %4379 = vmatpush1.msra.mxu0 0.0
        %4380 = vmatprep.subr.mxu0 0.0
        %4381 = vmatpush1.msra.mxu0 0.0
        %4382 = vmatprep.subr.mxu0 0.0
        %4383 = vmatpush1.msra.mxu0 0.0
        %4384 = vmatprep.subr.mxu0 0.0
        %4385 = vmatpush1.msra.mxu0 0.0
        %4386 = vmatprep.subr.mxu0 0.0
        %4387 = vmatpush1.msra.mxu0 0.0
        %4388 = vmatprep.subr.mxu0 0.0
        %4389 = vmatpush1.msra.mxu0 0.0
        %4390 = vmatprep.subr.mxu0 0.0
        %4391 = vmatpush1.msra.mxu0 0.0
        %4392 = vmatprep.subr.mxu0 0.0
        %4393 = vmatpush1.msra.mxu0 0.0
        %4394 = vmatprep.subr.mxu0 0.0
        %4395 = vmatpush1.msra.mxu0 0.0
        %4396 = vmatprep.subr.mxu0 0.0
        %4397 = vmatpush1.msra.mxu0 0.0
        %4398 = vmatprep.subr.mxu0 0.0
        %4399 = vmatpush1.msra.mxu0 0.0
        %4400 = vmatprep.subr.mxu0 0.0
        %4401 = vmatpush1.msra.mxu0 0.0
        %4402 = vmatprep.subr.mxu0 0.0
        %4403 = vmatpush1.msra.mxu0 0.0
        %4404 = vmatprep.subr.mxu0 0.0
        %4405 = vmatpush1.msra.mxu0 0.0
        %4406 = vmatprep.mubr.f32.mxu0 0.0
        %4407 = vmatmul.mubr.f32.gmra.mrb[0].mxu0 %v4340
        %v4408 = vpop.f32.mrb[0].mxu0
        %v4409 = vadd.f32 0.0, %v4408
        %v4410 = vpop.f32.mrb[0].mxu0
        %4411 = vdwg.mxu0
        %v4412 = vadd.f32 %v4334, %v4409
        %s4413 = scalar_lea.vmem [#allocation7], 10
        %v4414 = vld [vmem:[%s4413] sm:$0x1]
        %v4416 = vlaneseq
        %v4417 = vshrl.u32 %v4416, 7
        %v4418 = vsub.s32 0, %v4417
        %v4419 = vrot.slane %v4414, %v4418
        %v4421 = vadd.f32 %v4412, %v4419
        %v4423 = vcombine.high %v4421, %v4421
        %v4425 = vunpack.c.l.s4 1966171168
        %v4426 = vunpack.c.0.s8 %v4425
        %v4427 = vlaneseq
        %v4428 = vshrl.u32 %v4427, 7
        %v4429 = vsub.s32 %v4426, %v4428
        %v4430 = vrot.slane %v4421, %v4429
        %v4432 = vunpack.c.l.s4 1966171168
        %v4433 = vunpack.c.0.s8 %v4432
        %v4434 = vlaneseq
        %v4435 = vshrl.u32 %v4434, 7
        %v4436 = vsub.s32 %v4433, %v4435
        %v4437 = vrot.slane %v4423, %v4436
        %v4438 = vcombine.high %v4430, %v4430
        %v4439 = vcombine.high %v4437, %v4437
        %v4441 = vunpack.c.l.s4 1966171168
        %v4442 = vunpack.c.0.s8 %v4441
        %v4443 = vlaneseq
        %v4444 = vshrl.u32 %v4443, 7
        %v4445 = vsub.s32 %v4442, %v4444
        %v4446 = vrot.slane %v4430, %v4445
        %v4448 = vunpack.c.l.s4 1966171168
        %v4449 = vunpack.c.0.s8 %v4448
        %v4450 = vlaneseq
        %v4451 = vshrl.u32 %v4450, 7
        %v4452 = vsub.s32 %v4449, %v4451
        %v4453 = vrot.slane %v4437, %v4452
        %v4455 = vunpack.c.l.s4 1966171168
        %v4456 = vunpack.c.0.s8 %v4455
        %v4457 = vlaneseq
        %v4458 = vshrl.u32 %v4457, 7
        %v4459 = vsub.s32 %v4456, %v4458
        %v4460 = vrot.slane %v4438, %v4459
        %v4462 = vunpack.c.l.s4 1966171168
        %v4463 = vunpack.c.0.s8 %v4462
        %v4464 = vlaneseq
        %v4465 = vshrl.u32 %v4464, 7
        %v4466 = vsub.s32 %v4463, %v4465
        %v4467 = vrot.slane %v4439, %v4466
        %v4468 = vcombine.high %v4446, %v4446
        %v4469 = vcombine.high %v4453, %v4453
        %v4470 = vcombine.high %v4460, %v4460
        %v4471 = vcombine.high %v4467, %v4467
        %4480 = vst.msk [vmem:[%s3709 + $0x2] sm:$0x1] %vm627, %v4446
        %4481 = vst.msk [vmem:[%s3709 + $0x6] sm:$0x1] %vm627, %v4460
        %4482 = vst.msk [vmem:[%s3709 + $0xa] sm:$0x1] %vm627, %v4468
        %4483 = vst.msk [vmem:[%s3709 + $0xe] sm:$0x1] %vm627, %v4470
        %4484 = vst.msk [vmem:[%s3709 + $0x12] sm:$0x1] %vm627, %v4453
        %4485 = vst.msk [vmem:[%s3709 + $0x16] sm:$0x1] %vm627, %v4467
        %4486 = vst.msk [vmem:[%s3709 + $0x1a] sm:$0x1] %vm627, %v4469
        %4487 = vst.msk [vmem:[%s3709 + $0x1e] sm:$0x1] %vm627, %v4471
        %v4488 = vld [vmem:[%s216] sm:$0xff]
        %s4489 = scalar_lea.vmem [#allocation5], 704
        %v4490 = vld [vmem:[%s4489] sm:$0xff]
        %v4491 = vld [vmem:[%s4489 + $0x8] sm:$0xff]
        %v4492 = vld [vmem:[%s251] sm:$0xff]
        %s4493 = scalar_lea.vmem [#allocation5], 720
        %v4494 = vld [vmem:[%s4493] sm:$0xff]
        %v4495 = vld [vmem:[%s4493 + $0x8] sm:$0xff]
        %v4497 = vsel %vm256, %v4492, 0
        %4499 = vmatprep.subr.mxu0 0.0
        %4500 = vmatpush1.msra.mxu0 %v4494
        %4501 = vmatprep.subr.mxu0 0.0
        %4502 = vmatpush1.msra.mxu0 %v4495
        %4503 = vmatprep.subr.mxu0 0.0
        %4504 = vmatpush1.msra.mxu0 0.0
        %4505 = vmatprep.subr.mxu0 0.0
        %4506 = vmatpush1.msra.mxu0 0.0
        %4507 = vmatprep.subr.mxu0 0.0
        %4508 = vmatpush1.msra.mxu0 0.0
        %4509 = vmatprep.subr.mxu0 0.0
        %4510 = vmatpush1.msra.mxu0 0.0
        %4511 = vmatprep.subr.mxu0 0.0
        %4512 = vmatpush1.msra.mxu0 0.0
        %4513 = vmatprep.subr.mxu0 0.0
        %4514 = vmatpush1.msra.mxu0 0.0
        %4515 = vmatprep.subr.mxu0 0.0
        %4516 = vmatpush1.msra.mxu0 0.0
        %4517 = vmatprep.subr.mxu0 0.0
        %4518 = vmatpush1.msra.mxu0 0.0
        %4519 = vmatprep.subr.mxu0 0.0
        %4520 = vmatpush1.msra.mxu0 0.0
        %4521 = vmatprep.subr.mxu0 0.0
        %4522 = vmatpush1.msra.mxu0 0.0
        %4523 = vmatprep.subr.mxu0 0.0
        %4524 = vmatpush1.msra.mxu0 0.0
        %4525 = vmatprep.subr.mxu0 0.0
        %4526 = vmatpush1.msra.mxu0 0.0
        %4527 = vmatprep.subr.mxu0 0.0
        %4528 = vmatpush1.msra.mxu0 0.0
        %4529 = vmatprep.subr.mxu0 0.0
        %4530 = vmatpush1.msra.mxu0 0.0
        %4531 = vmatprep.subr.mxu0 0.0
        %4532 = vmatpush1.msra.mxu0 0.0
        %4533 = vmatprep.subr.mxu0 0.0
        %4534 = vmatpush1.msra.mxu0 0.0
        %4535 = vmatprep.subr.mxu0 0.0
        %4536 = vmatpush1.msra.mxu0 0.0
        %4537 = vmatprep.subr.mxu0 0.0
        %4538 = vmatpush1.msra.mxu0 0.0
        %4539 = vmatprep.subr.mxu0 0.0
        %4540 = vmatpush1.msra.mxu0 0.0
        %4541 = vmatprep.subr.mxu0 0.0
        %4542 = vmatpush1.msra.mxu0 0.0
        %4543 = vmatprep.subr.mxu0 0.0
        %4544 = vmatpush1.msra.mxu0 0.0
        %4545 = vmatprep.subr.mxu0 0.0
        %4546 = vmatpush1.msra.mxu0 0.0
        %4547 = vmatprep.subr.mxu0 0.0
        %4548 = vmatpush1.msra.mxu0 0.0
        %4549 = vmatprep.subr.mxu0 0.0
        %4550 = vmatpush1.msra.mxu0 0.0
        %4551 = vmatprep.subr.mxu0 0.0
        %4552 = vmatpush1.msra.mxu0 0.0
        %4553 = vmatprep.subr.mxu0 0.0
        %4554 = vmatpush1.msra.mxu0 0.0
        %4555 = vmatprep.subr.mxu0 0.0
        %4556 = vmatpush1.msra.mxu0 0.0
        %4557 = vmatprep.subr.mxu0 0.0
        %4558 = vmatpush1.msra.mxu0 0.0
        %4559 = vmatprep.subr.mxu0 0.0
        %4560 = vmatpush1.msra.mxu0 0.0
        %4561 = vmatprep.subr.mxu0 0.0
        %4562 = vmatpush1.msra.mxu0 0.0
        %4563 = vmatprep.mubr.f32.mxu0 0.0
        %4564 = vmatmul.mubr.f32.gmra.mrb[0].mxu0 %v4497
        %v4565 = vpop.f32.mrb[0].mxu0
        %v4566 = vadd.f32 0.0, %v4565
        %v4567 = vpop.f32.mrb[0].mxu0
        %4568 = vdwg.mxu0
        %v4570 = vsel %vm256, %v4488, 0
        %4572 = vmatprep.subr.mxu0 0.0
        %4573 = vmatpush1.msra.mxu0 %v4490
        %4574 = vmatprep.subr.mxu0 0.0
        %4575 = vmatpush1.msra.mxu0 %v4491
        %4576 = vmatprep.subr.mxu0 0.0
        %4577 = vmatpush1.msra.mxu0 0.0
        %4578 = vmatprep.subr.mxu0 0.0
        %4579 = vmatpush1.msra.mxu0 0.0
        %4580 = vmatprep.subr.mxu0 0.0
        %4581 = vmatpush1.msra.mxu0 0.0
        %4582 = vmatprep.subr.mxu0 0.0
        %4583 = vmatpush1.msra.mxu0 0.0
        %4584 = vmatprep.subr.mxu0 0.0
        %4585 = vmatpush1.msra.mxu0 0.0
        %4586 = vmatprep.subr.mxu0 0.0
        %4587 = vmatpush1.msra.mxu0 0.0
        %4588 = vmatprep.subr.mxu0 0.0
        %4589 = vmatpush1.msra.mxu0 0.0
        %4590 = vmatprep.subr.mxu0 0.0
        %4591 = vmatpush1.msra.mxu0 0.0
        %4592 = vmatprep.subr.mxu0 0.0
        %4593 = vmatpush1.msra.mxu0 0.0
        %4594 = vmatprep.subr.mxu0 0.0
        %4595 = vmatpush1.msra.mxu0 0.0
        %4596 = vmatprep.subr.mxu0 0.0
        %4597 = vmatpush1.msra.mxu0 0.0
        %4598 = vmatprep.subr.mxu0 0.0
        %4599 = vmatpush1.msra.mxu0 0.0
        %4600 = vmatprep.subr.mxu0 0.0
        %4601 = vmatpush1.msra.mxu0 0.0
        %4602 = vmatprep.subr.mxu0 0.0
        %4603 = vmatpush1.msra.mxu0 0.0
        %4604 = vmatprep.subr.mxu0 0.0
        %4605 = vmatpush1.msra.mxu0 0.0
        %4606 = vmatprep.subr.mxu0 0.0
        %4607 = vmatpush1.msra.mxu0 0.0
        %4608 = vmatprep.subr.mxu0 0.0
        %4609 = vmatpush1.msra.mxu0 0.0
        %4610 = vmatprep.subr.mxu0 0.0
        %4611 = vmatpush1.msra.mxu0 0.0
        %4612 = vmatprep.subr.mxu0 0.0
        %4613 = vmatpush1.msra.mxu0 0.0
        %4614 = vmatprep.subr.mxu0 0.0
        %4615 = vmatpush1.msra.mxu0 0.0
        %4616 = vmatprep.subr.mxu0 0.0
        %4617 = vmatpush1.msra.mxu0 0.0
        %4618 = vmatprep.subr.mxu0 0.0
        %4619 = vmatpush1.msra.mxu0 0.0
        %4620 = vmatprep.subr.mxu0 0.0
        %4621 = vmatpush1.msra.mxu0 0.0
        %4622 = vmatprep.subr.mxu0 0.0
        %4623 = vmatpush1.msra.mxu0 0.0
        %4624 = vmatprep.subr.mxu0 0.0
        %4625 = vmatpush1.msra.mxu0 0.0
        %4626 = vmatprep.subr.mxu0 0.0
        %4627 = vmatpush1.msra.mxu0 0.0
        %4628 = vmatprep.subr.mxu0 0.0
        %4629 = vmatpush1.msra.mxu0 0.0
        %4630 = vmatprep.subr.mxu0 0.0
        %4631 = vmatpush1.msra.mxu0 0.0
        %4632 = vmatprep.subr.mxu0 0.0
        %4633 = vmatpush1.msra.mxu0 0.0
        %4634 = vmatprep.subr.mxu0 0.0
        %4635 = vmatpush1.msra.mxu0 0.0
        %4636 = vmatprep.mubr.f32.mxu0 0.0
        %4637 = vmatmul.mubr.f32.gmra.mrb[0].mxu0 %v4570
        %v4638 = vpop.f32.mrb[0].mxu0
        %v4639 = vadd.f32 %v4566, %v4638
        %v4640 = vpop.f32.mrb[0].mxu0
        %4641 = vdwg.mxu0
        %v4642 = vld [vmem:[%s403] sm:$0xff]
        %s4643 = scalar_lea.vmem [#allocation5], 736
        %v4644 = vld [vmem:[%s4643] sm:$0xff]
        %v4645 = vld [vmem:[%s4643 + $0x8] sm:$0xff]
        %v4647 = vsel %vm256, %v4642, 0
        %4649 = vmatprep.subr.mxu0 0.0
        %4650 = vmatpush1.msra.mxu0 %v4644
        %4651 = vmatprep.subr.mxu0 0.0
        %4652 = vmatpush1.msra.mxu0 %v4645
        %4653 = vmatprep.subr.mxu0 0.0
        %4654 = vmatpush1.msra.mxu0 0.0
        %4655 = vmatprep.subr.mxu0 0.0
        %4656 = vmatpush1.msra.mxu0 0.0
        %4657 = vmatprep.subr.mxu0 0.0
        %4658 = vmatpush1.msra.mxu0 0.0
        %4659 = vmatprep.subr.mxu0 0.0
        %4660 = vmatpush1.msra.mxu0 0.0
        %4661 = vmatprep.subr.mxu0 0.0
        %4662 = vmatpush1.msra.mxu0 0.0
        %4663 = vmatprep.subr.mxu0 0.0
        %4664 = vmatpush1.msra.mxu0 0.0
        %4665 = vmatprep.subr.mxu0 0.0
        %4666 = vmatpush1.msra.mxu0 0.0
        %4667 = vmatprep.subr.mxu0 0.0
        %4668 = vmatpush1.msra.mxu0 0.0
        %4669 = vmatprep.subr.mxu0 0.0
        %4670 = vmatpush1.msra.mxu0 0.0
        %4671 = vmatprep.subr.mxu0 0.0
        %4672 = vmatpush1.msra.mxu0 0.0
        %4673 = vmatprep.subr.mxu0 0.0
        %4674 = vmatpush1.msra.mxu0 0.0
        %4675 = vmatprep.subr.mxu0 0.0
        %4676 = vmatpush1.msra.mxu0 0.0
        %4677 = vmatprep.subr.mxu0 0.0
        %4678 = vmatpush1.msra.mxu0 0.0
        %4679 = vmatprep.subr.mxu0 0.0
        %4680 = vmatpush1.msra.mxu0 0.0
        %4681 = vmatprep.subr.mxu0 0.0
        %4682 = vmatpush1.msra.mxu0 0.0
        %4683 = vmatprep.subr.mxu0 0.0
        %4684 = vmatpush1.msra.mxu0 0.0
        %4685 = vmatprep.subr.mxu0 0.0
        %4686 = vmatpush1.msra.mxu0 0.0
        %4687 = vmatprep.subr.mxu0 0.0
        %4688 = vmatpush1.msra.mxu0 0.0
        %4689 = vmatprep.subr.mxu0 0.0
        %4690 = vmatpush1.msra.mxu0 0.0
        %4691 = vmatprep.subr.mxu0 0.0
        %4692 = vmatpush1.msra.mxu0 0.0
        %4693 = vmatprep.subr.mxu0 0.0
        %4694 = vmatpush1.msra.mxu0 0.0
        %4695 = vmatprep.subr.mxu0 0.0
        %4696 = vmatpush1.msra.mxu0 0.0
        %4697 = vmatprep.subr.mxu0 0.0
        %4698 = vmatpush1.msra.mxu0 0.0
        %4699 = vmatprep.subr.mxu0 0.0
        %4700 = vmatpush1.msra.mxu0 0.0
        %4701 = vmatprep.subr.mxu0 0.0
        %4702 = vmatpush1.msra.mxu0 0.0
        %4703 = vmatprep.subr.mxu0 0.0
        %4704 = vmatpush1.msra.mxu0 0.0
        %4705 = vmatprep.subr.mxu0 0.0
        %4706 = vmatpush1.msra.mxu0 0.0
        %4707 = vmatprep.subr.mxu0 0.0
        %4708 = vmatpush1.msra.mxu0 0.0
        %4709 = vmatprep.subr.mxu0 0.0
        %4710 = vmatpush1.msra.mxu0 0.0
        %4711 = vmatprep.subr.mxu0 0.0
        %4712 = vmatpush1.msra.mxu0 0.0
        %4713 = vmatprep.mubr.f32.mxu0 0.0
        %4714 = vmatmul.mubr.f32.gmra.mrb[0].mxu0 %v4647
        %v4715 = vpop.f32.mrb[0].mxu0
        %v4716 = vadd.f32 0.0, %v4715
        %v4717 = vpop.f32.mrb[0].mxu0
        %4718 = vdwg.mxu0
        %v4719 = vadd.f32 %v4639, %v4716
        %v4720 = vld [vmem:[%s482] sm:$0xff]
        %s4721 = scalar_lea.vmem [#allocation5], 752
        %v4722 = vld [vmem:[%s4721] sm:$0xff]
        %v4723 = vld [vmem:[%s4721 + $0x8] sm:$0xff]
        %v4725 = vsel %vm256, %v4720, 0
        %4727 = vmatprep.subr.mxu0 0.0
        %4728 = vmatpush1.msra.mxu0 %v4722
        %4729 = vmatprep.subr.mxu0 0.0
        %4730 = vmatpush1.msra.mxu0 %v4723
        %4731 = vmatprep.subr.mxu0 0.0
        %4732 = vmatpush1.msra.mxu0 0.0
        %4733 = vmatprep.subr.mxu0 0.0
        %4734 = vmatpush1.msra.mxu0 0.0
        %4735 = vmatprep.subr.mxu0 0.0
        %4736 = vmatpush1.msra.mxu0 0.0
        %4737 = vmatprep.subr.mxu0 0.0
        %4738 = vmatpush1.msra.mxu0 0.0
        %4739 = vmatprep.subr.mxu0 0.0
        %4740 = vmatpush1.msra.mxu0 0.0
        %4741 = vmatprep.subr.mxu0 0.0
        %4742 = vmatpush1.msra.mxu0 0.0
        %4743 = vmatprep.subr.mxu0 0.0
        %4744 = vmatpush1.msra.mxu0 0.0
        %4745 = vmatprep.subr.mxu0 0.0
        %4746 = vmatpush1.msra.mxu0 0.0
        %4747 = vmatprep.subr.mxu0 0.0
        %4748 = vmatpush1.msra.mxu0 0.0
        %4749 = vmatprep.subr.mxu0 0.0
        %4750 = vmatpush1.msra.mxu0 0.0
        %4751 = vmatprep.subr.mxu0 0.0
        %4752 = vmatpush1.msra.mxu0 0.0
        %4753 = vmatprep.subr.mxu0 0.0
        %4754 = vmatpush1.msra.mxu0 0.0
        %4755 = vmatprep.subr.mxu0 0.0
        %4756 = vmatpush1.msra.mxu0 0.0
        %4757 = vmatprep.subr.mxu0 0.0
        %4758 = vmatpush1.msra.mxu0 0.0
        %4759 = vmatprep.subr.mxu0 0.0
        %4760 = vmatpush1.msra.mxu0 0.0
        %4761 = vmatprep.subr.mxu0 0.0
        %4762 = vmatpush1.msra.mxu0 0.0
        %4763 = vmatprep.subr.mxu0 0.0
        %4764 = vmatpush1.msra.mxu0 0.0
        %4765 = vmatprep.subr.mxu0 0.0
        %4766 = vmatpush1.msra.mxu0 0.0
        %4767 = vmatprep.subr.mxu0 0.0
        %4768 = vmatpush1.msra.mxu0 0.0
        %4769 = vmatprep.subr.mxu0 0.0
        %4770 = vmatpush1.msra.mxu0 0.0
        %4771 = vmatprep.subr.mxu0 0.0
        %4772 = vmatpush1.msra.mxu0 0.0
        %4773 = vmatprep.subr.mxu0 0.0
        %4774 = vmatpush1.msra.mxu0 0.0
        %4775 = vmatprep.subr.mxu0 0.0
        %4776 = vmatpush1.msra.mxu0 0.0
        %4777 = vmatprep.subr.mxu0 0.0
        %4778 = vmatpush1.msra.mxu0 0.0
        %4779 = vmatprep.subr.mxu0 0.0
        %4780 = vmatpush1.msra.mxu0 0.0
        %4781 = vmatprep.subr.mxu0 0.0
        %4782 = vmatpush1.msra.mxu0 0.0
        %4783 = vmatprep.subr.mxu0 0.0
        %4784 = vmatpush1.msra.mxu0 0.0
        %4785 = vmatprep.subr.mxu0 0.0
        %4786 = vmatpush1.msra.mxu0 0.0
        %4787 = vmatprep.subr.mxu0 0.0
        %4788 = vmatpush1.msra.mxu0 0.0
        %4789 = vmatprep.subr.mxu0 0.0
        %4790 = vmatpush1.msra.mxu0 0.0
        %4791 = vmatprep.mubr.f32.mxu0 0.0
        %4792 = vmatmul.mubr.f32.gmra.mrb[0].mxu0 %v4725
        %v4793 = vpop.f32.mrb[0].mxu0
        %v4794 = vadd.f32 0.0, %v4793
        %v4795 = vpop.f32.mrb[0].mxu0
        %4796 = vdwg.mxu0
        %v4797 = vadd.f32 %v4719, %v4794
        %s4798 = scalar_lea.vmem [#allocation7], 11
        %v4799 = vld [vmem:[%s4798] sm:$0x1]
        %v4801 = vlaneseq
        %v4802 = vshrl.u32 %v4801, 7
        %v4803 = vsub.s32 0, %v4802
        %v4804 = vrot.slane %v4799, %v4803
        %v4806 = vadd.f32 %v4797, %v4804
        %v4808 = vcombine.high %v4806, %v4806
        %v4810 = vunpack.c.l.s4 1966171168
        %v4811 = vunpack.c.0.s8 %v4810
        %v4812 = vlaneseq
        %v4813 = vshrl.u32 %v4812, 7
        %v4814 = vsub.s32 %v4811, %v4813
        %v4815 = vrot.slane %v4806, %v4814
        %v4817 = vunpack.c.l.s4 1966171168
        %v4818 = vunpack.c.0.s8 %v4817
        %v4819 = vlaneseq
        %v4820 = vshrl.u32 %v4819, 7
        %v4821 = vsub.s32 %v4818, %v4820
        %v4822 = vrot.slane %v4808, %v4821
        %v4823 = vcombine.high %v4815, %v4815
        %v4824 = vcombine.high %v4822, %v4822
        %v4826 = vunpack.c.l.s4 1966171168
        %v4827 = vunpack.c.0.s8 %v4826
        %v4828 = vlaneseq
        %v4829 = vshrl.u32 %v4828, 7
        %v4830 = vsub.s32 %v4827, %v4829
        %v4831 = vrot.slane %v4815, %v4830
        %v4833 = vunpack.c.l.s4 1966171168
        %v4834 = vunpack.c.0.s8 %v4833
        %v4835 = vlaneseq
        %v4836 = vshrl.u32 %v4835, 7
        %v4837 = vsub.s32 %v4834, %v4836
        %v4838 = vrot.slane %v4822, %v4837
        %v4840 = vunpack.c.l.s4 1966171168
        %v4841 = vunpack.c.0.s8 %v4840
        %v4842 = vlaneseq
        %v4843 = vshrl.u32 %v4842, 7
        %v4844 = vsub.s32 %v4841, %v4843
        %v4845 = vrot.slane %v4823, %v4844
        %v4847 = vunpack.c.l.s4 1966171168
        %v4848 = vunpack.c.0.s8 %v4847
        %v4849 = vlaneseq
        %v4850 = vshrl.u32 %v4849, 7
        %v4851 = vsub.s32 %v4848, %v4850
        %v4852 = vrot.slane %v4824, %v4851
        %v4853 = vcombine.high %v4831, %v4831
        %v4854 = vcombine.high %v4838, %v4838
        %v4855 = vcombine.high %v4845, %v4845
        %v4856 = vcombine.high %v4852, %v4852
        %4865 = vst.msk [vmem:[%s3709 + $0x3] sm:$0x1] %vm627, %v4831
        %4866 = vst.msk [vmem:[%s3709 + $0x7] sm:$0x1] %vm627, %v4845
        %4867 = vst.msk [vmem:[%s3709 + $0xb] sm:$0x1] %vm627, %v4853
        %4868 = vst.msk [vmem:[%s3709 + $0xf] sm:$0x1] %vm627, %v4855
        %4869 = vst.msk [vmem:[%s3709 + $0x13] sm:$0x1] %vm627, %v4838
        %4870 = vst.msk [vmem:[%s3709 + $0x17] sm:$0x1] %vm627, %v4852
        %4871 = vst.msk [vmem:[%s3709 + $0x1b] sm:$0x1] %vm627, %v4854
        %4872 = vst.msk [vmem:[%s3709 + $0x1f] sm:$0x1] %vm627, %v4856
        %v4873 = vld [vmem:[%s216] sm:$0xff]
        %s4874 = scalar_lea.vmem [#allocation5], 768
        %v4875 = vld [vmem:[%s4874] sm:$0xff]
        %v4876 = vld [vmem:[%s4874 + $0x8] sm:$0xff]
        %v4877 = vld [vmem:[%s251] sm:$0xff]
        %s4878 = scalar_lea.vmem [#allocation5], 784
        %v4879 = vld [vmem:[%s4878] sm:$0xff]
        %v4880 = vld [vmem:[%s4878 + $0x8] sm:$0xff]
        %v4882 = vsel %vm256, %v4877, 0
        %4884 = vmatprep.subr.mxu0 0.0
        %4885 = vmatpush1.msra.mxu0 %v4879
        %4886 = vmatprep.subr.mxu0 0.0
        %4887 = vmatpush1.msra.mxu0 %v4880
        %4888 = vmatprep.subr.mxu0 0.0
        %4889 = vmatpush1.msra.mxu0 0.0
        %4890 = vmatprep.subr.mxu0 0.0
        %4891 = vmatpush1.msra.mxu0 0.0
        %4892 = vmatprep.subr.mxu0 0.0
        %4893 = vmatpush1.msra.mxu0 0.0
        %4894 = vmatprep.subr.mxu0 0.0
        %4895 = vmatpush1.msra.mxu0 0.0
        %4896 = vmatprep.subr.mxu0 0.0
        %4897 = vmatpush1.msra.mxu0 0.0
        %4898 = vmatprep.subr.mxu0 0.0
        %4899 = vmatpush1.msra.mxu0 0.0
        %4900 = vmatprep.subr.mxu0 0.0
        %4901 = vmatpush1.msra.mxu0 0.0
        %4902 = vmatprep.subr.mxu0 0.0
        %4903 = vmatpush1.msra.mxu0 0.0
        %4904 = vmatprep.subr.mxu0 0.0
        %4905 = vmatpush1.msra.mxu0 0.0
        %4906 = vmatprep.subr.mxu0 0.0
        %4907 = vmatpush1.msra.mxu0 0.0
        %4908 = vmatprep.subr.mxu0 0.0
        %4909 = vmatpush1.msra.mxu0 0.0
        %4910 = vmatprep.subr.mxu0 0.0
        %4911 = vmatpush1.msra.mxu0 0.0
        %4912 = vmatprep.subr.mxu0 0.0
        %4913 = vmatpush1.msra.mxu0 0.0
        %4914 = vmatprep.subr.mxu0 0.0
        %4915 = vmatpush1.msra.mxu0 0.0
        %4916 = vmatprep.subr.mxu0 0.0
        %4917 = vmatpush1.msra.mxu0 0.0
        %4918 = vmatprep.subr.mxu0 0.0
        %4919 = vmatpush1.msra.mxu0 0.0
        %4920 = vmatprep.subr.mxu0 0.0
        %4921 = vmatpush1.msra.mxu0 0.0
        %4922 = vmatprep.subr.mxu0 0.0
        %4923 = vmatpush1.msra.mxu0 0.0
        %4924 = vmatprep.subr.mxu0 0.0
        %4925 = vmatpush1.msra.mxu0 0.0
        %4926 = vmatprep.subr.mxu0 0.0
        %4927 = vmatpush1.msra.mxu0 0.0
        %4928 = vmatprep.subr.mxu0 0.0
        %4929 = vmatpush1.msra.mxu0 0.0
        %4930 = vmatprep.subr.mxu0 0.0
        %4931 = vmatpush1.msra.mxu0 0.0
        %4932 = vmatprep.subr.mxu0 0.0
        %4933 = vmatpush1.msra.mxu0 0.0
        %4934 = vmatprep.subr.mxu0 0.0
        %4935 = vmatpush1.msra.mxu0 0.0
        %4936 = vmatprep.subr.mxu0 0.0
        %4937 = vmatpush1.msra.mxu0 0.0
        %4938 = vmatprep.subr.mxu0 0.0
        %4939 = vmatpush1.msra.mxu0 0.0
        %4940 = vmatprep.subr.mxu0 0.0
        %4941 = vmatpush1.msra.mxu0 0.0
        %4942 = vmatprep.subr.mxu0 0.0
        %4943 = vmatpush1.msra.mxu0 0.0
        %4944 = vmatprep.subr.mxu0 0.0
        %4945 = vmatpush1.msra.mxu0 0.0
        %4946 = vmatprep.subr.mxu0 0.0
        %4947 = vmatpush1.msra.mxu0 0.0
        %4948 = vmatprep.mubr.f32.mxu0 0.0
        %4949 = vmatmul.mubr.f32.gmra.mrb[0].mxu0 %v4882
        %v4950 = vpop.f32.mrb[0].mxu0
        %v4951 = vadd.f32 0.0, %v4950
        %v4952 = vpop.f32.mrb[0].mxu0
        %4953 = vdwg.mxu0
        %v4955 = vsel %vm256, %v4873, 0
        %4957 = vmatprep.subr.mxu0 0.0
        %4958 = vmatpush1.msra.mxu0 %v4875
        %4959 = vmatprep.subr.mxu0 0.0
        %4960 = vmatpush1.msra.mxu0 %v4876
        %4961 = vmatprep.subr.mxu0 0.0
        %4962 = vmatpush1.msra.mxu0 0.0
        %4963 = vmatprep.subr.mxu0 0.0
        %4964 = vmatpush1.msra.mxu0 0.0
        %4965 = vmatprep.subr.mxu0 0.0
        %4966 = vmatpush1.msra.mxu0 0.0
        %4967 = vmatprep.subr.mxu0 0.0
        %4968 = vmatpush1.msra.mxu0 0.0
        %4969 = vmatprep.subr.mxu0 0.0
        %4970 = vmatpush1.msra.mxu0 0.0
        %4971 = vmatprep.subr.mxu0 0.0
        %4972 = vmatpush1.msra.mxu0 0.0
        %4973 = vmatprep.subr.mxu0 0.0
        %4974 = vmatpush1.msra.mxu0 0.0
        %4975 = vmatprep.subr.mxu0 0.0
        %4976 = vmatpush1.msra.mxu0 0.0
        %4977 = vmatprep.subr.mxu0 0.0
        %4978 = vmatpush1.msra.mxu0 0.0
        %4979 = vmatprep.subr.mxu0 0.0
        %4980 = vmatpush1.msra.mxu0 0.0
        %4981 = vmatprep.subr.mxu0 0.0
        %4982 = vmatpush1.msra.mxu0 0.0
        %4983 = vmatprep.subr.mxu0 0.0
        %4984 = vmatpush1.msra.mxu0 0.0
        %4985 = vmatprep.subr.mxu0 0.0
        %4986 = vmatpush1.msra.mxu0 0.0
        %4987 = vmatprep.subr.mxu0 0.0
        %4988 = vmatpush1.msra.mxu0 0.0
        %4989 = vmatprep.subr.mxu0 0.0
        %4990 = vmatpush1.msra.mxu0 0.0
        %4991 = vmatprep.subr.mxu0 0.0
        %4992 = vmatpush1.msra.mxu0 0.0
        %4993 = vmatprep.subr.mxu0 0.0
        %4994 = vmatpush1.msra.mxu0 0.0
        %4995 = vmatprep.subr.mxu0 0.0
        %4996 = vmatpush1.msra.mxu0 0.0
        %4997 = vmatprep.subr.mxu0 0.0
        %4998 = vmatpush1.msra.mxu0 0.0
        %4999 = vmatprep.subr.mxu0 0.0
        %5000 = vmatpush1.msra.mxu0 0.0
        %5001 = vmatprep.subr.mxu0 0.0
        %5002 = vmatpush1.msra.mxu0 0.0
        %5003 = vmatprep.subr.mxu0 0.0
        %5004 = vmatpush1.msra.mxu0 0.0
        %5005 = vmatprep.subr.mxu0 0.0
        %5006 = vmatpush1.msra.mxu0 0.0
        %5007 = vmatprep.subr.mxu0 0.0
        %5008 = vmatpush1.msra.mxu0 0.0
        %5009 = vmatprep.subr.mxu0 0.0
        %5010 = vmatpush1.msra.mxu0 0.0
        %5011 = vmatprep.subr.mxu0 0.0
        %5012 = vmatpush1.msra.mxu0 0.0
        %5013 = vmatprep.subr.mxu0 0.0
        %5014 = vmatpush1.msra.mxu0 0.0
        %5015 = vmatprep.subr.mxu0 0.0
        %5016 = vmatpush1.msra.mxu0 0.0
        %5017 = vmatprep.subr.mxu0 0.0
        %5018 = vmatpush1.msra.mxu0 0.0
        %5019 = vmatprep.subr.mxu0 0.0
        %5020 = vmatpush1.msra.mxu0 0.0
        %5021 = vmatprep.mubr.f32.mxu0 0.0
        %5022 = vmatmul.mubr.f32.gmra.mrb[0].mxu0 %v4955
        %v5023 = vpop.f32.mrb[0].mxu0
        %v5024 = vadd.f32 %v4951, %v5023
        %v5025 = vpop.f32.mrb[0].mxu0
        %5026 = vdwg.mxu0
        %v5027 = vld [vmem:[%s403] sm:$0xff]
        %s5028 = scalar_lea.vmem [#allocation5], 800
        %v5029 = vld [vmem:[%s5028] sm:$0xff]
        %v5030 = vld [vmem:[%s5028 + $0x8] sm:$0xff]
        %v5032 = vsel %vm256, %v5027, 0
        %5034 = vmatprep.subr.mxu0 0.0
        %5035 = vmatpush1.msra.mxu0 %v5029
        %5036 = vmatprep.subr.mxu0 0.0
        %5037 = vmatpush1.msra.mxu0 %v5030
        %5038 = vmatprep.subr.mxu0 0.0
        %5039 = vmatpush1.msra.mxu0 0.0
        %5040 = vmatprep.subr.mxu0 0.0
        %5041 = vmatpush1.msra.mxu0 0.0
        %5042 = vmatprep.subr.mxu0 0.0
        %5043 = vmatpush1.msra.mxu0 0.0
        %5044 = vmatprep.subr.mxu0 0.0
        %5045 = vmatpush1.msra.mxu0 0.0
        %5046 = vmatprep.subr.mxu0 0.0
        %5047 = vmatpush1.msra.mxu0 0.0
        %5048 = vmatprep.subr.mxu0 0.0
        %5049 = vmatpush1.msra.mxu0 0.0
        %5050 = vmatprep.subr.mxu0 0.0
        %5051 = vmatpush1.msra.mxu0 0.0
        %5052 = vmatprep.subr.mxu0 0.0
        %5053 = vmatpush1.msra.mxu0 0.0
        %5054 = vmatprep.subr.mxu0 0.0
        %5055 = vmatpush1.msra.mxu0 0.0
        %5056 = vmatprep.subr.mxu0 0.0
        %5057 = vmatpush1.msra.mxu0 0.0
        %5058 = vmatprep.subr.mxu0 0.0
        %5059 = vmatpush1.msra.mxu0 0.0
        %5060 = vmatprep.subr.mxu0 0.0
        %5061 = vmatpush1.msra.mxu0 0.0
        %5062 = vmatprep.subr.mxu0 0.0
        %5063 = vmatpush1.msra.mxu0 0.0
        %5064 = vmatprep.subr.mxu0 0.0
        %5065 = vmatpush1.msra.mxu0 0.0
        %5066 = vmatprep.subr.mxu0 0.0
        %5067 = vmatpush1.msra.mxu0 0.0
        %5068 = vmatprep.subr.mxu0 0.0
        %5069 = vmatpush1.msra.mxu0 0.0
        %5070 = vmatprep.subr.mxu0 0.0
        %5071 = vmatpush1.msra.mxu0 0.0
        %5072 = vmatprep.subr.mxu0 0.0
        %5073 = vmatpush1.msra.mxu0 0.0
        %5074 = vmatprep.subr.mxu0 0.0
        %5075 = vmatpush1.msra.mxu0 0.0
        %5076 = vmatprep.subr.mxu0 0.0
        %5077 = vmatpush1.msra.mxu0 0.0
        %5078 = vmatprep.subr.mxu0 0.0
        %5079 = vmatpush1.msra.mxu0 0.0
        %5080 = vmatprep.subr.mxu0 0.0
        %5081 = vmatpush1.msra.mxu0 0.0
        %5082 = vmatprep.subr.mxu0 0.0
        %5083 = vmatpush1.msra.mxu0 0.0
        %5084 = vmatprep.subr.mxu0 0.0
        %5085 = vmatpush1.msra.mxu0 0.0
        %5086 = vmatprep.subr.mxu0 0.0
        %5087 = vmatpush1.msra.mxu0 0.0
        %5088 = vmatprep.subr.mxu0 0.0
        %5089 = vmatpush1.msra.mxu0 0.0
        %5090 = vmatprep.subr.mxu0 0.0
        %5091 = vmatpush1.msra.mxu0 0.0
        %5092 = vmatprep.subr.mxu0 0.0
        %5093 = vmatpush1.msra.mxu0 0.0
        %5094 = vmatprep.subr.mxu0 0.0
        %5095 = vmatpush1.msra.mxu0 0.0
        %5096 = vmatprep.subr.mxu0 0.0
        %5097 = vmatpush1.msra.mxu0 0.0
        %5098 = vmatprep.mubr.f32.mxu0 0.0
        %5099 = vmatmul.mubr.f32.gmra.mrb[0].mxu0 %v5032
        %v5100 = vpop.f32.mrb[0].mxu0
        %v5101 = vadd.f32 0.0, %v5100
        %v5102 = vpop.f32.mrb[0].mxu0
        %5103 = vdwg.mxu0
        %v5104 = vadd.f32 %v5024, %v5101
        %v5105 = vld [vmem:[%s482] sm:$0xff]
        %s5106 = scalar_lea.vmem [#allocation5], 816
        %v5107 = vld [vmem:[%s5106] sm:$0xff]
        %v5108 = vld [vmem:[%s5106 + $0x8] sm:$0xff]
        %v5110 = vsel %vm256, %v5105, 0
        %5112 = vmatprep.subr.mxu0 0.0
        %5113 = vmatpush1.msra.mxu0 %v5107
        %5114 = vmatprep.subr.mxu0 0.0
        %5115 = vmatpush1.msra.mxu0 %v5108
        %5116 = vmatprep.subr.mxu0 0.0
        %5117 = vmatpush1.msra.mxu0 0.0
        %5118 = vmatprep.subr.mxu0 0.0
        %5119 = vmatpush1.msra.mxu0 0.0
        %5120 = vmatprep.subr.mxu0 0.0
        %5121 = vmatpush1.msra.mxu0 0.0
        %5122 = vmatprep.subr.mxu0 0.0
        %5123 = vmatpush1.msra.mxu0 0.0
        %5124 = vmatprep.subr.mxu0 0.0
        %5125 = vmatpush1.msra.mxu0 0.0
        %5126 = vmatprep.subr.mxu0 0.0
        %5127 = vmatpush1.msra.mxu0 0.0
        %5128 = vmatprep.subr.mxu0 0.0
        %5129 = vmatpush1.msra.mxu0 0.0
        %5130 = vmatprep.subr.mxu0 0.0
        %5131 = vmatpush1.msra.mxu0 0.0
        %5132 = vmatprep.subr.mxu0 0.0
        %5133 = vmatpush1.msra.mxu0 0.0
        %5134 = vmatprep.subr.mxu0 0.0
        %5135 = vmatpush1.msra.mxu0 0.0
        %5136 = vmatprep.subr.mxu0 0.0
        %5137 = vmatpush1.msra.mxu0 0.0
        %5138 = vmatprep.subr.mxu0 0.0
        %5139 = vmatpush1.msra.mxu0 0.0
        %5140 = vmatprep.subr.mxu0 0.0
        %5141 = vmatpush1.msra.mxu0 0.0
        %5142 = vmatprep.subr.mxu0 0.0
        %5143 = vmatpush1.msra.mxu0 0.0
        %5144 = vmatprep.subr.mxu0 0.0
        %5145 = vmatpush1.msra.mxu0 0.0
        %5146 = vmatprep.subr.mxu0 0.0
        %5147 = vmatpush1.msra.mxu0 0.0
        %5148 = vmatprep.subr.mxu0 0.0
        %5149 = vmatpush1.msra.mxu0 0.0
        %5150 = vmatprep.subr.mxu0 0.0
        %5151 = vmatpush1.msra.mxu0 0.0
        %5152 = vmatprep.subr.mxu0 0.0
        %5153 = vmatpush1.msra.mxu0 0.0
        %5154 = vmatprep.subr.mxu0 0.0
        %5155 = vmatpush1.msra.mxu0 0.0
        %5156 = vmatprep.subr.mxu0 0.0
        %5157 = vmatpush1.msra.mxu0 0.0
        %5158 = vmatprep.subr.mxu0 0.0
        %5159 = vmatpush1.msra.mxu0 0.0
        %5160 = vmatprep.subr.mxu0 0.0
        %5161 = vmatpush1.msra.mxu0 0.0
        %5162 = vmatprep.subr.mxu0 0.0
        %5163 = vmatpush1.msra.mxu0 0.0
        %5164 = vmatprep.subr.mxu0 0.0
        %5165 = vmatpush1.msra.mxu0 0.0
        %5166 = vmatprep.subr.mxu0 0.0
        %5167 = vmatpush1.msra.mxu0 0.0
        %5168 = vmatprep.subr.mxu0 0.0
        %5169 = vmatpush1.msra.mxu0 0.0
        %5170 = vmatprep.subr.mxu0 0.0
        %5171 = vmatpush1.msra.mxu0 0.0
        %5172 = vmatprep.subr.mxu0 0.0
        %5173 = vmatpush1.msra.mxu0 0.0
        %5174 = vmatprep.subr.mxu0 0.0
        %5175 = vmatpush1.msra.mxu0 0.0
        %5176 = vmatprep.mubr.f32.mxu0 0.0
        %5177 = vmatmul.mubr.f32.gmra.mrb[0].mxu0 %v5110
        %v5178 = vpop.f32.mrb[0].mxu0
        %v5179 = vadd.f32 0.0, %v5178
        %v5180 = vpop.f32.mrb[0].mxu0
        %5181 = vdwg.mxu0
        %v5182 = vadd.f32 %v5104, %v5179
        %s5183 = scalar_lea.vmem [#allocation7], 12
        %v5184 = vld [vmem:[%s5183] sm:$0x1]
        %v5186 = vlaneseq
        %v5187 = vshrl.u32 %v5186, 7
        %v5188 = vsub.s32 0, %v5187
        %v5189 = vrot.slane %v5184, %v5188
        %v5191 = vadd.f32 %v5182, %v5189
        %v5193 = vcombine.high %v5191, %v5191
        %v5195 = vunpack.c.l.s4 1966171168
        %v5196 = vunpack.c.0.s8 %v5195
        %v5197 = vlaneseq
        %v5198 = vshrl.u32 %v5197, 7
        %v5199 = vsub.s32 %v5196, %v5198
        %v5200 = vrot.slane %v5191, %v5199
        %v5202 = vunpack.c.l.s4 1966171168
        %v5203 = vunpack.c.0.s8 %v5202
        %v5204 = vlaneseq
        %v5205 = vshrl.u32 %v5204, 7
        %v5206 = vsub.s32 %v5203, %v5205
        %v5207 = vrot.slane %v5193, %v5206
        %v5208 = vcombine.high %v5200, %v5200
        %v5209 = vcombine.high %v5207, %v5207
        %v5211 = vunpack.c.l.s4 1966171168
        %v5212 = vunpack.c.0.s8 %v5211
        %v5213 = vlaneseq
        %v5214 = vshrl.u32 %v5213, 7
        %v5215 = vsub.s32 %v5212, %v5214
        %v5216 = vrot.slane %v5200, %v5215
        %v5218 = vunpack.c.l.s4 1966171168
        %v5219 = vunpack.c.0.s8 %v5218
        %v5220 = vlaneseq
        %v5221 = vshrl.u32 %v5220, 7
        %v5222 = vsub.s32 %v5219, %v5221
        %v5223 = vrot.slane %v5207, %v5222
        %v5225 = vunpack.c.l.s4 1966171168
        %v5226 = vunpack.c.0.s8 %v5225
        %v5227 = vlaneseq
        %v5228 = vshrl.u32 %v5227, 7
        %v5229 = vsub.s32 %v5226, %v5228
        %v5230 = vrot.slane %v5208, %v5229
        %v5232 = vunpack.c.l.s4 1966171168
        %v5233 = vunpack.c.0.s8 %v5232
        %v5234 = vlaneseq
        %v5235 = vshrl.u32 %v5234, 7
        %v5236 = vsub.s32 %v5233, %v5235
        %v5237 = vrot.slane %v5209, %v5236
        %v5238 = vcombine.high %v5216, %v5216
        %v5239 = vcombine.high %v5223, %v5223
        %v5240 = vcombine.high %v5230, %v5230
        %v5241 = vcombine.high %v5237, %v5237
        %s5250 = scalar_lea.vmem %s246, 96 [#allocation8]
        %5251 = vst.msk [vmem:[%s5250] sm:$0x1] %vm627, %v5216
        %5252 = vst.msk [vmem:[%s5250 + $0x4] sm:$0x1] %vm627, %v5230
        %5253 = vst.msk [vmem:[%s5250 + $0x8] sm:$0x1] %vm627, %v5238
        %5254 = vst.msk [vmem:[%s5250 + $0xc] sm:$0x1] %vm627, %v5240
        %5255 = vst.msk [vmem:[%s5250 + $0x10] sm:$0x1] %vm627, %v5223
        %5256 = vst.msk [vmem:[%s5250 + $0x14] sm:$0x1] %vm627, %v5237
        %5257 = vst.msk [vmem:[%s5250 + $0x18] sm:$0x1] %vm627, %v5239
        %5258 = vst.msk [vmem:[%s5250 + $0x1c] sm:$0x1] %vm627, %v5241
        %v5259 = vld [vmem:[%s216] sm:$0xff]
        %s5260 = scalar_lea.vmem [#allocation5], 832
        %v5261 = vld [vmem:[%s5260] sm:$0xff]
        %v5262 = vld [vmem:[%s5260 + $0x8] sm:$0xff]
        %v5263 = vld [vmem:[%s251] sm:$0xff]
        %s5264 = scalar_lea.vmem [#allocation5], 848
        %v5265 = vld [vmem:[%s5264] sm:$0xff]
        %v5266 = vld [vmem:[%s5264 + $0x8] sm:$0xff]
        %v5268 = vsel %vm256, %v5263, 0
        %5270 = vmatprep.subr.mxu0 0.0
        %5271 = vmatpush1.msra.mxu0 %v5265
        %5272 = vmatprep.subr.mxu0 0.0
        %5273 = vmatpush1.msra.mxu0 %v5266
        %5274 = vmatprep.subr.mxu0 0.0
        %5275 = vmatpush1.msra.mxu0 0.0
        %5276 = vmatprep.subr.mxu0 0.0
        %5277 = vmatpush1.msra.mxu0 0.0
        %5278 = vmatprep.subr.mxu0 0.0
        %5279 = vmatpush1.msra.mxu0 0.0
        %5280 = vmatprep.subr.mxu0 0.0
        %5281 = vmatpush1.msra.mxu0 0.0
        %5282 = vmatprep.subr.mxu0 0.0
        %5283 = vmatpush1.msra.mxu0 0.0
        %5284 = vmatprep.subr.mxu0 0.0
        %5285 = vmatpush1.msra.mxu0 0.0
        %5286 = vmatprep.subr.mxu0 0.0
        %5287 = vmatpush1.msra.mxu0 0.0
        %5288 = vmatprep.subr.mxu0 0.0
        %5289 = vmatpush1.msra.mxu0 0.0
        %5290 = vmatprep.subr.mxu0 0.0
        %5291 = vmatpush1.msra.mxu0 0.0
        %5292 = vmatprep.subr.mxu0 0.0
        %5293 = vmatpush1.msra.mxu0 0.0
        %5294 = vmatprep.subr.mxu0 0.0
        %5295 = vmatpush1.msra.mxu0 0.0
        %5296 = vmatprep.subr.mxu0 0.0
        %5297 = vmatpush1.msra.mxu0 0.0
        %5298 = vmatprep.subr.mxu0 0.0
        %5299 = vmatpush1.msra.mxu0 0.0
        %5300 = vmatprep.subr.mxu0 0.0
        %5301 = vmatpush1.msra.mxu0 0.0
        %5302 = vmatprep.subr.mxu0 0.0
        %5303 = vmatpush1.msra.mxu0 0.0
        %5304 = vmatprep.subr.mxu0 0.0
        %5305 = vmatpush1.msra.mxu0 0.0
        %5306 = vmatprep.subr.mxu0 0.0
        %5307 = vmatpush1.msra.mxu0 0.0
        %5308 = vmatprep.subr.mxu0 0.0
        %5309 = vmatpush1.msra.mxu0 0.0
        %5310 = vmatprep.subr.mxu0 0.0
        %5311 = vmatpush1.msra.mxu0 0.0
        %5312 = vmatprep.subr.mxu0 0.0
        %5313 = vmatpush1.msra.mxu0 0.0
        %5314 = vmatprep.subr.mxu0 0.0
        %5315 = vmatpush1.msra.mxu0 0.0
        %5316 = vmatprep.subr.mxu0 0.0
        %5317 = vmatpush1.msra.mxu0 0.0
        %5318 = vmatprep.subr.mxu0 0.0
        %5319 = vmatpush1.msra.mxu0 0.0
        %5320 = vmatprep.subr.mxu0 0.0
        %5321 = vmatpush1.msra.mxu0 0.0
        %5322 = vmatprep.subr.mxu0 0.0
        %5323 = vmatpush1.msra.mxu0 0.0
        %5324 = vmatprep.subr.mxu0 0.0
        %5325 = vmatpush1.msra.mxu0 0.0
        %5326 = vmatprep.subr.mxu0 0.0
        %5327 = vmatpush1.msra.mxu0 0.0
        %5328 = vmatprep.subr.mxu0 0.0
        %5329 = vmatpush1.msra.mxu0 0.0
        %5330 = vmatprep.subr.mxu0 0.0
        %5331 = vmatpush1.msra.mxu0 0.0
        %5332 = vmatprep.subr.mxu0 0.0
        %5333 = vmatpush1.msra.mxu0 0.0
        %5334 = vmatprep.mubr.f32.mxu0 0.0
        %5335 = vmatmul.mubr.f32.gmra.mrb[0].mxu0 %v5268
        %v5336 = vpop.f32.mrb[0].mxu0
        %v5337 = vadd.f32 0.0, %v5336
        %v5338 = vpop.f32.mrb[0].mxu0
        %5339 = vdwg.mxu0
        %v5341 = vsel %vm256, %v5259, 0
        %5343 = vmatprep.subr.mxu0 0.0
        %5344 = vmatpush1.msra.mxu0 %v5261
        %5345 = vmatprep.subr.mxu0 0.0
        %5346 = vmatpush1.msra.mxu0 %v5262
        %5347 = vmatprep.subr.mxu0 0.0
        %5348 = vmatpush1.msra.mxu0 0.0
        %5349 = vmatprep.subr.mxu0 0.0
        %5350 = vmatpush1.msra.mxu0 0.0
        %5351 = vmatprep.subr.mxu0 0.0
        %5352 = vmatpush1.msra.mxu0 0.0
        %5353 = vmatprep.subr.mxu0 0.0
        %5354 = vmatpush1.msra.mxu0 0.0
        %5355 = vmatprep.subr.mxu0 0.0
        %5356 = vmatpush1.msra.mxu0 0.0
        %5357 = vmatprep.subr.mxu0 0.0
        %5358 = vmatpush1.msra.mxu0 0.0
        %5359 = vmatprep.subr.mxu0 0.0
        %5360 = vmatpush1.msra.mxu0 0.0
        %5361 = vmatprep.subr.mxu0 0.0
        %5362 = vmatpush1.msra.mxu0 0.0
        %5363 = vmatprep.subr.mxu0 0.0
        %5364 = vmatpush1.msra.mxu0 0.0
        %5365 = vmatprep.subr.mxu0 0.0
        %5366 = vmatpush1.msra.mxu0 0.0
        %5367 = vmatprep.subr.mxu0 0.0
        %5368 = vmatpush1.msra.mxu0 0.0
        %5369 = vmatprep.subr.mxu0 0.0
        %5370 = vmatpush1.msra.mxu0 0.0
        %5371 = vmatprep.subr.mxu0 0.0
        %5372 = vmatpush1.msra.mxu0 0.0
        %5373 = vmatprep.subr.mxu0 0.0
        %5374 = vmatpush1.msra.mxu0 0.0
        %5375 = vmatprep.subr.mxu0 0.0
        %5376 = vmatpush1.msra.mxu0 0.0
        %5377 = vmatprep.subr.mxu0 0.0
        %5378 = vmatpush1.msra.mxu0 0.0
        %5379 = vmatprep.subr.mxu0 0.0
        %5380 = vmatpush1.msra.mxu0 0.0
        %5381 = vmatprep.subr.mxu0 0.0
        %5382 = vmatpush1.msra.mxu0 0.0
        %5383 = vmatprep.subr.mxu0 0.0
        %5384 = vmatpush1.msra.mxu0 0.0
        %5385 = vmatprep.subr.mxu0 0.0
        %5386 = vmatpush1.msra.mxu0 0.0
        %5387 = vmatprep.subr.mxu0 0.0
        %5388 = vmatpush1.msra.mxu0 0.0
        %5389 = vmatprep.subr.mxu0 0.0
        %5390 = vmatpush1.msra.mxu0 0.0
        %5391 = vmatprep.subr.mxu0 0.0
        %5392 = vmatpush1.msra.mxu0 0.0
        %5393 = vmatprep.subr.mxu0 0.0
        %5394 = vmatpush1.msra.mxu0 0.0
        %5395 = vmatprep.subr.mxu0 0.0
        %5396 = vmatpush1.msra.mxu0 0.0
        %5397 = vmatprep.subr.mxu0 0.0
        %5398 = vmatpush1.msra.mxu0 0.0
        %5399 = vmatprep.subr.mxu0 0.0
        %5400 = vmatpush1.msra.mxu0 0.0
        %5401 = vmatprep.subr.mxu0 0.0
        %5402 = vmatpush1.msra.mxu0 0.0
        %5403 = vmatprep.subr.mxu0 0.0
        %5404 = vmatpush1.msra.mxu0 0.0
        %5405 = vmatprep.subr.mxu0 0.0
        %5406 = vmatpush1.msra.mxu0 0.0
        %5407 = vmatprep.mubr.f32.mxu0 0.0
        %5408 = vmatmul.mubr.f32.gmra.mrb[0].mxu0 %v5341
        %v5409 = vpop.f32.mrb[0].mxu0
        %v5410 = vadd.f32 %v5337, %v5409
        %v5411 = vpop.f32.mrb[0].mxu0
        %5412 = vdwg.mxu0
        %v5413 = vld [vmem:[%s403] sm:$0xff]
        %s5414 = scalar_lea.vmem [#allocation5], 864
        %v5415 = vld [vmem:[%s5414] sm:$0xff]
        %v5416 = vld [vmem:[%s5414 + $0x8] sm:$0xff]
        %v5418 = vsel %vm256, %v5413, 0
        %5420 = vmatprep.subr.mxu0 0.0
        %5421 = vmatpush1.msra.mxu0 %v5415
        %5422 = vmatprep.subr.mxu0 0.0
        %5423 = vmatpush1.msra.mxu0 %v5416
        %5424 = vmatprep.subr.mxu0 0.0
        %5425 = vmatpush1.msra.mxu0 0.0
        %5426 = vmatprep.subr.mxu0 0.0
        %5427 = vmatpush1.msra.mxu0 0.0
        %5428 = vmatprep.subr.mxu0 0.0
        %5429 = vmatpush1.msra.mxu0 0.0
        %5430 = vmatprep.subr.mxu0 0.0
        %5431 = vmatpush1.msra.mxu0 0.0
        %5432 = vmatprep.subr.mxu0 0.0
        %5433 = vmatpush1.msra.mxu0 0.0
        %5434 = vmatprep.subr.mxu0 0.0
        %5435 = vmatpush1.msra.mxu0 0.0
        %5436 = vmatprep.subr.mxu0 0.0
        %5437 = vmatpush1.msra.mxu0 0.0
        %5438 = vmatprep.subr.mxu0 0.0
        %5439 = vmatpush1.msra.mxu0 0.0
        %5440 = vmatprep.subr.mxu0 0.0
        %5441 = vmatpush1.msra.mxu0 0.0
        %5442 = vmatprep.subr.mxu0 0.0
        %5443 = vmatpush1.msra.mxu0 0.0
        %5444 = vmatprep.subr.mxu0 0.0
        %5445 = vmatpush1.msra.mxu0 0.0
        %5446 = vmatprep.subr.mxu0 0.0
        %5447 = vmatpush1.msra.mxu0 0.0
        %5448 = vmatprep.subr.mxu0 0.0
        %5449 = vmatpush1.msra.mxu0 0.0
        %5450 = vmatprep.subr.mxu0 0.0
        %5451 = vmatpush1.msra.mxu0 0.0
        %5452 = vmatprep.subr.mxu0 0.0
        %5453 = vmatpush1.msra.mxu0 0.0
        %5454 = vmatprep.subr.mxu0 0.0
        %5455 = vmatpush1.msra.mxu0 0.0
        %5456 = vmatprep.subr.mxu0 0.0
        %5457 = vmatpush1.msra.mxu0 0.0
        %5458 = vmatprep.subr.mxu0 0.0
        %5459 = vmatpush1.msra.mxu0 0.0
        %5460 = vmatprep.subr.mxu0 0.0
        %5461 = vmatpush1.msra.mxu0 0.0
        %5462 = vmatprep.subr.mxu0 0.0
        %5463 = vmatpush1.msra.mxu0 0.0
        %5464 = vmatprep.subr.mxu0 0.0
        %5465 = vmatpush1.msra.mxu0 0.0
        %5466 = vmatprep.subr.mxu0 0.0
        %5467 = vmatpush1.msra.mxu0 0.0
        %5468 = vmatprep.subr.mxu0 0.0
        %5469 = vmatpush1.msra.mxu0 0.0
        %5470 = vmatprep.subr.mxu0 0.0
        %5471 = vmatpush1.msra.mxu0 0.0
        %5472 = vmatprep.subr.mxu0 0.0
        %5473 = vmatpush1.msra.mxu0 0.0
        %5474 = vmatprep.subr.mxu0 0.0
        %5475 = vmatpush1.msra.mxu0 0.0
        %5476 = vmatprep.subr.mxu0 0.0
        %5477 = vmatpush1.msra.mxu0 0.0
        %5478 = vmatprep.subr.mxu0 0.0
        %5479 = vmatpush1.msra.mxu0 0.0
        %5480 = vmatprep.subr.mxu0 0.0
        %5481 = vmatpush1.msra.mxu0 0.0
        %5482 = vmatprep.subr.mxu0 0.0
        %5483 = vmatpush1.msra.mxu0 0.0
        %5484 = vmatprep.mubr.f32.mxu0 0.0
        %5485 = vmatmul.mubr.f32.gmra.mrb[0].mxu0 %v5418
        %v5486 = vpop.f32.mrb[0].mxu0
        %v5487 = vadd.f32 0.0, %v5486
        %v5488 = vpop.f32.mrb[0].mxu0
        %5489 = vdwg.mxu0
        %v5490 = vadd.f32 %v5410, %v5487
        %v5491 = vld [vmem:[%s482] sm:$0xff]
        %s5492 = scalar_lea.vmem [#allocation5], 880
        %v5493 = vld [vmem:[%s5492] sm:$0xff]
        %v5494 = vld [vmem:[%s5492 + $0x8] sm:$0xff]
        %v5496 = vsel %vm256, %v5491, 0
        %5498 = vmatprep.subr.mxu0 0.0
        %5499 = vmatpush1.msra.mxu0 %v5493
        %5500 = vmatprep.subr.mxu0 0.0
        %5501 = vmatpush1.msra.mxu0 %v5494
        %5502 = vmatprep.subr.mxu0 0.0
        %5503 = vmatpush1.msra.mxu0 0.0
        %5504 = vmatprep.subr.mxu0 0.0
        %5505 = vmatpush1.msra.mxu0 0.0
        %5506 = vmatprep.subr.mxu0 0.0
        %5507 = vmatpush1.msra.mxu0 0.0
        %5508 = vmatprep.subr.mxu0 0.0
        %5509 = vmatpush1.msra.mxu0 0.0
        %5510 = vmatprep.subr.mxu0 0.0
        %5511 = vmatpush1.msra.mxu0 0.0
        %5512 = vmatprep.subr.mxu0 0.0
        %5513 = vmatpush1.msra.mxu0 0.0
        %5514 = vmatprep.subr.mxu0 0.0
        %5515 = vmatpush1.msra.mxu0 0.0
        %5516 = vmatprep.subr.mxu0 0.0
        %5517 = vmatpush1.msra.mxu0 0.0
        %5518 = vmatprep.subr.mxu0 0.0
        %5519 = vmatpush1.msra.mxu0 0.0
        %5520 = vmatprep.subr.mxu0 0.0
        %5521 = vmatpush1.msra.mxu0 0.0
        %5522 = vmatprep.subr.mxu0 0.0
        %5523 = vmatpush1.msra.mxu0 0.0
        %5524 = vmatprep.subr.mxu0 0.0
        %5525 = vmatpush1.msra.mxu0 0.0
        %5526 = vmatprep.subr.mxu0 0.0
        %5527 = vmatpush1.msra.mxu0 0.0
        %5528 = vmatprep.subr.mxu0 0.0
        %5529 = vmatpush1.msra.mxu0 0.0
        %5530 = vmatprep.subr.mxu0 0.0
        %5531 = vmatpush1.msra.mxu0 0.0
        %5532 = vmatprep.subr.mxu0 0.0
        %5533 = vmatpush1.msra.mxu0 0.0
        %5534 = vmatprep.subr.mxu0 0.0
        %5535 = vmatpush1.msra.mxu0 0.0
        %5536 = vmatprep.subr.mxu0 0.0
        %5537 = vmatpush1.msra.mxu0 0.0
        %5538 = vmatprep.subr.mxu0 0.0
        %5539 = vmatpush1.msra.mxu0 0.0
        %5540 = vmatprep.subr.mxu0 0.0
        %5541 = vmatpush1.msra.mxu0 0.0
        %5542 = vmatprep.subr.mxu0 0.0
        %5543 = vmatpush1.msra.mxu0 0.0
        %5544 = vmatprep.subr.mxu0 0.0
        %5545 = vmatpush1.msra.mxu0 0.0
        %5546 = vmatprep.subr.mxu0 0.0
        %5547 = vmatpush1.msra.mxu0 0.0
        %5548 = vmatprep.subr.mxu0 0.0
        %5549 = vmatpush1.msra.mxu0 0.0
        %5550 = vmatprep.subr.mxu0 0.0
        %5551 = vmatpush1.msra.mxu0 0.0
        %5552 = vmatprep.subr.mxu0 0.0
        %5553 = vmatpush1.msra.mxu0 0.0
        %5554 = vmatprep.subr.mxu0 0.0
        %5555 = vmatpush1.msra.mxu0 0.0
        %5556 = vmatprep.subr.mxu0 0.0
        %5557 = vmatpush1.msra.mxu0 0.0
        %5558 = vmatprep.subr.mxu0 0.0
        %5559 = vmatpush1.msra.mxu0 0.0
        %5560 = vmatprep.subr.mxu0 0.0
        %5561 = vmatpush1.msra.mxu0 0.0
        %5562 = vmatprep.mubr.f32.mxu0 0.0
        %5563 = vmatmul.mubr.f32.gmra.mrb[0].mxu0 %v5496
        %v5564 = vpop.f32.mrb[0].mxu0
        %v5565 = vadd.f32 0.0, %v5564
        %v5566 = vpop.f32.mrb[0].mxu0
        %5567 = vdwg.mxu0
        %v5568 = vadd.f32 %v5490, %v5565
        %s5569 = scalar_lea.vmem [#allocation7], 13
        %v5570 = vld [vmem:[%s5569] sm:$0x1]
        %v5572 = vlaneseq
        %v5573 = vshrl.u32 %v5572, 7
        %v5574 = vsub.s32 0, %v5573
        %v5575 = vrot.slane %v5570, %v5574
        %v5577 = vadd.f32 %v5568, %v5575
        %v5579 = vcombine.high %v5577, %v5577
        %v5581 = vunpack.c.l.s4 1966171168
        %v5582 = vunpack.c.0.s8 %v5581
        %v5583 = vlaneseq
        %v5584 = vshrl.u32 %v5583, 7
        %v5585 = vsub.s32 %v5582, %v5584
        %v5586 = vrot.slane %v5577, %v5585
        %v5588 = vunpack.c.l.s4 1966171168
        %v5589 = vunpack.c.0.s8 %v5588
        %v5590 = vlaneseq
        %v5591 = vshrl.u32 %v5590, 7
        %v5592 = vsub.s32 %v5589, %v5591
        %v5593 = vrot.slane %v5579, %v5592
        %v5594 = vcombine.high %v5586, %v5586
        %v5595 = vcombine.high %v5593, %v5593
        %v5597 = vunpack.c.l.s4 1966171168
        %v5598 = vunpack.c.0.s8 %v5597
        %v5599 = vlaneseq
        %v5600 = vshrl.u32 %v5599, 7
        %v5601 = vsub.s32 %v5598, %v5600
        %v5602 = vrot.slane %v5586, %v5601
        %v5604 = vunpack.c.l.s4 1966171168
        %v5605 = vunpack.c.0.s8 %v5604
        %v5606 = vlaneseq
        %v5607 = vshrl.u32 %v5606, 7
        %v5608 = vsub.s32 %v5605, %v5607
        %v5609 = vrot.slane %v5593, %v5608
        %v5611 = vunpack.c.l.s4 1966171168
        %v5612 = vunpack.c.0.s8 %v5611
        %v5613 = vlaneseq
        %v5614 = vshrl.u32 %v5613, 7
        %v5615 = vsub.s32 %v5612, %v5614
        %v5616 = vrot.slane %v5594, %v5615
        %v5618 = vunpack.c.l.s4 1966171168
        %v5619 = vunpack.c.0.s8 %v5618
        %v5620 = vlaneseq
        %v5621 = vshrl.u32 %v5620, 7
        %v5622 = vsub.s32 %v5619, %v5621
        %v5623 = vrot.slane %v5595, %v5622
        %v5624 = vcombine.high %v5602, %v5602
        %v5625 = vcombine.high %v5609, %v5609
        %v5626 = vcombine.high %v5616, %v5616
        %v5627 = vcombine.high %v5623, %v5623
        %5636 = vst.msk [vmem:[%s5250 + $0x1] sm:$0x1] %vm627, %v5602
        %5637 = vst.msk [vmem:[%s5250 + $0x5] sm:$0x1] %vm627, %v5616
        %5638 = vst.msk [vmem:[%s5250 + $0x9] sm:$0x1] %vm627, %v5624
        %5639 = vst.msk [vmem:[%s5250 + $0xd] sm:$0x1] %vm627, %v5626
        %5640 = vst.msk [vmem:[%s5250 + $0x11] sm:$0x1] %vm627, %v5609
        %5641 = vst.msk [vmem:[%s5250 + $0x15] sm:$0x1] %vm627, %v5623
        %5642 = vst.msk [vmem:[%s5250 + $0x19] sm:$0x1] %vm627, %v5625
        %5643 = vst.msk [vmem:[%s5250 + $0x1d] sm:$0x1] %vm627, %v5627
        %v5644 = vld [vmem:[%s216] sm:$0xff]
        %s5645 = scalar_lea.vmem [#allocation5], 896
        %v5646 = vld [vmem:[%s5645] sm:$0xff]
        %v5647 = vld [vmem:[%s5645 + $0x8] sm:$0xff]
        %v5648 = vld [vmem:[%s251] sm:$0xff]
        %s5649 = scalar_lea.vmem [#allocation5], 912
        %v5650 = vld [vmem:[%s5649] sm:$0xff]
        %v5651 = vld [vmem:[%s5649 + $0x8] sm:$0xff]
        %v5653 = vsel %vm256, %v5648, 0
        %5655 = vmatprep.subr.mxu0 0.0
        %5656 = vmatpush1.msra.mxu0 %v5650
        %5657 = vmatprep.subr.mxu0 0.0
        %5658 = vmatpush1.msra.mxu0 %v5651
        %5659 = vmatprep.subr.mxu0 0.0
        %5660 = vmatpush1.msra.mxu0 0.0
        %5661 = vmatprep.subr.mxu0 0.0
        %5662 = vmatpush1.msra.mxu0 0.0
        %5663 = vmatprep.subr.mxu0 0.0
        %5664 = vmatpush1.msra.mxu0 0.0
        %5665 = vmatprep.subr.mxu0 0.0
        %5666 = vmatpush1.msra.mxu0 0.0
        %5667 = vmatprep.subr.mxu0 0.0
        %5668 = vmatpush1.msra.mxu0 0.0
        %5669 = vmatprep.subr.mxu0 0.0
        %5670 = vmatpush1.msra.mxu0 0.0
        %5671 = vmatprep.subr.mxu0 0.0
        %5672 = vmatpush1.msra.mxu0 0.0
        %5673 = vmatprep.subr.mxu0 0.0
        %5674 = vmatpush1.msra.mxu0 0.0
        %5675 = vmatprep.subr.mxu0 0.0
        %5676 = vmatpush1.msra.mxu0 0.0
        %5677 = vmatprep.subr.mxu0 0.0
        %5678 = vmatpush1.msra.mxu0 0.0
        %5679 = vmatprep.subr.mxu0 0.0
        %5680 = vmatpush1.msra.mxu0 0.0
        %5681 = vmatprep.subr.mxu0 0.0
        %5682 = vmatpush1.msra.mxu0 0.0
        %5683 = vmatprep.subr.mxu0 0.0
        %5684 = vmatpush1.msra.mxu0 0.0
        %5685 = vmatprep.subr.mxu0 0.0
        %5686 = vmatpush1.msra.mxu0 0.0
        %5687 = vmatprep.subr.mxu0 0.0
        %5688 = vmatpush1.msra.mxu0 0.0
        %5689 = vmatprep.subr.mxu0 0.0
        %5690 = vmatpush1.msra.mxu0 0.0
        %5691 = vmatprep.subr.mxu0 0.0
        %5692 = vmatpush1.msra.mxu0 0.0
        %5693 = vmatprep.subr.mxu0 0.0
        %5694 = vmatpush1.msra.mxu0 0.0
        %5695 = vmatprep.subr.mxu0 0.0
        %5696 = vmatpush1.msra.mxu0 0.0
        %5697 = vmatprep.subr.mxu0 0.0
        %5698 = vmatpush1.msra.mxu0 0.0
        %5699 = vmatprep.subr.mxu0 0.0
        %5700 = vmatpush1.msra.mxu0 0.0
        %5701 = vmatprep.subr.mxu0 0.0
        %5702 = vmatpush1.msra.mxu0 0.0
        %5703 = vmatprep.subr.mxu0 0.0
        %5704 = vmatpush1.msra.mxu0 0.0
        %5705 = vmatprep.subr.mxu0 0.0
        %5706 = vmatpush1.msra.mxu0 0.0
        %5707 = vmatprep.subr.mxu0 0.0
        %5708 = vmatpush1.msra.mxu0 0.0
        %5709 = vmatprep.subr.mxu0 0.0
        %5710 = vmatpush1.msra.mxu0 0.0
        %5711 = vmatprep.subr.mxu0 0.0
        %5712 = vmatpush1.msra.mxu0 0.0
        %5713 = vmatprep.subr.mxu0 0.0
        %5714 = vmatpush1.msra.mxu0 0.0
        %5715 = vmatprep.subr.mxu0 0.0
        %5716 = vmatpush1.msra.mxu0 0.0
        %5717 = vmatprep.subr.mxu0 0.0
        %5718 = vmatpush1.msra.mxu0 0.0
        %5719 = vmatprep.mubr.f32.mxu0 0.0
        %5720 = vmatmul.mubr.f32.gmra.mrb[0].mxu0 %v5653
        %v5721 = vpop.f32.mrb[0].mxu0
        %v5722 = vadd.f32 0.0, %v5721
        %v5723 = vpop.f32.mrb[0].mxu0
        %5724 = vdwg.mxu0
        %v5726 = vsel %vm256, %v5644, 0
        %5728 = vmatprep.subr.mxu0 0.0
        %5729 = vmatpush1.msra.mxu0 %v5646
        %5730 = vmatprep.subr.mxu0 0.0
        %5731 = vmatpush1.msra.mxu0 %v5647
        %5732 = vmatprep.subr.mxu0 0.0
        %5733 = vmatpush1.msra.mxu0 0.0
        %5734 = vmatprep.subr.mxu0 0.0
        %5735 = vmatpush1.msra.mxu0 0.0
        %5736 = vmatprep.subr.mxu0 0.0
        %5737 = vmatpush1.msra.mxu0 0.0
        %5738 = vmatprep.subr.mxu0 0.0
        %5739 = vmatpush1.msra.mxu0 0.0
        %5740 = vmatprep.subr.mxu0 0.0
        %5741 = vmatpush1.msra.mxu0 0.0
        %5742 = vmatprep.subr.mxu0 0.0
        %5743 = vmatpush1.msra.mxu0 0.0
        %5744 = vmatprep.subr.mxu0 0.0
        %5745 = vmatpush1.msra.mxu0 0.0
        %5746 = vmatprep.subr.mxu0 0.0
        %5747 = vmatpush1.msra.mxu0 0.0
        %5748 = vmatprep.subr.mxu0 0.0
        %5749 = vmatpush1.msra.mxu0 0.0
        %5750 = vmatprep.subr.mxu0 0.0
        %5751 = vmatpush1.msra.mxu0 0.0
        %5752 = vmatprep.subr.mxu0 0.0
        %5753 = vmatpush1.msra.mxu0 0.0
        %5754 = vmatprep.subr.mxu0 0.0
        %5755 = vmatpush1.msra.mxu0 0.0
        %5756 = vmatprep.subr.mxu0 0.0
        %5757 = vmatpush1.msra.mxu0 0.0
        %5758 = vmatprep.subr.mxu0 0.0
        %5759 = vmatpush1.msra.mxu0 0.0
        %5760 = vmatprep.subr.mxu0 0.0
        %5761 = vmatpush1.msra.mxu0 0.0
        %5762 = vmatprep.subr.mxu0 0.0
        %5763 = vmatpush1.msra.mxu0 0.0
        %5764 = vmatprep.subr.mxu0 0.0
        %5765 = vmatpush1.msra.mxu0 0.0
        %5766 = vmatprep.subr.mxu0 0.0
        %5767 = vmatpush1.msra.mxu0 0.0
        %5768 = vmatprep.subr.mxu0 0.0
        %5769 = vmatpush1.msra.mxu0 0.0
        %5770 = vmatprep.subr.mxu0 0.0
        %5771 = vmatpush1.msra.mxu0 0.0
        %5772 = vmatprep.subr.mxu0 0.0
        %5773 = vmatpush1.msra.mxu0 0.0
        %5774 = vmatprep.subr.mxu0 0.0
        %5775 = vmatpush1.msra.mxu0 0.0
        %5776 = vmatprep.subr.mxu0 0.0
        %5777 = vmatpush1.msra.mxu0 0.0
        %5778 = vmatprep.subr.mxu0 0.0
        %5779 = vmatpush1.msra.mxu0 0.0
        %5780 = vmatprep.subr.mxu0 0.0
        %5781 = vmatpush1.msra.mxu0 0.0
        %5782 = vmatprep.subr.mxu0 0.0
        %5783 = vmatpush1.msra.mxu0 0.0
        %5784 = vmatprep.subr.mxu0 0.0
        %5785 = vmatpush1.msra.mxu0 0.0
        %5786 = vmatprep.subr.mxu0 0.0
        %5787 = vmatpush1.msra.mxu0 0.0
        %5788 = vmatprep.subr.mxu0 0.0
        %5789 = vmatpush1.msra.mxu0 0.0
        %5790 = vmatprep.subr.mxu0 0.0
        %5791 = vmatpush1.msra.mxu0 0.0
        %5792 = vmatprep.mubr.f32.mxu0 0.0
        %5793 = vmatmul.mubr.f32.gmra.mrb[0].mxu0 %v5726
        %v5794 = vpop.f32.mrb[0].mxu0
        %v5795 = vadd.f32 %v5722, %v5794
        %v5796 = vpop.f32.mrb[0].mxu0
        %5797 = vdwg.mxu0
        %v5798 = vld [vmem:[%s403] sm:$0xff]
        %s5799 = scalar_lea.vmem [#allocation5], 928
        %v5800 = vld [vmem:[%s5799] sm:$0xff]
        %v5801 = vld [vmem:[%s5799 + $0x8] sm:$0xff]
        %v5803 = vsel %vm256, %v5798, 0
        %5805 = vmatprep.subr.mxu0 0.0
        %5806 = vmatpush1.msra.mxu0 %v5800
        %5807 = vmatprep.subr.mxu0 0.0
        %5808 = vmatpush1.msra.mxu0 %v5801
        %5809 = vmatprep.subr.mxu0 0.0
        %5810 = vmatpush1.msra.mxu0 0.0
        %5811 = vmatprep.subr.mxu0 0.0
        %5812 = vmatpush1.msra.mxu0 0.0
        %5813 = vmatprep.subr.mxu0 0.0
        %5814 = vmatpush1.msra.mxu0 0.0
        %5815 = vmatprep.subr.mxu0 0.0
        %5816 = vmatpush1.msra.mxu0 0.0
        %5817 = vmatprep.subr.mxu0 0.0
        %5818 = vmatpush1.msra.mxu0 0.0
        %5819 = vmatprep.subr.mxu0 0.0
        %5820 = vmatpush1.msra.mxu0 0.0
        %5821 = vmatprep.subr.mxu0 0.0
        %5822 = vmatpush1.msra.mxu0 0.0
        %5823 = vmatprep.subr.mxu0 0.0
        %5824 = vmatpush1.msra.mxu0 0.0
        %5825 = vmatprep.subr.mxu0 0.0
        %5826 = vmatpush1.msra.mxu0 0.0
        %5827 = vmatprep.subr.mxu0 0.0
        %5828 = vmatpush1.msra.mxu0 0.0
        %5829 = vmatprep.subr.mxu0 0.0
        %5830 = vmatpush1.msra.mxu0 0.0
        %5831 = vmatprep.subr.mxu0 0.0
        %5832 = vmatpush1.msra.mxu0 0.0
        %5833 = vmatprep.subr.mxu0 0.0
        %5834 = vmatpush1.msra.mxu0 0.0
        %5835 = vmatprep.subr.mxu0 0.0
        %5836 = vmatpush1.msra.mxu0 0.0
        %5837 = vmatprep.subr.mxu0 0.0
        %5838 = vmatpush1.msra.mxu0 0.0
        %5839 = vmatprep.subr.mxu0 0.0
        %5840 = vmatpush1.msra.mxu0 0.0
        %5841 = vmatprep.subr.mxu0 0.0
        %5842 = vmatpush1.msra.mxu0 0.0
        %5843 = vmatprep.subr.mxu0 0.0
        %5844 = vmatpush1.msra.mxu0 0.0
        %5845 = vmatprep.subr.mxu0 0.0
        %5846 = vmatpush1.msra.mxu0 0.0
        %5847 = vmatprep.subr.mxu0 0.0
        %5848 = vmatpush1.msra.mxu0 0.0
        %5849 = vmatprep.subr.mxu0 0.0
        %5850 = vmatpush1.msra.mxu0 0.0
        %5851 = vmatprep.subr.mxu0 0.0
        %5852 = vmatpush1.msra.mxu0 0.0
        %5853 = vmatprep.subr.mxu0 0.0
        %5854 = vmatpush1.msra.mxu0 0.0
        %5855 = vmatprep.subr.mxu0 0.0
        %5856 = vmatpush1.msra.mxu0 0.0
        %5857 = vmatprep.subr.mxu0 0.0
        %5858 = vmatpush1.msra.mxu0 0.0
        %5859 = vmatprep.subr.mxu0 0.0
        %5860 = vmatpush1.msra.mxu0 0.0
        %5861 = vmatprep.subr.mxu0 0.0
        %5862 = vmatpush1.msra.mxu0 0.0
        %5863 = vmatprep.subr.mxu0 0.0
        %5864 = vmatpush1.msra.mxu0 0.0
        %5865 = vmatprep.subr.mxu0 0.0
        %5866 = vmatpush1.msra.mxu0 0.0
        %5867 = vmatprep.subr.mxu0 0.0
        %5868 = vmatpush1.msra.mxu0 0.0
        %5869 = vmatprep.mubr.f32.mxu0 0.0
        %5870 = vmatmul.mubr.f32.gmra.mrb[0].mxu0 %v5803
        %v5871 = vpop.f32.mrb[0].mxu0
        %v5872 = vadd.f32 0.0, %v5871
        %v5873 = vpop.f32.mrb[0].mxu0
        %5874 = vdwg.mxu0
        %v5875 = vadd.f32 %v5795, %v5872
        %v5876 = vld [vmem:[%s482] sm:$0xff]
        %s5877 = scalar_lea.vmem [#allocation5], 944
        %v5878 = vld [vmem:[%s5877] sm:$0xff]
        %v5879 = vld [vmem:[%s5877 + $0x8] sm:$0xff]
        %v5881 = vsel %vm256, %v5876, 0
        %5883 = vmatprep.subr.mxu0 0.0
        %5884 = vmatpush1.msra.mxu0 %v5878
        %5885 = vmatprep.subr.mxu0 0.0
        %5886 = vmatpush1.msra.mxu0 %v5879
        %5887 = vmatprep.subr.mxu0 0.0
        %5888 = vmatpush1.msra.mxu0 0.0
        %5889 = vmatprep.subr.mxu0 0.0
        %5890 = vmatpush1.msra.mxu0 0.0
        %5891 = vmatprep.subr.mxu0 0.0
        %5892 = vmatpush1.msra.mxu0 0.0
        %5893 = vmatprep.subr.mxu0 0.0
        %5894 = vmatpush1.msra.mxu0 0.0
        %5895 = vmatprep.subr.mxu0 0.0
        %5896 = vmatpush1.msra.mxu0 0.0
        %5897 = vmatprep.subr.mxu0 0.0
        %5898 = vmatpush1.msra.mxu0 0.0
        %5899 = vmatprep.subr.mxu0 0.0
        %5900 = vmatpush1.msra.mxu0 0.0
        %5901 = vmatprep.subr.mxu0 0.0
        %5902 = vmatpush1.msra.mxu0 0.0
        %5903 = vmatprep.subr.mxu0 0.0
        %5904 = vmatpush1.msra.mxu0 0.0
        %5905 = vmatprep.subr.mxu0 0.0
        %5906 = vmatpush1.msra.mxu0 0.0
        %5907 = vmatprep.subr.mxu0 0.0
        %5908 = vmatpush1.msra.mxu0 0.0
        %5909 = vmatprep.subr.mxu0 0.0
        %5910 = vmatpush1.msra.mxu0 0.0
        %5911 = vmatprep.subr.mxu0 0.0
        %5912 = vmatpush1.msra.mxu0 0.0
        %5913 = vmatprep.subr.mxu0 0.0
        %5914 = vmatpush1.msra.mxu0 0.0
        %5915 = vmatprep.subr.mxu0 0.0
        %5916 = vmatpush1.msra.mxu0 0.0
        %5917 = vmatprep.subr.mxu0 0.0
        %5918 = vmatpush1.msra.mxu0 0.0
        %5919 = vmatprep.subr.mxu0 0.0
        %5920 = vmatpush1.msra.mxu0 0.0
        %5921 = vmatprep.subr.mxu0 0.0
        %5922 = vmatpush1.msra.mxu0 0.0
        %5923 = vmatprep.subr.mxu0 0.0
        %5924 = vmatpush1.msra.mxu0 0.0
        %5925 = vmatprep.subr.mxu0 0.0
        %5926 = vmatpush1.msra.mxu0 0.0
        %5927 = vmatprep.subr.mxu0 0.0
        %5928 = vmatpush1.msra.mxu0 0.0
        %5929 = vmatprep.subr.mxu0 0.0
        %5930 = vmatpush1.msra.mxu0 0.0
        %5931 = vmatprep.subr.mxu0 0.0
        %5932 = vmatpush1.msra.mxu0 0.0
        %5933 = vmatprep.subr.mxu0 0.0
        %5934 = vmatpush1.msra.mxu0 0.0
        %5935 = vmatprep.subr.mxu0 0.0
        %5936 = vmatpush1.msra.mxu0 0.0
        %5937 = vmatprep.subr.mxu0 0.0
        %5938 = vmatpush1.msra.mxu0 0.0
        %5939 = vmatprep.subr.mxu0 0.0
        %5940 = vmatpush1.msra.mxu0 0.0
        %5941 = vmatprep.subr.mxu0 0.0
        %5942 = vmatpush1.msra.mxu0 0.0
        %5943 = vmatprep.subr.mxu0 0.0
        %5944 = vmatpush1.msra.mxu0 0.0
        %5945 = vmatprep.subr.mxu0 0.0
        %5946 = vmatpush1.msra.mxu0 0.0
        %5947 = vmatprep.mubr.f32.mxu0 0.0
        %5948 = vmatmul.mubr.f32.gmra.mrb[0].mxu0 %v5881
        %v5949 = vpop.f32.mrb[0].mxu0
        %v5950 = vadd.f32 0.0, %v5949
        %v5951 = vpop.f32.mrb[0].mxu0
        %5952 = vdwg.mxu0
        %v5953 = vadd.f32 %v5875, %v5950
        %s5954 = scalar_lea.vmem [#allocation7], 14
        %v5955 = vld [vmem:[%s5954] sm:$0x1]
        %v5957 = vlaneseq
        %v5958 = vshrl.u32 %v5957, 7
        %v5959 = vsub.s32 0, %v5958
        %v5960 = vrot.slane %v5955, %v5959
        %v5962 = vadd.f32 %v5953, %v5960
        %v5964 = vcombine.high %v5962, %v5962
        %v5966 = vunpack.c.l.s4 1966171168
        %v5967 = vunpack.c.0.s8 %v5966
        %v5968 = vlaneseq
        %v5969 = vshrl.u32 %v5968, 7
        %v5970 = vsub.s32 %v5967, %v5969
        %v5971 = vrot.slane %v5962, %v5970
        %v5973 = vunpack.c.l.s4 1966171168
        %v5974 = vunpack.c.0.s8 %v5973
        %v5975 = vlaneseq
        %v5976 = vshrl.u32 %v5975, 7
        %v5977 = vsub.s32 %v5974, %v5976
        %v5978 = vrot.slane %v5964, %v5977
        %v5979 = vcombine.high %v5971, %v5971
        %v5980 = vcombine.high %v5978, %v5978
        %v5982 = vunpack.c.l.s4 1966171168
        %v5983 = vunpack.c.0.s8 %v5982
        %v5984 = vlaneseq
        %v5985 = vshrl.u32 %v5984, 7
        %v5986 = vsub.s32 %v5983, %v5985
        %v5987 = vrot.slane %v5971, %v5986
        %v5989 = vunpack.c.l.s4 1966171168
        %v5990 = vunpack.c.0.s8 %v5989
        %v5991 = vlaneseq
        %v5992 = vshrl.u32 %v5991, 7
        %v5993 = vsub.s32 %v5990, %v5992
        %v5994 = vrot.slane %v5978, %v5993
        %v5996 = vunpack.c.l.s4 1966171168
        %v5997 = vunpack.c.0.s8 %v5996
        %v5998 = vlaneseq
        %v5999 = vshrl.u32 %v5998, 7
        %v6000 = vsub.s32 %v5997, %v5999
        %v6001 = vrot.slane %v5979, %v6000
        %v6003 = vunpack.c.l.s4 1966171168
        %v6004 = vunpack.c.0.s8 %v6003
        %v6005 = vlaneseq
        %v6006 = vshrl.u32 %v6005, 7
        %v6007 = vsub.s32 %v6004, %v6006
        %v6008 = vrot.slane %v5980, %v6007
        %v6009 = vcombine.high %v5987, %v5987
        %v6010 = vcombine.high %v5994, %v5994
        %v6011 = vcombine.high %v6001, %v6001
        %v6012 = vcombine.high %v6008, %v6008
        %6021 = vst.msk [vmem:[%s5250 + $0x2] sm:$0x1] %vm627, %v5987
        %6022 = vst.msk [vmem:[%s5250 + $0x6] sm:$0x1] %vm627, %v6001
        %6023 = vst.msk [vmem:[%s5250 + $0xa] sm:$0x1] %vm627, %v6009
        %6024 = vst.msk [vmem:[%s5250 + $0xe] sm:$0x1] %vm627, %v6011
        %6025 = vst.msk [vmem:[%s5250 + $0x12] sm:$0x1] %vm627, %v5994
        %6026 = vst.msk [vmem:[%s5250 + $0x16] sm:$0x1] %vm627, %v6008
        %6027 = vst.msk [vmem:[%s5250 + $0x1a] sm:$0x1] %vm627, %v6010
        %6028 = vst.msk [vmem:[%s5250 + $0x1e] sm:$0x1] %vm627, %v6012
        %v6029 = vld [vmem:[%s216] sm:$0xff]
        %s6030 = scalar_lea.vmem [#allocation5], 960
        %v6031 = vld [vmem:[%s6030] sm:$0xff]
        %v6032 = vld [vmem:[%s6030 + $0x8] sm:$0xff]
        %v6033 = vld [vmem:[%s251] sm:$0xff]
        %s6034 = scalar_lea.vmem [#allocation5], 976
        %v6035 = vld [vmem:[%s6034] sm:$0xff]
        %v6036 = vld [vmem:[%s6034 + $0x8] sm:$0xff]
        %v6038 = vsel %vm256, %v6033, 0
        %6040 = vmatprep.subr.mxu0 0.0
        %6041 = vmatpush1.msra.mxu0 %v6035
        %6042 = vmatprep.subr.mxu0 0.0
        %6043 = vmatpush1.msra.mxu0 %v6036
        %6044 = vmatprep.subr.mxu0 0.0
        %6045 = vmatpush1.msra.mxu0 0.0
        %6046 = vmatprep.subr.mxu0 0.0
        %6047 = vmatpush1.msra.mxu0 0.0
        %6048 = vmatprep.subr.mxu0 0.0
        %6049 = vmatpush1.msra.mxu0 0.0
        %6050 = vmatprep.subr.mxu0 0.0
        %6051 = vmatpush1.msra.mxu0 0.0
        %6052 = vmatprep.subr.mxu0 0.0
        %6053 = vmatpush1.msra.mxu0 0.0
        %6054 = vmatprep.subr.mxu0 0.0
        %6055 = vmatpush1.msra.mxu0 0.0
        %6056 = vmatprep.subr.mxu0 0.0
        %6057 = vmatpush1.msra.mxu0 0.0
        %6058 = vmatprep.subr.mxu0 0.0
        %6059 = vmatpush1.msra.mxu0 0.0
        %6060 = vmatprep.subr.mxu0 0.0
        %6061 = vmatpush1.msra.mxu0 0.0
        %6062 = vmatprep.subr.mxu0 0.0
        %6063 = vmatpush1.msra.mxu0 0.0
        %6064 = vmatprep.subr.mxu0 0.0
        %6065 = vmatpush1.msra.mxu0 0.0
        %6066 = vmatprep.subr.mxu0 0.0
        %6067 = vmatpush1.msra.mxu0 0.0
        %6068 = vmatprep.subr.mxu0 0.0
        %6069 = vmatpush1.msra.mxu0 0.0
        %6070 = vmatprep.subr.mxu0 0.0
        %6071 = vmatpush1.msra.mxu0 0.0
        %6072 = vmatprep.subr.mxu0 0.0
        %6073 = vmatpush1.msra.mxu0 0.0
        %6074 = vmatprep.subr.mxu0 0.0
        %6075 = vmatpush1.msra.mxu0 0.0
        %6076 = vmatprep.subr.mxu0 0.0
        %6077 = vmatpush1.msra.mxu0 0.0
        %6078 = vmatprep.subr.mxu0 0.0
        %6079 = vmatpush1.msra.mxu0 0.0
        %6080 = vmatprep.subr.mxu0 0.0
        %6081 = vmatpush1.msra.mxu0 0.0
        %6082 = vmatprep.subr.mxu0 0.0
        %6083 = vmatpush1.msra.mxu0 0.0
        %6084 = vmatprep.subr.mxu0 0.0
        %6085 = vmatpush1.msra.mxu0 0.0
        %6086 = vmatprep.subr.mxu0 0.0
        %6087 = vmatpush1.msra.mxu0 0.0
        %6088 = vmatprep.subr.mxu0 0.0
        %6089 = vmatpush1.msra.mxu0 0.0
        %6090 = vmatprep.subr.mxu0 0.0
        %6091 = vmatpush1.msra.mxu0 0.0
        %6092 = vmatprep.subr.mxu0 0.0
        %6093 = vmatpush1.msra.mxu0 0.0
        %6094 = vmatprep.subr.mxu0 0.0
        %6095 = vmatpush1.msra.mxu0 0.0
        %6096 = vmatprep.subr.mxu0 0.0
        %6097 = vmatpush1.msra.mxu0 0.0
        %6098 = vmatprep.subr.mxu0 0.0
        %6099 = vmatpush1.msra.mxu0 0.0
        %6100 = vmatprep.subr.mxu0 0.0
        %6101 = vmatpush1.msra.mxu0 0.0
        %6102 = vmatprep.subr.mxu0 0.0
        %6103 = vmatpush1.msra.mxu0 0.0
        %6104 = vmatprep.mubr.f32.mxu0 0.0
        %6105 = vmatmul.mubr.f32.gmra.mrb[0].mxu0 %v6038
        %v6106 = vpop.f32.mrb[0].mxu0
        %v6107 = vadd.f32 0.0, %v6106
        %v6108 = vpop.f32.mrb[0].mxu0
        %6109 = vdwg.mxu0
        %v6111 = vsel %vm256, %v6029, 0
        %6113 = vmatprep.subr.mxu0 0.0
        %6114 = vmatpush1.msra.mxu0 %v6031
        %6115 = vmatprep.subr.mxu0 0.0
        %6116 = vmatpush1.msra.mxu0 %v6032
        %6117 = vmatprep.subr.mxu0 0.0
        %6118 = vmatpush1.msra.mxu0 0.0
        %6119 = vmatprep.subr.mxu0 0.0
        %6120 = vmatpush1.msra.mxu0 0.0
        %6121 = vmatprep.subr.mxu0 0.0
        %6122 = vmatpush1.msra.mxu0 0.0
        %6123 = vmatprep.subr.mxu0 0.0
        %6124 = vmatpush1.msra.mxu0 0.0
        %6125 = vmatprep.subr.mxu0 0.0
        %6126 = vmatpush1.msra.mxu0 0.0
        %6127 = vmatprep.subr.mxu0 0.0
        %6128 = vmatpush1.msra.mxu0 0.0
        %6129 = vmatprep.subr.mxu0 0.0
        %6130 = vmatpush1.msra.mxu0 0.0
        %6131 = vmatprep.subr.mxu0 0.0
        %6132 = vmatpush1.msra.mxu0 0.0
        %6133 = vmatprep.subr.mxu0 0.0
        %6134 = vmatpush1.msra.mxu0 0.0
        %6135 = vmatprep.subr.mxu0 0.0
        %6136 = vmatpush1.msra.mxu0 0.0
        %6137 = vmatprep.subr.mxu0 0.0
        %6138 = vmatpush1.msra.mxu0 0.0
        %6139 = vmatprep.subr.mxu0 0.0
        %6140 = vmatpush1.msra.mxu0 0.0
        %6141 = vmatprep.subr.mxu0 0.0
        %6142 = vmatpush1.msra.mxu0 0.0
        %6143 = vmatprep.subr.mxu0 0.0
        %6144 = vmatpush1.msra.mxu0 0.0
        %6145 = vmatprep.subr.mxu0 0.0
        %6146 = vmatpush1.msra.mxu0 0.0
        %6147 = vmatprep.subr.mxu0 0.0
        %6148 = vmatpush1.msra.mxu0 0.0
        %6149 = vmatprep.subr.mxu0 0.0
        %6150 = vmatpush1.msra.mxu0 0.0
        %6151 = vmatprep.subr.mxu0 0.0
        %6152 = vmatpush1.msra.mxu0 0.0
        %6153 = vmatprep.subr.mxu0 0.0
        %6154 = vmatpush1.msra.mxu0 0.0
        %6155 = vmatprep.subr.mxu0 0.0
        %6156 = vmatpush1.msra.mxu0 0.0
        %6157 = vmatprep.subr.mxu0 0.0
        %6158 = vmatpush1.msra.mxu0 0.0
        %6159 = vmatprep.subr.mxu0 0.0
        %6160 = vmatpush1.msra.mxu0 0.0
        %6161 = vmatprep.subr.mxu0 0.0
        %6162 = vmatpush1.msra.mxu0 0.0
        %6163 = vmatprep.subr.mxu0 0.0
        %6164 = vmatpush1.msra.mxu0 0.0
        %6165 = vmatprep.subr.mxu0 0.0
        %6166 = vmatpush1.msra.mxu0 0.0
        %6167 = vmatprep.subr.mxu0 0.0
        %6168 = vmatpush1.msra.mxu0 0.0
        %6169 = vmatprep.subr.mxu0 0.0
        %6170 = vmatpush1.msra.mxu0 0.0
        %6171 = vmatprep.subr.mxu0 0.0
        %6172 = vmatpush1.msra.mxu0 0.0
        %6173 = vmatprep.subr.mxu0 0.0
        %6174 = vmatpush1.msra.mxu0 0.0
        %6175 = vmatprep.subr.mxu0 0.0
        %6176 = vmatpush1.msra.mxu0 0.0
        %6177 = vmatprep.mubr.f32.mxu0 0.0
        %6178 = vmatmul.mubr.f32.gmra.mrb[0].mxu0 %v6111
        %v6179 = vpop.f32.mrb[0].mxu0
        %v6180 = vadd.f32 %v6107, %v6179
        %v6181 = vpop.f32.mrb[0].mxu0
        %6182 = vdwg.mxu0
        %v6183 = vld [vmem:[%s403] sm:$0xff]
        %s6184 = scalar_lea.vmem [#allocation5], 992
        %v6185 = vld [vmem:[%s6184] sm:$0xff]
        %v6186 = vld [vmem:[%s6184 + $0x8] sm:$0xff]
        %v6188 = vsel %vm256, %v6183, 0
        %6190 = vmatprep.subr.mxu0 0.0
        %6191 = vmatpush1.msra.mxu0 %v6185
        %6192 = vmatprep.subr.mxu0 0.0
        %6193 = vmatpush1.msra.mxu0 %v6186
        %6194 = vmatprep.subr.mxu0 0.0
        %6195 = vmatpush1.msra.mxu0 0.0
        %6196 = vmatprep.subr.mxu0 0.0
        %6197 = vmatpush1.msra.mxu0 0.0
        %6198 = vmatprep.subr.mxu0 0.0
        %6199 = vmatpush1.msra.mxu0 0.0
        %6200 = vmatprep.subr.mxu0 0.0
        %6201 = vmatpush1.msra.mxu0 0.0
        %6202 = vmatprep.subr.mxu0 0.0
        %6203 = vmatpush1.msra.mxu0 0.0
        %6204 = vmatprep.subr.mxu0 0.0
        %6205 = vmatpush1.msra.mxu0 0.0
        %6206 = vmatprep.subr.mxu0 0.0
        %6207 = vmatpush1.msra.mxu0 0.0
        %6208 = vmatprep.subr.mxu0 0.0
        %6209 = vmatpush1.msra.mxu0 0.0
        %6210 = vmatprep.subr.mxu0 0.0
        %6211 = vmatpush1.msra.mxu0 0.0
        %6212 = vmatprep.subr.mxu0 0.0
        %6213 = vmatpush1.msra.mxu0 0.0
        %6214 = vmatprep.subr.mxu0 0.0
        %6215 = vmatpush1.msra.mxu0 0.0
        %6216 = vmatprep.subr.mxu0 0.0
        %6217 = vmatpush1.msra.mxu0 0.0
        %6218 = vmatprep.subr.mxu0 0.0
        %6219 = vmatpush1.msra.mxu0 0.0
        %6220 = vmatprep.subr.mxu0 0.0
        %6221 = vmatpush1.msra.mxu0 0.0
        %6222 = vmatprep.subr.mxu0 0.0
        %6223 = vmatpush1.msra.mxu0 0.0
        %6224 = vmatprep.subr.mxu0 0.0
        %6225 = vmatpush1.msra.mxu0 0.0
        %6226 = vmatprep.subr.mxu0 0.0
        %6227 = vmatpush1.msra.mxu0 0.0
        %6228 = vmatprep.subr.mxu0 0.0
        %6229 = vmatpush1.msra.mxu0 0.0
        %6230 = vmatprep.subr.mxu0 0.0
        %6231 = vmatpush1.msra.mxu0 0.0
        %6232 = vmatprep.subr.mxu0 0.0
        %6233 = vmatpush1.msra.mxu0 0.0
        %6234 = vmatprep.subr.mxu0 0.0
        %6235 = vmatpush1.msra.mxu0 0.0
        %6236 = vmatprep.subr.mxu0 0.0
        %6237 = vmatpush1.msra.mxu0 0.0
        %6238 = vmatprep.subr.mxu0 0.0
        %6239 = vmatpush1.msra.mxu0 0.0
        %6240 = vmatprep.subr.mxu0 0.0
        %6241 = vmatpush1.msra.mxu0 0.0
        %6242 = vmatprep.subr.mxu0 0.0
        %6243 = vmatpush1.msra.mxu0 0.0
        %6244 = vmatprep.subr.mxu0 0.0
        %6245 = vmatpush1.msra.mxu0 0.0
        %6246 = vmatprep.subr.mxu0 0.0
        %6247 = vmatpush1.msra.mxu0 0.0
        %6248 = vmatprep.subr.mxu0 0.0
        %6249 = vmatpush1.msra.mxu0 0.0
        %6250 = vmatprep.subr.mxu0 0.0
        %6251 = vmatpush1.msra.mxu0 0.0
        %6252 = vmatprep.subr.mxu0 0.0
        %6253 = vmatpush1.msra.mxu0 0.0
        %6254 = vmatprep.mubr.f32.mxu0 0.0
        %6255 = vmatmul.mubr.f32.gmra.mrb[0].mxu0 %v6188
        %v6256 = vpop.f32.mrb[0].mxu0
        %v6257 = vadd.f32 0.0, %v6256
        %v6258 = vpop.f32.mrb[0].mxu0
        %6259 = vdwg.mxu0
        %v6260 = vadd.f32 %v6180, %v6257
        %v6261 = vld [vmem:[%s482] sm:$0xff]
        %s6262 = scalar_lea.vmem [#allocation5], 1008
        %v6263 = vld [vmem:[%s6262] sm:$0xff]
        %v6264 = vld [vmem:[%s6262 + $0x8] sm:$0xff]
        %v6266 = vsel %vm256, %v6261, 0
        %6268 = vmatprep.subr.mxu0 0.0
        %6269 = vmatpush1.msra.mxu0 %v6263
        %6270 = vmatprep.subr.mxu0 0.0
        %6271 = vmatpush1.msra.mxu0 %v6264
        %6272 = vmatprep.subr.mxu0 0.0
        %6273 = vmatpush1.msra.mxu0 0.0
        %6274 = vmatprep.subr.mxu0 0.0
        %6275 = vmatpush1.msra.mxu0 0.0
        %6276 = vmatprep.subr.mxu0 0.0
        %6277 = vmatpush1.msra.mxu0 0.0
        %6278 = vmatprep.subr.mxu0 0.0
        %6279 = vmatpush1.msra.mxu0 0.0
        %6280 = vmatprep.subr.mxu0 0.0
        %6281 = vmatpush1.msra.mxu0 0.0
        %6282 = vmatprep.subr.mxu0 0.0
        %6283 = vmatpush1.msra.mxu0 0.0
        %6284 = vmatprep.subr.mxu0 0.0
        %6285 = vmatpush1.msra.mxu0 0.0
        %6286 = vmatprep.subr.mxu0 0.0
        %6287 = vmatpush1.msra.mxu0 0.0
        %6288 = vmatprep.subr.mxu0 0.0
        %6289 = vmatpush1.msra.mxu0 0.0
        %6290 = vmatprep.subr.mxu0 0.0
        %6291 = vmatpush1.msra.mxu0 0.0
        %6292 = vmatprep.subr.mxu0 0.0
        %6293 = vmatpush1.msra.mxu0 0.0
        %6294 = vmatprep.subr.mxu0 0.0
        %6295 = vmatpush1.msra.mxu0 0.0
        %6296 = vmatprep.subr.mxu0 0.0
        %6297 = vmatpush1.msra.mxu0 0.0
        %6298 = vmatprep.subr.mxu0 0.0
        %6299 = vmatpush1.msra.mxu0 0.0
        %6300 = vmatprep.subr.mxu0 0.0
        %6301 = vmatpush1.msra.mxu0 0.0
        %6302 = vmatprep.subr.mxu0 0.0
        %6303 = vmatpush1.msra.mxu0 0.0
        %6304 = vmatprep.subr.mxu0 0.0
        %6305 = vmatpush1.msra.mxu0 0.0
        %6306 = vmatprep.subr.mxu0 0.0
        %6307 = vmatpush1.msra.mxu0 0.0
        %6308 = vmatprep.subr.mxu0 0.0
        %6309 = vmatpush1.msra.mxu0 0.0
        %6310 = vmatprep.subr.mxu0 0.0
        %6311 = vmatpush1.msra.mxu0 0.0
        %6312 = vmatprep.subr.mxu0 0.0
        %6313 = vmatpush1.msra.mxu0 0.0
        %6314 = vmatprep.subr.mxu0 0.0
        %6315 = vmatpush1.msra.mxu0 0.0
        %6316 = vmatprep.subr.mxu0 0.0
        %6317 = vmatpush1.msra.mxu0 0.0
        %6318 = vmatprep.subr.mxu0 0.0
        %6319 = vmatpush1.msra.mxu0 0.0
        %6320 = vmatprep.subr.mxu0 0.0
        %6321 = vmatpush1.msra.mxu0 0.0
        %6322 = vmatprep.subr.mxu0 0.0
        %6323 = vmatpush1.msra.mxu0 0.0
        %6324 = vmatprep.subr.mxu0 0.0
        %6325 = vmatpush1.msra.mxu0 0.0
        %6326 = vmatprep.subr.mxu0 0.0
        %6327 = vmatpush1.msra.mxu0 0.0
        %6328 = vmatprep.subr.mxu0 0.0
        %6329 = vmatpush1.msra.mxu0 0.0
        %6330 = vmatprep.subr.mxu0 0.0
        %6331 = vmatpush1.msra.mxu0 0.0
        %6332 = vmatprep.mubr.f32.mxu0 0.0
        %6333 = vmatmul.mubr.f32.gmra.mrb[0].mxu0 %v6266
        %v6334 = vpop.f32.mrb[0].mxu0
        %v6335 = vadd.f32 0.0, %v6334
        %v6336 = vpop.f32.mrb[0].mxu0
        %6337 = vdwg.mxu0
        %v6338 = vadd.f32 %v6260, %v6335
        %s6339 = scalar_lea.vmem [#allocation7], 15
        %v6340 = vld [vmem:[%s6339] sm:$0x1]
        %v6342 = vlaneseq
        %v6343 = vshrl.u32 %v6342, 7
        %v6344 = vsub.s32 0, %v6343
        %v6345 = vrot.slane %v6340, %v6344
        %v6347 = vadd.f32 %v6338, %v6345
        %v6349 = vcombine.high %v6347, %v6347
        %v6351 = vunpack.c.l.s4 1966171168
        %v6352 = vunpack.c.0.s8 %v6351
        %v6353 = vlaneseq
        %v6354 = vshrl.u32 %v6353, 7
        %v6355 = vsub.s32 %v6352, %v6354
        %v6356 = vrot.slane %v6347, %v6355
        %v6358 = vunpack.c.l.s4 1966171168
        %v6359 = vunpack.c.0.s8 %v6358
        %v6360 = vlaneseq
        %v6361 = vshrl.u32 %v6360, 7
        %v6362 = vsub.s32 %v6359, %v6361
        %v6363 = vrot.slane %v6349, %v6362
        %v6364 = vcombine.high %v6356, %v6356
        %v6365 = vcombine.high %v6363, %v6363
        %v6367 = vunpack.c.l.s4 1966171168
        %v6368 = vunpack.c.0.s8 %v6367
        %v6369 = vlaneseq
        %v6370 = vshrl.u32 %v6369, 7
        %v6371 = vsub.s32 %v6368, %v6370
        %v6372 = vrot.slane %v6356, %v6371
        %v6374 = vunpack.c.l.s4 1966171168
        %v6375 = vunpack.c.0.s8 %v6374
        %v6376 = vlaneseq
        %v6377 = vshrl.u32 %v6376, 7
        %v6378 = vsub.s32 %v6375, %v6377
        %v6379 = vrot.slane %v6363, %v6378
        %v6381 = vunpack.c.l.s4 1966171168
        %v6382 = vunpack.c.0.s8 %v6381
        %v6383 = vlaneseq
        %v6384 = vshrl.u32 %v6383, 7
        %v6385 = vsub.s32 %v6382, %v6384
        %v6386 = vrot.slane %v6364, %v6385
        %v6388 = vunpack.c.l.s4 1966171168
        %v6389 = vunpack.c.0.s8 %v6388
        %v6390 = vlaneseq
        %v6391 = vshrl.u32 %v6390, 7
        %v6392 = vsub.s32 %v6389, %v6391
        %v6393 = vrot.slane %v6365, %v6392
        %v6394 = vcombine.high %v6372, %v6372
        %v6395 = vcombine.high %v6379, %v6379
        %v6396 = vcombine.high %v6386, %v6386
        %v6397 = vcombine.high %v6393, %v6393
        %6406 = vst.msk [vmem:[%s5250 + $0x3] sm:$0x1] %vm627, %v6372
        %6407 = vst.msk [vmem:[%s5250 + $0x7] sm:$0x1] %vm627, %v6386
        %6408 = vst.msk [vmem:[%s5250 + $0xb] sm:$0x1] %vm627, %v6394
        %6409 = vst.msk [vmem:[%s5250 + $0xf] sm:$0x1] %vm627, %v6396
        %6410 = vst.msk [vmem:[%s5250 + $0x13] sm:$0x1] %vm627, %v6379
        %6411 = vst.msk [vmem:[%s5250 + $0x17] sm:$0x1] %vm627, %v6393
        %6412 = vst.msk [vmem:[%s5250 + $0x1b] sm:$0x1] %vm627, %v6395
        %6413 = vst.msk [vmem:[%s5250 + $0x1f] sm:$0x1] %vm627, %v6397
        %s6414 = sand.u32 %s124, 1
        %s6415 = scalar_lea.sflag [#allocation4], %s6414
        %s6416 = sand.u32 %s124, 1
        %s6417 = smul.addr %s6416, 128
        %s6418 = scalar_lea.vmem [#allocation8], %s6417
        // Predicated region
        $region45: #{tpu_custom_call.1} parent=31 // pred_check
          %p6419 = pneg %p134
        $region46: #{tpu_custom_call.1} parent=31 // pred_check_branch
          %6421 = sbr.rel (%p6419) target = $region48
        $region47: #{tpu_custom_call.1} parent=31 // pred_region
          #allocation10 [shape = 'u32[6]{0}', space=smem, size = 0x18, scoped, tag = 'DMA stride descriptor']
          %s6422 = smul.u32 8, %s27
          %s6424 = ssub.s32 2048, 2048
          %6425 = vsyncadd %s6415, %s6424
          %s6426 = sadd.s32 %s28, %s6422
          %s6427 = smul.addr %s26, 64
          %s6428 = sadd.s32 %s6426, %s6427
          %s6429 = smul.addr %s6428, 64
          %s6430 = scalar_lea.hbm %s3, %s6429
          %s6432 = sshll.u32 1, 14
          %s6433 = sxor.u32 4294967295, %s6432
          %s6436 = sshll.u32 7, 18
          %s6437 = sxor.u32 4294967295, %s6436
          %s6438 = sand.u32 0, %s6437
          %s6440 = sor.u32 %s6438, 0
          %s6442 = sshll.u32 3, 24
          %s6443 = sxor.u32 4294967295, %s6442
          %s6444 = sand.u32 %s6440, %s6443
          %s6446 = sor.u32 %s6444, 0
          %s6447 = sshll.u32 %s6418, 4
          %s6448 = int_to_ptr.vmem [resolvable:$true] %s6447
          %6454 = sst [smem:[#allocation10]] 512
          %s6455 = scalar_lea.smem [#allocation10], 1
          %6456 = sst [smem:[%s6455]] 1024
          %s6457 = scalar_lea.smem [#allocation10], 2
          %6458 = sst [smem:[%s6457]] 8
          %s6459 = scalar_lea.smem [#allocation10], 3
          %6460 = sst [smem:[%s6459]] 64
          %s6461 = scalar_lea.smem [#allocation10], 4
          %6462 = sst [smem:[%s6461]] 64
          %s6463 = scalar_lea.smem [#allocation10], 5
          %6464 = sst [smem:[%s6463]] 4
          %6466 = dma.general %s6448, 2048, %s6430, %s6415, [#allocation9], [#allocation10], %s6446, 0
        $region48: #{tpu_custom_call.1} parent=31 // pred_fallthru
          _
      $region32: #{tpu_custom_call.1} parent=5 // pred_fallthru
        _
      %p6467 = scmp.le.s32.totalorder 2, %s16
      // Predicated region
      $region49: #{tpu_custom_call.1} parent=5 // pred_check
        %p6468 = pneg %p6467
      $region50: #{tpu_custom_call.1} parent=5 // pred_check_branch
        %6470 = sbr.rel (%p6468) target = $region52
      $region51: #{tpu_custom_call.1} parent=5 // pred_region
        %s6471 = ssub.s32 %s16, 2
        // Predicated region
        $region53: #{tpu_custom_call.1} parent=51 // pred_check
          %p6472 = pneg %p140
        $region54: #{tpu_custom_call.1} parent=51 // pred_check_branch
          %6474 = sbr.rel (%p6472) target = $region56
        $region55: #{tpu_custom_call.1} parent=51 // pred_region
          %s6475 = sand.u32 %s125, 1
          %s6476 = scalar_lea.sflag [#allocation4], %s6475
          %s6477 = sand.u32 %s125, 1
          %s6478 = smul.addr %s6477, 128
          %s6479 = scalar_lea.vmem [#allocation8], %s6478
          %6480 = dma.done %s6476, 2048
        $region56: #{tpu_custom_call.1} parent=51 // pred_fallthru
          _
      $region52: #{tpu_custom_call.1} parent=5 // pred_fallthru
        _
    $region6: #{tpu_custom_call.1} parent=1 // loop_footer
      %s20 = sadd.s32 1, %s16
    $region7: #{tpu_custom_call.1} parent=1 // loop_footer_branch
      %15 = sbr.rel target = $region3
    $region8: #{tpu_custom_call.1} parent=1 // loop_exit
      _
    %6481 = vsyncpa [#allocation3], 1
    %s6482 = scalar_lea.sflag [#allocation3], 1
    %6483 = vsyncpa %s6482, 1
    %6484 = vsyncpa [#allocation6], 1
    %6485 = vsyncpa [#allocation4], 1
    %s6486 = scalar_lea.sflag [#allocation4], 1
    %6487 = vsyncpa %s6486, 1

</llo_original>
